<compile_context>
chip_gen: v7x
topology: tpu7x:2x2x1
jax: 0.10.0
libtpu: 0.0.40
codegen_flags: <defaults>
</compile_context>

<pallas_src>
import math
from functools import partial

import jax
import jax.numpy as jnp
import numpy as np
from jax.experimental import pallas as pl
from jax.experimental.pallas import tpu as pltpu


# ----------------------------------------------------------------------------- helpers
def _rms(t, w, b, eps=1e-6):
    # RMSNorm in f32; rsqrt goes to the EUP slot.
    r = jax.lax.rsqrt(jnp.mean(t * t, axis=-1, keepdims=True) + eps)
    return (t * r) * w + b


# ----------------------------------------------------------------------------- fused model kernel
def molformer_kernel(x_ref, an_w_ref, an_b_ref, fn_w_ref, fn_b_ref,
                     wqkv_ref, wo_ref, w13_ref, w2_ref,
                     nw_ref, nb_ref, wout_ref,
                     hw1_ref, hb1_ref, hw2_ref, hb2_ref,
                     logits_ref, hidden_ref, props_ref,
                     act_ref,
                     *, batch, seq, dim, num_heads, head_dim, hid_p):
    l = pl.program_id(0)
    bs = batch * seq
    f32 = jnp.float32
    bf16 = jnp.bfloat16

    # activation becomes VMEM-resident across the layer grid axis
    @pl.when(l == 0)
    def _init():
        act_ref[...] = x_ref[...]

    h = act_ref[...]                                                   # (B*S, D) f32

    # ---------------- attention sublayer: h += Wo(softmax(q k^T) v); scale folded into Wq
    xn = _rms(h, an_w_ref[0], an_b_ref[0]).astype(bf16)
    qkv = jnp.dot(xn, wqkv_ref[0], preferred_element_type=f32)         # (B*S, 3D), one MXU push
    q3 = qkv[:, 0 * dim:1 * dim].reshape(batch, seq, dim).astype(bf16)
    k3 = qkv[:, 1 * dim:2 * dim].reshape(batch, seq, dim).astype(bf16)
    v3 = qkv[:, 2 * dim:3 * dim].reshape(batch, seq, dim).astype(bf16)
    wo_l = wo_ref[0]                                                   # (D, D) bf16

    attn = jnp.zeros((bs, dim), f32)
    for hh in range(num_heads):                                        # static unroll over heads
        cs = slice(hh * head_dim, (hh + 1) * head_dim)
        s = jnp.einsum('bqd,bkd->bqk', q3[..., cs], k3[..., cs],
                       preferred_element_type=f32)                     # (B, S, S) f32
        s = s - jnp.max(s, axis=-1, keepdims=True)
        p = jnp.exp(s)
        p = p * pl.reciprocal(jnp.sum(p, axis=-1, keepdims=True), approx=True)
        ctx = jnp.einsum('bqk,bkd->bqd', p.astype(bf16), v3[..., cs],
                         preferred_element_type=f32)                   # (B, S, hd)
        # accumulate output projection per head -> no concat over heads
        attn = attn + jnp.dot(ctx.reshape(bs, head_dim).astype(bf16), wo_l[cs, :],
                              preferred_element_type=f32)
    h = h + attn

    # ---------------- SwiGLU FFN: h += W2( silu(W1 hn) * (V hn) )   (W1||V fused, hidden padded)
    hn = _rms(h, fn_w_ref[0], fn_b_ref[0]).astype(bf16)
    g = jnp.dot(hn, w13_ref[0], preferred_element_type=f32)            # (B*S, 2*hid_p)
    g1 = g[:, :hid_p]
    prod = (g1 * jax.nn.sigmoid(g1) * g[:, hid_p:]).astype(bf16)
    h = h + jnp.dot(prod, w2_ref[0], preferred_element_type=f32)

    act_ref[...] = h

    # ---------------- final RMSNorm + vocab head + property heads (last layer only)
    @pl.when(l == pl.num_programs(0) - 1)
    def _head():
        hidden = _rms(h, nw_ref[...], nb_ref[...])                     # (B*S, D) f32
        hidden_ref[...] = hidden
        hb = hidden.astype(bf16)
        logits_ref[...] = jnp.dot(hb, wout_ref[...], preferred_element_type=f32)

        pooled = jnp.mean(hidden.reshape(batch, seq, dim), axis=1)     # (B, D)
        h1 = jnp.dot(pooled.astype(bf16), hw1_ref[...], preferred_element_type=f32)
        h1 = jnp.maximum(h1 + hb1_ref[...], 0.0)                       # (B, 3*128) fused heads
        raw = jnp.dot(h1.astype(bf16), hw2_ref[...],
                      preferred_element_type=f32) + hb2_ref[...]       # (B, 128) lane-dense slab
        lane = jax.lax.broadcasted_iota(jnp.int32, raw.shape, 1)
        # column 0 = logp, column 1 = QED (sigmoid), column 2 = SAS
        props_ref[...] = jnp.where(lane == 1, jax.nn.sigmoid(raw), raw)


@partial(jax.jit, static_argnames=("num_heads",))
def molformer_forward(packed, input_ids, num_heads):
    B, S = input_ids.shape
    L, D, _ = packed['wqkv'].shape
    V = packed['wout'].shape[1]
    hid_p = packed['w2'].shape[1]
    hp3 = packed['hw1'].shape[1]
    PW = packed['hw2'].shape[1]
    head_dim = D // num_heads
    assert S % 8 == 0 and D % 128 == 0

    # embedding + positional encoding (gather stays outside the kernel); pad mask is a no-op
    # in the reference Attention.forward -> skipped.
    x = (packed['emb'][input_ids] + packed['pe'][None, :S, :]).reshape(B * S, D)

    kernel = partial(molformer_kernel, batch=B, seq=S, dim=D,
                     num_heads=num_heads, head_dim=head_dim, hid_p=hid_p)

    grid_spec = pltpu.PrefetchScalarGridSpec(
        num_scalar_prefetch=0,
        grid=(L,),
        in_specs=[
            pl.BlockSpec((B * S, D), lambda l: (0, 0)),              # x (fetched once)
            pl.BlockSpec((1, 1, D), lambda l: (l, 0, 0)),            # attn-norm weight
            pl.BlockSpec((1, 1, D), lambda l: (l, 0, 0)),            # attn-norm bias
            pl.BlockSpec((1, 1, D), lambda l: (l, 0, 0)),            # ffn-norm weight
            pl.BlockSpec((1, 1, D), lambda l: (l, 0, 0)),            # ffn-norm bias
            pl.BlockSpec((1, D, 3 * D), lambda l: (l, 0, 0)),        # fused Wqkv (bf16)
            pl.BlockSpec((1, D, D), lambda l: (l, 0, 0)),            # Wo (bf16)
            pl.BlockSpec((1, D, 2 * hid_p), lambda l: (l, 0, 0)),    # fused W1||V (bf16, padded)
            pl.BlockSpec((1, hid_p, D), lambda l: (l, 0, 0)),        # W2 (bf16, padded)
            pl.BlockSpec((1, D), lambda l: (0, 0)),                  # final norm weight
            pl.BlockSpec((1, D), lambda l: (0, 0)),                  # final norm bias
            pl.BlockSpec((D, V), lambda l: (0, 0)),                  # vocab head (bf16)
            pl.BlockSpec((D, hp3), lambda l: (0, 0)),                # fused heads layer-1 (bf16)
            pl.BlockSpec((1, hp3), lambda l: (0, 0)),                # fused heads bias-1
            pl.BlockSpec((hp3, PW), lambda l: (0, 0)),               # fused heads layer-2 (bf16)
            pl.BlockSpec((1, PW), lambda l: (0, 0)),                 # fused heads bias-2
        ],
        out_specs=(
            pl.BlockSpec((B * S, V), lambda l: (0, 0)),              # logits
            pl.BlockSpec((B * S, D), lambda l: (0, 0)),              # hidden state
            pl.BlockSpec((B, PW), lambda l: (0, 0)),                 # [logp, qed, sas, 0...]
        ),
        scratch_shapes=[pltpu.VMEM((B * S, D), jnp.float32)],        # resident activation
    )

    logits, hidden, props = pl.pallas_call(
        kernel,
        out_shape=(jax.ShapeDtypeStruct((B * S, V), jnp.float32),
                   jax.ShapeDtypeStruct((B * S, D), jnp.float32),
                   jax.ShapeDtypeStruct((B, PW), jnp.float32)),
        grid_spec=grid_spec,
        compiler_params=pltpu.CompilerParams(
            dimension_semantics=("arbitrary",),
            vmem_limit_bytes=32 * 1024 * 1024),
    )(x, packed['an_w'], packed['an_b'], packed['fn_w'], packed['fn_b'],
      packed['wqkv'], packed['wo'], packed['w13'], packed['w2'],
      packed['norm_w'], packed['norm_b'], packed['wout'],
      packed['hw1'], packed['hb1'], packed['hw2'], packed['hb2'])

    logits = logits.reshape(B, S, V)
    hidden = hidden.reshape(B, S, D)
    # return order matches PyTorch: (output, logp, QED, SAS, hidden_state)
    return logits, props[:, 0], props[:, 1], props[:, 2], hidden


# ----------------------------------------------------------------------------- parameters
def make_pe(d_model, max_len):
    pos = np.arange(max_len, dtype=np.float32)[:, None]
    div = np.exp(np.arange(0, d_model, 2, dtype=np.float32) * (-math.log(10000.0) / d_model))
    pe = np.zeros((max_len, d_model), np.float32)
    pe[:, 0::2] = np.sin(pos * div)
    pe[:, 1::2] = np.cos(pos * div)
    return jnp.asarray(pe)


def init_params(key, *, dim, num_heads, num_layers, vocab_size, max_seq_len):
    hidden = int(2 * (4 * dim) / 3)
    keys = iter(jax.random.split(key, 8 + 7 * num_layers + 6))

    def w(shape, scale=0.02):
        return jax.random.normal(next(keys), shape, jnp.float32) * scale

    params = {
        'dim': dim,
        'head_dim': dim // num_heads,
        'emb': jax.random.normal(next(keys), (vocab_size, dim), jnp.float32),
        'pe': make_pe(dim, max_seq_len),
        'layers': [],
        'norm_w': jnp.ones((1, dim), jnp.float32),
        'norm_b': jnp.zeros((1, dim), jnp.float32),
        'wout': w((dim, 128)),
        # prediction heads (Linear(256,128)+ReLU+Linear(128,1))
        'sas_w1': w((dim, 128)), 'sas_b1': jnp.zeros((1, 128), jnp.float32),
        'sas_w2': w((128, 1)),   'sas_b2': jnp.zeros((1, 1), jnp.float32),
        'qed_w1': w((dim, 128)), 'qed_b1': jnp.zeros((1, 128), jnp.float32),
        'qed_w2': w((128, 1)),   'qed_b2': jnp.zeros((1, 1), jnp.float32),
        'lp_w1':  w((dim, 128)), 'lp_b1': jnp.zeros((1, 128), jnp.float32),
        'lp_w2':  w((128, 1)),   'lp_b2': jnp.zeros((1, 1), jnp.float32),
    }
    params['wout'] = w((dim, 128))  # vocab head, vocab_size columns set below by caller
    for _ in range(num_layers):
        params['layers'].append({
            'an_w': jnp.ones((1, dim), jnp.float32), 'an_b': jnp.zeros((1, dim), jnp.float32),
            'wq': w((dim, dim)), 'wk': w((dim, dim)), 'wv': w((dim, dim)), 'wo': w((dim, dim)),
            'fn_w': jnp.ones((1, dim), jnp.float32), 'fn_b': jnp.zeros((1, dim), jnp.float32),
            'w1': w((dim, hidden)), 'v': w((dim, hidden)), 'w2': w((hidden, dim)),
        })
    return params


def pack_params(params):
    """Fuse / pad / stack / bf16-cast weights into the layout the fused kernel expects."""
    layers = params['layers']
    dim = params['dim']
    hd = params['head_dim']
    hid = layers[0]['w1'].shape[1]
    hid_p = ((hid + 127) // 128) * 128        # 682 -> 768, lane-dense FFN intermediates
    scale = 1.0 / math.sqrt(hd)               # power of two for hd=64 -> exact fold into Wq

    def pad_cols(m, n):
        return jnp.pad(m, ((0, 0), (0, n - m.shape[1])))

    def pad_rows(m, n):
        return jnp.pad(m, ((0, n - m.shape[0]), (0, 0)))

    wqkv = jnp.stack([jnp.concatenate([lp['wq'] * scale, lp['wk'], lp['wv']], axis=1)
                      for lp in layers]).astype(jnp.bfloat16)                       # (L, D, 3D)
    wo = jnp.stack([lp['wo'] for lp in layers]).astype(jnp.bfloat16)                # (L, D, D)
    w13 = jnp.stack([jnp.concatenate([pad_cols(lp['w1'], hid_p),
                                      pad_cols(lp['v'], hid_p)], axis=1)
                     for lp in layers]).astype(jnp.bfloat16)                        # (L, D, 2H')
    w2 = jnp.stack([pad_rows(lp['w2'], hid_p) for lp in layers]).astype(jnp.bfloat16)

    # fused SAS/QED/logp heads; output column order = [logp, qed, sas], lane-padded to 128
    mh = params['lp_w1'].shape[1]            # 128
    hw1 = jnp.concatenate([params['lp_w1'], params['qed_w1'], params['sas_w1']],
                          axis=1).astype(jnp.bfloat16)                              # (D, 3*128)
    hb1 = jnp.concatenate([params['lp_b1'], params['qed_b1'], params['sas_b1']], axis=1)
    hw2 = jnp.zeros((3 * mh, 128), jnp.float32)
    hw2 = hw2.at[0 * mh:1 * mh, 0].set(params['lp_w2'][:, 0])
    hw2 = hw2.at[1 * mh:2 * mh, 1].set(params['qed_w2'][:, 0])
    hw2 = hw2.at[2 * mh:3 * mh, 2].set(params['sas_w2'][:, 0])
    hb2 = jnp.zeros((1, 128), jnp.float32)
    hb2 = hb2.at[0, 0].set(params['lp_b2'][0, 0])
    hb2 = hb2.at[0, 1].set(params['qed_b2'][0, 0])
    hb2 = hb2.at[0, 2].set(params['sas_b2'][0, 0])

    return {
        'emb': params['emb'], 'pe': params['pe'],
        'an_w': jnp.stack([lp['an_w'] for lp in layers]),
        'an_b': jnp.stack([lp['an_b'] for lp in layers]),
        'fn_w': jnp.stack([lp['fn_w'] for lp in layers]),
        'fn_b': jnp.stack([lp['fn_b'] for lp in layers]),
        'wqkv': wqkv, 'wo': wo, 'w13': w13, 'w2': w2,
        'norm_w': params['norm_w'], 'norm_b': params['norm_b'],
        'wout': params['wout'].astype(jnp.bfloat16),
        'hw1': hw1, 'hb1': hb1, 'hw2': hw2.astype(jnp.bfloat16), 'hb2': hb2,
    }


# ----------------------------------------------------------------------------- pure-JAX reference
def reference_forward(params, input_ids, num_heads):
    head_dim = params['head_dim']
    B, S = input_ids.shape
    h = params['emb'][input_ids] + params['pe'][None, :S, :]

    def rms(t, w, b):
        r = jnp.sqrt(jnp.mean(t * t, axis=-1, keepdims=True) + 1e-6)
        return (t / r) * w + b

    for lp in params['layers']:
        xn = rms(h, lp['an_w'], lp['an_b'])
        D = xn.shape[-1]
        q = (xn @ lp['wq']).reshape(B, S, num_heads, head_dim).transpose(0, 2, 1, 3)
        k = (xn @ lp['wk']).reshape(B, S, num_heads, head_dim).transpose(0, 2, 1, 3)
        v = (xn @ lp['wv']).reshape(B, S, num_heads, head_dim).transpose(0, 2, 1, 3)
        s = jnp.einsum('bhqd,bhkd->bhqk', q, k) / math.sqrt(head_dim)
        p = jax.nn.softmax(s, axis=-1)
        o = jnp.einsum('bhqk,bhkd->bhqd', p, v).transpose(0, 2, 1, 3).reshape(B, S, D)
        h = o @ lp['wo'] + h
        hn = rms(h, lp['fn_w'], lp['fn_b'])
        h = h + (jax.nn.silu(hn @ lp['w1']) * (hn @ lp['v'])) @ lp['w2']

    hidden = rms(h, params['norm_w'], params['norm_b'])
    logits = hidden @ params['wout']
    pooled = hidden.mean(axis=1)

    def mlp(w1, b1, w2, b2):
        return jnp.maximum(pooled @ w1 + b1, 0.0) @ w2 + b2

    sas = mlp(params['sas_w1'], params['sas_b1'], params['sas_w2'], params['sas_b2'])[:, 0]
    qed = jax.nn.sigmoid(mlp(params['qed_w1'], params['qed_b1'],
                             params['qed_w2'], params['qed_b2']))[:, 0]
    logp = mlp(params['lp_w1'], params['lp_b1'], params['lp_w2'], params['lp_b2'])[:, 0]
    return logits, logp, qed, sas, hidden


# ----------------------------------------------------------------------------- main
if __name__ == "__main__":
    # dim must be 256 so the SAS/QED/logp heads' default input_dim=256 matches
    DIM, NUM_HEADS, NUM_LAYERS = 256, 4, 2
    VOCAB, MAX_SEQ_LEN = 128, 16
    BATCH, SEQ = 2, 16

    key = jax.random.PRNGKey(0)
    pkey, ikey = jax.random.split(key)
    params = init_params(pkey, dim=DIM, num_heads=NUM_HEADS, num_layers=NUM_LAYERS,
                         vocab_size=VOCAB, max_seq_len=MAX_SEQ_LEN)
    packed = pack_params(params)
    input_ids = jax.random.randint(ikey, (BATCH, SEQ), 0, VOCAB, dtype=jnp.int32)

    outs = molformer_forward(packed, input_ids, num_heads=NUM_HEADS)
    outs = jax.block_until_ready(outs)
    logits, logp, qed, sas, hidden = outs

    # sanity-check against a pure-JAX f32 reference (kernel uses bf16 weights -> loose tol)
    r_logits, r_logp, r_qed, r_sas, r_hidden = reference_forward(params, input_ids, NUM_HEADS)
    np.testing.assert_allclose(np.asarray(logits), np.asarray(r_logits), atol=3e-2, rtol=3e-2)
    np.testing.assert_allclose(np.asarray(hidden), np.asarray(r_hidden), atol=3e-2, rtol=3e-2)
    np.testing.assert_allclose(np.asarray(logp), np.asarray(r_logp), atol=3e-2, rtol=3e-2)
    np.testing.assert_allclose(np.asarray(qed), np.asarray(r_qed), atol=3e-2, rtol=3e-2)
    np.testing.assert_allclose(np.asarray(sas), np.asarray(r_sas), atol=3e-2, rtol=3e-2)

    assert logits.shape == (BATCH, SEQ, VOCAB)
    assert hidden.shape == (BATCH, SEQ, DIM)
    assert logp.shape == qed.shape == sas.shape == (BATCH,)
    print("KERNEL_OK")
</pallas_src>

<mosaic_0001>
module attributes {stable_mosaic.version = 11 : i64} {
  func.func @molformer_kernel(%arg0: i32, %arg1: memref<32x256xf32, #tpu.memory_space<vmem>>, %arg2: memref<1x1x256xf32, #tpu.memory_space<vmem>>, %arg3: memref<1x1x256xf32, #tpu.memory_space<vmem>>, %arg4: memref<1x1x256xf32, #tpu.memory_space<vmem>>, %arg5: memref<1x1x256xf32, #tpu.memory_space<vmem>>, %arg6: memref<1x256x768xbf16, #tpu.memory_space<vmem>>, %arg7: memref<1x256x256xbf16, #tpu.memory_space<vmem>>, %arg8: memref<1x256x1536xbf16, #tpu.memory_space<vmem>>, %arg9: memref<1x768x256xbf16, #tpu.memory_space<vmem>>, %arg10: memref<1x256xf32, #tpu.memory_space<vmem>>, %arg11: memref<1x256xf32, #tpu.memory_space<vmem>>, %arg12: memref<256x128xbf16, #tpu.memory_space<vmem>>, %arg13: memref<256x384xbf16, #tpu.memory_space<vmem>>, %arg14: memref<1x384xf32, #tpu.memory_space<vmem>>, %arg15: memref<384x128xbf16, #tpu.memory_space<vmem>>, %arg16: memref<1x128xf32, #tpu.memory_space<vmem>>, %arg17: memref<32x128xf32, #tpu.memory_space<vmem>>, %arg18: memref<32x256xf32, #tpu.memory_space<vmem>>, %arg19: memref<2x128xf32, #tpu.memory_space<vmem>>, %arg20: memref<32x256xf32, #tpu.memory_space<vmem>>) attributes {dimension_semantics = [#tpu.dimension_semantics<arbitrary>], iteration_bounds = array<i64: 2>, scalar_prefetch = 0 : i64, scratch_operands = 1 : i64, tpu.core_type = #tpu.core_type<tc>, window_params = [{pipeline_mode = #tpu.pipeline_mode<synchronous>, transform_indices = @transform_0, window_bounds = array<i64: 32, 256>}, {transform_indices = @transform_1, window_bounds = array<i64: 1, 1, 256>}, {transform_indices = @transform_2, window_bounds = array<i64: 1, 1, 256>}, {transform_indices = @transform_3, window_bounds = array<i64: 1, 1, 256>}, {transform_indices = @transform_4, window_bounds = array<i64: 1, 1, 256>}, {transform_indices = @transform_5, window_bounds = array<i64: 1, 256, 768>}, {transform_indices = @transform_6, window_bounds = array<i64: 1, 256, 256>}, {transform_indices = @transform_7, window_bounds = array<i64: 1, 256, 1536>}, {transform_indices = @transform_8, window_bounds = array<i64: 1, 768, 256>}, {pipeline_mode = #tpu.pipeline_mode<synchronous>, transform_indices = @transform_9, window_bounds = array<i64: 1, 256>}, {pipeline_mode = #tpu.pipeline_mode<synchronous>, transform_indices = @transform_10, window_bounds = array<i64: 1, 256>}, {pipeline_mode = #tpu.pipeline_mode<synchronous>, transform_indices = @transform_11, window_bounds = array<i64: 256, 128>}, {pipeline_mode = #tpu.pipeline_mode<synchronous>, transform_indices = @transform_12, window_bounds = array<i64: 256, 384>}, {pipeline_mode = #tpu.pipeline_mode<synchronous>, transform_indices = @transform_13, window_bounds = array<i64: 1, 384>}, {pipeline_mode = #tpu.pipeline_mode<synchronous>, transform_indices = @transform_14, window_bounds = array<i64: 384, 128>}, {pipeline_mode = #tpu.pipeline_mode<synchronous>, transform_indices = @transform_15, window_bounds = array<i64: 1, 128>}, {pipeline_mode = #tpu.pipeline_mode<synchronous>, transform_indices = @transform_16, window_bounds = array<i64: 32, 128>}, {pipeline_mode = #tpu.pipeline_mode<synchronous>, transform_indices = @transform_17, window_bounds = array<i64: 32, 256>}, {pipeline_mode = #tpu.pipeline_mode<synchronous>, transform_indices = @transform_18, window_bounds = array<i64: 2, 128>}]} {
    %c0_i32 = arith.constant 0 : i32
    %0 = arith.cmpi eq, %arg0, %c0_i32 : i32
    %1 = arith.extui %0 : i1 to i32
    %c0_i32_0 = arith.constant 0 : i32
    %2 = arith.cmpi ne, %1, %c0_i32_0 : i32
    scf.if %2 {
      %c0_59 = arith.constant 0 : index
      %c0_60 = arith.constant 0 : index
      %163 = vector.load %arg1[%c0_59, %c0_60] : memref<32x256xf32, #tpu.memory_space<vmem>>, vector<32x256xf32>
      %c0_61 = arith.constant 0 : index
      %c0_62 = arith.constant 0 : index
      %164 = vector.load %arg20[%c0_61, %c0_62] : memref<32x256xf32, #tpu.memory_space<vmem>>, vector<32x256xf32>
      tpu.vector_store %arg20[%c0_61, %c0_62], %163 {strides = array<i32>} : memref<32x256xf32, #tpu.memory_space<vmem>>, vector<32x256xf32>,
    } else {
    }
    %c0 = arith.constant 0 : index
    %c0_1 = arith.constant 0 : index
    %3 = vector.load %arg20[%c0, %c0_1] : memref<32x256xf32, #tpu.memory_space<vmem>>, vector<32x256xf32>
    %c0_2 = arith.constant 0 : index
    %c0_3 = arith.constant 0 : index
    %c0_4 = arith.constant 0 : index
    %4 = vector.load %arg2[%c0_2, %c0_3, %c0_4] : memref<1x1x256xf32, #tpu.memory_space<vmem>>, vector<1x1x256xf32>
    %5 = vector.shape_cast %4 : vector<1x1x256xf32> to vector<1x256xf32>
    %c0_5 = arith.constant 0 : index
    %c0_6 = arith.constant 0 : index
    %c0_7 = arith.constant 0 : index
    %6 = vector.load %arg3[%c0_5, %c0_6, %c0_7] : memref<1x1x256xf32, #tpu.memory_space<vmem>>, vector<1x1x256xf32>
    %7 = vector.shape_cast %6 : vector<1x1x256xf32> to vector<1x256xf32>
    %8 = arith.mulf %3, %3 : vector<32x256xf32>
    %cst = arith.constant dense<0.000000e+00> : vector<32xf32>
    %9 = vector.multi_reduction <add>, %8, %cst [1] : vector<32x256xf32> to vector<32xf32>
    %10 = vector.shape_cast %9 : vector<32xf32> to vector<32x1xf32>
    %cst_8 = arith.constant 2.560000e+02 : f32
    %11 = vector.broadcast %cst_8 : f32 to vector<32x1xf32>
    %12 = arith.divf %10, %11 : vector<32x1xf32>
    %cst_9 = arith.constant 9.99999997E-7 : f32
    %13 = vector.broadcast %cst_9 : f32 to vector<32x1xf32>
    %14 = arith.addf %12, %13 : vector<32x1xf32>
    %15 = math.rsqrt %14 : vector<32x1xf32>
    %16 = vector.broadcast %15 : vector<32x1xf32> to vector<32x256xf32>
    %17 = arith.mulf %3, %16 : vector<32x256xf32>
    %18 = vector.broadcast %5 : vector<1x256xf32> to vector<32x256xf32>
    %19 = arith.mulf %17, %18 : vector<32x256xf32>
    %20 = vector.broadcast %7 : vector<1x256xf32> to vector<32x256xf32>
    %21 = arith.addf %19, %20 : vector<32x256xf32>
    %22 = arith.truncf %21 : vector<32x256xf32> to vector<32x256xbf16>
    %c0_10 = arith.constant 0 : index
    %c0_11 = arith.constant 0 : index
    %c0_12 = arith.constant 0 : index
    %23 = vector.load %arg6[%c0_10, %c0_11, %c0_12] : memref<1x256x768xbf16, #tpu.memory_space<vmem>>, vector<1x256x768xbf16>
    %24 = vector.shape_cast %23 : vector<1x256x768xbf16> to vector<256x768xbf16>
    %cst_13 = arith.constant dense<0.000000e+00> : vector<32x768xf32>
    %25 = tpu.matmul %22, %24, %cst_13 {dimension_numbers = #tpu.dot_dimension_numbers<[1], [0], [0], [1], [0, 0, 1, 1], [], []>} : vector<32x256xbf16>, vector<256x768xbf16>, vector<32x768xf32> -> vector<32x768xf32>
    %26 = vector.extract_strided_slice %25 {offsets = [0, 0], sizes = [32, 256], strides = [1, 1]} : vector<32x768xf32> to vector<32x256xf32>
    %27 = vector.shape_cast %26 : vector<32x256xf32> to vector<2x16x256xf32>
    %28 = arith.truncf %27 : vector<2x16x256xf32> to vector<2x16x256xbf16>
    %29 = vector.extract_strided_slice %25 {offsets = [0, 256], sizes = [32, 256], strides = [1, 1]} : vector<32x768xf32> to vector<32x256xf32>
    %30 = vector.shape_cast %29 : vector<32x256xf32> to vector<2x16x256xf32>
    %31 = arith.truncf %30 : vector<2x16x256xf32> to vector<2x16x256xbf16>
    %32 = vector.extract_strided_slice %25 {offsets = [0, 512], sizes = [32, 256], strides = [1, 1]} : vector<32x768xf32> to vector<32x256xf32>
    %33 = vector.shape_cast %32 : vector<32x256xf32> to vector<2x16x256xf32>
    %34 = arith.truncf %33 : vector<2x16x256xf32> to vector<2x16x256xbf16>
    %c0_14 = arith.constant 0 : index
    %c0_15 = arith.constant 0 : index
    %c0_16 = arith.constant 0 : index
    %35 = vector.load %arg7[%c0_14, %c0_15, %c0_16] : memref<1x256x256xbf16, #tpu.memory_space<vmem>>, vector<1x256x256xbf16>
    %36 = vector.shape_cast %35 : vector<1x256x256xbf16> to vector<256x256xbf16>
    %cst_17 = arith.constant 0.000000e+00 : f32
    %37 = vector.broadcast %cst_17 : f32 to vector<32x256xf32>
    %38 = vector.extract_strided_slice %28 {offsets = [0, 0, 0], sizes = [2, 16, 64], strides = [1, 1, 1]} : vector<2x16x256xbf16> to vector<2x16x64xbf16>
    %39 = vector.extract_strided_slice %31 {offsets = [0, 0, 0], sizes = [2, 16, 64], strides = [1, 1, 1]} : vector<2x16x256xbf16> to vector<2x16x64xbf16>
    "tpu.trace_start"() <{level = 10 : i32, message = "bqd,bkd->bqk"}> : () -> ()
    %cst_18 = arith.constant dense<0.000000e+00> : vector<2x16x16xf32>
    %40 = tpu.matmul %38, %39, %cst_18 {dimension_numbers = #tpu.dot_dimension_numbers<[2], [2], [1], [1], [0, 0, 0, 1, 1, 1], [0], [0]>} : vector<2x16x64xbf16>, vector<2x16x64xbf16>, vector<2x16x16xf32> -> vector<2x16x16xf32>
    "tpu.trace_stop"() : () -> ()
    %cst_19 = arith.constant dense<0xFF800000> : vector<2x16xf32>
    %41 = vector.multi_reduction <maximumf>, %40, %cst_19 [2] : vector<2x16x16xf32> to vector<2x16xf32>
    %42 = vector.shape_cast %41 : vector<2x16xf32> to vector<2x16x1xf32>
    %43 = vector.broadcast %42 : vector<2x16x1xf32> to vector<2x16x16xf32>
    %44 = arith.subf %40, %43 : vector<2x16x16xf32>
    %45 = math.exp %44 : vector<2x16x16xf32>
    %cst_20 = arith.constant dense<0.000000e+00> : vector<2x16xf32>
    %46 = vector.multi_reduction <add>, %45, %cst_20 [2] : vector<2x16x16xf32> to vector<2x16xf32>
    %47 = vector.shape_cast %46 : vector<2x16xf32> to vector<2x16x1xf32>
    %48 = tpu.reciprocal %47 {approx = true} : vector<2x16x1xf32> -> vector<2x16x1xf32>
    %49 = vector.broadcast %48 : vector<2x16x1xf32> to vector<2x16x16xf32>
    %50 = arith.mulf %45, %49 : vector<2x16x16xf32>
    %51 = arith.truncf %50 : vector<2x16x16xf32> to vector<2x16x16xbf16>
    %52 = vector.extract_strided_slice %34 {offsets = [0, 0, 0], sizes = [2, 16, 64], strides = [1, 1, 1]} : vector<2x16x256xbf16> to vector<2x16x64xbf16>
    "tpu.trace_start"() <{level = 10 : i32, message = "bqk,bkd->bqd"}> : () -> ()
    %cst_21 = arith.constant dense<0.000000e+00> : vector<2x16x64xf32>
    %53 = tpu.matmul %51, %52, %cst_21 {dimension_numbers = #tpu.dot_dimension_numbers<[2], [1], [1], [2], [0, 0, 0, 1, 1, 2], [0], [0]>} : vector<2x16x16xbf16>, vector<2x16x64xbf16>, vector<2x16x64xf32> -> vector<2x16x64xf32>
    "tpu.trace_stop"() : () -> ()
    %54 = vector.shape_cast %53 : vector<2x16x64xf32> to vector<32x64xf32>
    %55 = arith.truncf %54 : vector<32x64xf32> to vector<32x64xbf16>
    %56 = vector.extract_strided_slice %36 {offsets = [0, 0], sizes = [64, 256], strides = [1, 1]} : vector<256x256xbf16> to vector<64x256xbf16>
    %cst_22 = arith.constant dense<0.000000e+00> : vector<32x256xf32>
    %57 = tpu.matmul %55, %56, %cst_22 {dimension_numbers = #tpu.dot_dimension_numbers<[1], [0], [0], [1], [0, 0, 1, 1], [], []>} : vector<32x64xbf16>, vector<64x256xbf16>, vector<32x256xf32> -> vector<32x256xf32>
    %58 = arith.addf %37, %57 : vector<32x256xf32>
    %59 = vector.extract_strided_slice %28 {offsets = [0, 0, 64], sizes = [2, 16, 64], strides = [1, 1, 1]} : vector<2x16x256xbf16> to vector<2x16x64xbf16>
    %60 = vector.extract_strided_slice %31 {offsets = [0, 0, 64], sizes = [2, 16, 64], strides = [1, 1, 1]} : vector<2x16x256xbf16> to vector<2x16x64xbf16>
    "tpu.trace_start"() <{level = 10 : i32, message = "bqd,bkd->bqk"}> : () -> ()
    %cst_23 = arith.constant dense<0.000000e+00> : vector<2x16x16xf32>
    %61 = tpu.matmul %59, %60, %cst_23 {dimension_numbers = #tpu.dot_dimension_numbers<[2], [2], [1], [1], [0, 0, 0, 1, 1, 1], [0], [0]>} : vector<2x16x64xbf16>, vector<2x16x64xbf16>, vector<2x16x16xf32> -> vector<2x16x16xf32>
    "tpu.trace_stop"() : () -> ()
    %cst_24 = arith.constant dense<0xFF800000> : vector<2x16xf32>
    %62 = vector.multi_reduction <maximumf>, %61, %cst_24 [2] : vector<2x16x16xf32> to vector<2x16xf32>
    %63 = vector.shape_cast %62 : vector<2x16xf32> to vector<2x16x1xf32>
    %64 = vector.broadcast %63 : vector<2x16x1xf32> to vector<2x16x16xf32>
    %65 = arith.subf %61, %64 : vector<2x16x16xf32>
    %66 = math.exp %65 : vector<2x16x16xf32>
    %cst_25 = arith.constant dense<0.000000e+00> : vector<2x16xf32>
    %67 = vector.multi_reduction <add>, %66, %cst_25 [2] : vector<2x16x16xf32> to vector<2x16xf32>
    %68 = vector.shape_cast %67 : vector<2x16xf32> to vector<2x16x1xf32>
    %69 = tpu.reciprocal %68 {approx = true} : vector<2x16x1xf32> -> vector<2x16x1xf32>
    %70 = vector.broadcast %69 : vector<2x16x1xf32> to vector<2x16x16xf32>
    %71 = arith.mulf %66, %70 : vector<2x16x16xf32>
    %72 = arith.truncf %71 : vector<2x16x16xf32> to vector<2x16x16xbf16>
    %73 = vector.extract_strided_slice %34 {offsets = [0, 0, 64], sizes = [2, 16, 64], strides = [1, 1, 1]} : vector<2x16x256xbf16> to vector<2x16x64xbf16>
    "tpu.trace_start"() <{level = 10 : i32, message = "bqk,bkd->bqd"}> : () -> ()
    %cst_26 = arith.constant dense<0.000000e+00> : vector<2x16x64xf32>
    %74 = tpu.matmul %72, %73, %cst_26 {dimension_numbers = #tpu.dot_dimension_numbers<[2], [1], [1], [2], [0, 0, 0, 1, 1, 2], [0], [0]>} : vector<2x16x16xbf16>, vector<2x16x64xbf16>, vector<2x16x64xf32> -> vector<2x16x64xf32>
    "tpu.trace_stop"() : () -> ()
    %75 = vector.shape_cast %74 : vector<2x16x64xf32> to vector<32x64xf32>
    %76 = arith.truncf %75 : vector<32x64xf32> to vector<32x64xbf16>
    %77 = vector.extract_strided_slice %36 {offsets = [64, 0], sizes = [64, 256], strides = [1, 1]} : vector<256x256xbf16> to vector<64x256xbf16>
    %cst_27 = arith.constant dense<0.000000e+00> : vector<32x256xf32>
    %78 = tpu.matmul %76, %77, %cst_27 {dimension_numbers = #tpu.dot_dimension_numbers<[1], [0], [0], [1], [0, 0, 1, 1], [], []>} : vector<32x64xbf16>, vector<64x256xbf16>, vector<32x256xf32> -> vector<32x256xf32>
    %79 = arith.addf %58, %78 : vector<32x256xf32>
    %80 = vector.extract_strided_slice %28 {offsets = [0, 0, 128], sizes = [2, 16, 64], strides = [1, 1, 1]} : vector<2x16x256xbf16> to vector<2x16x64xbf16>
    %81 = vector.extract_strided_slice %31 {offsets = [0, 0, 128], sizes = [2, 16, 64], strides = [1, 1, 1]} : vector<2x16x256xbf16> to vector<2x16x64xbf16>
    "tpu.trace_start"() <{level = 10 : i32, message = "bqd,bkd->bqk"}> : () -> ()
    %cst_28 = arith.constant dense<0.000000e+00> : vector<2x16x16xf32>
    %82 = tpu.matmul %80, %81, %cst_28 {dimension_numbers = #tpu.dot_dimension_numbers<[2], [2], [1], [1], [0, 0, 0, 1, 1, 1], [0], [0]>} : vector<2x16x64xbf16>, vector<2x16x64xbf16>, vector<2x16x16xf32> -> vector<2x16x16xf32>
    "tpu.trace_stop"() : () -> ()
    %cst_29 = arith.constant dense<0xFF800000> : vector<2x16xf32>
    %83 = vector.multi_reduction <maximumf>, %82, %cst_29 [2] : vector<2x16x16xf32> to vector<2x16xf32>
    %84 = vector.shape_cast %83 : vector<2x16xf32> to vector<2x16x1xf32>
    %85 = vector.broadcast %84 : vector<2x16x1xf32> to vector<2x16x16xf32>
    %86 = arith.subf %82, %85 : vector<2x16x16xf32>
    %87 = math.exp %86 : vector<2x16x16xf32>
    %cst_30 = arith.constant dense<0.000000e+00> : vector<2x16xf32>
    %88 = vector.multi_reduction <add>, %87, %cst_30 [2] : vector<2x16x16xf32> to vector<2x16xf32>
    %89 = vector.shape_cast %88 : vector<2x16xf32> to vector<2x16x1xf32>
    %90 = tpu.reciprocal %89 {approx = true} : vector<2x16x1xf32> -> vector<2x16x1xf32>
    %91 = vector.broadcast %90 : vector<2x16x1xf32> to vector<2x16x16xf32>
    %92 = arith.mulf %87, %91 : vector<2x16x16xf32>
    %93 = arith.truncf %92 : vector<2x16x16xf32> to vector<2x16x16xbf16>
    %94 = vector.extract_strided_slice %34 {offsets = [0, 0, 128], sizes = [2, 16, 64], strides = [1, 1, 1]} : vector<2x16x256xbf16> to vector<2x16x64xbf16>
    "tpu.trace_start"() <{level = 10 : i32, message = "bqk,bkd->bqd"}> : () -> ()
    %cst_31 = arith.constant dense<0.000000e+00> : vector<2x16x64xf32>
    %95 = tpu.matmul %93, %94, %cst_31 {dimension_numbers = #tpu.dot_dimension_numbers<[2], [1], [1], [2], [0, 0, 0, 1, 1, 2], [0], [0]>} : vector<2x16x16xbf16>, vector<2x16x64xbf16>, vector<2x16x64xf32> -> vector<2x16x64xf32>
    "tpu.trace_stop"() : () -> ()
    %96 = vector.shape_cast %95 : vector<2x16x64xf32> to vector<32x64xf32>
    %97 = arith.truncf %96 : vector<32x64xf32> to vector<32x64xbf16>
    %98 = vector.extract_strided_slice %36 {offsets = [128, 0], sizes = [64, 256], strides = [1, 1]} : vector<256x256xbf16> to vector<64x256xbf16>
    %cst_32 = arith.constant dense<0.000000e+00> : vector<32x256xf32>
    %99 = tpu.matmul %97, %98, %cst_32 {dimension_numbers = #tpu.dot_dimension_numbers<[1], [0], [0], [1], [0, 0, 1, 1], [], []>} : vector<32x64xbf16>, vector<64x256xbf16>, vector<32x256xf32> -> vector<32x256xf32>
    %100 = arith.addf %79, %99 : vector<32x256xf32>
    %101 = vector.extract_strided_slice %28 {offsets = [0, 0, 192], sizes = [2, 16, 64], strides = [1, 1, 1]} : vector<2x16x256xbf16> to vector<2x16x64xbf16>
    %102 = vector.extract_strided_slice %31 {offsets = [0, 0, 192], sizes = [2, 16, 64], strides = [1, 1, 1]} : vector<2x16x256xbf16> to vector<2x16x64xbf16>
    "tpu.trace_start"() <{level = 10 : i32, message = "bqd,bkd->bqk"}> : () -> ()
    %cst_33 = arith.constant dense<0.000000e+00> : vector<2x16x16xf32>
    %103 = tpu.matmul %101, %102, %cst_33 {dimension_numbers = #tpu.dot_dimension_numbers<[2], [2], [1], [1], [0, 0, 0, 1, 1, 1], [0], [0]>} : vector<2x16x64xbf16>, vector<2x16x64xbf16>, vector<2x16x16xf32> -> vector<2x16x16xf32>
    "tpu.trace_stop"() : () -> ()
    %cst_34 = arith.constant dense<0xFF800000> : vector<2x16xf32>
    %104 = vector.multi_reduction <maximumf>, %103, %cst_34 [2] : vector<2x16x16xf32> to vector<2x16xf32>
    %105 = vector.shape_cast %104 : vector<2x16xf32> to vector<2x16x1xf32>
    %106 = vector.broadcast %105 : vector<2x16x1xf32> to vector<2x16x16xf32>
    %107 = arith.subf %103, %106 : vector<2x16x16xf32>
    %108 = math.exp %107 : vector<2x16x16xf32>
    %cst_35 = arith.constant dense<0.000000e+00> : vector<2x16xf32>
    %109 = vector.multi_reduction <add>, %108, %cst_35 [2] : vector<2x16x16xf32> to vector<2x16xf32>
    %110 = vector.shape_cast %109 : vector<2x16xf32> to vector<2x16x1xf32>
    %111 = tpu.reciprocal %110 {approx = true} : vector<2x16x1xf32> -> vector<2x16x1xf32>
    %112 = vector.broadcast %111 : vector<2x16x1xf32> to vector<2x16x16xf32>
    %113 = arith.mulf %108, %112 : vector<2x16x16xf32>
    %114 = arith.truncf %113 : vector<2x16x16xf32> to vector<2x16x16xbf16>
    %115 = vector.extract_strided_slice %34 {offsets = [0, 0, 192], sizes = [2, 16, 64], strides = [1, 1, 1]} : vector<2x16x256xbf16> to vector<2x16x64xbf16>
    "tpu.trace_start"() <{level = 10 : i32, message = "bqk,bkd->bqd"}> : () -> ()
    %cst_36 = arith.constant dense<0.000000e+00> : vector<2x16x64xf32>
    %116 = tpu.matmul %114, %115, %cst_36 {dimension_numbers = #tpu.dot_dimension_numbers<[2], [1], [1], [2], [0, 0, 0, 1, 1, 2], [0], [0]>} : vector<2x16x16xbf16>, vector<2x16x64xbf16>, vector<2x16x64xf32> -> vector<2x16x64xf32>
    "tpu.trace_stop"() : () -> ()
    %117 = vector.shape_cast %116 : vector<2x16x64xf32> to vector<32x64xf32>
    %118 = arith.truncf %117 : vector<32x64xf32> to vector<32x64xbf16>
    %119 = vector.extract_strided_slice %36 {offsets = [192, 0], sizes = [64, 256], strides = [1, 1]} : vector<256x256xbf16> to vector<64x256xbf16>
    %cst_37 = arith.constant dense<0.000000e+00> : vector<32x256xf32>
    %120 = tpu.matmul %118, %119, %cst_37 {dimension_numbers = #tpu.dot_dimension_numbers<[1], [0], [0], [1], [0, 0, 1, 1], [], []>} : vector<32x64xbf16>, vector<64x256xbf16>, vector<32x256xf32> -> vector<32x256xf32>
    %121 = arith.addf %100, %120 : vector<32x256xf32>
    %122 = arith.addf %3, %121 : vector<32x256xf32>
    %c0_38 = arith.constant 0 : index
    %c0_39 = arith.constant 0 : index
    %c0_40 = arith.constant 0 : index
    %123 = vector.load %arg4[%c0_38, %c0_39, %c0_40] : memref<1x1x256xf32, #tpu.memory_space<vmem>>, vector<1x1x256xf32>
    %124 = vector.shape_cast %123 : vector<1x1x256xf32> to vector<1x256xf32>
    %c0_41 = arith.constant 0 : index
    %c0_42 = arith.constant 0 : index
    %c0_43 = arith.constant 0 : index
    %125 = vector.load %arg5[%c0_41, %c0_42, %c0_43] : memref<1x1x256xf32, #tpu.memory_space<vmem>>, vector<1x1x256xf32>
    %126 = vector.shape_cast %125 : vector<1x1x256xf32> to vector<1x256xf32>
    %127 = arith.mulf %122, %122 : vector<32x256xf32>
    %cst_44 = arith.constant dense<0.000000e+00> : vector<32xf32>
    %128 = vector.multi_reduction <add>, %127, %cst_44 [1] : vector<32x256xf32> to vector<32xf32>
    %129 = vector.shape_cast %128 : vector<32xf32> to vector<32x1xf32>
    %cst_45 = arith.constant 2.560000e+02 : f32
    %130 = vector.broadcast %cst_45 : f32 to vector<32x1xf32>
    %131 = arith.divf %129, %130 : vector<32x1xf32>
    %cst_46 = arith.constant 9.99999997E-7 : f32
    %132 = vector.broadcast %cst_46 : f32 to vector<32x1xf32>
    %133 = arith.addf %131, %132 : vector<32x1xf32>
    %134 = math.rsqrt %133 : vector<32x1xf32>
    %135 = vector.broadcast %134 : vector<32x1xf32> to vector<32x256xf32>
    %136 = arith.mulf %122, %135 : vector<32x256xf32>
    %137 = vector.broadcast %124 : vector<1x256xf32> to vector<32x256xf32>
    %138 = arith.mulf %136, %137 : vector<32x256xf32>
    %139 = vector.broadcast %126 : vector<1x256xf32> to vector<32x256xf32>
    %140 = arith.addf %138, %139 : vector<32x256xf32>
    %141 = arith.truncf %140 : vector<32x256xf32> to vector<32x256xbf16>
    %c0_47 = arith.constant 0 : index
    %c0_48 = arith.constant 0 : index
    %c0_49 = arith.constant 0 : index
    %142 = vector.load %arg8[%c0_47, %c0_48, %c0_49] : memref<1x256x1536xbf16, #tpu.memory_space<vmem>>, vector<1x256x1536xbf16>
    %143 = vector.shape_cast %142 : vector<1x256x1536xbf16> to vector<256x1536xbf16>
    %cst_50 = arith.constant dense<0.000000e+00> : vector<32x1536xf32>
    %144 = tpu.matmul %141, %143, %cst_50 {dimension_numbers = #tpu.dot_dimension_numbers<[1], [0], [0], [1], [0, 0, 1, 1], [], []>} : vector<32x256xbf16>, vector<256x1536xbf16>, vector<32x1536xf32> -> vector<32x1536xf32>
    %145 = vector.extract_strided_slice %144 {offsets = [0, 0], sizes = [32, 768], strides = [1, 1]} : vector<32x1536xf32> to vector<32x768xf32>
    %146 = arith.negf %145 : vector<32x768xf32>
    %147 = math.exp %146 : vector<32x768xf32>
    %cst_51 = arith.constant 1.000000e+00 : f32
    %148 = vector.broadcast %cst_51 : f32 to vector<32x768xf32>
    %149 = arith.addf %148, %147 : vector<32x768xf32>
    %150 = arith.divf %148, %149 : vector<32x768xf32>
    %151 = arith.mulf %145, %150 : vector<32x768xf32>
    %152 = vector.extract_strided_slice %144 {offsets = [0, 768], sizes = [32, 768], strides = [1, 1]} : vector<32x1536xf32> to vector<32x768xf32>
    %153 = arith.mulf %151, %152 : vector<32x768xf32>
    %154 = arith.truncf %153 : vector<32x768xf32> to vector<32x768xbf16>
    %c0_52 = arith.constant 0 : index
    %c0_53 = arith.constant 0 : index
    %c0_54 = arith.constant 0 : index
    %155 = vector.load %arg9[%c0_52, %c0_53, %c0_54] : memref<1x768x256xbf16, #tpu.memory_space<vmem>>, vector<1x768x256xbf16>
    %156 = vector.shape_cast %155 : vector<1x768x256xbf16> to vector<768x256xbf16>
    %cst_55 = arith.constant dense<0.000000e+00> : vector<32x256xf32>
    %157 = tpu.matmul %154, %156, %cst_55 {dimension_numbers = #tpu.dot_dimension_numbers<[1], [0], [0], [1], [0, 0, 1, 1], [], []>} : vector<32x768xbf16>, vector<768x256xbf16>, vector<32x256xf32> -> vector<32x256xf32>
    %158 = arith.addf %122, %157 : vector<32x256xf32>
    %c0_56 = arith.constant 0 : index
    %c0_57 = arith.constant 0 : index
    %159 = vector.load %arg20[%c0_56, %c0_57] : memref<32x256xf32, #tpu.memory_space<vmem>>, vector<32x256xf32>
    tpu.vector_store %arg20[%c0_56, %c0_57], %158 {strides = array<i32>} : memref<32x256xf32, #tpu.memory_space<vmem>>, vector<32x256xf32>,
    %c1_i32 = arith.constant 1 : i32
    %160 = arith.cmpi eq, %arg0, %c1_i32 : i32
    %161 = arith.extui %160 : i1 to i32
    %c0_i32_58 = arith.constant 0 : i32
    %162 = arith.cmpi ne, %161, %c0_i32_58 : i32
    scf.if %162 {
      %c0_59 = arith.constant 0 : index
      %c0_60 = arith.constant 0 : index
      %163 = vector.load %arg10[%c0_59, %c0_60] : memref<1x256xf32, #tpu.memory_space<vmem>>, vector<1x256xf32>
      %c0_61 = arith.constant 0 : index
      %c0_62 = arith.constant 0 : index
      %164 = vector.load %arg11[%c0_61, %c0_62] : memref<1x256xf32, #tpu.memory_space<vmem>>, vector<1x256xf32>
      %165 = arith.mulf %158, %158 : vector<32x256xf32>
      %cst_63 = arith.constant dense<0.000000e+00> : vector<32xf32>
      %166 = vector.multi_reduction <add>, %165, %cst_63 [1] : vector<32x256xf32> to vector<32xf32>
      %167 = vector.shape_cast %166 : vector<32xf32> to vector<32x1xf32>
      %cst_64 = arith.constant 2.560000e+02 : f32
      %168 = vector.broadcast %cst_64 : f32 to vector<32x1xf32>
      %169 = arith.divf %167, %168 : vector<32x1xf32>
      %cst_65 = arith.constant 9.99999997E-7 : f32
      %170 = vector.broadcast %cst_65 : f32 to vector<32x1xf32>
      %171 = arith.addf %169, %170 : vector<32x1xf32>
      %172 = math.rsqrt %171 : vector<32x1xf32>
      %173 = vector.broadcast %172 : vector<32x1xf32> to vector<32x256xf32>
      %174 = arith.mulf %158, %173 : vector<32x256xf32>
      %175 = vector.broadcast %163 : vector<1x256xf32> to vector<32x256xf32>
      %176 = arith.mulf %174, %175 : vector<32x256xf32>
      %177 = vector.broadcast %164 : vector<1x256xf32> to vector<32x256xf32>
      %178 = arith.addf %176, %177 : vector<32x256xf32>
      %c0_66 = arith.constant 0 : index
      %c0_67 = arith.constant 0 : index
      %179 = vector.load %arg18[%c0_66, %c0_67] : memref<32x256xf32, #tpu.memory_space<vmem>>, vector<32x256xf32>
      tpu.vector_store %arg18[%c0_66, %c0_67], %178 {strides = array<i32>} : memref<32x256xf32, #tpu.memory_space<vmem>>, vector<32x256xf32>,
      %180 = arith.truncf %178 : vector<32x256xf32> to vector<32x256xbf16>
      %c0_68 = arith.constant 0 : index
      %c0_69 = arith.constant 0 : index
      %181 = vector.load %arg12[%c0_68, %c0_69] : memref<256x128xbf16, #tpu.memory_space<vmem>>, vector<256x128xbf16>
      %cst_70 = arith.constant dense<0.000000e+00> : vector<32x128xf32>
      %182 = tpu.matmul %180, %181, %cst_70 {dimension_numbers = #tpu.dot_dimension_numbers<[1], [0], [0], [1], [0, 0, 1, 1], [], []>} : vector<32x256xbf16>, vector<256x128xbf16>, vector<32x128xf32> -> vector<32x128xf32>
      %c0_71 = arith.constant 0 : index
      %c0_72 = arith.constant 0 : index
      %183 = vector.load %arg17[%c0_71, %c0_72] : memref<32x128xf32, #tpu.memory_space<vmem>>, vector<32x128xf32>
      tpu.vector_store %arg17[%c0_71, %c0_72], %182 {strides = array<i32>} : memref<32x128xf32, #tpu.memory_space<vmem>>, vector<32x128xf32>,
      %184 = vector.shape_cast %178 : vector<32x256xf32> to vector<2x16x256xf32>
      %cst_73 = arith.constant dense<0.000000e+00> : vector<2x256xf32>
      %185 = vector.multi_reduction <add>, %184, %cst_73 [1] : vector<2x16x256xf32> to vector<2x256xf32>
      %cst_74 = arith.constant 1.600000e+01 : f32
      %186 = vector.broadcast %cst_74 : f32 to vector<2x256xf32>
      %187 = arith.divf %185, %186 : vector<2x256xf32>
      %188 = arith.truncf %187 : vector<2x256xf32> to vector<2x256xbf16>
      %c0_75 = arith.constant 0 : index
      %c0_76 = arith.constant 0 : index
      %189 = vector.load %arg13[%c0_75, %c0_76] : memref<256x384xbf16, #tpu.memory_space<vmem>>, vector<256x384xbf16>
      %cst_77 = arith.constant dense<0.000000e+00> : vector<2x384xf32>
      %190 = tpu.matmul %188, %189, %cst_77 {dimension_numbers = #tpu.dot_dimension_numbers<[1], [0], [0], [1], [0, 0, 1, 1], [], []>} : vector<2x256xbf16>, vector<256x384xbf16>, vector<2x384xf32> -> vector<2x384xf32>
      %c0_78 = arith.constant 0 : index
      %c0_79 = arith.constant 0 : index
      %191 = vector.load %arg14[%c0_78, %c0_79] : memref<1x384xf32, #tpu.memory_space<vmem>>, vector<1x384xf32>
      %192 = vector.broadcast %191 : vector<1x384xf32> to vector<2x384xf32>
      %193 = arith.addf %190, %192 : vector<2x384xf32>
      %cst_80 = arith.constant 0.000000e+00 : f32
      %194 = vector.broadcast %cst_80 : f32 to vector<2x384xf32>
      %195 = arith.maximumf %193, %194 : vector<2x384xf32>
      %196 = arith.truncf %195 : vector<2x384xf32> to vector<2x384xbf16>
      %c0_81 = arith.constant 0 : index
      %c0_82 = arith.constant 0 : index
      %197 = vector.load %arg15[%c0_81, %c0_82] : memref<384x128xbf16, #tpu.memory_space<vmem>>, vector<384x128xbf16>
      %cst_83 = arith.constant dense<0.000000e+00> : vector<2x128xf32>
      %198 = tpu.matmul %196, %197, %cst_83 {dimension_numbers = #tpu.dot_dimension_numbers<[1], [0], [0], [1], [0, 0, 1, 1], [], []>} : vector<2x384xbf16>, vector<384x128xbf16>, vector<2x128xf32> -> vector<2x128xf32>
      %c0_84 = arith.constant 0 : index
      %c0_85 = arith.constant 0 : index
      %199 = vector.load %arg16[%c0_84, %c0_85] : memref<1x128xf32, #tpu.memory_space<vmem>>, vector<1x128xf32>
      %200 = vector.broadcast %199 : vector<1x128xf32> to vector<2x128xf32>
      %201 = arith.addf %198, %200 : vector<2x128xf32>
      %202 = tpu.iota {dimensions = array<i32: 1>} : vector<2x128xi32>
      %c1_i32_86 = arith.constant 1 : i32
      %203 = vector.broadcast %c1_i32_86 : i32 to vector<2x128xi32>
      %204 = arith.cmpi eq, %202, %203 : vector<2x128xi32>
      %205 = arith.negf %201 : vector<2x128xf32>
      %206 = math.exp %205 : vector<2x128xf32>
      %cst_87 = arith.constant 1.000000e+00 : f32
      %207 = vector.broadcast %cst_87 : f32 to vector<2x128xf32>
      %208 = arith.addf %207, %206 : vector<2x128xf32>
      %209 = arith.divf %207, %208 : vector<2x128xf32>
      %210 = arith.select %204, %209, %201 : vector<2x128xi1>, vector<2x128xf32>
      %c0_88 = arith.constant 0 : index
      %c0_89 = arith.constant 0 : index
      %211 = vector.load %arg19[%c0_88, %c0_89] : memref<2x128xf32, #tpu.memory_space<vmem>>, vector<2x128xf32>
      tpu.vector_store %arg19[%c0_88, %c0_89], %210 {strides = array<i32>} : memref<2x128xf32, #tpu.memory_space<vmem>>, vector<2x128xf32>,
    } else {
    }
    return
  }
  func.func @transform_0(%arg0: i32) -> (i32, i32) {
    %c0_i32 = arith.constant 0 : i32
    %c0_i32_0 = arith.constant 0 : i32
    %c0_i32_1 = arith.constant 0 : i32
    return %c0_i32, %c0_i32_0 : i32, i32
  }
  func.func @transform_1(%arg0: i32) -> (i32, i32, i32) {
    %c0_i32 = arith.constant 0 : i32
    %c0_i32_0 = arith.constant 0 : i32
    %c0_i32_1 = arith.constant 0 : i32
    return %arg0, %c0_i32, %c0_i32_0 : i32, i32, i32
  }
  func.func @transform_2(%arg0: i32) -> (i32, i32, i32) {
    %c0_i32 = arith.constant 0 : i32
    %c0_i32_0 = arith.constant 0 : i32
    %c0_i32_1 = arith.constant 0 : i32
    return %arg0, %c0_i32, %c0_i32_0 : i32, i32, i32
  }
  func.func @transform_3(%arg0: i32) -> (i32, i32, i32) {
    %c0_i32 = arith.constant 0 : i32
    %c0_i32_0 = arith.constant 0 : i32
    %c0_i32_1 = arith.constant 0 : i32
    return %arg0, %c0_i32, %c0_i32_0 : i32, i32, i32
  }
  func.func @transform_4(%arg0: i32) -> (i32, i32, i32) {
    %c0_i32 = arith.constant 0 : i32
    %c0_i32_0 = arith.constant 0 : i32
    %c0_i32_1 = arith.constant 0 : i32
    return %arg0, %c0_i32, %c0_i32_0 : i32, i32, i32
  }
  func.func @transform_5(%arg0: i32) -> (i32, i32, i32) {
    %c0_i32 = arith.constant 0 : i32
    %c0_i32_0 = arith.constant 0 : i32
    %c0_i32_1 = arith.constant 0 : i32
    return %arg0, %c0_i32, %c0_i32_0 : i32, i32, i32
  }
  func.func @transform_6(%arg0: i32) -> (i32, i32, i32) {
    %c0_i32 = arith.constant 0 : i32
    %c0_i32_0 = arith.constant 0 : i32
    %c0_i32_1 = arith.constant 0 : i32
    return %arg0, %c0_i32, %c0_i32_0 : i32, i32, i32
  }
  func.func @transform_7(%arg0: i32) -> (i32, i32, i32) {
    %c0_i32 = arith.constant 0 : i32
    %c0_i32_0 = arith.constant 0 : i32
    %c0_i32_1 = arith.constant 0 : i32
    return %arg0, %c0_i32, %c0_i32_0 : i32, i32, i32
  }
  func.func @transform_8(%arg0: i32) -> (i32, i32, i32) {
    %c0_i32 = arith.constant 0 : i32
    %c0_i32_0 = arith.constant 0 : i32
    %c0_i32_1 = arith.constant 0 : i32
    return %arg0, %c0_i32, %c0_i32_0 : i32, i32, i32
  }
  func.func @transform_9(%arg0: i32) -> (i32, i32) {
    %c0_i32 = arith.constant 0 : i32
    %c0_i32_0 = arith.constant 0 : i32
    %c0_i32_1 = arith.constant 0 : i32
    return %c0_i32, %c0_i32_0 : i32, i32
  }
  func.func @transform_10(%arg0: i32) -> (i32, i32) {
    %c0_i32 = arith.constant 0 : i32
    %c0_i32_0 = arith.constant 0 : i32
    %c0_i32_1 = arith.constant 0 : i32
    return %c0_i32, %c0_i32_0 : i32, i32
  }
  func.func @transform_11(%arg0: i32) -> (i32, i32) {
    %c0_i32 = arith.constant 0 : i32
    %c0_i32_0 = arith.constant 0 : i32
    %c0_i32_1 = arith.constant 0 : i32
    return %c0_i32, %c0_i32_0 : i32, i32
  }
  func.func @transform_12(%arg0: i32) -> (i32, i32) {
    %c0_i32 = arith.constant 0 : i32
    %c0_i32_0 = arith.constant 0 : i32
    %c0_i32_1 = arith.constant 0 : i32
    return %c0_i32, %c0_i32_0 : i32, i32
  }
  func.func @transform_13(%arg0: i32) -> (i32, i32) {
    %c0_i32 = arith.constant 0 : i32
    %c0_i32_0 = arith.constant 0 : i32
    %c0_i32_1 = arith.constant 0 : i32
    return %c0_i32, %c0_i32_0 : i32, i32
  }
  func.func @transform_14(%arg0: i32) -> (i32, i32) {
    %c0_i32 = arith.constant 0 : i32
    %c0_i32_0 = arith.constant 0 : i32
    %c0_i32_1 = arith.constant 0 : i32
    return %c0_i32, %c0_i32_0 : i32, i32
  }
  func.func @transform_15(%arg0: i32) -> (i32, i32) {
    %c0_i32 = arith.constant 0 : i32
    %c0_i32_0 = arith.constant 0 : i32
    %c0_i32_1 = arith.constant 0 : i32
    return %c0_i32, %c0_i32_0 : i32, i32
  }
  func.func @transform_16(%arg0: i32) -> (i32, i32) {
    %c0_i32 = arith.constant 0 : i32
    %c0_i32_0 = arith.constant 0 : i32
    %c0_i32_1 = arith.constant 0 : i32
    return %c0_i32, %c0_i32_0 : i32, i32
  }
  func.func @transform_17(%arg0: i32) -> (i32, i32) {
    %c0_i32 = arith.constant 0 : i32
    %c0_i32_0 = arith.constant 0 : i32
    %c0_i32_1 = arith.constant 0 : i32
    return %c0_i32, %c0_i32_0 : i32, i32
  }
  func.func @transform_18(%arg0: i32) -> (i32, i32) {
    %c0_i32 = arith.constant 0 : i32
    %c0_i32_0 = arith.constant 0 : i32
    %c0_i32_1 = arith.constant 0 : i32
    return %c0_i32, %c0_i32_0 : i32, i32
  }
}

</mosaic_0001>

<llo_original>
// kernel: molformer_forward.1
$region0: #{molformer_forward.1}
  #allocation0 [shape = 'u32[]', space=smem, size = 0x4, offset = 0x4, fixed_abs, tag = 'smem constant byte address 0x4 - core index']
  #allocation1 [shape = 'u32[144,128]{1,0:T(1,128)}', space=vmem, size = 0x12000, scoped, tag = 'internal scratch']
  #allocation2 [shape = 'f32[32,256]{1,0:T(8,128)}', space=vmem, size = 0x8000, scoped, tag = 'scratch operand']
  %s0 = inlined_call_operand.vmem [shape: f32[32,256], index: 0, kind: input, shape index: {}]
  %s1 = inlined_call_operand.hbm [shape: f32[2,1,256], index: 1, kind: input, shape index: {}]
  %s2 = inlined_call_operand.hbm [shape: f32[2,1,256], index: 2, kind: input, shape index: {}]
  %s3 = inlined_call_operand.hbm [shape: f32[2,1,256], index: 3, kind: input, shape index: {}]
  %s4 = inlined_call_operand.hbm [shape: f32[2,1,256], index: 4, kind: input, shape index: {}]
  %s5 = inlined_call_operand.hbm [shape: bf16[2,256,768], index: 5, kind: input, shape index: {}]
  %s6 = inlined_call_operand.hbm [shape: bf16[2,256,256], index: 6, kind: input, shape index: {}]
  %s7 = inlined_call_operand.hbm [shape: bf16[2,256,1536], index: 7, kind: input, shape index: {}]
  %s8 = inlined_call_operand.hbm [shape: bf16[2,768,256], index: 8, kind: input, shape index: {}]
  %s9 = inlined_call_operand.hbm [shape: f32[1,256], index: 9, kind: input, shape index: {}]
  %s10 = inlined_call_operand.hbm [shape: f32[1,256], index: 10, kind: input, shape index: {}]
  %s11 = inlined_call_operand.hbm [shape: bf16[256,128], index: 11, kind: input, shape index: {}]
  %s12 = inlined_call_operand.hbm [shape: bf16[256,384], index: 12, kind: input, shape index: {}]
  %s13 = inlined_call_operand.hbm [shape: f32[1,384], index: 13, kind: input, shape index: {}]
  %s14 = inlined_call_operand.hbm [shape: bf16[384,128], index: 14, kind: input, shape index: {}]
  %s15 = inlined_call_operand.hbm [shape: f32[1,128], index: 15, kind: input, shape index: {}]
  %s16 = inlined_call_operand.hbm [shape: f32[32,128], index: 16, kind: output, shape index: {0}]
  %s17 = inlined_call_operand.hbm [shape: f32[32,256], index: 17, kind: output, shape index: {1}]
  %s18 = inlined_call_operand.vmem [shape: f32[2,128], index: 18, kind: output, shape index: {2}]
  %19 = xla_tuple %s16, %s17, %s18
  %s20 = sld [smem:[#allocation0]]
  $region181: #{molformer_forward.1} parent=0
    _
  %s22 = ssub.s32 1, %s20
  %s23 = scalar_select 0, %s22, %s20
  $region1: #{molformer_forward.1} parent=0
    #allocation3 [shape = 'u8[2048]{0}', space=vmem, size = 0x800, scoped, tag = 'input window, operand 1']
    #allocation4 [shape = 's32[2]{0}', space=sflag, size = 0x8, scoped, tag = 'scoped memory for molformer_forward.1']
    #allocation5 [shape = 's32[2]{0}', space=sflag, size = 0x8, scoped, tag = 'scoped memory for molformer_forward.1']
    #allocation6 [shape = 'u8[2048]{0}', space=vmem, size = 0x800, scoped, tag = 'input window, operand 2']
    #allocation7 [shape = 's32[2]{0}', space=sflag, size = 0x8, scoped, tag = 'scoped memory for molformer_forward.1']
    #allocation8 [shape = 'u8[2048]{0}', space=vmem, size = 0x800, scoped, tag = 'input window, operand 3']
    #allocation9 [shape = 'u8[2048]{0}', space=vmem, size = 0x800, scoped, tag = 'input window, operand 4']
    #allocation10 [shape = 's32[2]{0}', space=sflag, size = 0x8, scoped, tag = 'scoped memory for molformer_forward.1']
    #allocation11 [shape = 'u8[786432]{0}', space=vmem, size = 0xc0000, scoped, tag = 'input window, operand 5']
    #allocation12 [shape = 'u8[262144]{0}', space=vmem, size = 0x40000, scoped, tag = 'input window, operand 6']
    #allocation13 [shape = 's32[2]{0}', space=sflag, size = 0x8, scoped, tag = 'scoped memory for molformer_forward.1']
    #allocation14 [shape = 'u8[1572864]{0}', space=vmem, size = 0x180000, scoped, tag = 'input window, operand 7']
    #allocation15 [shape = 'u8[786432]{0}', space=vmem, size = 0xc0000, scoped, tag = 'input window, operand 8']
    #allocation16 [shape = 's32[2]{0}', space=sflag, size = 0x8, scoped, tag = 'scoped memory for molformer_forward.1']
    #allocation17 [shape = 'u8[1024]{0}', space=vmem, size = 0x400, scoped, tag = 'input window, operand 9, single buffered']
    #allocation18 [shape = 'u8[1024]{0}', space=vmem, size = 0x400, scoped, tag = 'input window, operand 10, single buffered']
    #allocation19 [shape = 's32[1]{0}', space=sflag, size = 0x4, scoped, tag = 'scoped memory for molformer_forward.1']
    #allocation20 [shape = 'u8[65536]{0}', space=vmem, size = 0x10000, scoped, tag = 'input window, operand 11, single buffered']
    #allocation21 [shape = 'u8[196608]{0}', space=vmem, size = 0x30000, scoped, tag = 'input window, operand 12, single buffered']
    #allocation22 [shape = 's32[1]{0}', space=sflag, size = 0x4, scoped, tag = 'scoped memory for molformer_forward.1']
    #allocation23 [shape = 'u8[1536]{0}', space=vmem, size = 0x800, scoped, tag = 'input window, operand 13, single buffered']
    #allocation24 [shape = 'u8[98304]{0}', space=vmem, size = 0x18000, scoped, tag = 'input window, operand 14, single buffered']
    #allocation25 [shape = 's32[1]{0}', space=sflag, size = 0x4, scoped, tag = 'scoped memory for molformer_forward.1']
    #allocation26 [shape = 'u8[512]{0}', space=vmem, size = 0x400, scoped, tag = 'input window, operand 15, single buffered']
    #allocation27 [shape = 'u8[16384]{0}', space=vmem, size = 0x4000, scoped, tag = 'output window, operand 0, single buffered']
    #allocation28 [shape = 'u8[32768]{0}', space=vmem, size = 0x8000, scoped, tag = 'output window, operand 1, single buffered']
    #allocation29 [shape = 's32[1]{0}', space=sflag, size = 0x4, scoped, tag = 'scoped memory for molformer_forward.1']
    %24 = vsyncpa [#allocation4], 0
    %s25 = scalar_lea.sflag [#allocation4], 1
    %26 = vsyncpa %s25, 0
    %27 = vsyncpa [#allocation7], 0
    %s28 = scalar_lea.sflag [#allocation7], 1
    %29 = vsyncpa %s28, 0
    %30 = vsyncpa [#allocation10], 0
    %s31 = scalar_lea.sflag [#allocation10], 1
    %32 = vsyncpa %s31, 0
    %33 = vsyncpa [#allocation13], 0
    %s34 = scalar_lea.sflag [#allocation13], 1
    %35 = vsyncpa %s34, 0
    %36 = vsyncpa [#allocation16], 0
    %s37 = scalar_lea.sflag [#allocation16], 1
    %38 = vsyncpa %s37, 0
    %39 = vsyncpa [#allocation19], 0
    %40 = vsyncpa [#allocation22], 0
    %41 = vsyncpa [#allocation25], 0
    %42 = vsyncpa [#allocation5], 0
    %43 = vsyncpa [#allocation29], 0
    loop: start=0, step=1, limit=4
    $region2: #{molformer_forward.1} parent=1 // loop_pre_header
      _
    $region3: #{molformer_forward.1} parent=1 // loop_header
      %s45 = sphi 0, %s49
      %p46 = scmp.ge.s32.totalorder %s45, 4
      %s53 = sphi 0, %s53
      %s55 = sphi 0, %s53
      %s56 = sphi 0, %s55
      %s70 = sphi 0, %s56
      %s76 = sphi 0, %s78
      %s79 = sphi 0, %s76
      %s80 = sphi 0, %s79
      %s96 = sphi 0, %s80
      %s102 = sphi 0, %s104
      %s105 = sphi 0, %s102
      %s106 = sphi 0, %s105
      %s122 = sphi 0, %s106
      %s128 = sphi 0, %s130
      %s131 = sphi 0, %s128
      %s132 = sphi 0, %s131
      %s148 = sphi 0, %s132
      %s154 = sphi 0, %s156
      %s157 = sphi 0, %s154
      %s158 = sphi 0, %s157
      %s174 = sphi 0, %s158
      %s180 = sphi 0, %s182
      %s183 = sphi 0, %s180
      %s184 = sphi 0, %s183
      %s200 = sphi 0, %s184
      %s206 = sphi 0, %s208
      %s209 = sphi 0, %s206
      %s210 = sphi 0, %s209
      %s226 = sphi 0, %s210
      %s232 = sphi 0, %s234
      %s235 = sphi 0, %s232
      %s236 = sphi 0, %s235
      %s252 = sphi 0, %s236
      %s258 = sphi 0, %s260
      %s261 = sphi 0, %s258
      %s262 = sphi 0, %s261
      %s278 = sphi 0, %s262
      %s282 = sphi 0, %s282
      %s284 = sphi 0, %s282
      %s285 = sphi 0, %s284
      %s299 = sphi 0, %s285
      %s303 = sphi 0, %s303
      %s305 = sphi 0, %s303
      %s306 = sphi 0, %s305
      %s320 = sphi 0, %s306
      %s324 = sphi 0, %s324
      %s326 = sphi 0, %s324
      %s327 = sphi 0, %s326
      %s341 = sphi 0, %s327
      %s345 = sphi 0, %s345
      %s347 = sphi 0, %s345
      %s348 = sphi 0, %s347
      %s362 = sphi 0, %s348
      %s366 = sphi 0, %s366
      %s368 = sphi 0, %s366
      %s369 = sphi 0, %s368
      %s383 = sphi 0, %s369
      %s387 = sphi 0, %s387
      %s389 = sphi 0, %s387
      %s390 = sphi 0, %s389
      %s404 = sphi 0, %s390
      %s408 = sphi 0, %s408
      %s410 = sphi 0, %s408
      %s411 = sphi 0, %s410
      %s425 = sphi 0, %s411
      %s429 = sphi 0, %s429
      %s431 = sphi 0, %s429
      %s432 = sphi 0, %s431
      %s446 = sphi 0, %s432
      %s450 = sphi 0, %s450
      %s452 = sphi 0, %s450
      %s453 = sphi 0, %s452
      %s467 = sphi 0, %s453
      %s471 = sphi 0, %s471
      %s473 = sphi 0, %s471
      %s474 = sphi 0, %s473
      %s488 = sphi 0, %s474
    $region4: #{molformer_forward.1} parent=1 // loop_header_branch
      %48 = sbr.rel (%p46) target = $region8
    $region5: #{molformer_forward.1} parent=1 // loop_body
      %s50 = ssub.s32 %s45, 1
      %s51 = ssub.s32 %s45, 2
      %s52 = sadd.s32 %s45, 1
      %s54 = sadd.s32 %s53, 1
      %p57 = scmp.eq.s32.totalorder %s45, 1
      %p58 = scmp.ne.s32.totalorder %s53, %s55
      %p59 = scmp.eq.s32.totalorder %s45, 0
      %p60 = por %p58, %p59
      %p61 = scmp.ne.s32.totalorder %s53, %s55
      %p62 = scmp.eq.s32.totalorder %s50, 1
      %p63 = por %p61, %p62
      %p64 = scmp.ne.s32.totalorder %s55, %s56
      %p65 = scmp.eq.s32.totalorder %s50, 0
      %p66 = por %p64, %p65
      %p67 = scmp.ne.s32.totalorder %s55, %s56
      %p68 = scmp.eq.s32.totalorder %s51, 1
      %p69 = por %p67, %p68
      %p71 = scmp.ne.s32.totalorder %s56, %s70
      %p72 = scmp.eq.s32.totalorder %s51, 0
      %p73 = por %p71, %p72
      %s74 = ssub.s32 %s45, %s52
      %p75 = scmp.eq.s32.totalorder %s74, 0
      %s77 = sadd.s32 %s76, 1
      %s78 = scalar_select %p75, %s76, %s77
      %p81 = pneg %p75
      %p82 = scmp.eq.s32.totalorder %s45, 1
      %p83 = por %p81, %p82
      %p84 = scmp.ne.s32.totalorder %s76, %s79
      %p85 = scmp.eq.s32.totalorder %s45, 0
      %p86 = por %p84, %p85
      %p87 = scmp.ne.s32.totalorder %s76, %s79
      %p88 = scmp.eq.s32.totalorder %s50, 1
      %p89 = por %p87, %p88
      %p90 = scmp.ne.s32.totalorder %s79, %s80
      %p91 = scmp.eq.s32.totalorder %s50, 0
      %p92 = por %p90, %p91
      %p93 = scmp.ne.s32.totalorder %s79, %s80
      %p94 = scmp.eq.s32.totalorder %s51, 1
      %p95 = por %p93, %p94
      %p97 = scmp.ne.s32.totalorder %s80, %s96
      %p98 = scmp.eq.s32.totalorder %s51, 0
      %p99 = por %p97, %p98
      %s100 = ssub.s32 %s45, %s52
      %p101 = scmp.eq.s32.totalorder %s100, 0
      %s103 = sadd.s32 %s102, 1
      %s104 = scalar_select %p101, %s102, %s103
      %p107 = pneg %p101
      %p108 = scmp.eq.s32.totalorder %s45, 1
      %p109 = por %p107, %p108
      %p110 = scmp.ne.s32.totalorder %s102, %s105
      %p111 = scmp.eq.s32.totalorder %s45, 0
      %p112 = por %p110, %p111
      %p113 = scmp.ne.s32.totalorder %s102, %s105
      %p114 = scmp.eq.s32.totalorder %s50, 1
      %p115 = por %p113, %p114
      %p116 = scmp.ne.s32.totalorder %s105, %s106
      %p117 = scmp.eq.s32.totalorder %s50, 0
      %p118 = por %p116, %p117
      %p119 = scmp.ne.s32.totalorder %s105, %s106
      %p120 = scmp.eq.s32.totalorder %s51, 1
      %p121 = por %p119, %p120
      %p123 = scmp.ne.s32.totalorder %s106, %s122
      %p124 = scmp.eq.s32.totalorder %s51, 0
      %p125 = por %p123, %p124
      %s126 = ssub.s32 %s45, %s52
      %p127 = scmp.eq.s32.totalorder %s126, 0
      %s129 = sadd.s32 %s128, 1
      %s130 = scalar_select %p127, %s128, %s129
      %p133 = pneg %p127
      %p134 = scmp.eq.s32.totalorder %s45, 1
      %p135 = por %p133, %p134
      %p136 = scmp.ne.s32.totalorder %s128, %s131
      %p137 = scmp.eq.s32.totalorder %s45, 0
      %p138 = por %p136, %p137
      %p139 = scmp.ne.s32.totalorder %s128, %s131
      %p140 = scmp.eq.s32.totalorder %s50, 1
      %p141 = por %p139, %p140
      %p142 = scmp.ne.s32.totalorder %s131, %s132
      %p143 = scmp.eq.s32.totalorder %s50, 0
      %p144 = por %p142, %p143
      %p145 = scmp.ne.s32.totalorder %s131, %s132
      %p146 = scmp.eq.s32.totalorder %s51, 1
      %p147 = por %p145, %p146
      %p149 = scmp.ne.s32.totalorder %s132, %s148
      %p150 = scmp.eq.s32.totalorder %s51, 0
      %p151 = por %p149, %p150
      %s152 = ssub.s32 %s45, %s52
      %p153 = scmp.eq.s32.totalorder %s152, 0
      %s155 = sadd.s32 %s154, 1
      %s156 = scalar_select %p153, %s154, %s155
      %p159 = pneg %p153
      %p160 = scmp.eq.s32.totalorder %s45, 1
      %p161 = por %p159, %p160
      %p162 = scmp.ne.s32.totalorder %s154, %s157
      %p163 = scmp.eq.s32.totalorder %s45, 0
      %p164 = por %p162, %p163
      %p165 = scmp.ne.s32.totalorder %s154, %s157
      %p166 = scmp.eq.s32.totalorder %s50, 1
      %p167 = por %p165, %p166
      %p168 = scmp.ne.s32.totalorder %s157, %s158
      %p169 = scmp.eq.s32.totalorder %s50, 0
      %p170 = por %p168, %p169
      %p171 = scmp.ne.s32.totalorder %s157, %s158
      %p172 = scmp.eq.s32.totalorder %s51, 1
      %p173 = por %p171, %p172
      %p175 = scmp.ne.s32.totalorder %s158, %s174
      %p176 = scmp.eq.s32.totalorder %s51, 0
      %p177 = por %p175, %p176
      %s178 = ssub.s32 %s45, %s52
      %p179 = scmp.eq.s32.totalorder %s178, 0
      %s181 = sadd.s32 %s180, 1
      %s182 = scalar_select %p179, %s180, %s181
      %p185 = pneg %p179
      %p186 = scmp.eq.s32.totalorder %s45, 1
      %p187 = por %p185, %p186
      %p188 = scmp.ne.s32.totalorder %s180, %s183
      %p189 = scmp.eq.s32.totalorder %s45, 0
      %p190 = por %p188, %p189
      %p191 = scmp.ne.s32.totalorder %s180, %s183
      %p192 = scmp.eq.s32.totalorder %s50, 1
      %p193 = por %p191, %p192
      %p194 = scmp.ne.s32.totalorder %s183, %s184
      %p195 = scmp.eq.s32.totalorder %s50, 0
      %p196 = por %p194, %p195
      %p197 = scmp.ne.s32.totalorder %s183, %s184
      %p198 = scmp.eq.s32.totalorder %s51, 1
      %p199 = por %p197, %p198
      %p201 = scmp.ne.s32.totalorder %s184, %s200
      %p202 = scmp.eq.s32.totalorder %s51, 0
      %p203 = por %p201, %p202
      %s204 = ssub.s32 %s45, %s52
      %p205 = scmp.eq.s32.totalorder %s204, 0
      %s207 = sadd.s32 %s206, 1
      %s208 = scalar_select %p205, %s206, %s207
      %p211 = pneg %p205
      %p212 = scmp.eq.s32.totalorder %s45, 1
      %p213 = por %p211, %p212
      %p214 = scmp.ne.s32.totalorder %s206, %s209
      %p215 = scmp.eq.s32.totalorder %s45, 0
      %p216 = por %p214, %p215
      %p217 = scmp.ne.s32.totalorder %s206, %s209
      %p218 = scmp.eq.s32.totalorder %s50, 1
      %p219 = por %p217, %p218
      %p220 = scmp.ne.s32.totalorder %s209, %s210
      %p221 = scmp.eq.s32.totalorder %s50, 0
      %p222 = por %p220, %p221
      %p223 = scmp.ne.s32.totalorder %s209, %s210
      %p224 = scmp.eq.s32.totalorder %s51, 1
      %p225 = por %p223, %p224
      %p227 = scmp.ne.s32.totalorder %s210, %s226
      %p228 = scmp.eq.s32.totalorder %s51, 0
      %p229 = por %p227, %p228
      %s230 = ssub.s32 %s45, %s52
      %p231 = scmp.eq.s32.totalorder %s230, 0
      %s233 = sadd.s32 %s232, 1
      %s234 = scalar_select %p231, %s232, %s233
      %p237 = pneg %p231
      %p238 = scmp.eq.s32.totalorder %s45, 1
      %p239 = por %p237, %p238
      %p240 = scmp.ne.s32.totalorder %s232, %s235
      %p241 = scmp.eq.s32.totalorder %s45, 0
      %p242 = por %p240, %p241
      %p243 = scmp.ne.s32.totalorder %s232, %s235
      %p244 = scmp.eq.s32.totalorder %s50, 1
      %p245 = por %p243, %p244
      %p246 = scmp.ne.s32.totalorder %s235, %s236
      %p247 = scmp.eq.s32.totalorder %s50, 0
      %p248 = por %p246, %p247
      %p249 = scmp.ne.s32.totalorder %s235, %s236
      %p250 = scmp.eq.s32.totalorder %s51, 1
      %p251 = por %p249, %p250
      %p253 = scmp.ne.s32.totalorder %s236, %s252
      %p254 = scmp.eq.s32.totalorder %s51, 0
      %p255 = por %p253, %p254
      %s256 = ssub.s32 %s45, %s52
      %p257 = scmp.eq.s32.totalorder %s256, 0
      %s259 = sadd.s32 %s258, 1
      %s260 = scalar_select %p257, %s258, %s259
      %p263 = pneg %p257
      %p264 = scmp.eq.s32.totalorder %s45, 1
      %p265 = por %p263, %p264
      %p266 = scmp.ne.s32.totalorder %s258, %s261
      %p267 = scmp.eq.s32.totalorder %s45, 0
      %p268 = por %p266, %p267
      %p269 = scmp.ne.s32.totalorder %s258, %s261
      %p270 = scmp.eq.s32.totalorder %s50, 1
      %p271 = por %p269, %p270
      %p272 = scmp.ne.s32.totalorder %s261, %s262
      %p273 = scmp.eq.s32.totalorder %s50, 0
      %p274 = por %p272, %p273
      %p275 = scmp.ne.s32.totalorder %s261, %s262
      %p276 = scmp.eq.s32.totalorder %s51, 1
      %p277 = por %p275, %p276
      %p279 = scmp.ne.s32.totalorder %s262, %s278
      %p280 = scmp.eq.s32.totalorder %s51, 0
      %p281 = por %p279, %p280
      %s283 = sadd.s32 %s282, 1
      %p286 = scmp.eq.s32.totalorder %s45, 1
      %p287 = scmp.ne.s32.totalorder %s282, %s284
      %p288 = scmp.eq.s32.totalorder %s45, 0
      %p289 = por %p287, %p288
      %p290 = scmp.ne.s32.totalorder %s282, %s284
      %p291 = scmp.eq.s32.totalorder %s50, 1
      %p292 = por %p290, %p291
      %p293 = scmp.ne.s32.totalorder %s284, %s285
      %p294 = scmp.eq.s32.totalorder %s50, 0
      %p295 = por %p293, %p294
      %p296 = scmp.ne.s32.totalorder %s284, %s285
      %p297 = scmp.eq.s32.totalorder %s51, 1
      %p298 = por %p296, %p297
      %p300 = scmp.ne.s32.totalorder %s285, %s299
      %p301 = scmp.eq.s32.totalorder %s51, 0
      %p302 = por %p300, %p301
      %s304 = sadd.s32 %s303, 1
      %p307 = scmp.eq.s32.totalorder %s45, 1
      %p308 = scmp.ne.s32.totalorder %s303, %s305
      %p309 = scmp.eq.s32.totalorder %s45, 0
      %p310 = por %p308, %p309
      %p311 = scmp.ne.s32.totalorder %s303, %s305
      %p312 = scmp.eq.s32.totalorder %s50, 1
      %p313 = por %p311, %p312
      %p314 = scmp.ne.s32.totalorder %s305, %s306
      %p315 = scmp.eq.s32.totalorder %s50, 0
      %p316 = por %p314, %p315
      %p317 = scmp.ne.s32.totalorder %s305, %s306
      %p318 = scmp.eq.s32.totalorder %s51, 1
      %p319 = por %p317, %p318
      %p321 = scmp.ne.s32.totalorder %s306, %s320
      %p322 = scmp.eq.s32.totalorder %s51, 0
      %p323 = por %p321, %p322
      %s325 = sadd.s32 %s324, 1
      %p328 = scmp.eq.s32.totalorder %s45, 1
      %p329 = scmp.ne.s32.totalorder %s324, %s326
      %p330 = scmp.eq.s32.totalorder %s45, 0
      %p331 = por %p329, %p330
      %p332 = scmp.ne.s32.totalorder %s324, %s326
      %p333 = scmp.eq.s32.totalorder %s50, 1
      %p334 = por %p332, %p333
      %p335 = scmp.ne.s32.totalorder %s326, %s327
      %p336 = scmp.eq.s32.totalorder %s50, 0
      %p337 = por %p335, %p336
      %p338 = scmp.ne.s32.totalorder %s326, %s327
      %p339 = scmp.eq.s32.totalorder %s51, 1
      %p340 = por %p338, %p339
      %p342 = scmp.ne.s32.totalorder %s327, %s341
      %p343 = scmp.eq.s32.totalorder %s51, 0
      %p344 = por %p342, %p343
      %s346 = sadd.s32 %s345, 1
      %p349 = scmp.eq.s32.totalorder %s45, 1
      %p350 = scmp.ne.s32.totalorder %s345, %s347
      %p351 = scmp.eq.s32.totalorder %s45, 0
      %p352 = por %p350, %p351
      %p353 = scmp.ne.s32.totalorder %s345, %s347
      %p354 = scmp.eq.s32.totalorder %s50, 1
      %p355 = por %p353, %p354
      %p356 = scmp.ne.s32.totalorder %s347, %s348
      %p357 = scmp.eq.s32.totalorder %s50, 0
      %p358 = por %p356, %p357
      %p359 = scmp.ne.s32.totalorder %s347, %s348
      %p360 = scmp.eq.s32.totalorder %s51, 1
      %p361 = por %p359, %p360
      %p363 = scmp.ne.s32.totalorder %s348, %s362
      %p364 = scmp.eq.s32.totalorder %s51, 0
      %p365 = por %p363, %p364
      %s367 = sadd.s32 %s366, 1
      %p370 = scmp.eq.s32.totalorder %s45, 1
      %p371 = scmp.ne.s32.totalorder %s366, %s368
      %p372 = scmp.eq.s32.totalorder %s45, 0
      %p373 = por %p371, %p372
      %p374 = scmp.ne.s32.totalorder %s366, %s368
      %p375 = scmp.eq.s32.totalorder %s50, 1
      %p376 = por %p374, %p375
      %p377 = scmp.ne.s32.totalorder %s368, %s369
      %p378 = scmp.eq.s32.totalorder %s50, 0
      %p379 = por %p377, %p378
      %p380 = scmp.ne.s32.totalorder %s368, %s369
      %p381 = scmp.eq.s32.totalorder %s51, 1
      %p382 = por %p380, %p381
      %p384 = scmp.ne.s32.totalorder %s369, %s383
      %p385 = scmp.eq.s32.totalorder %s51, 0
      %p386 = por %p384, %p385
      %s388 = sadd.s32 %s387, 1
      %p391 = scmp.eq.s32.totalorder %s45, 1
      %p392 = scmp.ne.s32.totalorder %s387, %s389
      %p393 = scmp.eq.s32.totalorder %s45, 0
      %p394 = por %p392, %p393
      %p395 = scmp.ne.s32.totalorder %s387, %s389
      %p396 = scmp.eq.s32.totalorder %s50, 1
      %p397 = por %p395, %p396
      %p398 = scmp.ne.s32.totalorder %s389, %s390
      %p399 = scmp.eq.s32.totalorder %s50, 0
      %p400 = por %p398, %p399
      %p401 = scmp.ne.s32.totalorder %s389, %s390
      %p402 = scmp.eq.s32.totalorder %s51, 1
      %p403 = por %p401, %p402
      %p405 = scmp.ne.s32.totalorder %s390, %s404
      %p406 = scmp.eq.s32.totalorder %s51, 0
      %p407 = por %p405, %p406
      %s409 = sadd.s32 %s408, 1
      %p412 = scmp.eq.s32.totalorder %s45, 1
      %p413 = scmp.ne.s32.totalorder %s408, %s410
      %p414 = scmp.eq.s32.totalorder %s45, 0
      %p415 = por %p413, %p414
      %p416 = scmp.ne.s32.totalorder %s408, %s410
      %p417 = scmp.eq.s32.totalorder %s50, 1
      %p418 = por %p416, %p417
      %p419 = scmp.ne.s32.totalorder %s410, %s411
      %p420 = scmp.eq.s32.totalorder %s50, 0
      %p421 = por %p419, %p420
      %p422 = scmp.ne.s32.totalorder %s410, %s411
      %p423 = scmp.eq.s32.totalorder %s51, 1
      %p424 = por %p422, %p423
      %p426 = scmp.ne.s32.totalorder %s411, %s425
      %p427 = scmp.eq.s32.totalorder %s51, 0
      %p428 = por %p426, %p427
      %s430 = sadd.s32 %s429, 1
      %p433 = scmp.eq.s32.totalorder %s45, 1
      %p434 = scmp.ne.s32.totalorder %s429, %s431
      %p435 = scmp.eq.s32.totalorder %s45, 0
      %p436 = por %p434, %p435
      %p437 = scmp.ne.s32.totalorder %s429, %s431
      %p438 = scmp.eq.s32.totalorder %s50, 1
      %p439 = por %p437, %p438
      %p440 = scmp.ne.s32.totalorder %s431, %s432
      %p441 = scmp.eq.s32.totalorder %s50, 0
      %p442 = por %p440, %p441
      %p443 = scmp.ne.s32.totalorder %s431, %s432
      %p444 = scmp.eq.s32.totalorder %s51, 1
      %p445 = por %p443, %p444
      %p447 = scmp.ne.s32.totalorder %s432, %s446
      %p448 = scmp.eq.s32.totalorder %s51, 0
      %p449 = por %p447, %p448
      %s451 = sadd.s32 %s450, 1
      %p454 = scmp.eq.s32.totalorder %s45, 1
      %p455 = scmp.ne.s32.totalorder %s450, %s452
      %p456 = scmp.eq.s32.totalorder %s45, 0
      %p457 = por %p455, %p456
      %p458 = scmp.ne.s32.totalorder %s450, %s452
      %p459 = scmp.eq.s32.totalorder %s50, 1
      %p460 = por %p458, %p459
      %p461 = scmp.ne.s32.totalorder %s452, %s453
      %p462 = scmp.eq.s32.totalorder %s50, 0
      %p463 = por %p461, %p462
      %p464 = scmp.ne.s32.totalorder %s452, %s453
      %p465 = scmp.eq.s32.totalorder %s51, 1
      %p466 = por %p464, %p465
      %p468 = scmp.ne.s32.totalorder %s453, %s467
      %p469 = scmp.eq.s32.totalorder %s51, 0
      %p470 = por %p468, %p469
      %s472 = sadd.s32 %s471, 1
      %p475 = scmp.eq.s32.totalorder %s45, 1
      %p476 = scmp.ne.s32.totalorder %s471, %s473
      %p477 = scmp.eq.s32.totalorder %s45, 0
      %p478 = por %p476, %p477
      %p479 = scmp.ne.s32.totalorder %s471, %s473
      %p480 = scmp.eq.s32.totalorder %s50, 1
      %p481 = por %p479, %p480
      %p482 = scmp.ne.s32.totalorder %s473, %s474
      %p483 = scmp.eq.s32.totalorder %s50, 0
      %p484 = por %p482, %p483
      %p485 = scmp.ne.s32.totalorder %s473, %s474
      %p486 = scmp.eq.s32.totalorder %s51, 1
      %p487 = por %p485, %p486
      %p489 = scmp.ne.s32.totalorder %s474, %s488
      %p490 = scmp.eq.s32.totalorder %s51, 0
      %p491 = por %p489, %p490
      %p492 = scmp.le.s32.totalorder 1, %s45
      %p493 = scmp.lt.s32.totalorder %s45, 3
      %p494 = pnand %p492, %p493
      %p495 = pneg %p494
      // Predicated region
      $region9: #{molformer_forward.1} parent=5 // pred_check
        _
      $region10: #{molformer_forward.1} parent=5 // pred_check_branch
        %497 = sbr.rel (%p494) target = $region12
      $region11: #{molformer_forward.1} parent=5 // pred_region
        %s498 = ssub.s32 %s45, 1
        // Predicated region
        $region13: #{molformer_forward.1} parent=11 // pred_check
          %p499 = pneg %p66
        $region14: #{molformer_forward.1} parent=11 // pred_check_branch
          %501 = sbr.rel (%p499) target = $region16
        $region15: #{molformer_forward.1} parent=11 // pred_region
          _
        $region16: #{molformer_forward.1} parent=11 // pred_fallthru
          _
        // Predicated region
        $region17: #{molformer_forward.1} parent=11 // pred_check
          %p502 = pneg %p295
        $region18: #{molformer_forward.1} parent=11 // pred_check_branch
          %504 = sbr.rel (%p502) target = $region20
        $region19: #{molformer_forward.1} parent=11 // pred_region
          %s506 = ssub.s32 32, 32
          %507 = vsyncadd [#allocation16], %s506
          %s509 = sshll.u32 [#allocation17], 4
          %s510 = int_to_ptr.vmem [resolvable:$true] %s509
          %512 = dma.hbm_to_vmem [thread:$0]  %s9, 32, %s510, [#allocation16]
        $region20: #{molformer_forward.1} parent=11 // pred_fallthru
          _
        // Predicated region
        $region21: #{molformer_forward.1} parent=11 // pred_check
          %p513 = pneg %p316
        $region22: #{molformer_forward.1} parent=11 // pred_check_branch
          %515 = sbr.rel (%p513) target = $region24
        $region23: #{molformer_forward.1} parent=11 // pred_region
          %s517 = ssub.s32 32, 32
          %518 = vsyncadd [#allocation19], %s517
          %s520 = sshll.u32 [#allocation18], 4
          %s521 = int_to_ptr.vmem [resolvable:$true] %s520
          %523 = dma.hbm_to_vmem [thread:$0]  %s10, 32, %s521, [#allocation19]
        $region24: #{molformer_forward.1} parent=11 // pred_fallthru
          _
        // Predicated region
        $region25: #{molformer_forward.1} parent=11 // pred_check
          %p524 = pneg %p337
        $region26: #{molformer_forward.1} parent=11 // pred_check_branch
          %526 = sbr.rel (%p524) target = $region28
        $region27: #{molformer_forward.1} parent=11 // pred_region
          %s528 = ssub.s32 2048, 2048
          %529 = vsyncadd [#allocation19], %s528
          %s530 = sshll.u32 [#allocation20], 4
          %s531 = int_to_ptr.vmem [resolvable:$true] %s530
          %536 = dma.hbm_to_vmem [thread:$0]  %s11, 2048, %s531, [#allocation19], 64, 64, 4
        $region28: #{molformer_forward.1} parent=11 // pred_fallthru
          _
        // Predicated region
        $region29: #{molformer_forward.1} parent=11 // pred_check
          %p537 = pneg %p358
        $region30: #{molformer_forward.1} parent=11 // pred_check_branch
          %539 = sbr.rel (%p537) target = $region32
        $region31: #{molformer_forward.1} parent=11 // pred_region
          %s541 = ssub.s32 6144, 6144
          %542 = vsyncadd [#allocation22], %s541
          %s543 = sshll.u32 [#allocation21], 4
          %s544 = int_to_ptr.vmem [resolvable:$true] %s543
          %549 = dma.hbm_to_vmem [thread:$0]  %s12, 6144, %s544, [#allocation22], 192, 192, 12
        $region32: #{molformer_forward.1} parent=11 // pred_fallthru
          _
        // Predicated region
        $region33: #{molformer_forward.1} parent=11 // pred_check
          %p550 = pneg %p379
        $region34: #{molformer_forward.1} parent=11 // pred_check_branch
          %552 = sbr.rel (%p550) target = $region36
        $region35: #{molformer_forward.1} parent=11 // pred_region
          %s554 = ssub.s32 48, 48
          %555 = vsyncadd [#allocation22], %s554
          %s557 = sshll.u32 [#allocation23], 4
          %s558 = int_to_ptr.vmem [resolvable:$true] %s557
          %560 = dma.hbm_to_vmem [thread:$0]  %s13, 48, %s558, [#allocation22]
        $region36: #{molformer_forward.1} parent=11 // pred_fallthru
          _
        // Predicated region
        $region37: #{molformer_forward.1} parent=11 // pred_check
          %p561 = pneg %p400
        $region38: #{molformer_forward.1} parent=11 // pred_check_branch
          %563 = sbr.rel (%p561) target = $region40
        $region39: #{molformer_forward.1} parent=11 // pred_region
          %s565 = ssub.s32 3072, 3072
          %566 = vsyncadd [#allocation25], %s565
          %s567 = sshll.u32 [#allocation24], 4
          %s568 = int_to_ptr.vmem [resolvable:$true] %s567
          %573 = dma.hbm_to_vmem [thread:$0]  %s14, 3072, %s568, [#allocation25], 64, 64, 4
        $region40: #{molformer_forward.1} parent=11 // pred_fallthru
          _
        // Predicated region
        $region41: #{molformer_forward.1} parent=11 // pred_check
          %p574 = pneg %p421
        $region42: #{molformer_forward.1} parent=11 // pred_check_branch
          %576 = sbr.rel (%p574) target = $region44
        $region43: #{molformer_forward.1} parent=11 // pred_region
          %s578 = ssub.s32 16, 16
          %579 = vsyncadd [#allocation25], %s578
          %s581 = sshll.u32 [#allocation26], 4
          %s582 = int_to_ptr.vmem [resolvable:$true] %s581
          %584 = dma.hbm_to_vmem [thread:$0]  %s15, 16, %s582, [#allocation25]
        $region44: #{molformer_forward.1} parent=11 // pred_fallthru
          _
      $region12: #{molformer_forward.1} parent=5 // pred_fallthru
        _
      %p585 = scmp.lt.s32.totalorder %s45, 2
      // Predicated region
      $region45: #{molformer_forward.1} parent=5 // pred_check
        %p586 = pneg %p585
      $region46: #{molformer_forward.1} parent=5 // pred_check_branch
        %588 = sbr.rel (%p586) target = $region48
      $region47: #{molformer_forward.1} parent=5 // pred_region
        // Predicated region
        $region49: #{molformer_forward.1} parent=47 // pred_check
          %p589 = pneg %p86
        $region50: #{molformer_forward.1} parent=47 // pred_check_branch
          %591 = sbr.rel (%p589) target = $region52
        $region51: #{molformer_forward.1} parent=47 // pred_region
          %s592 = sand.u32 %s76, 1
          %s593 = scalar_lea.sflag [#allocation4], %s592
          %s594 = sand.u32 %s76, 1
          %s595 = smul.addr %s594, 2
          %s596 = scalar_lea.vmem [#allocation3], %s595
          %s598 = ssub.s32 32, 32
          %599 = vsyncadd %s593, %s598
          %s600 = smul.addr %s45, 2
          %s601 = smul.addr %s600, 16
          %s602 = scalar_lea.hbm %s1, %s601
          %s604 = sshll.u32 %s596, 4
          %s605 = int_to_ptr.vmem [resolvable:$true] %s604
          %607 = dma.hbm_to_vmem [thread:$0]  %s602, 32, %s605, %s593
        $region52: #{molformer_forward.1} parent=47 // pred_fallthru
          _
        // Predicated region
        $region53: #{molformer_forward.1} parent=47 // pred_check
          %p608 = pneg %p112
        $region54: #{molformer_forward.1} parent=47 // pred_check_branch
          %610 = sbr.rel (%p608) target = $region56
        $region55: #{molformer_forward.1} parent=47 // pred_region
          %s611 = sand.u32 %s45, 1
          %s612 = scalar_lea.sflag [#allocation7], %s611
          %s613 = sand.u32 %s102, 1
          %s614 = smul.addr %s613, 2
          %s615 = scalar_lea.vmem [#allocation6], %s614
          %s617 = ssub.s32 32, 32
          %618 = vsyncadd %s612, %s617
          %s619 = smul.addr %s45, 2
          %s620 = smul.addr %s619, 16
          %s621 = scalar_lea.hbm %s2, %s620
          %s623 = sshll.u32 %s615, 4
          %s624 = int_to_ptr.vmem [resolvable:$true] %s623
          %626 = dma.hbm_to_vmem [thread:$0]  %s621, 32, %s624, %s612
        $region56: #{molformer_forward.1} parent=47 // pred_fallthru
          _
        // Predicated region
        $region57: #{molformer_forward.1} parent=47 // pred_check
          %p627 = pneg %p138
        $region58: #{molformer_forward.1} parent=47 // pred_check_branch
          %629 = sbr.rel (%p627) target = $region60
        $region59: #{molformer_forward.1} parent=47 // pred_region
          %s630 = sand.u32 %s45, 1
          %s631 = scalar_lea.sflag [#allocation7], %s630
          %s632 = sand.u32 %s128, 1
          %s633 = smul.addr %s632, 2
          %s634 = scalar_lea.vmem [#allocation8], %s633
          %s636 = ssub.s32 32, 32
          %637 = vsyncadd %s631, %s636
          %s638 = smul.addr %s45, 2
          %s639 = smul.addr %s638, 16
          %s640 = scalar_lea.hbm %s3, %s639
          %s642 = sshll.u32 %s634, 4
          %s643 = int_to_ptr.vmem [resolvable:$true] %s642
          %645 = dma.hbm_to_vmem [thread:$0]  %s640, 32, %s643, %s631
        $region60: #{molformer_forward.1} parent=47 // pred_fallthru
          _
        // Predicated region
        $region61: #{molformer_forward.1} parent=47 // pred_check
          %p646 = pneg %p164
        $region62: #{molformer_forward.1} parent=47 // pred_check_branch
          %648 = sbr.rel (%p646) target = $region64
        $region63: #{molformer_forward.1} parent=47 // pred_region
          %s649 = sand.u32 %s45, 1
          %s650 = scalar_lea.sflag [#allocation10], %s649
          %s651 = sand.u32 %s154, 1
          %s652 = smul.addr %s651, 2
          %s653 = scalar_lea.vmem [#allocation9], %s652
          %s655 = ssub.s32 32, 32
          %656 = vsyncadd %s650, %s655
          %s657 = smul.addr %s45, 2
          %s658 = smul.addr %s657, 16
          %s659 = scalar_lea.hbm %s4, %s658
          %s661 = sshll.u32 %s653, 4
          %s662 = int_to_ptr.vmem [resolvable:$true] %s661
          %664 = dma.hbm_to_vmem [thread:$0]  %s659, 32, %s662, %s650
        $region64: #{molformer_forward.1} parent=47 // pred_fallthru
          _
        // Predicated region
        $region65: #{molformer_forward.1} parent=47 // pred_check
          %p665 = pneg %p190
        $region66: #{molformer_forward.1} parent=47 // pred_check_branch
          %667 = sbr.rel (%p665) target = $region68
        $region67: #{molformer_forward.1} parent=47 // pred_region
          %s668 = sand.u32 %s45, 1
          %s669 = scalar_lea.sflag [#allocation10], %s668
          %s670 = sand.u32 %s180, 1
          %s671 = smul.addr %s670, 768
          %s672 = scalar_lea.vmem [#allocation11], %s671
          %s674 = ssub.s32 12288, 12288
          %675 = vsyncadd %s669, %s674
          %s676 = smul.addr %s45, 192
          %s677 = smul.addr %s676, 64
          %s678 = scalar_lea.hbm %s5, %s677
          %s679 = sshll.u32 %s672, 4
          %s680 = int_to_ptr.vmem [resolvable:$true] %s679
          %685 = dma.hbm_to_vmem [thread:$0]  %s678, 12288, %s680, %s669, 384, 384, 24
        $region68: #{molformer_forward.1} parent=47 // pred_fallthru
          _
        // Predicated region
        $region69: #{molformer_forward.1} parent=47 // pred_check
          %p686 = pneg %p216
        $region70: #{molformer_forward.1} parent=47 // pred_check_branch
          %688 = sbr.rel (%p686) target = $region72
        $region71: #{molformer_forward.1} parent=47 // pred_region
          %s689 = sand.u32 %s45, 1
          %s690 = scalar_lea.sflag [#allocation13], %s689
          %s691 = sand.u32 %s206, 1
          %s692 = smul.addr %s691, 256
          %s693 = scalar_lea.vmem [#allocation12], %s692
          %s695 = ssub.s32 4096, 4096
          %696 = vsyncadd %s690, %s695
          %s697 = smul.addr %s45, 64
          %s698 = smul.addr %s697, 64
          %s699 = scalar_lea.hbm %s6, %s698
          %s700 = sshll.u32 %s693, 4
          %s701 = int_to_ptr.vmem [resolvable:$true] %s700
          %706 = dma.hbm_to_vmem [thread:$0]  %s699, 4096, %s701, %s690, 128, 128, 8
        $region72: #{molformer_forward.1} parent=47 // pred_fallthru
          _
        // Predicated region
        $region73: #{molformer_forward.1} parent=47 // pred_check
          %p707 = pneg %p242
        $region74: #{molformer_forward.1} parent=47 // pred_check_branch
          %709 = sbr.rel (%p707) target = $region76
        $region75: #{molformer_forward.1} parent=47 // pred_region
          %s710 = sand.u32 %s45, 1
          %s711 = scalar_lea.sflag [#allocation13], %s710
          %s712 = sand.u32 %s232, 1
          %s713 = smul.addr %s712, 1536
          %s714 = scalar_lea.vmem [#allocation14], %s713
          %s716 = ssub.s32 24576, 24576
          %717 = vsyncadd %s711, %s716
          %s718 = smul.addr %s45, 384
          %s719 = smul.addr %s718, 64
          %s720 = scalar_lea.hbm %s7, %s719
          %s721 = sshll.u32 %s714, 4
          %s722 = int_to_ptr.vmem [resolvable:$true] %s721
          %727 = dma.hbm_to_vmem [thread:$0]  %s720, 24576, %s722, %s711, 768, 768, 48
        $region76: #{molformer_forward.1} parent=47 // pred_fallthru
          _
        // Predicated region
        $region77: #{molformer_forward.1} parent=47 // pred_check
          %p728 = pneg %p268
        $region78: #{molformer_forward.1} parent=47 // pred_check_branch
          %730 = sbr.rel (%p728) target = $region80
        $region79: #{molformer_forward.1} parent=47 // pred_region
          %s731 = sand.u32 %s45, 1
          %s732 = scalar_lea.sflag [#allocation16], %s731
          %s733 = sand.u32 %s258, 1
          %s734 = smul.addr %s733, 768
          %s735 = scalar_lea.vmem [#allocation15], %s734
          %s737 = ssub.s32 12288, 12288
          %738 = vsyncadd %s732, %s737
          %s739 = smul.addr %s45, 192
          %s740 = smul.addr %s739, 64
          %s741 = scalar_lea.hbm %s8, %s740
          %s742 = sshll.u32 %s735, 4
          %s743 = int_to_ptr.vmem [resolvable:$true] %s742
          %748 = dma.hbm_to_vmem [thread:$0]  %s741, 12288, %s743, %s732, 128, 128, 8
        $region80: #{molformer_forward.1} parent=47 // pred_fallthru
          _
      $region48: #{molformer_forward.1} parent=5 // pred_fallthru
        _
      %p749 = scmp.le.s32.totalorder 1, %s45
      %p750 = scmp.lt.s32.totalorder %s45, 3
      %p751 = pnand %p749, %p750
      %p752 = pneg %p751
      // Predicated region
      $region81: #{molformer_forward.1} parent=5 // pred_check
        _
      $region82: #{molformer_forward.1} parent=5 // pred_check_branch
        %754 = sbr.rel (%p751) target = $region84
      $region83: #{molformer_forward.1} parent=5 // pred_region
        %s755 = ssub.s32 %s45, 1
        %s756 = sand.u32 %s79, 1
        %s757 = scalar_lea.sflag [#allocation4], %s756
        %s758 = sand.u32 %s79, 1
        %s759 = smul.addr %s758, 2
        %s760 = scalar_lea.vmem [#allocation3], %s759
        // Predicated region
        $region85: #{molformer_forward.1} parent=83 // pred_check
          %p761 = pneg %p92
        $region86: #{molformer_forward.1} parent=83 // pred_check_branch
          %763 = sbr.rel (%p761) target = $region88
        $region87: #{molformer_forward.1} parent=83 // pred_region
          %764 = dma.done %s757, 32
        $region88: #{molformer_forward.1} parent=83 // pred_fallthru
          _
        %s765 = sand.u32 %s50, 1
        %s766 = scalar_lea.sflag [#allocation7], %s765
        %s767 = sand.u32 %s105, 1
        %s768 = smul.addr %s767, 2
        %s769 = scalar_lea.vmem [#allocation6], %s768
        // Predicated region
        $region89: #{molformer_forward.1} parent=83 // pred_check
          %p770 = pneg %p118
        $region90: #{molformer_forward.1} parent=83 // pred_check_branch
          %772 = sbr.rel (%p770) target = $region92
        $region91: #{molformer_forward.1} parent=83 // pred_region
          %773 = dma.done %s766, 32
        $region92: #{molformer_forward.1} parent=83 // pred_fallthru
          _
        %s774 = sand.u32 %s50, 1
        %s775 = scalar_lea.sflag [#allocation7], %s774
        %s776 = sand.u32 %s131, 1
        %s777 = smul.addr %s776, 2
        %s778 = scalar_lea.vmem [#allocation8], %s777
        // Predicated region
        $region93: #{molformer_forward.1} parent=83 // pred_check
          %p779 = pneg %p144
        $region94: #{molformer_forward.1} parent=83 // pred_check_branch
          %781 = sbr.rel (%p779) target = $region96
        $region95: #{molformer_forward.1} parent=83 // pred_region
          %782 = dma.done %s775, 32
        $region96: #{molformer_forward.1} parent=83 // pred_fallthru
          _
        %s783 = sand.u32 %s50, 1
        %s784 = scalar_lea.sflag [#allocation10], %s783
        %s785 = sand.u32 %s157, 1
        %s786 = smul.addr %s785, 2
        %s787 = scalar_lea.vmem [#allocation9], %s786
        // Predicated region
        $region97: #{molformer_forward.1} parent=83 // pred_check
          %p788 = pneg %p170
        $region98: #{molformer_forward.1} parent=83 // pred_check_branch
          %790 = sbr.rel (%p788) target = $region100
        $region99: #{molformer_forward.1} parent=83 // pred_region
          %791 = dma.done %s784, 32
        $region100: #{molformer_forward.1} parent=83 // pred_fallthru
          _
        %s792 = sand.u32 %s50, 1
        %s793 = scalar_lea.sflag [#allocation10], %s792
        %s794 = sand.u32 %s183, 1
        %s795 = smul.addr %s794, 768
        %s796 = scalar_lea.vmem [#allocation11], %s795
        // Predicated region
        $region101: #{molformer_forward.1} parent=83 // pred_check
          %p797 = pneg %p196
        $region102: #{molformer_forward.1} parent=83 // pred_check_branch
          %799 = sbr.rel (%p797) target = $region104
        $region103: #{molformer_forward.1} parent=83 // pred_region
          %800 = dma.done %s793, 12288
        $region104: #{molformer_forward.1} parent=83 // pred_fallthru
          _
        %s801 = sand.u32 %s50, 1
        %s802 = scalar_lea.sflag [#allocation13], %s801
        %s803 = sand.u32 %s209, 1
        %s804 = smul.addr %s803, 256
        %s805 = scalar_lea.vmem [#allocation12], %s804
        // Predicated region
        $region105: #{molformer_forward.1} parent=83 // pred_check
          %p806 = pneg %p222
        $region106: #{molformer_forward.1} parent=83 // pred_check_branch
          %808 = sbr.rel (%p806) target = $region108
        $region107: #{molformer_forward.1} parent=83 // pred_region
          %809 = dma.done %s802, 4096
        $region108: #{molformer_forward.1} parent=83 // pred_fallthru
          _
        %s810 = sand.u32 %s50, 1
        %s811 = scalar_lea.sflag [#allocation13], %s810
        %s812 = sand.u32 %s235, 1
        %s813 = smul.addr %s812, 1536
        %s814 = scalar_lea.vmem [#allocation14], %s813
        // Predicated region
        $region109: #{molformer_forward.1} parent=83 // pred_check
          %p815 = pneg %p248
        $region110: #{molformer_forward.1} parent=83 // pred_check_branch
          %817 = sbr.rel (%p815) target = $region112
        $region111: #{molformer_forward.1} parent=83 // pred_region
          %818 = dma.done %s811, 24576
        $region112: #{molformer_forward.1} parent=83 // pred_fallthru
          _
        %s819 = sand.u32 %s50, 1
        %s820 = scalar_lea.sflag [#allocation16], %s819
        %s821 = sand.u32 %s261, 1
        %s822 = smul.addr %s821, 768
        %s823 = scalar_lea.vmem [#allocation15], %s822
        // Predicated region
        $region113: #{molformer_forward.1} parent=83 // pred_check
          %p824 = pneg %p274
        $region114: #{molformer_forward.1} parent=83 // pred_check_branch
          %826 = sbr.rel (%p824) target = $region116
        $region115: #{molformer_forward.1} parent=83 // pred_region
          %827 = dma.done %s820, 12288
        $region116: #{molformer_forward.1} parent=83 // pred_fallthru
          _
        // Predicated region
        $region117: #{molformer_forward.1} parent=83 // pred_check
          %p828 = pneg %p295
        $region118: #{molformer_forward.1} parent=83 // pred_check_branch
          %830 = sbr.rel (%p828) target = $region120
        $region119: #{molformer_forward.1} parent=83 // pred_region
          %831 = dma.done [#allocation16], 32
        $region120: #{molformer_forward.1} parent=83 // pred_fallthru
          _
        // Predicated region
        $region121: #{molformer_forward.1} parent=83 // pred_check
          %p832 = pneg %p316
        $region122: #{molformer_forward.1} parent=83 // pred_check_branch
          %834 = sbr.rel (%p832) target = $region124
        $region123: #{molformer_forward.1} parent=83 // pred_region
          %835 = dma.done [#allocation19], 32
        $region124: #{molformer_forward.1} parent=83 // pred_fallthru
          _
        // Predicated region
        $region125: #{molformer_forward.1} parent=83 // pred_check
          %p836 = pneg %p337
        $region126: #{molformer_forward.1} parent=83 // pred_check_branch
          %838 = sbr.rel (%p836) target = $region128
        $region127: #{molformer_forward.1} parent=83 // pred_region
          %839 = dma.done [#allocation19], 2048
        $region128: #{molformer_forward.1} parent=83 // pred_fallthru
          _
        // Predicated region
        $region129: #{molformer_forward.1} parent=83 // pred_check
          %p840 = pneg %p358
        $region130: #{molformer_forward.1} parent=83 // pred_check_branch
          %842 = sbr.rel (%p840) target = $region132
        $region131: #{molformer_forward.1} parent=83 // pred_region
          %843 = dma.done [#allocation22], 6144
        $region132: #{molformer_forward.1} parent=83 // pred_fallthru
          _
        // Predicated region
        $region133: #{molformer_forward.1} parent=83 // pred_check
          %p844 = pneg %p379
        $region134: #{molformer_forward.1} parent=83 // pred_check_branch
          %846 = sbr.rel (%p844) target = $region136
        $region135: #{molformer_forward.1} parent=83 // pred_region
          %847 = dma.done [#allocation22], 48
        $region136: #{molformer_forward.1} parent=83 // pred_fallthru
          _
        // Predicated region
        $region137: #{molformer_forward.1} parent=83 // pred_check
          %p848 = pneg %p400
        $region138: #{molformer_forward.1} parent=83 // pred_check_branch
          %850 = sbr.rel (%p848) target = $region140
        $region139: #{molformer_forward.1} parent=83 // pred_region
          %851 = dma.done [#allocation25], 3072
        $region140: #{molformer_forward.1} parent=83 // pred_fallthru
          _
        // Predicated region
        $region141: #{molformer_forward.1} parent=83 // pred_check
          %p852 = pneg %p421
        $region142: #{molformer_forward.1} parent=83 // pred_check_branch
          %854 = sbr.rel (%p852) target = $region144
        $region143: #{molformer_forward.1} parent=83 // pred_region
          %855 = dma.done [#allocation25], 16
        $region144: #{molformer_forward.1} parent=83 // pred_fallthru
          _
        %p856 = pneg %p66
        %p857 = pneg %p63
        %s858 = sand.u32 %s79, 1
        %s859 = scalar_lea.sflag [#allocation4], %s858
        %s860 = sand.u32 %s79, 1
        %s861 = smul.addr %s860, 2
        %s862 = scalar_lea.vmem [#allocation3], %s861
        %p863 = pneg %p92
        %p864 = pneg %p89
        %s865 = sand.u32 %s50, 1
        %s866 = scalar_lea.sflag [#allocation7], %s865
        %s867 = sand.u32 %s105, 1
        %s868 = smul.addr %s867, 2
        %s869 = scalar_lea.vmem [#allocation6], %s868
        %p870 = pneg %p118
        %p871 = pneg %p115
        %s872 = sand.u32 %s50, 1
        %s873 = scalar_lea.sflag [#allocation7], %s872
        %s874 = sand.u32 %s131, 1
        %s875 = smul.addr %s874, 2
        %s876 = scalar_lea.vmem [#allocation8], %s875
        %p877 = pneg %p144
        %p878 = pneg %p141
        %s879 = sand.u32 %s50, 1
        %s880 = scalar_lea.sflag [#allocation10], %s879
        %s881 = sand.u32 %s157, 1
        %s882 = smul.addr %s881, 2
        %s883 = scalar_lea.vmem [#allocation9], %s882
        %p884 = pneg %p170
        %p885 = pneg %p167
        %s886 = sand.u32 %s50, 1
        %s887 = scalar_lea.sflag [#allocation10], %s886
        %s888 = sand.u32 %s183, 1
        %s889 = smul.addr %s888, 768
        %s890 = scalar_lea.vmem [#allocation11], %s889
        %p891 = pneg %p196
        %p892 = pneg %p193
        %s893 = sand.u32 %s50, 1
        %s894 = scalar_lea.sflag [#allocation13], %s893
        %s895 = sand.u32 %s209, 1
        %s896 = smul.addr %s895, 256
        %s897 = scalar_lea.vmem [#allocation12], %s896
        %p898 = pneg %p222
        %p899 = pneg %p219
        %s900 = sand.u32 %s50, 1
        %s901 = scalar_lea.sflag [#allocation13], %s900
        %s902 = sand.u32 %s235, 1
        %s903 = smul.addr %s902, 1536
        %s904 = scalar_lea.vmem [#allocation14], %s903
        %p905 = pneg %p248
        %p906 = pneg %p245
        %s907 = sand.u32 %s50, 1
        %s908 = scalar_lea.sflag [#allocation16], %s907
        %s909 = sand.u32 %s261, 1
        %s910 = smul.addr %s909, 768
        %s911 = scalar_lea.vmem [#allocation15], %s910
        %p912 = pneg %p274
        %p913 = pneg %p271
        %p914 = pneg %p295
        %p915 = pneg %p292
        %p916 = pneg %p316
        %p917 = pneg %p313
        %p918 = pneg %p337
        %p919 = pneg %p334
        %p920 = pneg %p358
        %p921 = pneg %p355
        %p922 = pneg %p379
        %p923 = pneg %p376
        %p924 = pneg %p400
        %p925 = pneg %p397
        %p926 = pneg %p421
        %p927 = pneg %p418
        %p928 = pneg %p442
        %p929 = pneg %p439
        %p930 = pneg %p463
        %p931 = pneg %p460
        %p932 = pneg %p484
        %p933 = pneg %p481
        %p935 = scmp.eq.s32.totalorder %s50, 0
        // Predicated region
        $region145: #{molformer_forward.1} parent=83 // pred_check
          %p936 = pneg %p935
        $region146: #{molformer_forward.1} parent=83 // pred_check_branch
          %938 = sbr.rel (%p936) target = $region148
        $region147: #{molformer_forward.1} parent=83 // pred_region
          %v939 = vld [vmem:[%s0] sm:$0xff]
          %v940 = vld [vmem:[%s0 + $0x8] sm:$0xff]
          %v941 = vld [vmem:[%s0 + $0x10] sm:$0xff]
          %v942 = vld [vmem:[%s0 + $0x18] sm:$0xff]
          %v943 = vld [vmem:[%s0 + $0x20] sm:$0xff]
          %v944 = vld [vmem:[%s0 + $0x28] sm:$0xff]
          %v945 = vld [vmem:[%s0 + $0x30] sm:$0xff]
          %v946 = vld [vmem:[%s0 + $0x38] sm:$0xff]
          %947 = vst [vmem:[#allocation2] sm:$0xff] %v939
          %948 = vst [vmem:[#allocation2 + $0x8] sm:$0xff] %v940
          %949 = vst [vmem:[#allocation2 + $0x10] sm:$0xff] %v941
          %950 = vst [vmem:[#allocation2 + $0x18] sm:$0xff] %v942
          %951 = vst [vmem:[#allocation2 + $0x20] sm:$0xff] %v943
          %952 = vst [vmem:[#allocation2 + $0x28] sm:$0xff] %v944
          %953 = vst [vmem:[#allocation2 + $0x30] sm:$0xff] %v945
          %954 = vst [vmem:[#allocation2 + $0x38] sm:$0xff] %v946
        $region148: #{molformer_forward.1} parent=83 // pred_fallthru
          _
        %v955 = vld [vmem:[#allocation2] sm:$0xff]
        %v956 = vld [vmem:[#allocation2 + $0x8] sm:$0xff]
        %v957 = vld [vmem:[#allocation2 + $0x10] sm:$0xff]
        %v958 = vld [vmem:[#allocation2 + $0x18] sm:$0xff]
        %v959 = vld [vmem:[#allocation2 + $0x20] sm:$0xff]
        %v960 = vld [vmem:[#allocation2 + $0x28] sm:$0xff]
        %v961 = vld [vmem:[#allocation2 + $0x30] sm:$0xff]
        %v962 = vld [vmem:[#allocation2 + $0x38] sm:$0xff]
        %v963 = vld [vmem:[%s760] sm:$0x3]
        %v964 = vld [vmem:[%s769] sm:$0x3]
        %v965 = vmul.f32 %v955, %v955
        %v966 = vmul.f32 %v956, %v956
        %v967 = vmul.f32 %v957, %v957
        %v968 = vmul.f32 %v958, %v958
        %v969 = vmul.f32 %v959, %v959
        %v970 = vmul.f32 %v960, %v960
        %v971 = vmul.f32 %v961, %v961
        %v972 = vmul.f32 %v962, %v962
        %v973 = vadd.f32 %v965, %v966
        %974 = vadd.xlane.f32.xlu0 %v973
        %v975 = vpop.xlane.xlu0 %974
        %v976 = vadd.f32 %v967, %v968
        %977 = vadd.xlane.f32.xlu0 %v976
        %v978 = vpop.xlane.xlu0 %977
        %v979 = vadd.f32 %v969, %v970
        %980 = vadd.xlane.f32.xlu0 %v979
        %v981 = vpop.xlane.xlu0 %980
        %v982 = vadd.f32 %v971, %v972
        %983 = vadd.xlane.f32.xlu0 %v982
        %v984 = vpop.xlane.xlu0 %983
        %v985 = vrcp.pop 256.0
        %v986 = vmul.f32 %v975, %v985
        %v987 = vmul.f32 %v978, %v985
        %v988 = vmul.f32 %v981, %v985
        %v989 = vmul.f32 %v984, %v985
        %v990 = vadd.f32 %v986, 1e-06
        %v991 = vadd.f32 %v987, 1e-06
        %v992 = vadd.f32 %v988, 1e-06
        %v993 = vadd.f32 %v989, 1e-06
        %v994 = vrsqrt.pop %v990
        %v995 = vrsqrt.pop %v991
        %v996 = vrsqrt.pop %v992
        %v997 = vrsqrt.pop %v993
        %v998 = vmul.f32 %v955, %v994
        %v999 = vmul.f32 %v956, %v994
        %v1000 = vmul.f32 %v957, %v995
        %v1001 = vmul.f32 %v958, %v995
        %v1002 = vmul.f32 %v959, %v996
        %v1003 = vmul.f32 %v960, %v996
        %v1004 = vmul.f32 %v961, %v997
        %v1005 = vmul.f32 %v962, %v997
        %v1007 = vlaneseq
        %v1008 = vshrl.u32 %v1007, 7
        %v1009 = vsub.s32 0, %v1008
        %v1010 = vrot.slane %v963, %v1009
        %v1011 = vlaneseq
        %v1012 = vshrl.u32 %v1011, 7
        %v1013 = vsub.s32 1, %v1012
        %v1014 = vrot.slane %v963, %v1013
        %v1017 = vmul.f32 %v998, %v1010
        %v1018 = vmul.f32 %v999, %v1014
        %v1019 = vmul.f32 %v1000, %v1010
        %v1020 = vmul.f32 %v1001, %v1014
        %v1021 = vmul.f32 %v1002, %v1010
        %v1022 = vmul.f32 %v1003, %v1014
        %v1023 = vmul.f32 %v1004, %v1010
        %v1024 = vmul.f32 %v1005, %v1014
        %v1026 = vlaneseq
        %v1027 = vshrl.u32 %v1026, 7
        %v1028 = vsub.s32 0, %v1027
        %v1029 = vrot.slane %v964, %v1028
        %v1030 = vlaneseq
        %v1031 = vshrl.u32 %v1030, 7
        %v1032 = vsub.s32 1, %v1031
        %v1033 = vrot.slane %v964, %v1032
        %v1036 = vadd.f32 %v1017, %v1029
        %v1037 = vadd.f32 %v1018, %v1033
        %v1038 = vadd.f32 %v1019, %v1029
        %v1039 = vadd.f32 %v1020, %v1033
        %v1040 = vadd.f32 %v1021, %v1029
        %v1041 = vadd.f32 %v1022, %v1033
        %v1042 = vadd.f32 %v1023, %v1029
        %v1043 = vadd.f32 %v1024, %v1033
        %v1044 = vpack.c.bf16 %v1038, %v1036
        %v1045 = vpack.c.bf16 %v1039, %v1037
        %v1046 = vpack.c.bf16 %v1042, %v1040
        %v1047 = vpack.c.bf16 %v1043, %v1041
        %v1048 = vld [vmem:[%s796] sm:$0xff]
        %v1049 = vld [vmem:[%s796 + $0x8] sm:$0xff]
        %v1050 = vld [vmem:[%s796 + $0x10] sm:$0xff]
        %v1051 = vld [vmem:[%s796 + $0x18] sm:$0xff]
        %v1052 = vld [vmem:[%s796 + $0x20] sm:$0xff]
        %v1053 = vld [vmem:[%s796 + $0x28] sm:$0xff]
        %v1054 = vld [vmem:[%s796 + $0x30] sm:$0xff]
        %v1055 = vld [vmem:[%s796 + $0x38] sm:$0xff]
        %v1056 = vld [vmem:[%s796 + $0x40] sm:$0xff]
        %v1057 = vld [vmem:[%s796 + $0x48] sm:$0xff]
        %v1058 = vld [vmem:[%s796 + $0x50] sm:$0xff]
        %v1059 = vld [vmem:[%s796 + $0x58] sm:$0xff]
        %v1060 = vld [vmem:[%s796 + $0x60] sm:$0xff]
        %v1061 = vld [vmem:[%s796 + $0x68] sm:$0xff]
        %v1062 = vld [vmem:[%s796 + $0x70] sm:$0xff]
        %v1063 = vld [vmem:[%s796 + $0x78] sm:$0xff]
        %v1064 = vld [vmem:[%s796 + $0x80] sm:$0xff]
        %v1065 = vld [vmem:[%s796 + $0x88] sm:$0xff]
        %v1066 = vld [vmem:[%s796 + $0x90] sm:$0xff]
        %v1067 = vld [vmem:[%s796 + $0x98] sm:$0xff]
        %v1068 = vld [vmem:[%s796 + $0xa0] sm:$0xff]
        %v1069 = vld [vmem:[%s796 + $0xa8] sm:$0xff]
        %v1070 = vld [vmem:[%s796 + $0xb0] sm:$0xff]
        %v1071 = vld [vmem:[%s796 + $0xb8] sm:$0xff]
        %v1072 = vld [vmem:[%s796 + $0xc0] sm:$0xff]
        %v1073 = vld [vmem:[%s796 + $0xc8] sm:$0xff]
        %v1074 = vld [vmem:[%s796 + $0xd0] sm:$0xff]
        %v1075 = vld [vmem:[%s796 + $0xd8] sm:$0xff]
        %v1076 = vld [vmem:[%s796 + $0xe0] sm:$0xff]
        %v1077 = vld [vmem:[%s796 + $0xe8] sm:$0xff]
        %v1078 = vld [vmem:[%s796 + $0xf0] sm:$0xff]
        %v1079 = vld [vmem:[%s796 + $0xf8] sm:$0xff]
        %v1080 = vld [vmem:[%s796 + $0x100] sm:$0xff]
        %v1081 = vld [vmem:[%s796 + $0x108] sm:$0xff]
        %v1082 = vld [vmem:[%s796 + $0x110] sm:$0xff]
        %v1083 = vld [vmem:[%s796 + $0x118] sm:$0xff]
        %v1084 = vld [vmem:[%s796 + $0x120] sm:$0xff]
        %v1085 = vld [vmem:[%s796 + $0x128] sm:$0xff]
        %v1086 = vld [vmem:[%s796 + $0x130] sm:$0xff]
        %v1087 = vld [vmem:[%s796 + $0x138] sm:$0xff]
        %v1088 = vld [vmem:[%s796 + $0x140] sm:$0xff]
        %v1089 = vld [vmem:[%s796 + $0x148] sm:$0xff]
        %v1090 = vld [vmem:[%s796 + $0x150] sm:$0xff]
        %v1091 = vld [vmem:[%s796 + $0x158] sm:$0xff]
        %v1092 = vld [vmem:[%s796 + $0x160] sm:$0xff]
        %v1093 = vld [vmem:[%s796 + $0x168] sm:$0xff]
        %v1094 = vld [vmem:[%s796 + $0x170] sm:$0xff]
        %v1095 = vld [vmem:[%s796 + $0x178] sm:$0xff]
        %v1096 = vld [vmem:[%s796 + $0x180] sm:$0xff]
        %v1097 = vld [vmem:[%s796 + $0x188] sm:$0xff]
        %v1098 = vld [vmem:[%s796 + $0x190] sm:$0xff]
        %v1099 = vld [vmem:[%s796 + $0x198] sm:$0xff]
        %v1100 = vld [vmem:[%s796 + $0x1a0] sm:$0xff]
        %v1101 = vld [vmem:[%s796 + $0x1a8] sm:$0xff]
        %v1102 = vld [vmem:[%s796 + $0x1b0] sm:$0xff]
        %v1103 = vld [vmem:[%s796 + $0x1b8] sm:$0xff]
        %v1104 = vld [vmem:[%s796 + $0x1c0] sm:$0xff]
        %v1105 = vld [vmem:[%s796 + $0x1c8] sm:$0xff]
        %v1106 = vld [vmem:[%s796 + $0x1d0] sm:$0xff]
        %v1107 = vld [vmem:[%s796 + $0x1d8] sm:$0xff]
        %v1108 = vld [vmem:[%s796 + $0x1e0] sm:$0xff]
        %v1109 = vld [vmem:[%s796 + $0x1e8] sm:$0xff]
        %v1110 = vld [vmem:[%s796 + $0x1f0] sm:$0xff]
        %v1111 = vld [vmem:[%s796 + $0x1f8] sm:$0xff]
        %v1112 = vld [vmem:[%s796 + $0x200] sm:$0xff]
        %v1113 = vld [vmem:[%s796 + $0x208] sm:$0xff]
        %v1114 = vld [vmem:[%s796 + $0x210] sm:$0xff]
        %v1115 = vld [vmem:[%s796 + $0x218] sm:$0xff]
        %v1116 = vld [vmem:[%s796 + $0x220] sm:$0xff]
        %v1117 = vld [vmem:[%s796 + $0x228] sm:$0xff]
        %v1118 = vld [vmem:[%s796 + $0x230] sm:$0xff]
        %v1119 = vld [vmem:[%s796 + $0x238] sm:$0xff]
        %v1120 = vld [vmem:[%s796 + $0x240] sm:$0xff]
        %v1121 = vld [vmem:[%s796 + $0x248] sm:$0xff]
        %v1122 = vld [vmem:[%s796 + $0x250] sm:$0xff]
        %v1123 = vld [vmem:[%s796 + $0x258] sm:$0xff]
        %v1124 = vld [vmem:[%s796 + $0x260] sm:$0xff]
        %v1125 = vld [vmem:[%s796 + $0x268] sm:$0xff]
        %v1126 = vld [vmem:[%s796 + $0x270] sm:$0xff]
        %v1127 = vld [vmem:[%s796 + $0x278] sm:$0xff]
        %v1128 = vld [vmem:[%s796 + $0x280] sm:$0xff]
        %v1129 = vld [vmem:[%s796 + $0x288] sm:$0xff]
        %v1130 = vld [vmem:[%s796 + $0x290] sm:$0xff]
        %v1131 = vld [vmem:[%s796 + $0x298] sm:$0xff]
        %v1132 = vld [vmem:[%s796 + $0x2a0] sm:$0xff]
        %v1133 = vld [vmem:[%s796 + $0x2a8] sm:$0xff]
        %v1134 = vld [vmem:[%s796 + $0x2b0] sm:$0xff]
        %v1135 = vld [vmem:[%s796 + $0x2b8] sm:$0xff]
        %v1136 = vld [vmem:[%s796 + $0x2c0] sm:$0xff]
        %v1137 = vld [vmem:[%s796 + $0x2c8] sm:$0xff]
        %v1138 = vld [vmem:[%s796 + $0x2d0] sm:$0xff]
        %v1139 = vld [vmem:[%s796 + $0x2d8] sm:$0xff]
        %v1140 = vld [vmem:[%s796 + $0x2e0] sm:$0xff]
        %v1141 = vld [vmem:[%s796 + $0x2e8] sm:$0xff]
        %v1142 = vld [vmem:[%s796 + $0x2f0] sm:$0xff]
        %v1143 = vld [vmem:[%s796 + $0x2f8] sm:$0xff]
        %v1240 = vunpack.c.l.b16 %v1048
        %v1241 = vunpack.c.h.b16 %v1048
        %v1242 = vunpack.c.l.b16 %v1049
        %v1243 = vunpack.c.h.b16 %v1049
        %v1244 = vunpack.c.l.b16 %v1050
        %v1245 = vunpack.c.h.b16 %v1050
        %v1246 = vunpack.c.l.b16 %v1051
        %v1247 = vunpack.c.h.b16 %v1051
        %v1248 = vunpack.c.l.b16 %v1052
        %v1249 = vunpack.c.h.b16 %v1052
        %v1250 = vunpack.c.l.b16 %v1053
        %v1251 = vunpack.c.h.b16 %v1053
        %v1252 = vunpack.c.l.b16 %v1054
        %v1253 = vunpack.c.h.b16 %v1054
        %v1254 = vunpack.c.l.b16 %v1055
        %v1255 = vunpack.c.h.b16 %v1055
        %v1256 = vunpack.c.l.b16 %v1056
        %v1257 = vunpack.c.h.b16 %v1056
        %v1258 = vunpack.c.l.b16 %v1057
        %v1259 = vunpack.c.h.b16 %v1057
        %v1260 = vunpack.c.l.b16 %v1058
        %v1261 = vunpack.c.h.b16 %v1058
        %v1262 = vunpack.c.l.b16 %v1059
        %v1263 = vunpack.c.h.b16 %v1059
        %v1264 = vunpack.c.l.b16 %v1060
        %v1265 = vunpack.c.h.b16 %v1060
        %v1266 = vunpack.c.l.b16 %v1061
        %v1267 = vunpack.c.h.b16 %v1061
        %v1268 = vunpack.c.l.b16 %v1062
        %v1269 = vunpack.c.h.b16 %v1062
        %v1270 = vunpack.c.l.b16 %v1063
        %v1271 = vunpack.c.h.b16 %v1063
        %v1272 = vunpack.c.l.b16 %v1064
        %v1273 = vunpack.c.h.b16 %v1064
        %v1274 = vunpack.c.l.b16 %v1065
        %v1275 = vunpack.c.h.b16 %v1065
        %v1276 = vunpack.c.l.b16 %v1066
        %v1277 = vunpack.c.h.b16 %v1066
        %v1278 = vunpack.c.l.b16 %v1067
        %v1279 = vunpack.c.h.b16 %v1067
        %v1280 = vunpack.c.l.b16 %v1068
        %v1281 = vunpack.c.h.b16 %v1068
        %v1282 = vunpack.c.l.b16 %v1069
        %v1283 = vunpack.c.h.b16 %v1069
        %v1284 = vunpack.c.l.b16 %v1070
        %v1285 = vunpack.c.h.b16 %v1070
        %v1286 = vunpack.c.l.b16 %v1071
        %v1287 = vunpack.c.h.b16 %v1071
        %v1288 = vunpack.c.l.b16 %v1072
        %v1289 = vunpack.c.h.b16 %v1072
        %v1290 = vunpack.c.l.b16 %v1073
        %v1291 = vunpack.c.h.b16 %v1073
        %v1292 = vunpack.c.l.b16 %v1074
        %v1293 = vunpack.c.h.b16 %v1074
        %v1294 = vunpack.c.l.b16 %v1075
        %v1295 = vunpack.c.h.b16 %v1075
        %v1296 = vunpack.c.l.b16 %v1076
        %v1297 = vunpack.c.h.b16 %v1076
        %v1298 = vunpack.c.l.b16 %v1077
        %v1299 = vunpack.c.h.b16 %v1077
        %v1300 = vunpack.c.l.b16 %v1078
        %v1301 = vunpack.c.h.b16 %v1078
        %v1302 = vunpack.c.l.b16 %v1079
        %v1303 = vunpack.c.h.b16 %v1079
        %v1304 = vunpack.c.l.b16 %v1080
        %v1305 = vunpack.c.h.b16 %v1080
        %v1306 = vunpack.c.l.b16 %v1081
        %v1307 = vunpack.c.h.b16 %v1081
        %v1308 = vunpack.c.l.b16 %v1082
        %v1309 = vunpack.c.h.b16 %v1082
        %v1310 = vunpack.c.l.b16 %v1083
        %v1311 = vunpack.c.h.b16 %v1083
        %v1312 = vunpack.c.l.b16 %v1084
        %v1313 = vunpack.c.h.b16 %v1084
        %v1314 = vunpack.c.l.b16 %v1085
        %v1315 = vunpack.c.h.b16 %v1085
        %v1316 = vunpack.c.l.b16 %v1086
        %v1317 = vunpack.c.h.b16 %v1086
        %v1318 = vunpack.c.l.b16 %v1087
        %v1319 = vunpack.c.h.b16 %v1087
        %v1320 = vunpack.c.l.b16 %v1088
        %v1321 = vunpack.c.h.b16 %v1088
        %v1322 = vunpack.c.l.b16 %v1089
        %v1323 = vunpack.c.h.b16 %v1089
        %v1324 = vunpack.c.l.b16 %v1090
        %v1325 = vunpack.c.h.b16 %v1090
        %v1326 = vunpack.c.l.b16 %v1091
        %v1327 = vunpack.c.h.b16 %v1091
        %v1328 = vunpack.c.l.b16 %v1092
        %v1329 = vunpack.c.h.b16 %v1092
        %v1330 = vunpack.c.l.b16 %v1093
        %v1331 = vunpack.c.h.b16 %v1093
        %v1332 = vunpack.c.l.b16 %v1094
        %v1333 = vunpack.c.h.b16 %v1094
        %v1334 = vunpack.c.l.b16 %v1095
        %v1335 = vunpack.c.h.b16 %v1095
        %v1336 = vunpack.c.l.b16 %v1096
        %v1337 = vunpack.c.h.b16 %v1096
        %v1338 = vunpack.c.l.b16 %v1097
        %v1339 = vunpack.c.h.b16 %v1097
        %v1340 = vunpack.c.l.b16 %v1098
        %v1341 = vunpack.c.h.b16 %v1098
        %v1342 = vunpack.c.l.b16 %v1099
        %v1343 = vunpack.c.h.b16 %v1099
        %v1344 = vunpack.c.l.b16 %v1100
        %v1345 = vunpack.c.h.b16 %v1100
        %v1346 = vunpack.c.l.b16 %v1101
        %v1347 = vunpack.c.h.b16 %v1101
        %v1348 = vunpack.c.l.b16 %v1102
        %v1349 = vunpack.c.h.b16 %v1102
        %v1350 = vunpack.c.l.b16 %v1103
        %v1351 = vunpack.c.h.b16 %v1103
        %v1352 = vunpack.c.l.b16 %v1104
        %v1353 = vunpack.c.h.b16 %v1104
        %v1354 = vunpack.c.l.b16 %v1105
        %v1355 = vunpack.c.h.b16 %v1105
        %v1356 = vunpack.c.l.b16 %v1106
        %v1357 = vunpack.c.h.b16 %v1106
        %v1358 = vunpack.c.l.b16 %v1107
        %v1359 = vunpack.c.h.b16 %v1107
        %v1360 = vunpack.c.l.b16 %v1108
        %v1361 = vunpack.c.h.b16 %v1108
        %v1362 = vunpack.c.l.b16 %v1109
        %v1363 = vunpack.c.h.b16 %v1109
        %v1364 = vunpack.c.l.b16 %v1110
        %v1365 = vunpack.c.h.b16 %v1110
        %v1366 = vunpack.c.l.b16 %v1111
        %v1367 = vunpack.c.h.b16 %v1111
        %v1368 = vunpack.c.l.b16 %v1112
        %v1369 = vunpack.c.h.b16 %v1112
        %v1370 = vunpack.c.l.b16 %v1113
        %v1371 = vunpack.c.h.b16 %v1113
        %v1372 = vunpack.c.l.b16 %v1114
        %v1373 = vunpack.c.h.b16 %v1114
        %v1374 = vunpack.c.l.b16 %v1115
        %v1375 = vunpack.c.h.b16 %v1115
        %v1376 = vunpack.c.l.b16 %v1116
        %v1377 = vunpack.c.h.b16 %v1116
        %v1378 = vunpack.c.l.b16 %v1117
        %v1379 = vunpack.c.h.b16 %v1117
        %v1380 = vunpack.c.l.b16 %v1118
        %v1381 = vunpack.c.h.b16 %v1118
        %v1382 = vunpack.c.l.b16 %v1119
        %v1383 = vunpack.c.h.b16 %v1119
        %v1384 = vunpack.c.l.b16 %v1120
        %v1385 = vunpack.c.h.b16 %v1120
        %v1386 = vunpack.c.l.b16 %v1121
        %v1387 = vunpack.c.h.b16 %v1121
        %v1388 = vunpack.c.l.b16 %v1122
        %v1389 = vunpack.c.h.b16 %v1122
        %v1390 = vunpack.c.l.b16 %v1123
        %v1391 = vunpack.c.h.b16 %v1123
        %v1392 = vunpack.c.l.b16 %v1124
        %v1393 = vunpack.c.h.b16 %v1124
        %v1394 = vunpack.c.l.b16 %v1125
        %v1395 = vunpack.c.h.b16 %v1125
        %v1396 = vunpack.c.l.b16 %v1126
        %v1397 = vunpack.c.h.b16 %v1126
        %v1398 = vunpack.c.l.b16 %v1127
        %v1399 = vunpack.c.h.b16 %v1127
        %v1400 = vunpack.c.l.b16 %v1128
        %v1401 = vunpack.c.h.b16 %v1128
        %v1402 = vunpack.c.l.b16 %v1129
        %v1403 = vunpack.c.h.b16 %v1129
        %v1404 = vunpack.c.l.b16 %v1130
        %v1405 = vunpack.c.h.b16 %v1130
        %v1406 = vunpack.c.l.b16 %v1131
        %v1407 = vunpack.c.h.b16 %v1131
        %v1408 = vunpack.c.l.b16 %v1132
        %v1409 = vunpack.c.h.b16 %v1132
        %v1410 = vunpack.c.l.b16 %v1133
        %v1411 = vunpack.c.h.b16 %v1133
        %v1412 = vunpack.c.l.b16 %v1134
        %v1413 = vunpack.c.h.b16 %v1134
        %v1414 = vunpack.c.l.b16 %v1135
        %v1415 = vunpack.c.h.b16 %v1135
        %v1416 = vunpack.c.l.b16 %v1136
        %v1417 = vunpack.c.h.b16 %v1136
        %v1418 = vunpack.c.l.b16 %v1137
        %v1419 = vunpack.c.h.b16 %v1137
        %v1420 = vunpack.c.l.b16 %v1138
        %v1421 = vunpack.c.h.b16 %v1138
        %v1422 = vunpack.c.l.b16 %v1139
        %v1423 = vunpack.c.h.b16 %v1139
        %v1424 = vunpack.c.l.b16 %v1140
        %v1425 = vunpack.c.h.b16 %v1140
        %v1426 = vunpack.c.l.b16 %v1141
        %v1427 = vunpack.c.h.b16 %v1141
        %v1428 = vunpack.c.l.b16 %v1142
        %v1429 = vunpack.c.h.b16 %v1142
        %v1430 = vunpack.c.l.b16 %v1143
        %v1431 = vunpack.c.h.b16 %v1143
        %v1432 = vpack.c.b16 %v1246, %v1240
        %v1433 = vpack.c.b16 %v1247, %v1241
        %v1434 = vpack.c.b16 %v1248, %v1242
        %v1435 = vpack.c.b16 %v1249, %v1243
        %v1436 = vpack.c.b16 %v1250, %v1244
        %v1437 = vpack.c.b16 %v1251, %v1245
        %v1438 = vpack.c.b16 %v1258, %v1252
        %v1439 = vpack.c.b16 %v1259, %v1253
        %v1440 = vpack.c.b16 %v1260, %v1254
        %v1441 = vpack.c.b16 %v1261, %v1255
        %v1442 = vpack.c.b16 %v1262, %v1256
        %v1443 = vpack.c.b16 %v1263, %v1257
        %v1444 = vpack.c.b16 %v1270, %v1264
        %v1445 = vpack.c.b16 %v1271, %v1265
        %v1446 = vpack.c.b16 %v1272, %v1266
        %v1447 = vpack.c.b16 %v1273, %v1267
        %v1448 = vpack.c.b16 %v1274, %v1268
        %v1449 = vpack.c.b16 %v1275, %v1269
        %v1450 = vpack.c.b16 %v1282, %v1276
        %v1451 = vpack.c.b16 %v1283, %v1277
        %v1452 = vpack.c.b16 %v1284, %v1278
        %v1453 = vpack.c.b16 %v1285, %v1279
        %v1454 = vpack.c.b16 %v1286, %v1280
        %v1455 = vpack.c.b16 %v1287, %v1281
        %v1456 = vpack.c.b16 %v1294, %v1288
        %v1457 = vpack.c.b16 %v1295, %v1289
        %v1458 = vpack.c.b16 %v1296, %v1290
        %v1459 = vpack.c.b16 %v1297, %v1291
        %v1460 = vpack.c.b16 %v1298, %v1292
        %v1461 = vpack.c.b16 %v1299, %v1293
        %v1462 = vpack.c.b16 %v1306, %v1300
        %v1463 = vpack.c.b16 %v1307, %v1301
        %v1464 = vpack.c.b16 %v1308, %v1302
        %v1465 = vpack.c.b16 %v1309, %v1303
        %v1466 = vpack.c.b16 %v1310, %v1304
        %v1467 = vpack.c.b16 %v1311, %v1305
        %v1468 = vpack.c.b16 %v1318, %v1312
        %v1469 = vpack.c.b16 %v1319, %v1313
        %v1470 = vpack.c.b16 %v1320, %v1314
        %v1471 = vpack.c.b16 %v1321, %v1315
        %v1472 = vpack.c.b16 %v1322, %v1316
        %v1473 = vpack.c.b16 %v1323, %v1317
        %v1474 = vpack.c.b16 %v1330, %v1324
        %v1475 = vpack.c.b16 %v1331, %v1325
        %v1476 = vpack.c.b16 %v1332, %v1326
        %v1477 = vpack.c.b16 %v1333, %v1327
        %v1478 = vpack.c.b16 %v1334, %v1328
        %v1479 = vpack.c.b16 %v1335, %v1329
        %v1480 = vpack.c.b16 %v1342, %v1336
        %v1481 = vpack.c.b16 %v1343, %v1337
        %v1482 = vpack.c.b16 %v1344, %v1338
        %v1483 = vpack.c.b16 %v1345, %v1339
        %v1484 = vpack.c.b16 %v1346, %v1340
        %v1485 = vpack.c.b16 %v1347, %v1341
        %v1486 = vpack.c.b16 %v1354, %v1348
        %v1487 = vpack.c.b16 %v1355, %v1349
        %v1488 = vpack.c.b16 %v1356, %v1350
        %v1489 = vpack.c.b16 %v1357, %v1351
        %v1490 = vpack.c.b16 %v1358, %v1352
        %v1491 = vpack.c.b16 %v1359, %v1353
        %v1492 = vpack.c.b16 %v1366, %v1360
        %v1493 = vpack.c.b16 %v1367, %v1361
        %v1494 = vpack.c.b16 %v1368, %v1362
        %v1495 = vpack.c.b16 %v1369, %v1363
        %v1496 = vpack.c.b16 %v1370, %v1364
        %v1497 = vpack.c.b16 %v1371, %v1365
        %v1498 = vpack.c.b16 %v1378, %v1372
        %v1499 = vpack.c.b16 %v1379, %v1373
        %v1500 = vpack.c.b16 %v1380, %v1374
        %v1501 = vpack.c.b16 %v1381, %v1375
        %v1502 = vpack.c.b16 %v1382, %v1376
        %v1503 = vpack.c.b16 %v1383, %v1377
        %v1504 = vpack.c.b16 %v1390, %v1384
        %v1505 = vpack.c.b16 %v1391, %v1385
        %v1506 = vpack.c.b16 %v1392, %v1386
        %v1507 = vpack.c.b16 %v1393, %v1387
        %v1508 = vpack.c.b16 %v1394, %v1388
        %v1509 = vpack.c.b16 %v1395, %v1389
        %v1510 = vpack.c.b16 %v1402, %v1396
        %v1511 = vpack.c.b16 %v1403, %v1397
        %v1512 = vpack.c.b16 %v1404, %v1398
        %v1513 = vpack.c.b16 %v1405, %v1399
        %v1514 = vpack.c.b16 %v1406, %v1400
        %v1515 = vpack.c.b16 %v1407, %v1401
        %v1516 = vpack.c.b16 %v1414, %v1408
        %v1517 = vpack.c.b16 %v1415, %v1409
        %v1518 = vpack.c.b16 %v1416, %v1410
        %v1519 = vpack.c.b16 %v1417, %v1411
        %v1520 = vpack.c.b16 %v1418, %v1412
        %v1521 = vpack.c.b16 %v1419, %v1413
        %v1522 = vpack.c.b16 %v1426, %v1420
        %v1523 = vpack.c.b16 %v1427, %v1421
        %v1524 = vpack.c.b16 %v1428, %v1422
        %v1525 = vpack.c.b16 %v1429, %v1423
        %v1526 = vpack.c.b16 %v1430, %v1424
        %v1527 = vpack.c.b16 %v1431, %v1425
        %1624 = vmatprep.subr.bf16.mxu0 %v1433
        %1625 = vmatpush1.bf16.msra.mxu0 %v1432
        %1626 = vmatprep.subr.bf16.mxu0 %v1439
        %1627 = vmatpush1.bf16.msra.mxu0 %v1438
        %1628 = vmatprep.subr.bf16.mxu0 %v1445
        %1629 = vmatpush1.bf16.msra.mxu0 %v1444
        %1630 = vmatprep.subr.bf16.mxu0 %v1451
        %1631 = vmatpush1.bf16.msra.mxu0 %v1450
        %1632 = vmatprep.subr.bf16.mxu0 %v1457
        %1633 = vmatpush1.bf16.msra.mxu0 %v1456
        %1634 = vmatprep.subr.bf16.mxu0 %v1463
        %1635 = vmatpush1.bf16.msra.mxu0 %v1462
        %1636 = vmatprep.subr.bf16.mxu0 %v1469
        %1637 = vmatpush1.bf16.msra.mxu0 %v1468
        %1638 = vmatprep.subr.bf16.mxu0 %v1475
        %1639 = vmatpush1.bf16.msra.mxu0 %v1474
        %1640 = vmatprep.subr.bf16.mxu0 %v1481
        %1641 = vmatpush1.bf16.msra.mxu0 %v1480
        %1642 = vmatprep.subr.bf16.mxu0 %v1487
        %1643 = vmatpush1.bf16.msra.mxu0 %v1486
        %1644 = vmatprep.subr.bf16.mxu0 %v1493
        %1645 = vmatpush1.bf16.msra.mxu0 %v1492
        %1646 = vmatprep.subr.bf16.mxu0 %v1499
        %1647 = vmatpush1.bf16.msra.mxu0 %v1498
        %1648 = vmatprep.subr.bf16.mxu0 %v1505
        %1649 = vmatpush1.bf16.msra.mxu0 %v1504
        %1650 = vmatprep.subr.bf16.mxu0 %v1511
        %1651 = vmatpush1.bf16.msra.mxu0 %v1510
        %1652 = vmatprep.subr.bf16.mxu0 %v1517
        %1653 = vmatpush1.bf16.msra.mxu0 %v1516
        %1654 = vmatprep.subr.bf16.mxu0 %v1523
        %1655 = vmatpush1.bf16.msra.mxu0 %v1522
        %1656 = vmatprep.mubr.bf16.mxu0 %v1045
        %1657 = vmatmul.mubr.bf16.gmra.mrb[0].mxu0 %v1044
        %v1658 = vpop.f32.mrb[0].mxu0
        %v1659 = vadd.f32 0.0, %v1658
        %v1660 = vpop.f32.mrb[0].mxu0
        %v1661 = vadd.f32 0.0, %v1660
        %v1662 = vpop.f32.mrb[0].mxu0
        %v1663 = vadd.f32 0.0, %v1662
        %v1664 = vpop.f32.mrb[0].mxu0
        %v1665 = vadd.f32 0.0, %v1664
        %1666 = vmatprep.mubr.bf16.mxu0 %v1047
        %1667 = vmatmul.mubr.bf16.gmra.mrb[0].mxu0 %v1046
        %v1668 = vpop.f32.mrb[0].mxu0
        %v1669 = vadd.f32 0.0, %v1668
        %v1670 = vpop.f32.mrb[0].mxu0
        %v1671 = vadd.f32 0.0, %v1670
        %v1672 = vpop.f32.mrb[0].mxu0
        %v1673 = vadd.f32 0.0, %v1672
        %v1674 = vpop.f32.mrb[0].mxu0
        %v1675 = vadd.f32 0.0, %v1674
        %1676 = vdwg.mxu0
        %1677 = vmatprep.subr.bf16.mxu0 %v1435
        %1678 = vmatpush1.bf16.msra.mxu0 %v1434
        %1679 = vmatprep.subr.bf16.mxu0 %v1441
        %1680 = vmatpush1.bf16.msra.mxu0 %v1440
        %1681 = vmatprep.subr.bf16.mxu0 %v1447
        %1682 = vmatpush1.bf16.msra.mxu0 %v1446
        %1683 = vmatprep.subr.bf16.mxu0 %v1453
        %1684 = vmatpush1.bf16.msra.mxu0 %v1452
        %1685 = vmatprep.subr.bf16.mxu0 %v1459
        %1686 = vmatpush1.bf16.msra.mxu0 %v1458
        %1687 = vmatprep.subr.bf16.mxu0 %v1465
        %1688 = vmatpush1.bf16.msra.mxu0 %v1464
        %1689 = vmatprep.subr.bf16.mxu0 %v1471
        %1690 = vmatpush1.bf16.msra.mxu0 %v1470
        %1691 = vmatprep.subr.bf16.mxu0 %v1477
        %1692 = vmatpush1.bf16.msra.mxu0 %v1476
        %1693 = vmatprep.subr.bf16.mxu0 %v1483
        %1694 = vmatpush1.bf16.msra.mxu0 %v1482
        %1695 = vmatprep.subr.bf16.mxu0 %v1489
        %1696 = vmatpush1.bf16.msra.mxu0 %v1488
        %1697 = vmatprep.subr.bf16.mxu0 %v1495
        %1698 = vmatpush1.bf16.msra.mxu0 %v1494
        %1699 = vmatprep.subr.bf16.mxu0 %v1501
        %1700 = vmatpush1.bf16.msra.mxu0 %v1500
        %1701 = vmatprep.subr.bf16.mxu0 %v1507
        %1702 = vmatpush1.bf16.msra.mxu0 %v1506
        %1703 = vmatprep.subr.bf16.mxu0 %v1513
        %1704 = vmatpush1.bf16.msra.mxu0 %v1512
        %1705 = vmatprep.subr.bf16.mxu0 %v1519
        %1706 = vmatpush1.bf16.msra.mxu0 %v1518
        %1707 = vmatprep.subr.bf16.mxu0 %v1525
        %1708 = vmatpush1.bf16.msra.mxu0 %v1524
        %1709 = vmatprep.mubr.bf16.mxu0 %v1045
        %1710 = vmatmul.mubr.bf16.gmra.mrb[0].mxu0 %v1044
        %v1711 = vpop.f32.mrb[0].mxu0
        %v1712 = vadd.f32 0.0, %v1711
        %v1713 = vpop.f32.mrb[0].mxu0
        %v1714 = vadd.f32 0.0, %v1713
        %v1715 = vpop.f32.mrb[0].mxu0
        %v1716 = vadd.f32 0.0, %v1715
        %v1717 = vpop.f32.mrb[0].mxu0
        %v1718 = vadd.f32 0.0, %v1717
        %1719 = vmatprep.mubr.bf16.mxu0 %v1047
        %1720 = vmatmul.mubr.bf16.gmra.mrb[0].mxu0 %v1046
        %v1721 = vpop.f32.mrb[0].mxu0
        %v1722 = vadd.f32 0.0, %v1721
        %v1723 = vpop.f32.mrb[0].mxu0
        %v1724 = vadd.f32 0.0, %v1723
        %v1725 = vpop.f32.mrb[0].mxu0
        %v1726 = vadd.f32 0.0, %v1725
        %v1727 = vpop.f32.mrb[0].mxu0
        %v1728 = vadd.f32 0.0, %v1727
        %1729 = vdwg.mxu0
        %1730 = vmatprep.subr.bf16.mxu0 %v1437
        %1731 = vmatpush1.bf16.msra.mxu0 %v1436
        %1732 = vmatprep.subr.bf16.mxu0 %v1443
        %1733 = vmatpush1.bf16.msra.mxu0 %v1442
        %1734 = vmatprep.subr.bf16.mxu0 %v1449
        %1735 = vmatpush1.bf16.msra.mxu0 %v1448
        %1736 = vmatprep.subr.bf16.mxu0 %v1455
        %1737 = vmatpush1.bf16.msra.mxu0 %v1454
        %1738 = vmatprep.subr.bf16.mxu0 %v1461
        %1739 = vmatpush1.bf16.msra.mxu0 %v1460
        %1740 = vmatprep.subr.bf16.mxu0 %v1467
        %1741 = vmatpush1.bf16.msra.mxu0 %v1466
        %1742 = vmatprep.subr.bf16.mxu0 %v1473
        %1743 = vmatpush1.bf16.msra.mxu0 %v1472
        %1744 = vmatprep.subr.bf16.mxu0 %v1479
        %1745 = vmatpush1.bf16.msra.mxu0 %v1478
        %1746 = vmatprep.subr.bf16.mxu0 %v1485
        %1747 = vmatpush1.bf16.msra.mxu0 %v1484
        %1748 = vmatprep.subr.bf16.mxu0 %v1491
        %1749 = vmatpush1.bf16.msra.mxu0 %v1490
        %1750 = vmatprep.subr.bf16.mxu0 %v1497
        %1751 = vmatpush1.bf16.msra.mxu0 %v1496
        %1752 = vmatprep.subr.bf16.mxu0 %v1503
        %1753 = vmatpush1.bf16.msra.mxu0 %v1502
        %1754 = vmatprep.subr.bf16.mxu0 %v1509
        %1755 = vmatpush1.bf16.msra.mxu0 %v1508
        %1756 = vmatprep.subr.bf16.mxu0 %v1515
        %1757 = vmatpush1.bf16.msra.mxu0 %v1514
        %1758 = vmatprep.subr.bf16.mxu0 %v1521
        %1759 = vmatpush1.bf16.msra.mxu0 %v1520
        %1760 = vmatprep.subr.bf16.mxu0 %v1527
        %1761 = vmatpush1.bf16.msra.mxu0 %v1526
        %1762 = vmatprep.mubr.bf16.mxu0 %v1045
        %1763 = vmatmul.mubr.bf16.gmra.mrb[0].mxu0 %v1044
        %v1764 = vpop.f32.mrb[0].mxu0
        %v1765 = vadd.f32 0.0, %v1764
        %v1766 = vpop.f32.mrb[0].mxu0
        %v1767 = vadd.f32 0.0, %v1766
        %v1768 = vpop.f32.mrb[0].mxu0
        %v1769 = vadd.f32 0.0, %v1768
        %v1770 = vpop.f32.mrb[0].mxu0
        %v1771 = vadd.f32 0.0, %v1770
        %1772 = vmatprep.mubr.bf16.mxu0 %v1047
        %1773 = vmatmul.mubr.bf16.gmra.mrb[0].mxu0 %v1046
        %v1774 = vpop.f32.mrb[0].mxu0
        %v1775 = vadd.f32 0.0, %v1774
        %v1776 = vpop.f32.mrb[0].mxu0
        %v1777 = vadd.f32 0.0, %v1776
        %v1778 = vpop.f32.mrb[0].mxu0
        %v1779 = vadd.f32 0.0, %v1778
        %v1780 = vpop.f32.mrb[0].mxu0
        %v1781 = vadd.f32 0.0, %v1780
        %1782 = vdwg.mxu0
        %v1783 = vpack.c.bf16 %v1663, %v1659
        %v1784 = vpack.c.bf16 %v1665, %v1661
        %v1785 = vpack.c.bf16 %v1673, %v1669
        %v1786 = vpack.c.bf16 %v1675, %v1671
        %v1787 = vpack.c.bf16 %v1716, %v1712
        %v1788 = vpack.c.bf16 %v1718, %v1714
        %v1789 = vpack.c.bf16 %v1726, %v1722
        %v1790 = vpack.c.bf16 %v1728, %v1724
        %v1791 = vpack.c.bf16 %v1769, %v1765
        %v1792 = vpack.c.bf16 %v1771, %v1767
        %v1793 = vpack.c.bf16 %v1779, %v1775
        %v1794 = vpack.c.bf16 %v1781, %v1777
        %v1795 = vld [vmem:[%s805] sm:$0xff]
        %v1796 = vld [vmem:[%s805 + $0x8] sm:$0xff]
        %v1797 = vld [vmem:[%s805 + $0x10] sm:$0xff]
        %v1798 = vld [vmem:[%s805 + $0x18] sm:$0xff]
        %v1799 = vld [vmem:[%s805 + $0x20] sm:$0xff]
        %v1800 = vld [vmem:[%s805 + $0x28] sm:$0xff]
        %v1801 = vld [vmem:[%s805 + $0x30] sm:$0xff]
        %v1802 = vld [vmem:[%s805 + $0x38] sm:$0xff]
        %v1803 = vld [vmem:[%s805 + $0x40] sm:$0xff]
        %v1804 = vld [vmem:[%s805 + $0x48] sm:$0xff]
        %v1805 = vld [vmem:[%s805 + $0x50] sm:$0xff]
        %v1806 = vld [vmem:[%s805 + $0x58] sm:$0xff]
        %v1807 = vld [vmem:[%s805 + $0x60] sm:$0xff]
        %v1808 = vld [vmem:[%s805 + $0x68] sm:$0xff]
        %v1809 = vld [vmem:[%s805 + $0x70] sm:$0xff]
        %v1810 = vld [vmem:[%s805 + $0x78] sm:$0xff]
        %v1811 = vld [vmem:[%s805 + $0x80] sm:$0xff]
        %v1812 = vld [vmem:[%s805 + $0x88] sm:$0xff]
        %v1813 = vld [vmem:[%s805 + $0x90] sm:$0xff]
        %v1814 = vld [vmem:[%s805 + $0x98] sm:$0xff]
        %v1815 = vld [vmem:[%s805 + $0xa0] sm:$0xff]
        %v1816 = vld [vmem:[%s805 + $0xa8] sm:$0xff]
        %v1817 = vld [vmem:[%s805 + $0xb0] sm:$0xff]
        %v1818 = vld [vmem:[%s805 + $0xb8] sm:$0xff]
        %v1819 = vld [vmem:[%s805 + $0xc0] sm:$0xff]
        %v1820 = vld [vmem:[%s805 + $0xc8] sm:$0xff]
        %v1821 = vld [vmem:[%s805 + $0xd0] sm:$0xff]
        %v1822 = vld [vmem:[%s805 + $0xd8] sm:$0xff]
        %v1823 = vld [vmem:[%s805 + $0xe0] sm:$0xff]
        %v1824 = vld [vmem:[%s805 + $0xe8] sm:$0xff]
        %v1825 = vld [vmem:[%s805 + $0xf0] sm:$0xff]
        %v1826 = vld [vmem:[%s805 + $0xf8] sm:$0xff]
        %vm1827 = vcmask 523264
        %v1829 = vsel %vm1827, %v1783, 0
        %v1832 = vsel %vm1827, %v1787, 0
        %1834 = vmatprep.subr.bf16.mxu0 0
        %1835 = vmatpush1.bf16.xpose.msra.mxu0 %v1832
        %1836 = vmatprep.subr.bf16.mxu0 0
        %1837 = vmatpush1.bf16.xpose.msra.mxu0 0
        %1838 = vmatprep.subr.bf16.mxu0 0
        %1839 = vmatpush1.bf16.xpose.msra.mxu0 0
        %1840 = vmatprep.subr.bf16.mxu0 0
        %1841 = vmatpush1.bf16.xpose.msra.mxu0 0
        %1842 = vmatprep.subr.bf16.mxu0 0
        %1843 = vmatpush1.bf16.xpose.msra.mxu0 0
        %1844 = vmatprep.subr.bf16.mxu0 0
        %1845 = vmatpush1.bf16.xpose.msra.mxu0 0
        %1846 = vmatprep.subr.bf16.mxu0 0
        %1847 = vmatpush1.bf16.xpose.msra.mxu0 0
        %1848 = vmatprep.subr.bf16.mxu0 0
        %1849 = vmatpush1.bf16.xpose.msra.mxu0 0
        %1850 = vmatprep.subr.bf16.mxu0 0
        %1851 = vmatpush1.bf16.xpose.msra.mxu0 0
        %1852 = vmatprep.subr.bf16.mxu0 0
        %1853 = vmatpush1.bf16.xpose.msra.mxu0 0
        %1854 = vmatprep.subr.bf16.mxu0 0
        %1855 = vmatpush1.bf16.xpose.msra.mxu0 0
        %1856 = vmatprep.subr.bf16.mxu0 0
        %1857 = vmatpush1.bf16.xpose.msra.mxu0 0
        %1858 = vmatprep.subr.bf16.mxu0 0
        %1859 = vmatpush1.bf16.xpose.msra.mxu0 0
        %1860 = vmatprep.subr.bf16.mxu0 0
        %1861 = vmatpush1.bf16.xpose.msra.mxu0 0
        %1862 = vmatprep.subr.bf16.mxu0 0
        %1863 = vmatpush1.bf16.xpose.msra.mxu0 0
        %1864 = vmatprep.subr.bf16.mxu0 0
        %1865 = vmatpush1.bf16.xpose.msra.mxu0 0
        %1866 = vmatprep.mubr.bf16.mxu0 0
        %1867 = vmatmul.mubr.bf16.gmra.mrb[0].mxu0 %v1829
        %v1868 = vpop.f32.mrb[0].mxu0
        %v1869 = vadd.f32 0.0, %v1868
        %v1870 = vpop.f32.mrb[0].mxu0
        %v1871 = vpop.f32.mrb[0].mxu0
        %v1872 = vadd.f32 0.0, %v1871
        %v1873 = vpop.f32.mrb[0].mxu0
        %1874 = vdwg.mxu0
        %v1876 = vsel %vm1827, %v1785, 0
        %v1879 = vsel %vm1827, %v1789, 0
        %1881 = vmatprep.subr.bf16.mxu0 0
        %1882 = vmatpush1.bf16.xpose.msra.mxu0 %v1879
        %1883 = vmatprep.subr.bf16.mxu0 0
        %1884 = vmatpush1.bf16.xpose.msra.mxu0 0
        %1885 = vmatprep.subr.bf16.mxu0 0
        %1886 = vmatpush1.bf16.xpose.msra.mxu0 0
        %1887 = vmatprep.subr.bf16.mxu0 0
        %1888 = vmatpush1.bf16.xpose.msra.mxu0 0
        %1889 = vmatprep.subr.bf16.mxu0 0
        %1890 = vmatpush1.bf16.xpose.msra.mxu0 0
        %1891 = vmatprep.subr.bf16.mxu0 0
        %1892 = vmatpush1.bf16.xpose.msra.mxu0 0
        %1893 = vmatprep.subr.bf16.mxu0 0
        %1894 = vmatpush1.bf16.xpose.msra.mxu0 0
        %1895 = vmatprep.subr.bf16.mxu0 0
        %1896 = vmatpush1.bf16.xpose.msra.mxu0 0
        %1897 = vmatprep.subr.bf16.mxu0 0
        %1898 = vmatpush1.bf16.xpose.msra.mxu0 0
        %1899 = vmatprep.subr.bf16.mxu0 0
        %1900 = vmatpush1.bf16.xpose.msra.mxu0 0
        %1901 = vmatprep.subr.bf16.mxu0 0
        %1902 = vmatpush1.bf16.xpose.msra.mxu0 0
        %1903 = vmatprep.subr.bf16.mxu0 0
        %1904 = vmatpush1.bf16.xpose.msra.mxu0 0
        %1905 = vmatprep.subr.bf16.mxu0 0
        %1906 = vmatpush1.bf16.xpose.msra.mxu0 0
        %1907 = vmatprep.subr.bf16.mxu0 0
        %1908 = vmatpush1.bf16.xpose.msra.mxu0 0
        %1909 = vmatprep.subr.bf16.mxu0 0
        %1910 = vmatpush1.bf16.xpose.msra.mxu0 0
        %1911 = vmatprep.subr.bf16.mxu0 0
        %1912 = vmatpush1.bf16.xpose.msra.mxu0 0
        %1913 = vmatprep.mubr.bf16.mxu0 0
        %1914 = vmatmul.mubr.bf16.gmra.mrb[0].mxu0 %v1876
        %v1915 = vpop.f32.mrb[0].mxu0
        %v1916 = vadd.f32 0.0, %v1915
        %v1917 = vpop.f32.mrb[0].mxu0
        %v1918 = vpop.f32.mrb[0].mxu0
        %v1919 = vadd.f32 0.0, %v1918
        %v1920 = vpop.f32.mrb[0].mxu0
        %1921 = vdwg.mxu0
        %vm1922 = vcmask 130048
        %v1923 = vsel %vm1922, %v1869, -inf
        %1924 = vmax.xlane.f32.xlu0 %v1923
        %v1925 = vpop.xlane.xlu0 %1924
        %v1926 = vsel %vm1922, %v1872, -inf
        %1927 = vmax.xlane.f32.xlu0 %v1926
        %v1928 = vpop.xlane.xlu0 %1927
        %v1929 = vsel %vm1922, %v1916, -inf
        %1930 = vmax.xlane.f32.xlu0 %v1929
        %v1931 = vpop.xlane.xlu0 %1930
        %v1932 = vsel %vm1922, %v1919, -inf
        %1933 = vmax.xlane.f32.xlu0 %v1932
        %v1934 = vpop.xlane.xlu0 %1933
        %v1935 = vsub.f32 %v1869, %v1925
        %v1936 = vsub.f32 %v1872, %v1928
        %v1937 = vsub.f32 %v1916, %v1931
        %v1938 = vsub.f32 %v1919, %v1934
        %v1939 = vmul.f32 %v1935, 1.442695
        %v1940 = vpow.pop %v1939
        %v1941 = vmul.f32 %v1936, 1.442695
        %v1942 = vpow.pop %v1941
        %v1943 = vmul.f32 %v1937, 1.442695
        %v1944 = vpow.pop %v1943
        %v1945 = vmul.f32 %v1938, 1.442695
        %v1946 = vpow.pop %v1945
        %v1947 = vsel %vm1922, %v1940, 0.0
        %1948 = vadd.xlane.f32.xlu0 %v1947
        %v1949 = vpop.xlane.xlu0 %1948
        %v1950 = vsel %vm1922, %v1942, 0.0
        %1951 = vadd.xlane.f32.xlu0 %v1950
        %v1952 = vpop.xlane.xlu0 %1951
        %v1953 = vsel %vm1922, %v1944, 0.0
        %1954 = vadd.xlane.f32.xlu0 %v1953
        %v1955 = vpop.xlane.xlu0 %1954
        %v1956 = vsel %vm1922, %v1946, 0.0
        %1957 = vadd.xlane.f32.xlu0 %v1956
        %v1958 = vpop.xlane.xlu0 %1957
        %v1959 = vrcp.pop %v1949
        %v1960 = vrcp.pop %v1952
        %v1961 = vrcp.pop %v1955
        %v1962 = vrcp.pop %v1958
        %v1963 = vmul.f32 %v1940, %v1959
        %v1964 = vmul.f32 %v1942, %v1960
        %v1965 = vmul.f32 %v1944, %v1961
        %v1966 = vmul.f32 %v1946, %v1962
        %v1967 = vpack.c.bf16 %v1964, %v1963
        %v1968 = vpack.c.bf16 %v1966, %v1965
        %v1970 = vsel %vm1922, %v1967, 0
        %1972 = vmatprep.subr.bf16.mxu0 0
        %1973 = vmatpush1.bf16.msra.mxu0 %v1791
        %1974 = vmatprep.subr.bf16.mxu0 0
        %1975 = vmatpush1.bf16.msra.mxu0 0
        %1976 = vmatprep.subr.bf16.mxu0 0
        %1977 = vmatpush1.bf16.msra.mxu0 0
        %1978 = vmatprep.subr.bf16.mxu0 0
        %1979 = vmatpush1.bf16.msra.mxu0 0
        %1980 = vmatprep.subr.bf16.mxu0 0
        %1981 = vmatpush1.bf16.msra.mxu0 0
        %1982 = vmatprep.subr.bf16.mxu0 0
        %1983 = vmatpush1.bf16.msra.mxu0 0
        %1984 = vmatprep.subr.bf16.mxu0 0
        %1985 = vmatpush1.bf16.msra.mxu0 0
        %1986 = vmatprep.subr.bf16.mxu0 0
        %1987 = vmatpush1.bf16.msra.mxu0 0
        %1988 = vmatprep.subr.bf16.mxu0 0
        %1989 = vmatpush1.bf16.msra.mxu0 0
        %1990 = vmatprep.subr.bf16.mxu0 0
        %1991 = vmatpush1.bf16.msra.mxu0 0
        %1992 = vmatprep.subr.bf16.mxu0 0
        %1993 = vmatpush1.bf16.msra.mxu0 0
        %1994 = vmatprep.subr.bf16.mxu0 0
        %1995 = vmatpush1.bf16.msra.mxu0 0
        %1996 = vmatprep.subr.bf16.mxu0 0
        %1997 = vmatpush1.bf16.msra.mxu0 0
        %1998 = vmatprep.subr.bf16.mxu0 0
        %1999 = vmatpush1.bf16.msra.mxu0 0
        %2000 = vmatprep.subr.bf16.mxu0 0
        %2001 = vmatpush1.bf16.msra.mxu0 0
        %2002 = vmatprep.subr.bf16.mxu0 0
        %2003 = vmatpush1.bf16.msra.mxu0 0
        %2004 = vmatprep.mubr.bf16.mxu0 0
        %2005 = vmatmul.mubr.bf16.gmra.mrb[0].mxu0 %v1970
        %v2006 = vpop.f32.mrb[0].mxu0
        %v2007 = vadd.f32 0.0, %v2006
        %v2008 = vpop.f32.mrb[0].mxu0
        %v2009 = vpop.f32.mrb[0].mxu0
        %v2010 = vadd.f32 0.0, %v2009
        %v2011 = vpop.f32.mrb[0].mxu0
        %2012 = vdwg.mxu0
        %v2014 = vsel %vm1922, %v1968, 0
        %2016 = vmatprep.subr.bf16.mxu0 0
        %2017 = vmatpush1.bf16.msra.mxu0 %v1793
        %2018 = vmatprep.subr.bf16.mxu0 0
        %2019 = vmatpush1.bf16.msra.mxu0 0
        %2020 = vmatprep.subr.bf16.mxu0 0
        %2021 = vmatpush1.bf16.msra.mxu0 0
        %2022 = vmatprep.subr.bf16.mxu0 0
        %2023 = vmatpush1.bf16.msra.mxu0 0
        %2024 = vmatprep.subr.bf16.mxu0 0
        %2025 = vmatpush1.bf16.msra.mxu0 0
        %2026 = vmatprep.subr.bf16.mxu0 0
        %2027 = vmatpush1.bf16.msra.mxu0 0
        %2028 = vmatprep.subr.bf16.mxu0 0
        %2029 = vmatpush1.bf16.msra.mxu0 0
        %2030 = vmatprep.subr.bf16.mxu0 0
        %2031 = vmatpush1.bf16.msra.mxu0 0
        %2032 = vmatprep.subr.bf16.mxu0 0
        %2033 = vmatpush1.bf16.msra.mxu0 0
        %2034 = vmatprep.subr.bf16.mxu0 0
        %2035 = vmatpush1.bf16.msra.mxu0 0
        %2036 = vmatprep.subr.bf16.mxu0 0
        %2037 = vmatpush1.bf16.msra.mxu0 0
        %2038 = vmatprep.subr.bf16.mxu0 0
        %2039 = vmatpush1.bf16.msra.mxu0 0
        %2040 = vmatprep.subr.bf16.mxu0 0
        %2041 = vmatpush1.bf16.msra.mxu0 0
        %2042 = vmatprep.subr.bf16.mxu0 0
        %2043 = vmatpush1.bf16.msra.mxu0 0
        %2044 = vmatprep.subr.bf16.mxu0 0
        %2045 = vmatpush1.bf16.msra.mxu0 0
        %2046 = vmatprep.subr.bf16.mxu0 0
        %2047 = vmatpush1.bf16.msra.mxu0 0
        %2048 = vmatprep.mubr.bf16.mxu0 0
        %2049 = vmatmul.mubr.bf16.gmra.mrb[0].mxu0 %v2014
        %v2050 = vpop.f32.mrb[0].mxu0
        %v2051 = vadd.f32 0.0, %v2050
        %v2052 = vpop.f32.mrb[0].mxu0
        %v2053 = vpop.f32.mrb[0].mxu0
        %v2054 = vadd.f32 0.0, %v2053
        %v2055 = vpop.f32.mrb[0].mxu0
        %2056 = vdwg.mxu0
        %v2057 = vpack.c.bf16 %v2010, %v2007
        %v2058 = vpack.c.bf16 %v2054, %v2051
        %2060 = vrot.lane.b32.xlu0 %v1783, 64
        %v2061 = vpop.permute.xlu0 %2060
        %2063 = vrot.lane.b32.xlu0 %v1787, 64
        %v2064 = vpop.permute.xlu0 %2063
        %v2066 = vsel %vm1827, %v2061, 0
        %v2069 = vsel %vm1827, %v2064, 0
        %2071 = vmatprep.subr.bf16.mxu0 0
        %2072 = vmatpush1.bf16.xpose.msra.mxu0 %v2069
        %2073 = vmatprep.subr.bf16.mxu0 0
        %2074 = vmatpush1.bf16.xpose.msra.mxu0 0
        %2075 = vmatprep.subr.bf16.mxu0 0
        %2076 = vmatpush1.bf16.xpose.msra.mxu0 0
        %2077 = vmatprep.subr.bf16.mxu0 0
        %2078 = vmatpush1.bf16.xpose.msra.mxu0 0
        %2079 = vmatprep.subr.bf16.mxu0 0
        %2080 = vmatpush1.bf16.xpose.msra.mxu0 0
        %2081 = vmatprep.subr.bf16.mxu0 0
        %2082 = vmatpush1.bf16.xpose.msra.mxu0 0
        %2083 = vmatprep.subr.bf16.mxu0 0
        %2084 = vmatpush1.bf16.xpose.msra.mxu0 0
        %2085 = vmatprep.subr.bf16.mxu0 0
        %2086 = vmatpush1.bf16.xpose.msra.mxu0 0
        %2087 = vmatprep.subr.bf16.mxu0 0
        %2088 = vmatpush1.bf16.xpose.msra.mxu0 0
        %2089 = vmatprep.subr.bf16.mxu0 0
        %2090 = vmatpush1.bf16.xpose.msra.mxu0 0
        %2091 = vmatprep.subr.bf16.mxu0 0
        %2092 = vmatpush1.bf16.xpose.msra.mxu0 0
        %2093 = vmatprep.subr.bf16.mxu0 0
        %2094 = vmatpush1.bf16.xpose.msra.mxu0 0
        %2095 = vmatprep.subr.bf16.mxu0 0
        %2096 = vmatpush1.bf16.xpose.msra.mxu0 0
        %2097 = vmatprep.subr.bf16.mxu0 0
        %2098 = vmatpush1.bf16.xpose.msra.mxu0 0
        %2099 = vmatprep.subr.bf16.mxu0 0
        %2100 = vmatpush1.bf16.xpose.msra.mxu0 0
        %2101 = vmatprep.subr.bf16.mxu0 0
        %2102 = vmatpush1.bf16.xpose.msra.mxu0 0
        %2103 = vmatprep.mubr.bf16.mxu0 0
        %2104 = vmatmul.mubr.bf16.gmra.mrb[0].mxu0 %v2066
        %v2105 = vpop.f32.mrb[0].mxu0
        %v2106 = vadd.f32 0.0, %v2105
        %v2107 = vpop.f32.mrb[0].mxu0
        %v2108 = vpop.f32.mrb[0].mxu0
        %v2109 = vadd.f32 0.0, %v2108
        %v2110 = vpop.f32.mrb[0].mxu0
        %2111 = vdwg.mxu0
        %2113 = vrot.lane.b32.xlu0 %v1785, 64
        %v2114 = vpop.permute.xlu0 %2113
        %2116 = vrot.lane.b32.xlu0 %v1789, 64
        %v2117 = vpop.permute.xlu0 %2116
        %v2119 = vsel %vm1827, %v2114, 0
        %v2122 = vsel %vm1827, %v2117, 0
        %2124 = vmatprep.subr.bf16.mxu0 0
        %2125 = vmatpush1.bf16.xpose.msra.mxu0 %v2122
        %2126 = vmatprep.subr.bf16.mxu0 0
        %2127 = vmatpush1.bf16.xpose.msra.mxu0 0
        %2128 = vmatprep.subr.bf16.mxu0 0
        %2129 = vmatpush1.bf16.xpose.msra.mxu0 0
        %2130 = vmatprep.subr.bf16.mxu0 0
        %2131 = vmatpush1.bf16.xpose.msra.mxu0 0
        %2132 = vmatprep.subr.bf16.mxu0 0
        %2133 = vmatpush1.bf16.xpose.msra.mxu0 0
        %2134 = vmatprep.subr.bf16.mxu0 0
        %2135 = vmatpush1.bf16.xpose.msra.mxu0 0
        %2136 = vmatprep.subr.bf16.mxu0 0
        %2137 = vmatpush1.bf16.xpose.msra.mxu0 0
        %2138 = vmatprep.subr.bf16.mxu0 0
        %2139 = vmatpush1.bf16.xpose.msra.mxu0 0
        %2140 = vmatprep.subr.bf16.mxu0 0
        %2141 = vmatpush1.bf16.xpose.msra.mxu0 0
        %2142 = vmatprep.subr.bf16.mxu0 0
        %2143 = vmatpush1.bf16.xpose.msra.mxu0 0
        %2144 = vmatprep.subr.bf16.mxu0 0
        %2145 = vmatpush1.bf16.xpose.msra.mxu0 0
        %2146 = vmatprep.subr.bf16.mxu0 0
        %2147 = vmatpush1.bf16.xpose.msra.mxu0 0
        %2148 = vmatprep.subr.bf16.mxu0 0
        %2149 = vmatpush1.bf16.xpose.msra.mxu0 0
        %2150 = vmatprep.subr.bf16.mxu0 0
        %2151 = vmatpush1.bf16.xpose.msra.mxu0 0
        %2152 = vmatprep.subr.bf16.mxu0 0
        %2153 = vmatpush1.bf16.xpose.msra.mxu0 0
        %2154 = vmatprep.subr.bf16.mxu0 0
        %2155 = vmatpush1.bf16.xpose.msra.mxu0 0
        %2156 = vmatprep.mubr.bf16.mxu0 0
        %2157 = vmatmul.mubr.bf16.gmra.mrb[0].mxu0 %v2119
        %v2158 = vpop.f32.mrb[0].mxu0
        %v2159 = vadd.f32 0.0, %v2158
        %v2160 = vpop.f32.mrb[0].mxu0
        %v2161 = vpop.f32.mrb[0].mxu0
        %v2162 = vadd.f32 0.0, %v2161
        %v2163 = vpop.f32.mrb[0].mxu0
        %2164 = vdwg.mxu0
        %v2165 = vsel %vm1922, %v2106, -inf
        %2166 = vmax.xlane.f32.xlu0 %v2165
        %v2167 = vpop.xlane.xlu0 %2166
        %v2168 = vsel %vm1922, %v2109, -inf
        %2169 = vmax.xlane.f32.xlu0 %v2168
        %v2170 = vpop.xlane.xlu0 %2169
        %v2171 = vsel %vm1922, %v2159, -inf
        %2172 = vmax.xlane.f32.xlu0 %v2171
        %v2173 = vpop.xlane.xlu0 %2172
        %v2174 = vsel %vm1922, %v2162, -inf
        %2175 = vmax.xlane.f32.xlu0 %v2174
        %v2176 = vpop.xlane.xlu0 %2175
        %v2177 = vsub.f32 %v2106, %v2167
        %v2178 = vsub.f32 %v2109, %v2170
        %v2179 = vsub.f32 %v2159, %v2173
        %v2180 = vsub.f32 %v2162, %v2176
        %v2181 = vmul.f32 %v2177, 1.442695
        %v2182 = vpow.pop %v2181
        %v2183 = vmul.f32 %v2178, 1.442695
        %v2184 = vpow.pop %v2183
        %v2185 = vmul.f32 %v2179, 1.442695
        %v2186 = vpow.pop %v2185
        %v2187 = vmul.f32 %v2180, 1.442695
        %v2188 = vpow.pop %v2187
        %v2189 = vsel %vm1922, %v2182, 0.0
        %2190 = vadd.xlane.f32.xlu0 %v2189
        %v2191 = vpop.xlane.xlu0 %2190
        %v2192 = vsel %vm1922, %v2184, 0.0
        %2193 = vadd.xlane.f32.xlu0 %v2192
        %v2194 = vpop.xlane.xlu0 %2193
        %v2195 = vsel %vm1922, %v2186, 0.0
        %2196 = vadd.xlane.f32.xlu0 %v2195
        %v2197 = vpop.xlane.xlu0 %2196
        %v2198 = vsel %vm1922, %v2188, 0.0
        %2199 = vadd.xlane.f32.xlu0 %v2198
        %v2200 = vpop.xlane.xlu0 %2199
        %v2201 = vrcp.pop %v2191
        %v2202 = vrcp.pop %v2194
        %v2203 = vrcp.pop %v2197
        %v2204 = vrcp.pop %v2200
        %v2205 = vmul.f32 %v2182, %v2201
        %v2206 = vmul.f32 %v2184, %v2202
        %v2207 = vmul.f32 %v2186, %v2203
        %v2208 = vmul.f32 %v2188, %v2204
        %v2209 = vpack.c.bf16 %v2206, %v2205
        %v2210 = vpack.c.bf16 %v2208, %v2207
        %2212 = vrot.lane.b32.xlu0 %v1791, 64
        %v2213 = vpop.permute.xlu0 %2212
        %v2216 = vsel %vm1922, %v2209, 0
        %2218 = vmatprep.subr.bf16.mxu0 0
        %2219 = vmatpush1.bf16.msra.mxu0 %v2213
        %2220 = vmatprep.subr.bf16.mxu0 0
        %2221 = vmatpush1.bf16.msra.mxu0 0
        %2222 = vmatprep.subr.bf16.mxu0 0
        %2223 = vmatpush1.bf16.msra.mxu0 0
        %2224 = vmatprep.subr.bf16.mxu0 0
        %2225 = vmatpush1.bf16.msra.mxu0 0
        %2226 = vmatprep.subr.bf16.mxu0 0
        %2227 = vmatpush1.bf16.msra.mxu0 0
        %2228 = vmatprep.subr.bf16.mxu0 0
        %2229 = vmatpush1.bf16.msra.mxu0 0
        %2230 = vmatprep.subr.bf16.mxu0 0
        %2231 = vmatpush1.bf16.msra.mxu0 0
        %2232 = vmatprep.subr.bf16.mxu0 0
        %2233 = vmatpush1.bf16.msra.mxu0 0
        %2234 = vmatprep.subr.bf16.mxu0 0
        %2235 = vmatpush1.bf16.msra.mxu0 0
        %2236 = vmatprep.subr.bf16.mxu0 0
        %2237 = vmatpush1.bf16.msra.mxu0 0
        %2238 = vmatprep.subr.bf16.mxu0 0
        %2239 = vmatpush1.bf16.msra.mxu0 0
        %2240 = vmatprep.subr.bf16.mxu0 0
        %2241 = vmatpush1.bf16.msra.mxu0 0
        %2242 = vmatprep.subr.bf16.mxu0 0
        %2243 = vmatpush1.bf16.msra.mxu0 0
        %2244 = vmatprep.subr.bf16.mxu0 0
        %2245 = vmatpush1.bf16.msra.mxu0 0
        %2246 = vmatprep.subr.bf16.mxu0 0
        %2247 = vmatpush1.bf16.msra.mxu0 0
        %2248 = vmatprep.subr.bf16.mxu0 0
        %2249 = vmatpush1.bf16.msra.mxu0 0
        %2250 = vmatprep.mubr.bf16.mxu0 0
        %2251 = vmatmul.mubr.bf16.gmra.mrb[0].mxu0 %v2216
        %v2252 = vpop.f32.mrb[0].mxu0
        %v2253 = vadd.f32 0.0, %v2252
        %v2254 = vpop.f32.mrb[0].mxu0
        %v2255 = vpop.f32.mrb[0].mxu0
        %v2256 = vadd.f32 0.0, %v2255
        %v2257 = vpop.f32.mrb[0].mxu0
        %2258 = vdwg.mxu0
        %2260 = vrot.lane.b32.xlu0 %v1793, 64
        %v2261 = vpop.permute.xlu0 %2260
        %v2264 = vsel %vm1922, %v2210, 0
        %2266 = vmatprep.subr.bf16.mxu0 0
        %2267 = vmatpush1.bf16.msra.mxu0 %v2261
        %2268 = vmatprep.subr.bf16.mxu0 0
        %2269 = vmatpush1.bf16.msra.mxu0 0
        %2270 = vmatprep.subr.bf16.mxu0 0
        %2271 = vmatpush1.bf16.msra.mxu0 0
        %2272 = vmatprep.subr.bf16.mxu0 0
        %2273 = vmatpush1.bf16.msra.mxu0 0
        %2274 = vmatprep.subr.bf16.mxu0 0
        %2275 = vmatpush1.bf16.msra.mxu0 0
        %2276 = vmatprep.subr.bf16.mxu0 0
        %2277 = vmatpush1.bf16.msra.mxu0 0
        %2278 = vmatprep.subr.bf16.mxu0 0
        %2279 = vmatpush1.bf16.msra.mxu0 0
        %2280 = vmatprep.subr.bf16.mxu0 0
        %2281 = vmatpush1.bf16.msra.mxu0 0
        %2282 = vmatprep.subr.bf16.mxu0 0
        %2283 = vmatpush1.bf16.msra.mxu0 0
        %2284 = vmatprep.subr.bf16.mxu0 0
        %2285 = vmatpush1.bf16.msra.mxu0 0
        %2286 = vmatprep.subr.bf16.mxu0 0
        %2287 = vmatpush1.bf16.msra.mxu0 0
        %2288 = vmatprep.subr.bf16.mxu0 0
        %2289 = vmatpush1.bf16.msra.mxu0 0
        %2290 = vmatprep.subr.bf16.mxu0 0
        %2291 = vmatpush1.bf16.msra.mxu0 0
        %2292 = vmatprep.subr.bf16.mxu0 0
        %2293 = vmatpush1.bf16.msra.mxu0 0
        %2294 = vmatprep.subr.bf16.mxu0 0
        %2295 = vmatpush1.bf16.msra.mxu0 0
        %2296 = vmatprep.subr.bf16.mxu0 0
        %2297 = vmatpush1.bf16.msra.mxu0 0
        %2298 = vmatprep.mubr.bf16.mxu0 0
        %2299 = vmatmul.mubr.bf16.gmra.mrb[0].mxu0 %v2264
        %v2300 = vpop.f32.mrb[0].mxu0
        %v2301 = vadd.f32 0.0, %v2300
        %v2302 = vpop.f32.mrb[0].mxu0
        %v2303 = vpop.f32.mrb[0].mxu0
        %v2304 = vadd.f32 0.0, %v2303
        %v2305 = vpop.f32.mrb[0].mxu0
        %2306 = vdwg.mxu0
        %v2307 = vpack.c.bf16 %v2256, %v2253
        %v2308 = vpack.c.bf16 %v2304, %v2301
        %v2317 = vunpack.c.l.b16 %v1803
        %v2318 = vunpack.c.h.b16 %v1803
        %v2319 = vunpack.c.l.b16 %v1804
        %v2320 = vunpack.c.h.b16 %v1804
        %v2321 = vunpack.c.l.b16 %v1805
        %v2322 = vunpack.c.h.b16 %v1805
        %v2323 = vunpack.c.l.b16 %v1806
        %v2324 = vunpack.c.h.b16 %v1806
        %v2325 = vunpack.c.l.b16 %v1807
        %v2326 = vunpack.c.h.b16 %v1807
        %v2327 = vunpack.c.l.b16 %v1808
        %v2328 = vunpack.c.h.b16 %v1808
        %v2329 = vunpack.c.l.b16 %v1809
        %v2330 = vunpack.c.h.b16 %v1809
        %v2331 = vunpack.c.l.b16 %v1810
        %v2332 = vunpack.c.h.b16 %v1810
        %v2333 = vpack.c.b16 %v2319, %v2317
        %v2334 = vpack.c.b16 %v2320, %v2318
        %v2335 = vpack.c.b16 %v2323, %v2321
        %v2336 = vpack.c.b16 %v2324, %v2322
        %v2337 = vpack.c.b16 %v2327, %v2325
        %v2338 = vpack.c.b16 %v2328, %v2326
        %v2339 = vpack.c.b16 %v2331, %v2329
        %v2340 = vpack.c.b16 %v2332, %v2330
        %v2350 = vsel %vm1827, %v2307, 0
        %v2353 = vsel %vm1827, %v2308, 0
        %2355 = vmatprep.subr.bf16.mxu0 %v2334
        %2356 = vmatpush1.bf16.msra.mxu0 %v2333
        %2357 = vmatprep.subr.bf16.mxu0 %v2336
        %2358 = vmatpush1.bf16.msra.mxu0 %v2335
        %2359 = vmatprep.subr.bf16.mxu0 %v2338
        %2360 = vmatpush1.bf16.msra.mxu0 %v2337
        %2361 = vmatprep.subr.bf16.mxu0 %v2340
        %2362 = vmatpush1.bf16.msra.mxu0 %v2339
        %2363 = vmatprep.subr.bf16.mxu0 0
        %2364 = vmatpush1.bf16.msra.mxu0 0
        %2365 = vmatprep.subr.bf16.mxu0 0
        %2366 = vmatpush1.bf16.msra.mxu0 0
        %2367 = vmatprep.subr.bf16.mxu0 0
        %2368 = vmatpush1.bf16.msra.mxu0 0
        %2369 = vmatprep.subr.bf16.mxu0 0
        %2370 = vmatpush1.bf16.msra.mxu0 0
        %2371 = vmatprep.subr.bf16.mxu0 0
        %2372 = vmatpush1.bf16.msra.mxu0 0
        %2373 = vmatprep.subr.bf16.mxu0 0
        %2374 = vmatpush1.bf16.msra.mxu0 0
        %2375 = vmatprep.subr.bf16.mxu0 0
        %2376 = vmatpush1.bf16.msra.mxu0 0
        %2377 = vmatprep.subr.bf16.mxu0 0
        %2378 = vmatpush1.bf16.msra.mxu0 0
        %2379 = vmatprep.subr.bf16.mxu0 0
        %2380 = vmatpush1.bf16.msra.mxu0 0
        %2381 = vmatprep.subr.bf16.mxu0 0
        %2382 = vmatpush1.bf16.msra.mxu0 0
        %2383 = vmatprep.subr.bf16.mxu0 0
        %2384 = vmatpush1.bf16.msra.mxu0 0
        %2385 = vmatprep.subr.bf16.mxu0 0
        %2386 = vmatpush1.bf16.msra.mxu0 0
        %2387 = vmatprep.mubr.bf16.mxu0 0
        %2388 = vmatmul.mubr.bf16.gmra.mrb[0].mxu0 %v2350
        %v2389 = vpop.f32.mrb[0].mxu0
        %v2390 = vadd.f32 0.0, %v2389
        %v2391 = vpop.f32.mrb[0].mxu0
        %v2392 = vadd.f32 0.0, %v2391
        %v2393 = vpop.f32.mrb[0].mxu0
        %v2394 = vadd.f32 0.0, %v2393
        %v2395 = vpop.f32.mrb[0].mxu0
        %v2396 = vadd.f32 0.0, %v2395
        %2397 = vmatprep.mubr.bf16.mxu0 0
        %2398 = vmatmul.mubr.bf16.gmra.mrb[0].mxu0 %v2353
        %v2399 = vpop.f32.mrb[0].mxu0
        %v2400 = vadd.f32 0.0, %v2399
        %v2401 = vpop.f32.mrb[0].mxu0
        %v2402 = vadd.f32 0.0, %v2401
        %v2403 = vpop.f32.mrb[0].mxu0
        %v2404 = vadd.f32 0.0, %v2403
        %v2405 = vpop.f32.mrb[0].mxu0
        %v2406 = vadd.f32 0.0, %v2405
        %2407 = vdwg.mxu0
        %v2416 = vunpack.c.l.b16 %v1795
        %v2417 = vunpack.c.h.b16 %v1795
        %v2418 = vunpack.c.l.b16 %v1796
        %v2419 = vunpack.c.h.b16 %v1796
        %v2420 = vunpack.c.l.b16 %v1797
        %v2421 = vunpack.c.h.b16 %v1797
        %v2422 = vunpack.c.l.b16 %v1798
        %v2423 = vunpack.c.h.b16 %v1798
        %v2424 = vunpack.c.l.b16 %v1799
        %v2425 = vunpack.c.h.b16 %v1799
        %v2426 = vunpack.c.l.b16 %v1800
        %v2427 = vunpack.c.h.b16 %v1800
        %v2428 = vunpack.c.l.b16 %v1801
        %v2429 = vunpack.c.h.b16 %v1801
        %v2430 = vunpack.c.l.b16 %v1802
        %v2431 = vunpack.c.h.b16 %v1802
        %v2432 = vpack.c.b16 %v2418, %v2416
        %v2433 = vpack.c.b16 %v2419, %v2417
        %v2434 = vpack.c.b16 %v2422, %v2420
        %v2435 = vpack.c.b16 %v2423, %v2421
        %v2436 = vpack.c.b16 %v2426, %v2424
        %v2437 = vpack.c.b16 %v2427, %v2425
        %v2438 = vpack.c.b16 %v2430, %v2428
        %v2439 = vpack.c.b16 %v2431, %v2429
        %v2449 = vsel %vm1827, %v2057, 0
        %v2452 = vsel %vm1827, %v2058, 0
        %2454 = vmatprep.subr.bf16.mxu0 %v2433
        %2455 = vmatpush1.bf16.msra.mxu0 %v2432
        %2456 = vmatprep.subr.bf16.mxu0 %v2435
        %2457 = vmatpush1.bf16.msra.mxu0 %v2434
        %2458 = vmatprep.subr.bf16.mxu0 %v2437
        %2459 = vmatpush1.bf16.msra.mxu0 %v2436
        %2460 = vmatprep.subr.bf16.mxu0 %v2439
        %2461 = vmatpush1.bf16.msra.mxu0 %v2438
        %2462 = vmatprep.subr.bf16.mxu0 0
        %2463 = vmatpush1.bf16.msra.mxu0 0
        %2464 = vmatprep.subr.bf16.mxu0 0
        %2465 = vmatpush1.bf16.msra.mxu0 0
        %2466 = vmatprep.subr.bf16.mxu0 0
        %2467 = vmatpush1.bf16.msra.mxu0 0
        %2468 = vmatprep.subr.bf16.mxu0 0
        %2469 = vmatpush1.bf16.msra.mxu0 0
        %2470 = vmatprep.subr.bf16.mxu0 0
        %2471 = vmatpush1.bf16.msra.mxu0 0
        %2472 = vmatprep.subr.bf16.mxu0 0
        %2473 = vmatpush1.bf16.msra.mxu0 0
        %2474 = vmatprep.subr.bf16.mxu0 0
        %2475 = vmatpush1.bf16.msra.mxu0 0
        %2476 = vmatprep.subr.bf16.mxu0 0
        %2477 = vmatpush1.bf16.msra.mxu0 0
        %2478 = vmatprep.subr.bf16.mxu0 0
        %2479 = vmatpush1.bf16.msra.mxu0 0
        %2480 = vmatprep.subr.bf16.mxu0 0
        %2481 = vmatpush1.bf16.msra.mxu0 0
        %2482 = vmatprep.subr.bf16.mxu0 0
        %2483 = vmatpush1.bf16.msra.mxu0 0
        %2484 = vmatprep.subr.bf16.mxu0 0
        %2485 = vmatpush1.bf16.msra.mxu0 0
        %2486 = vmatprep.mubr.bf16.mxu0 0
        %2487 = vmatmul.mubr.bf16.gmra.mrb[0].mxu0 %v2449
        %v2488 = vpop.f32.mrb[0].mxu0
        %v2489 = vadd.f32 %v2390, %v2488
        %v2490 = vpop.f32.mrb[0].mxu0
        %v2491 = vadd.f32 %v2392, %v2490
        %v2492 = vpop.f32.mrb[0].mxu0
        %v2493 = vadd.f32 %v2394, %v2492
        %v2494 = vpop.f32.mrb[0].mxu0
        %v2495 = vadd.f32 %v2396, %v2494
        %2496 = vmatprep.mubr.bf16.mxu0 0
        %2497 = vmatmul.mubr.bf16.gmra.mrb[0].mxu0 %v2452
        %v2498 = vpop.f32.mrb[0].mxu0
        %v2499 = vadd.f32 %v2400, %v2498
        %v2500 = vpop.f32.mrb[0].mxu0
        %v2501 = vadd.f32 %v2402, %v2500
        %v2502 = vpop.f32.mrb[0].mxu0
        %v2503 = vadd.f32 %v2404, %v2502
        %v2504 = vpop.f32.mrb[0].mxu0
        %v2505 = vadd.f32 %v2406, %v2504
        %2506 = vdwg.mxu0
        %v2508 = vsel %vm1827, %v1784, 0
        %v2511 = vsel %vm1827, %v1788, 0
        %2513 = vmatprep.subr.bf16.mxu0 0
        %2514 = vmatpush1.bf16.xpose.msra.mxu0 %v2511
        %2515 = vmatprep.subr.bf16.mxu0 0
        %2516 = vmatpush1.bf16.xpose.msra.mxu0 0
        %2517 = vmatprep.subr.bf16.mxu0 0
        %2518 = vmatpush1.bf16.xpose.msra.mxu0 0
        %2519 = vmatprep.subr.bf16.mxu0 0
        %2520 = vmatpush1.bf16.xpose.msra.mxu0 0
        %2521 = vmatprep.subr.bf16.mxu0 0
        %2522 = vmatpush1.bf16.xpose.msra.mxu0 0
        %2523 = vmatprep.subr.bf16.mxu0 0
        %2524 = vmatpush1.bf16.xpose.msra.mxu0 0
        %2525 = vmatprep.subr.bf16.mxu0 0
        %2526 = vmatpush1.bf16.xpose.msra.mxu0 0
        %2527 = vmatprep.subr.bf16.mxu0 0
        %2528 = vmatpush1.bf16.xpose.msra.mxu0 0
        %2529 = vmatprep.subr.bf16.mxu0 0
        %2530 = vmatpush1.bf16.xpose.msra.mxu0 0
        %2531 = vmatprep.subr.bf16.mxu0 0
        %2532 = vmatpush1.bf16.xpose.msra.mxu0 0
        %2533 = vmatprep.subr.bf16.mxu0 0
        %2534 = vmatpush1.bf16.xpose.msra.mxu0 0
        %2535 = vmatprep.subr.bf16.mxu0 0
        %2536 = vmatpush1.bf16.xpose.msra.mxu0 0
        %2537 = vmatprep.subr.bf16.mxu0 0
        %2538 = vmatpush1.bf16.xpose.msra.mxu0 0
        %2539 = vmatprep.subr.bf16.mxu0 0
        %2540 = vmatpush1.bf16.xpose.msra.mxu0 0
        %2541 = vmatprep.subr.bf16.mxu0 0
        %2542 = vmatpush1.bf16.xpose.msra.mxu0 0
        %2543 = vmatprep.subr.bf16.mxu0 0
        %2544 = vmatpush1.bf16.xpose.msra.mxu0 0
        %2545 = vmatprep.mubr.bf16.mxu0 0
        %2546 = vmatmul.mubr.bf16.gmra.mrb[0].mxu0 %v2508
        %v2547 = vpop.f32.mrb[0].mxu0
        %v2548 = vadd.f32 0.0, %v2547
        %v2549 = vpop.f32.mrb[0].mxu0
        %v2550 = vpop.f32.mrb[0].mxu0
        %v2551 = vadd.f32 0.0, %v2550
        %v2552 = vpop.f32.mrb[0].mxu0
        %2553 = vdwg.mxu0
        %v2555 = vsel %vm1827, %v1786, 0
        %v2558 = vsel %vm1827, %v1790, 0
        %2560 = vmatprep.subr.bf16.mxu0 0
        %2561 = vmatpush1.bf16.xpose.msra.mxu0 %v2558
        %2562 = vmatprep.subr.bf16.mxu0 0
        %2563 = vmatpush1.bf16.xpose.msra.mxu0 0
        %2564 = vmatprep.subr.bf16.mxu0 0
        %2565 = vmatpush1.bf16.xpose.msra.mxu0 0
        %2566 = vmatprep.subr.bf16.mxu0 0
        %2567 = vmatpush1.bf16.xpose.msra.mxu0 0
        %2568 = vmatprep.subr.bf16.mxu0 0
        %2569 = vmatpush1.bf16.xpose.msra.mxu0 0
        %2570 = vmatprep.subr.bf16.mxu0 0
        %2571 = vmatpush1.bf16.xpose.msra.mxu0 0
        %2572 = vmatprep.subr.bf16.mxu0 0
        %2573 = vmatpush1.bf16.xpose.msra.mxu0 0
        %2574 = vmatprep.subr.bf16.mxu0 0
        %2575 = vmatpush1.bf16.xpose.msra.mxu0 0
        %2576 = vmatprep.subr.bf16.mxu0 0
        %2577 = vmatpush1.bf16.xpose.msra.mxu0 0
        %2578 = vmatprep.subr.bf16.mxu0 0
        %2579 = vmatpush1.bf16.xpose.msra.mxu0 0
        %2580 = vmatprep.subr.bf16.mxu0 0
        %2581 = vmatpush1.bf16.xpose.msra.mxu0 0
        %2582 = vmatprep.subr.bf16.mxu0 0
        %2583 = vmatpush1.bf16.xpose.msra.mxu0 0
        %2584 = vmatprep.subr.bf16.mxu0 0
        %2585 = vmatpush1.bf16.xpose.msra.mxu0 0
        %2586 = vmatprep.subr.bf16.mxu0 0
        %2587 = vmatpush1.bf16.xpose.msra.mxu0 0
        %2588 = vmatprep.subr.bf16.mxu0 0
        %2589 = vmatpush1.bf16.xpose.msra.mxu0 0
        %2590 = vmatprep.subr.bf16.mxu0 0
        %2591 = vmatpush1.bf16.xpose.msra.mxu0 0
        %2592 = vmatprep.mubr.bf16.mxu0 0
        %2593 = vmatmul.mubr.bf16.gmra.mrb[0].mxu0 %v2555
        %v2594 = vpop.f32.mrb[0].mxu0
        %v2595 = vadd.f32 0.0, %v2594
        %v2596 = vpop.f32.mrb[0].mxu0
        %v2597 = vpop.f32.mrb[0].mxu0
        %v2598 = vadd.f32 0.0, %v2597
        %v2599 = vpop.f32.mrb[0].mxu0
        %2600 = vdwg.mxu0
        %v2601 = vsel %vm1922, %v2548, -inf
        %2602 = vmax.xlane.f32.xlu0 %v2601
        %v2603 = vpop.xlane.xlu0 %2602
        %v2604 = vsel %vm1922, %v2551, -inf
        %2605 = vmax.xlane.f32.xlu0 %v2604
        %v2606 = vpop.xlane.xlu0 %2605
        %v2607 = vsel %vm1922, %v2595, -inf
        %2608 = vmax.xlane.f32.xlu0 %v2607
        %v2609 = vpop.xlane.xlu0 %2608
        %v2610 = vsel %vm1922, %v2598, -inf
        %2611 = vmax.xlane.f32.xlu0 %v2610
        %v2612 = vpop.xlane.xlu0 %2611
        %v2613 = vsub.f32 %v2548, %v2603
        %v2614 = vsub.f32 %v2551, %v2606
        %v2615 = vsub.f32 %v2595, %v2609
        %v2616 = vsub.f32 %v2598, %v2612
        %v2617 = vmul.f32 %v2613, 1.442695
        %v2618 = vpow.pop %v2617
        %v2619 = vmul.f32 %v2614, 1.442695
        %v2620 = vpow.pop %v2619
        %v2621 = vmul.f32 %v2615, 1.442695
        %v2622 = vpow.pop %v2621
        %v2623 = vmul.f32 %v2616, 1.442695
        %v2624 = vpow.pop %v2623
        %v2625 = vsel %vm1922, %v2618, 0.0
        %2626 = vadd.xlane.f32.xlu0 %v2625
        %v2627 = vpop.xlane.xlu0 %2626
        %v2628 = vsel %vm1922, %v2620, 0.0
        %2629 = vadd.xlane.f32.xlu0 %v2628
        %v2630 = vpop.xlane.xlu0 %2629
        %v2631 = vsel %vm1922, %v2622, 0.0
        %2632 = vadd.xlane.f32.xlu0 %v2631
        %v2633 = vpop.xlane.xlu0 %2632
        %v2634 = vsel %vm1922, %v2624, 0.0
        %2635 = vadd.xlane.f32.xlu0 %v2634
        %v2636 = vpop.xlane.xlu0 %2635
        %v2637 = vrcp.pop %v2627
        %v2638 = vrcp.pop %v2630
        %v2639 = vrcp.pop %v2633
        %v2640 = vrcp.pop %v2636
        %v2641 = vmul.f32 %v2618, %v2637
        %v2642 = vmul.f32 %v2620, %v2638
        %v2643 = vmul.f32 %v2622, %v2639
        %v2644 = vmul.f32 %v2624, %v2640
        %v2645 = vpack.c.bf16 %v2642, %v2641
        %v2646 = vpack.c.bf16 %v2644, %v2643
        %v2648 = vsel %vm1922, %v2645, 0
        %2650 = vmatprep.subr.bf16.mxu0 0
        %2651 = vmatpush1.bf16.msra.mxu0 %v1792
        %2652 = vmatprep.subr.bf16.mxu0 0
        %2653 = vmatpush1.bf16.msra.mxu0 0
        %2654 = vmatprep.subr.bf16.mxu0 0
        %2655 = vmatpush1.bf16.msra.mxu0 0
        %2656 = vmatprep.subr.bf16.mxu0 0
        %2657 = vmatpush1.bf16.msra.mxu0 0
        %2658 = vmatprep.subr.bf16.mxu0 0
        %2659 = vmatpush1.bf16.msra.mxu0 0
        %2660 = vmatprep.subr.bf16.mxu0 0
        %2661 = vmatpush1.bf16.msra.mxu0 0
        %2662 = vmatprep.subr.bf16.mxu0 0
        %2663 = vmatpush1.bf16.msra.mxu0 0
        %2664 = vmatprep.subr.bf16.mxu0 0
        %2665 = vmatpush1.bf16.msra.mxu0 0
        %2666 = vmatprep.subr.bf16.mxu0 0
        %2667 = vmatpush1.bf16.msra.mxu0 0
        %2668 = vmatprep.subr.bf16.mxu0 0
        %2669 = vmatpush1.bf16.msra.mxu0 0
        %2670 = vmatprep.subr.bf16.mxu0 0
        %2671 = vmatpush1.bf16.msra.mxu0 0
        %2672 = vmatprep.subr.bf16.mxu0 0
        %2673 = vmatpush1.bf16.msra.mxu0 0
        %2674 = vmatprep.subr.bf16.mxu0 0
        %2675 = vmatpush1.bf16.msra.mxu0 0
        %2676 = vmatprep.subr.bf16.mxu0 0
        %2677 = vmatpush1.bf16.msra.mxu0 0
        %2678 = vmatprep.subr.bf16.mxu0 0
        %2679 = vmatpush1.bf16.msra.mxu0 0
        %2680 = vmatprep.subr.bf16.mxu0 0
        %2681 = vmatpush1.bf16.msra.mxu0 0
        %2682 = vmatprep.mubr.bf16.mxu0 0
        %2683 = vmatmul.mubr.bf16.gmra.mrb[0].mxu0 %v2648
        %v2684 = vpop.f32.mrb[0].mxu0
        %v2685 = vadd.f32 0.0, %v2684
        %v2686 = vpop.f32.mrb[0].mxu0
        %v2687 = vpop.f32.mrb[0].mxu0
        %v2688 = vadd.f32 0.0, %v2687
        %v2689 = vpop.f32.mrb[0].mxu0
        %2690 = vdwg.mxu0
        %v2692 = vsel %vm1922, %v2646, 0
        %2694 = vmatprep.subr.bf16.mxu0 0
        %2695 = vmatpush1.bf16.msra.mxu0 %v1794
        %2696 = vmatprep.subr.bf16.mxu0 0
        %2697 = vmatpush1.bf16.msra.mxu0 0
        %2698 = vmatprep.subr.bf16.mxu0 0
        %2699 = vmatpush1.bf16.msra.mxu0 0
        %2700 = vmatprep.subr.bf16.mxu0 0
        %2701 = vmatpush1.bf16.msra.mxu0 0
        %2702 = vmatprep.subr.bf16.mxu0 0
        %2703 = vmatpush1.bf16.msra.mxu0 0
        %2704 = vmatprep.subr.bf16.mxu0 0
        %2705 = vmatpush1.bf16.msra.mxu0 0
        %2706 = vmatprep.subr.bf16.mxu0 0
        %2707 = vmatpush1.bf16.msra.mxu0 0
        %2708 = vmatprep.subr.bf16.mxu0 0
        %2709 = vmatpush1.bf16.msra.mxu0 0
        %2710 = vmatprep.subr.bf16.mxu0 0
        %2711 = vmatpush1.bf16.msra.mxu0 0
        %2712 = vmatprep.subr.bf16.mxu0 0
        %2713 = vmatpush1.bf16.msra.mxu0 0
        %2714 = vmatprep.subr.bf16.mxu0 0
        %2715 = vmatpush1.bf16.msra.mxu0 0
        %2716 = vmatprep.subr.bf16.mxu0 0
        %2717 = vmatpush1.bf16.msra.mxu0 0
        %2718 = vmatprep.subr.bf16.mxu0 0
        %2719 = vmatpush1.bf16.msra.mxu0 0
        %2720 = vmatprep.subr.bf16.mxu0 0
        %2721 = vmatpush1.bf16.msra.mxu0 0
        %2722 = vmatprep.subr.bf16.mxu0 0
        %2723 = vmatpush1.bf16.msra.mxu0 0
        %2724 = vmatprep.subr.bf16.mxu0 0
        %2725 = vmatpush1.bf16.msra.mxu0 0
        %2726 = vmatprep.mubr.bf16.mxu0 0
        %2727 = vmatmul.mubr.bf16.gmra.mrb[0].mxu0 %v2692
        %v2728 = vpop.f32.mrb[0].mxu0
        %v2729 = vadd.f32 0.0, %v2728
        %v2730 = vpop.f32.mrb[0].mxu0
        %v2731 = vpop.f32.mrb[0].mxu0
        %v2732 = vadd.f32 0.0, %v2731
        %v2733 = vpop.f32.mrb[0].mxu0
        %2734 = vdwg.mxu0
        %v2735 = vpack.c.bf16 %v2688, %v2685
        %v2736 = vpack.c.bf16 %v2732, %v2729
        %v2745 = vunpack.c.l.b16 %v1811
        %v2746 = vunpack.c.h.b16 %v1811
        %v2747 = vunpack.c.l.b16 %v1812
        %v2748 = vunpack.c.h.b16 %v1812
        %v2749 = vunpack.c.l.b16 %v1813
        %v2750 = vunpack.c.h.b16 %v1813
        %v2751 = vunpack.c.l.b16 %v1814
        %v2752 = vunpack.c.h.b16 %v1814
        %v2753 = vunpack.c.l.b16 %v1815
        %v2754 = vunpack.c.h.b16 %v1815
        %v2755 = vunpack.c.l.b16 %v1816
        %v2756 = vunpack.c.h.b16 %v1816
        %v2757 = vunpack.c.l.b16 %v1817
        %v2758 = vunpack.c.h.b16 %v1817
        %v2759 = vunpack.c.l.b16 %v1818
        %v2760 = vunpack.c.h.b16 %v1818
        %v2761 = vpack.c.b16 %v2747, %v2745
        %v2762 = vpack.c.b16 %v2748, %v2746
        %v2763 = vpack.c.b16 %v2751, %v2749
        %v2764 = vpack.c.b16 %v2752, %v2750
        %v2765 = vpack.c.b16 %v2755, %v2753
        %v2766 = vpack.c.b16 %v2756, %v2754
        %v2767 = vpack.c.b16 %v2759, %v2757
        %v2768 = vpack.c.b16 %v2760, %v2758
        %v2778 = vsel %vm1827, %v2735, 0
        %v2781 = vsel %vm1827, %v2736, 0
        %2783 = vmatprep.subr.bf16.mxu0 %v2762
        %2784 = vmatpush1.bf16.msra.mxu0 %v2761
        %2785 = vmatprep.subr.bf16.mxu0 %v2764
        %2786 = vmatpush1.bf16.msra.mxu0 %v2763
        %2787 = vmatprep.subr.bf16.mxu0 %v2766
        %2788 = vmatpush1.bf16.msra.mxu0 %v2765
        %2789 = vmatprep.subr.bf16.mxu0 %v2768
        %2790 = vmatpush1.bf16.msra.mxu0 %v2767
        %2791 = vmatprep.subr.bf16.mxu0 0
        %2792 = vmatpush1.bf16.msra.mxu0 0
        %2793 = vmatprep.subr.bf16.mxu0 0
        %2794 = vmatpush1.bf16.msra.mxu0 0
        %2795 = vmatprep.subr.bf16.mxu0 0
        %2796 = vmatpush1.bf16.msra.mxu0 0
        %2797 = vmatprep.subr.bf16.mxu0 0
        %2798 = vmatpush1.bf16.msra.mxu0 0
        %2799 = vmatprep.subr.bf16.mxu0 0
        %2800 = vmatpush1.bf16.msra.mxu0 0
        %2801 = vmatprep.subr.bf16.mxu0 0
        %2802 = vmatpush1.bf16.msra.mxu0 0
        %2803 = vmatprep.subr.bf16.mxu0 0
        %2804 = vmatpush1.bf16.msra.mxu0 0
        %2805 = vmatprep.subr.bf16.mxu0 0
        %2806 = vmatpush1.bf16.msra.mxu0 0
        %2807 = vmatprep.subr.bf16.mxu0 0
        %2808 = vmatpush1.bf16.msra.mxu0 0
        %2809 = vmatprep.subr.bf16.mxu0 0
        %2810 = vmatpush1.bf16.msra.mxu0 0
        %2811 = vmatprep.subr.bf16.mxu0 0
        %2812 = vmatpush1.bf16.msra.mxu0 0
        %2813 = vmatprep.subr.bf16.mxu0 0
        %2814 = vmatpush1.bf16.msra.mxu0 0
        %2815 = vmatprep.mubr.bf16.mxu0 0
        %2816 = vmatmul.mubr.bf16.gmra.mrb[0].mxu0 %v2778
        %v2817 = vpop.f32.mrb[0].mxu0
        %v2818 = vadd.f32 0.0, %v2817
        %v2819 = vpop.f32.mrb[0].mxu0
        %v2820 = vadd.f32 0.0, %v2819
        %v2821 = vpop.f32.mrb[0].mxu0
        %v2822 = vadd.f32 0.0, %v2821
        %v2823 = vpop.f32.mrb[0].mxu0
        %v2824 = vadd.f32 0.0, %v2823
        %2825 = vmatprep.mubr.bf16.mxu0 0
        %2826 = vmatmul.mubr.bf16.gmra.mrb[0].mxu0 %v2781
        %v2827 = vpop.f32.mrb[0].mxu0
        %v2828 = vadd.f32 0.0, %v2827
        %v2829 = vpop.f32.mrb[0].mxu0
        %v2830 = vadd.f32 0.0, %v2829
        %v2831 = vpop.f32.mrb[0].mxu0
        %v2832 = vadd.f32 0.0, %v2831
        %v2833 = vpop.f32.mrb[0].mxu0
        %v2834 = vadd.f32 0.0, %v2833
        %2835 = vdwg.mxu0
        %v2836 = vadd.f32 %v2489, %v2818
        %v2837 = vadd.f32 %v2491, %v2820
        %v2838 = vadd.f32 %v2493, %v2822
        %v2839 = vadd.f32 %v2495, %v2824
        %v2840 = vadd.f32 %v2499, %v2828
        %v2841 = vadd.f32 %v2501, %v2830
        %v2842 = vadd.f32 %v2503, %v2832
        %v2843 = vadd.f32 %v2505, %v2834
        %2845 = vrot.lane.b32.xlu0 %v1784, 64
        %v2846 = vpop.permute.xlu0 %2845
        %2848 = vrot.lane.b32.xlu0 %v1788, 64
        %v2849 = vpop.permute.xlu0 %2848
        %v2851 = vsel %vm1827, %v2846, 0
        %v2854 = vsel %vm1827, %v2849, 0
        %2856 = vmatprep.subr.bf16.mxu0 0
        %2857 = vmatpush1.bf16.xpose.msra.mxu0 %v2854
        %2858 = vmatprep.subr.bf16.mxu0 0
        %2859 = vmatpush1.bf16.xpose.msra.mxu0 0
        %2860 = vmatprep.subr.bf16.mxu0 0
        %2861 = vmatpush1.bf16.xpose.msra.mxu0 0
        %2862 = vmatprep.subr.bf16.mxu0 0
        %2863 = vmatpush1.bf16.xpose.msra.mxu0 0
        %2864 = vmatprep.subr.bf16.mxu0 0
        %2865 = vmatpush1.bf16.xpose.msra.mxu0 0
        %2866 = vmatprep.subr.bf16.mxu0 0
        %2867 = vmatpush1.bf16.xpose.msra.mxu0 0
        %2868 = vmatprep.subr.bf16.mxu0 0
        %2869 = vmatpush1.bf16.xpose.msra.mxu0 0
        %2870 = vmatprep.subr.bf16.mxu0 0
        %2871 = vmatpush1.bf16.xpose.msra.mxu0 0
        %2872 = vmatprep.subr.bf16.mxu0 0
        %2873 = vmatpush1.bf16.xpose.msra.mxu0 0
        %2874 = vmatprep.subr.bf16.mxu0 0
        %2875 = vmatpush1.bf16.xpose.msra.mxu0 0
        %2876 = vmatprep.subr.bf16.mxu0 0
        %2877 = vmatpush1.bf16.xpose.msra.mxu0 0
        %2878 = vmatprep.subr.bf16.mxu0 0
        %2879 = vmatpush1.bf16.xpose.msra.mxu0 0
        %2880 = vmatprep.subr.bf16.mxu0 0
        %2881 = vmatpush1.bf16.xpose.msra.mxu0 0
        %2882 = vmatprep.subr.bf16.mxu0 0
        %2883 = vmatpush1.bf16.xpose.msra.mxu0 0
        %2884 = vmatprep.subr.bf16.mxu0 0
        %2885 = vmatpush1.bf16.xpose.msra.mxu0 0
        %2886 = vmatprep.subr.bf16.mxu0 0
        %2887 = vmatpush1.bf16.xpose.msra.mxu0 0
        %2888 = vmatprep.mubr.bf16.mxu0 0
        %2889 = vmatmul.mubr.bf16.gmra.mrb[0].mxu0 %v2851
        %v2890 = vpop.f32.mrb[0].mxu0
        %v2891 = vadd.f32 0.0, %v2890
        %v2892 = vpop.f32.mrb[0].mxu0
        %v2893 = vpop.f32.mrb[0].mxu0
        %v2894 = vadd.f32 0.0, %v2893
        %v2895 = vpop.f32.mrb[0].mxu0
        %2896 = vdwg.mxu0
        %2898 = vrot.lane.b32.xlu0 %v1786, 64
        %v2899 = vpop.permute.xlu0 %2898
        %2901 = vrot.lane.b32.xlu0 %v1790, 64
        %v2902 = vpop.permute.xlu0 %2901
        %v2904 = vsel %vm1827, %v2899, 0
        %v2907 = vsel %vm1827, %v2902, 0
        %2909 = vmatprep.subr.bf16.mxu0 0
        %2910 = vmatpush1.bf16.xpose.msra.mxu0 %v2907
        %2911 = vmatprep.subr.bf16.mxu0 0
        %2912 = vmatpush1.bf16.xpose.msra.mxu0 0
        %2913 = vmatprep.subr.bf16.mxu0 0
        %2914 = vmatpush1.bf16.xpose.msra.mxu0 0
        %2915 = vmatprep.subr.bf16.mxu0 0
        %2916 = vmatpush1.bf16.xpose.msra.mxu0 0
        %2917 = vmatprep.subr.bf16.mxu0 0
        %2918 = vmatpush1.bf16.xpose.msra.mxu0 0
        %2919 = vmatprep.subr.bf16.mxu0 0
        %2920 = vmatpush1.bf16.xpose.msra.mxu0 0
        %2921 = vmatprep.subr.bf16.mxu0 0
        %2922 = vmatpush1.bf16.xpose.msra.mxu0 0
        %2923 = vmatprep.subr.bf16.mxu0 0
        %2924 = vmatpush1.bf16.xpose.msra.mxu0 0
        %2925 = vmatprep.subr.bf16.mxu0 0
        %2926 = vmatpush1.bf16.xpose.msra.mxu0 0
        %2927 = vmatprep.subr.bf16.mxu0 0
        %2928 = vmatpush1.bf16.xpose.msra.mxu0 0
        %2929 = vmatprep.subr.bf16.mxu0 0
        %2930 = vmatpush1.bf16.xpose.msra.mxu0 0
        %2931 = vmatprep.subr.bf16.mxu0 0
        %2932 = vmatpush1.bf16.xpose.msra.mxu0 0
        %2933 = vmatprep.subr.bf16.mxu0 0
        %2934 = vmatpush1.bf16.xpose.msra.mxu0 0
        %2935 = vmatprep.subr.bf16.mxu0 0
        %2936 = vmatpush1.bf16.xpose.msra.mxu0 0
        %2937 = vmatprep.subr.bf16.mxu0 0
        %2938 = vmatpush1.bf16.xpose.msra.mxu0 0
        %2939 = vmatprep.subr.bf16.mxu0 0
        %2940 = vmatpush1.bf16.xpose.msra.mxu0 0
        %2941 = vmatprep.mubr.bf16.mxu0 0
        %2942 = vmatmul.mubr.bf16.gmra.mrb[0].mxu0 %v2904
        %v2943 = vpop.f32.mrb[0].mxu0
        %v2944 = vadd.f32 0.0, %v2943
        %v2945 = vpop.f32.mrb[0].mxu0
        %v2946 = vpop.f32.mrb[0].mxu0
        %v2947 = vadd.f32 0.0, %v2946
        %v2948 = vpop.f32.mrb[0].mxu0
        %2949 = vdwg.mxu0
        %v2950 = vsel %vm1922, %v2891, -inf
        %2951 = vmax.xlane.f32.xlu0 %v2950
        %v2952 = vpop.xlane.xlu0 %2951
        %v2953 = vsel %vm1922, %v2894, -inf
        %2954 = vmax.xlane.f32.xlu0 %v2953
        %v2955 = vpop.xlane.xlu0 %2954
        %v2956 = vsel %vm1922, %v2944, -inf
        %2957 = vmax.xlane.f32.xlu0 %v2956
        %v2958 = vpop.xlane.xlu0 %2957
        %v2959 = vsel %vm1922, %v2947, -inf
        %2960 = vmax.xlane.f32.xlu0 %v2959
        %v2961 = vpop.xlane.xlu0 %2960
        %v2962 = vsub.f32 %v2891, %v2952
        %v2963 = vsub.f32 %v2894, %v2955
        %v2964 = vsub.f32 %v2944, %v2958
        %v2965 = vsub.f32 %v2947, %v2961
        %v2966 = vmul.f32 %v2962, 1.442695
        %v2967 = vpow.pop %v2966
        %v2968 = vmul.f32 %v2963, 1.442695
        %v2969 = vpow.pop %v2968
        %v2970 = vmul.f32 %v2964, 1.442695
        %v2971 = vpow.pop %v2970
        %v2972 = vmul.f32 %v2965, 1.442695
        %v2973 = vpow.pop %v2972
        %v2974 = vsel %vm1922, %v2967, 0.0
        %2975 = vadd.xlane.f32.xlu0 %v2974
        %v2976 = vpop.xlane.xlu0 %2975
        %v2977 = vsel %vm1922, %v2969, 0.0
        %2978 = vadd.xlane.f32.xlu0 %v2977
        %v2979 = vpop.xlane.xlu0 %2978
        %v2980 = vsel %vm1922, %v2971, 0.0
        %2981 = vadd.xlane.f32.xlu0 %v2980
        %v2982 = vpop.xlane.xlu0 %2981
        %v2983 = vsel %vm1922, %v2973, 0.0
        %2984 = vadd.xlane.f32.xlu0 %v2983
        %v2985 = vpop.xlane.xlu0 %2984
        %v2986 = vrcp.pop %v2976
        %v2987 = vrcp.pop %v2979
        %v2988 = vrcp.pop %v2982
        %v2989 = vrcp.pop %v2985
        %v2990 = vmul.f32 %v2967, %v2986
        %v2991 = vmul.f32 %v2969, %v2987
        %v2992 = vmul.f32 %v2971, %v2988
        %v2993 = vmul.f32 %v2973, %v2989
        %v2994 = vpack.c.bf16 %v2991, %v2990
        %v2995 = vpack.c.bf16 %v2993, %v2992
        %2997 = vrot.lane.b32.xlu0 %v1792, 64
        %v2998 = vpop.permute.xlu0 %2997
        %v3001 = vsel %vm1922, %v2994, 0
        %3003 = vmatprep.subr.bf16.mxu0 0
        %3004 = vmatpush1.bf16.msra.mxu0 %v2998
        %3005 = vmatprep.subr.bf16.mxu0 0
        %3006 = vmatpush1.bf16.msra.mxu0 0
        %3007 = vmatprep.subr.bf16.mxu0 0
        %3008 = vmatpush1.bf16.msra.mxu0 0
        %3009 = vmatprep.subr.bf16.mxu0 0
        %3010 = vmatpush1.bf16.msra.mxu0 0
        %3011 = vmatprep.subr.bf16.mxu0 0
        %3012 = vmatpush1.bf16.msra.mxu0 0
        %3013 = vmatprep.subr.bf16.mxu0 0
        %3014 = vmatpush1.bf16.msra.mxu0 0
        %3015 = vmatprep.subr.bf16.mxu0 0
        %3016 = vmatpush1.bf16.msra.mxu0 0
        %3017 = vmatprep.subr.bf16.mxu0 0
        %3018 = vmatpush1.bf16.msra.mxu0 0
        %3019 = vmatprep.subr.bf16.mxu0 0
        %3020 = vmatpush1.bf16.msra.mxu0 0
        %3021 = vmatprep.subr.bf16.mxu0 0
        %3022 = vmatpush1.bf16.msra.mxu0 0
        %3023 = vmatprep.subr.bf16.mxu0 0
        %3024 = vmatpush1.bf16.msra.mxu0 0
        %3025 = vmatprep.subr.bf16.mxu0 0
        %3026 = vmatpush1.bf16.msra.mxu0 0
        %3027 = vmatprep.subr.bf16.mxu0 0
        %3028 = vmatpush1.bf16.msra.mxu0 0
        %3029 = vmatprep.subr.bf16.mxu0 0
        %3030 = vmatpush1.bf16.msra.mxu0 0
        %3031 = vmatprep.subr.bf16.mxu0 0
        %3032 = vmatpush1.bf16.msra.mxu0 0
        %3033 = vmatprep.subr.bf16.mxu0 0
        %3034 = vmatpush1.bf16.msra.mxu0 0
        %3035 = vmatprep.mubr.bf16.mxu0 0
        %3036 = vmatmul.mubr.bf16.gmra.mrb[0].mxu0 %v3001
        %v3037 = vpop.f32.mrb[0].mxu0
        %v3038 = vadd.f32 0.0, %v3037
        %v3039 = vpop.f32.mrb[0].mxu0
        %v3040 = vpop.f32.mrb[0].mxu0
        %v3041 = vadd.f32 0.0, %v3040
        %v3042 = vpop.f32.mrb[0].mxu0
        %3043 = vdwg.mxu0
        %3045 = vrot.lane.b32.xlu0 %v1794, 64
        %v3046 = vpop.permute.xlu0 %3045
        %v3049 = vsel %vm1922, %v2995, 0
        %3051 = vmatprep.subr.bf16.mxu0 0
        %3052 = vmatpush1.bf16.msra.mxu0 %v3046
        %3053 = vmatprep.subr.bf16.mxu0 0
        %3054 = vmatpush1.bf16.msra.mxu0 0
        %3055 = vmatprep.subr.bf16.mxu0 0
        %3056 = vmatpush1.bf16.msra.mxu0 0
        %3057 = vmatprep.subr.bf16.mxu0 0
        %3058 = vmatpush1.bf16.msra.mxu0 0
        %3059 = vmatprep.subr.bf16.mxu0 0
        %3060 = vmatpush1.bf16.msra.mxu0 0
        %3061 = vmatprep.subr.bf16.mxu0 0
        %3062 = vmatpush1.bf16.msra.mxu0 0
        %3063 = vmatprep.subr.bf16.mxu0 0
        %3064 = vmatpush1.bf16.msra.mxu0 0
        %3065 = vmatprep.subr.bf16.mxu0 0
        %3066 = vmatpush1.bf16.msra.mxu0 0
        %3067 = vmatprep.subr.bf16.mxu0 0
        %3068 = vmatpush1.bf16.msra.mxu0 0
        %3069 = vmatprep.subr.bf16.mxu0 0
        %3070 = vmatpush1.bf16.msra.mxu0 0
        %3071 = vmatprep.subr.bf16.mxu0 0
        %3072 = vmatpush1.bf16.msra.mxu0 0
        %3073 = vmatprep.subr.bf16.mxu0 0
        %3074 = vmatpush1.bf16.msra.mxu0 0
        %3075 = vmatprep.subr.bf16.mxu0 0
        %3076 = vmatpush1.bf16.msra.mxu0 0
        %3077 = vmatprep.subr.bf16.mxu0 0
        %3078 = vmatpush1.bf16.msra.mxu0 0
        %3079 = vmatprep.subr.bf16.mxu0 0
        %3080 = vmatpush1.bf16.msra.mxu0 0
        %3081 = vmatprep.subr.bf16.mxu0 0
        %3082 = vmatpush1.bf16.msra.mxu0 0
        %3083 = vmatprep.mubr.bf16.mxu0 0
        %3084 = vmatmul.mubr.bf16.gmra.mrb[0].mxu0 %v3049
        %v3085 = vpop.f32.mrb[0].mxu0
        %v3086 = vadd.f32 0.0, %v3085
        %v3087 = vpop.f32.mrb[0].mxu0
        %v3088 = vpop.f32.mrb[0].mxu0
        %v3089 = vadd.f32 0.0, %v3088
        %v3090 = vpop.f32.mrb[0].mxu0
        %3091 = vdwg.mxu0
        %v3092 = vpack.c.bf16 %v3041, %v3038
        %v3093 = vpack.c.bf16 %v3089, %v3086
        %v3102 = vunpack.c.l.b16 %v1819
        %v3103 = vunpack.c.h.b16 %v1819
        %v3104 = vunpack.c.l.b16 %v1820
        %v3105 = vunpack.c.h.b16 %v1820
        %v3106 = vunpack.c.l.b16 %v1821
        %v3107 = vunpack.c.h.b16 %v1821
        %v3108 = vunpack.c.l.b16 %v1822
        %v3109 = vunpack.c.h.b16 %v1822
        %v3110 = vunpack.c.l.b16 %v1823
        %v3111 = vunpack.c.h.b16 %v1823
        %v3112 = vunpack.c.l.b16 %v1824
        %v3113 = vunpack.c.h.b16 %v1824
        %v3114 = vunpack.c.l.b16 %v1825
        %v3115 = vunpack.c.h.b16 %v1825
        %v3116 = vunpack.c.l.b16 %v1826
        %v3117 = vunpack.c.h.b16 %v1826
        %v3118 = vpack.c.b16 %v3104, %v3102
        %v3119 = vpack.c.b16 %v3105, %v3103
        %v3120 = vpack.c.b16 %v3108, %v3106
        %v3121 = vpack.c.b16 %v3109, %v3107
        %v3122 = vpack.c.b16 %v3112, %v3110
        %v3123 = vpack.c.b16 %v3113, %v3111
        %v3124 = vpack.c.b16 %v3116, %v3114
        %v3125 = vpack.c.b16 %v3117, %v3115
        %v3135 = vsel %vm1827, %v3092, 0
        %v3138 = vsel %vm1827, %v3093, 0
        %3140 = vmatprep.subr.bf16.mxu0 %v3119
        %3141 = vmatpush1.bf16.msra.mxu0 %v3118
        %3142 = vmatprep.subr.bf16.mxu0 %v3121
        %3143 = vmatpush1.bf16.msra.mxu0 %v3120
        %3144 = vmatprep.subr.bf16.mxu0 %v3123
        %3145 = vmatpush1.bf16.msra.mxu0 %v3122
        %3146 = vmatprep.subr.bf16.mxu0 %v3125
        %3147 = vmatpush1.bf16.msra.mxu0 %v3124
        %3148 = vmatprep.subr.bf16.mxu0 0
        %3149 = vmatpush1.bf16.msra.mxu0 0
        %3150 = vmatprep.subr.bf16.mxu0 0
        %3151 = vmatpush1.bf16.msra.mxu0 0
        %3152 = vmatprep.subr.bf16.mxu0 0
        %3153 = vmatpush1.bf16.msra.mxu0 0
        %3154 = vmatprep.subr.bf16.mxu0 0
        %3155 = vmatpush1.bf16.msra.mxu0 0
        %3156 = vmatprep.subr.bf16.mxu0 0
        %3157 = vmatpush1.bf16.msra.mxu0 0
        %3158 = vmatprep.subr.bf16.mxu0 0
        %3159 = vmatpush1.bf16.msra.mxu0 0
        %3160 = vmatprep.subr.bf16.mxu0 0
        %3161 = vmatpush1.bf16.msra.mxu0 0
        %3162 = vmatprep.subr.bf16.mxu0 0
        %3163 = vmatpush1.bf16.msra.mxu0 0
        %3164 = vmatprep.subr.bf16.mxu0 0
        %3165 = vmatpush1.bf16.msra.mxu0 0
        %3166 = vmatprep.subr.bf16.mxu0 0
        %3167 = vmatpush1.bf16.msra.mxu0 0
        %3168 = vmatprep.subr.bf16.mxu0 0
        %3169 = vmatpush1.bf16.msra.mxu0 0
        %3170 = vmatprep.subr.bf16.mxu0 0
        %3171 = vmatpush1.bf16.msra.mxu0 0
        %3172 = vmatprep.mubr.bf16.mxu0 0
        %3173 = vmatmul.mubr.bf16.gmra.mrb[0].mxu0 %v3135
        %v3174 = vpop.f32.mrb[0].mxu0
        %v3175 = vadd.f32 0.0, %v3174
        %v3176 = vpop.f32.mrb[0].mxu0
        %v3177 = vadd.f32 0.0, %v3176
        %v3178 = vpop.f32.mrb[0].mxu0
        %v3179 = vadd.f32 0.0, %v3178
        %v3180 = vpop.f32.mrb[0].mxu0
        %v3181 = vadd.f32 0.0, %v3180
        %3182 = vmatprep.mubr.bf16.mxu0 0
        %3183 = vmatmul.mubr.bf16.gmra.mrb[0].mxu0 %v3138
        %v3184 = vpop.f32.mrb[0].mxu0
        %v3185 = vadd.f32 0.0, %v3184
        %v3186 = vpop.f32.mrb[0].mxu0
        %v3187 = vadd.f32 0.0, %v3186
        %v3188 = vpop.f32.mrb[0].mxu0
        %v3189 = vadd.f32 0.0, %v3188
        %v3190 = vpop.f32.mrb[0].mxu0
        %v3191 = vadd.f32 0.0, %v3190
        %3192 = vdwg.mxu0
        %v3193 = vadd.f32 %v2836, %v3175
        %v3194 = vadd.f32 %v2837, %v3177
        %v3195 = vadd.f32 %v2838, %v3179
        %v3196 = vadd.f32 %v2839, %v3181
        %v3197 = vadd.f32 %v2840, %v3185
        %v3198 = vadd.f32 %v2841, %v3187
        %v3199 = vadd.f32 %v2842, %v3189
        %v3200 = vadd.f32 %v2843, %v3191
        %v3201 = vadd.f32 %v955, %v3193
        %v3202 = vadd.f32 %v956, %v3194
        %v3203 = vadd.f32 %v957, %v3195
        %v3204 = vadd.f32 %v958, %v3196
        %v3205 = vadd.f32 %v959, %v3197
        %v3206 = vadd.f32 %v960, %v3198
        %v3207 = vadd.f32 %v961, %v3199
        %v3208 = vadd.f32 %v962, %v3200
        %v3209 = vld [vmem:[%s778] sm:$0x3]
        %v3210 = vld [vmem:[%s787] sm:$0x3]
        %v3211 = vmul.f32 %v3201, %v3201
        %v3212 = vmul.f32 %v3202, %v3202
        %v3213 = vmul.f32 %v3203, %v3203
        %v3214 = vmul.f32 %v3204, %v3204
        %v3215 = vmul.f32 %v3205, %v3205
        %v3216 = vmul.f32 %v3206, %v3206
        %v3217 = vmul.f32 %v3207, %v3207
        %v3218 = vmul.f32 %v3208, %v3208
        %v3219 = vadd.f32 %v3211, %v3212
        %3220 = vadd.xlane.f32.xlu0 %v3219
        %v3221 = vpop.xlane.xlu0 %3220
        %v3222 = vadd.f32 %v3213, %v3214
        %3223 = vadd.xlane.f32.xlu0 %v3222
        %v3224 = vpop.xlane.xlu0 %3223
        %v3225 = vadd.f32 %v3215, %v3216
        %3226 = vadd.xlane.f32.xlu0 %v3225
        %v3227 = vpop.xlane.xlu0 %3226
        %v3228 = vadd.f32 %v3217, %v3218
        %3229 = vadd.xlane.f32.xlu0 %v3228
        %v3230 = vpop.xlane.xlu0 %3229
        %v3231 = vmul.f32 %v3221, %v985
        %v3232 = vmul.f32 %v3224, %v985
        %v3233 = vmul.f32 %v3227, %v985
        %v3234 = vmul.f32 %v3230, %v985
        %v3235 = vadd.f32 %v3231, 1e-06
        %v3236 = vadd.f32 %v3232, 1e-06
        %v3237 = vadd.f32 %v3233, 1e-06
        %v3238 = vadd.f32 %v3234, 1e-06
        %v3239 = vrsqrt.pop %v3235
        %v3240 = vrsqrt.pop %v3236
        %v3241 = vrsqrt.pop %v3237
        %v3242 = vrsqrt.pop %v3238
        %v3243 = vmul.f32 %v3201, %v3239
        %v3244 = vmul.f32 %v3202, %v3239
        %v3245 = vmul.f32 %v3203, %v3240
        %v3246 = vmul.f32 %v3204, %v3240
        %v3247 = vmul.f32 %v3205, %v3241
        %v3248 = vmul.f32 %v3206, %v3241
        %v3249 = vmul.f32 %v3207, %v3242
        %v3250 = vmul.f32 %v3208, %v3242
        %v3252 = vlaneseq
        %v3253 = vshrl.u32 %v3252, 7
        %v3254 = vsub.s32 0, %v3253
        %v3255 = vrot.slane %v3209, %v3254
        %v3256 = vlaneseq
        %v3257 = vshrl.u32 %v3256, 7
        %v3258 = vsub.s32 1, %v3257
        %v3259 = vrot.slane %v3209, %v3258
        %v3262 = vmul.f32 %v3243, %v3255
        %v3263 = vmul.f32 %v3244, %v3259
        %v3264 = vmul.f32 %v3245, %v3255
        %v3265 = vmul.f32 %v3246, %v3259
        %v3266 = vmul.f32 %v3247, %v3255
        %v3267 = vmul.f32 %v3248, %v3259
        %v3268 = vmul.f32 %v3249, %v3255
        %v3269 = vmul.f32 %v3250, %v3259
        %v3271 = vlaneseq
        %v3272 = vshrl.u32 %v3271, 7
        %v3273 = vsub.s32 0, %v3272
        %v3274 = vrot.slane %v3210, %v3273
        %v3275 = vlaneseq
        %v3276 = vshrl.u32 %v3275, 7
        %v3277 = vsub.s32 1, %v3276
        %v3278 = vrot.slane %v3210, %v3277
        %v3281 = vadd.f32 %v3262, %v3274
        %v3282 = vadd.f32 %v3263, %v3278
        %v3283 = vadd.f32 %v3264, %v3274
        %v3284 = vadd.f32 %v3265, %v3278
        %v3285 = vadd.f32 %v3266, %v3274
        %v3286 = vadd.f32 %v3267, %v3278
        %v3287 = vadd.f32 %v3268, %v3274
        %v3288 = vadd.f32 %v3269, %v3278
        %v3289 = vpack.c.bf16 %v3283, %v3281
        %v3290 = vpack.c.bf16 %v3284, %v3282
        %v3291 = vpack.c.bf16 %v3287, %v3285
        %v3292 = vpack.c.bf16 %v3288, %v3286
        %v3293 = vld [vmem:[%s814] sm:$0xff]
        %v3294 = vld [vmem:[%s814 + $0x8] sm:$0xff]
        %v3295 = vld [vmem:[%s814 + $0x10] sm:$0xff]
        %v3296 = vld [vmem:[%s814 + $0x18] sm:$0xff]
        %v3297 = vld [vmem:[%s814 + $0x20] sm:$0xff]
        %v3298 = vld [vmem:[%s814 + $0x28] sm:$0xff]
        %v3299 = vld [vmem:[%s814 + $0x30] sm:$0xff]
        %v3300 = vld [vmem:[%s814 + $0x38] sm:$0xff]
        %v3301 = vld [vmem:[%s814 + $0x40] sm:$0xff]
        %v3302 = vld [vmem:[%s814 + $0x48] sm:$0xff]
        %v3303 = vld [vmem:[%s814 + $0x50] sm:$0xff]
        %v3304 = vld [vmem:[%s814 + $0x58] sm:$0xff]
        %v3305 = vld [vmem:[%s814 + $0x60] sm:$0xff]
        %v3306 = vld [vmem:[%s814 + $0x68] sm:$0xff]
        %v3307 = vld [vmem:[%s814 + $0x70] sm:$0xff]
        %v3308 = vld [vmem:[%s814 + $0x78] sm:$0xff]
        %v3309 = vld [vmem:[%s814 + $0x80] sm:$0xff]
        %v3310 = vld [vmem:[%s814 + $0x88] sm:$0xff]
        %v3311 = vld [vmem:[%s814 + $0x90] sm:$0xff]
        %v3312 = vld [vmem:[%s814 + $0x98] sm:$0xff]
        %v3313 = vld [vmem:[%s814 + $0xa0] sm:$0xff]
        %v3314 = vld [vmem:[%s814 + $0xa8] sm:$0xff]
        %v3315 = vld [vmem:[%s814 + $0xb0] sm:$0xff]
        %v3316 = vld [vmem:[%s814 + $0xb8] sm:$0xff]
        %v3317 = vld [vmem:[%s814 + $0xc0] sm:$0xff]
        %v3318 = vld [vmem:[%s814 + $0xc8] sm:$0xff]
        %v3319 = vld [vmem:[%s814 + $0xd0] sm:$0xff]
        %v3320 = vld [vmem:[%s814 + $0xd8] sm:$0xff]
        %v3321 = vld [vmem:[%s814 + $0xe0] sm:$0xff]
        %v3322 = vld [vmem:[%s814 + $0xe8] sm:$0xff]
        %v3323 = vld [vmem:[%s814 + $0xf0] sm:$0xff]
        %v3324 = vld [vmem:[%s814 + $0xf8] sm:$0xff]
        %v3325 = vld [vmem:[%s814 + $0x100] sm:$0xff]
        %v3326 = vld [vmem:[%s814 + $0x108] sm:$0xff]
        %v3327 = vld [vmem:[%s814 + $0x110] sm:$0xff]
        %v3328 = vld [vmem:[%s814 + $0x118] sm:$0xff]
        %v3329 = vld [vmem:[%s814 + $0x120] sm:$0xff]
        %v3330 = vld [vmem:[%s814 + $0x128] sm:$0xff]
        %v3331 = vld [vmem:[%s814 + $0x130] sm:$0xff]
        %v3332 = vld [vmem:[%s814 + $0x138] sm:$0xff]
        %v3333 = vld [vmem:[%s814 + $0x140] sm:$0xff]
        %v3334 = vld [vmem:[%s814 + $0x148] sm:$0xff]
        %v3335 = vld [vmem:[%s814 + $0x150] sm:$0xff]
        %v3336 = vld [vmem:[%s814 + $0x158] sm:$0xff]
        %v3337 = vld [vmem:[%s814 + $0x160] sm:$0xff]
        %v3338 = vld [vmem:[%s814 + $0x168] sm:$0xff]
        %v3339 = vld [vmem:[%s814 + $0x170] sm:$0xff]
        %v3340 = vld [vmem:[%s814 + $0x178] sm:$0xff]
        %v3341 = vld [vmem:[%s814 + $0x180] sm:$0xff]
        %v3342 = vld [vmem:[%s814 + $0x188] sm:$0xff]
        %v3343 = vld [vmem:[%s814 + $0x190] sm:$0xff]
        %v3344 = vld [vmem:[%s814 + $0x198] sm:$0xff]
        %v3345 = vld [vmem:[%s814 + $0x1a0] sm:$0xff]
        %v3346 = vld [vmem:[%s814 + $0x1a8] sm:$0xff]
        %v3347 = vld [vmem:[%s814 + $0x1b0] sm:$0xff]
        %v3348 = vld [vmem:[%s814 + $0x1b8] sm:$0xff]
        %v3349 = vld [vmem:[%s814 + $0x1c0] sm:$0xff]
        %v3350 = vld [vmem:[%s814 + $0x1c8] sm:$0xff]
        %v3351 = vld [vmem:[%s814 + $0x1d0] sm:$0xff]
        %v3352 = vld [vmem:[%s814 + $0x1d8] sm:$0xff]
        %v3353 = vld [vmem:[%s814 + $0x1e0] sm:$0xff]
        %v3354 = vld [vmem:[%s814 + $0x1e8] sm:$0xff]
        %v3355 = vld [vmem:[%s814 + $0x1f0] sm:$0xff]
        %v3356 = vld [vmem:[%s814 + $0x1f8] sm:$0xff]
        %v3357 = vld [vmem:[%s814 + $0x200] sm:$0xff]
        %v3358 = vld [vmem:[%s814 + $0x208] sm:$0xff]
        %v3359 = vld [vmem:[%s814 + $0x210] sm:$0xff]
        %v3360 = vld [vmem:[%s814 + $0x218] sm:$0xff]
        %v3361 = vld [vmem:[%s814 + $0x220] sm:$0xff]
        %v3362 = vld [vmem:[%s814 + $0x228] sm:$0xff]
        %v3363 = vld [vmem:[%s814 + $0x230] sm:$0xff]
        %v3364 = vld [vmem:[%s814 + $0x238] sm:$0xff]
        %v3365 = vld [vmem:[%s814 + $0x240] sm:$0xff]
        %v3366 = vld [vmem:[%s814 + $0x248] sm:$0xff]
        %v3367 = vld [vmem:[%s814 + $0x250] sm:$0xff]
        %v3368 = vld [vmem:[%s814 + $0x258] sm:$0xff]
        %v3369 = vld [vmem:[%s814 + $0x260] sm:$0xff]
        %v3370 = vld [vmem:[%s814 + $0x268] sm:$0xff]
        %v3371 = vld [vmem:[%s814 + $0x270] sm:$0xff]
        %v3372 = vld [vmem:[%s814 + $0x278] sm:$0xff]
        %v3373 = vld [vmem:[%s814 + $0x280] sm:$0xff]
        %v3374 = vld [vmem:[%s814 + $0x288] sm:$0xff]
        %v3375 = vld [vmem:[%s814 + $0x290] sm:$0xff]
        %v3376 = vld [vmem:[%s814 + $0x298] sm:$0xff]
        %v3377 = vld [vmem:[%s814 + $0x2a0] sm:$0xff]
        %v3378 = vld [vmem:[%s814 + $0x2a8] sm:$0xff]
        %v3379 = vld [vmem:[%s814 + $0x2b0] sm:$0xff]
        %v3380 = vld [vmem:[%s814 + $0x2b8] sm:$0xff]
        %v3381 = vld [vmem:[%s814 + $0x2c0] sm:$0xff]
        %v3382 = vld [vmem:[%s814 + $0x2c8] sm:$0xff]
        %v3383 = vld [vmem:[%s814 + $0x2d0] sm:$0xff]
        %v3384 = vld [vmem:[%s814 + $0x2d8] sm:$0xff]
        %v3385 = vld [vmem:[%s814 + $0x2e0] sm:$0xff]
        %v3386 = vld [vmem:[%s814 + $0x2e8] sm:$0xff]
        %v3387 = vld [vmem:[%s814 + $0x2f0] sm:$0xff]
        %v3388 = vld [vmem:[%s814 + $0x2f8] sm:$0xff]
        %v3389 = vld [vmem:[%s814 + $0x300] sm:$0xff]
        %v3390 = vld [vmem:[%s814 + $0x308] sm:$0xff]
        %v3391 = vld [vmem:[%s814 + $0x310] sm:$0xff]
        %v3392 = vld [vmem:[%s814 + $0x318] sm:$0xff]
        %v3393 = vld [vmem:[%s814 + $0x320] sm:$0xff]
        %v3394 = vld [vmem:[%s814 + $0x328] sm:$0xff]
        %v3395 = vld [vmem:[%s814 + $0x330] sm:$0xff]
        %v3396 = vld [vmem:[%s814 + $0x338] sm:$0xff]
        %v3397 = vld [vmem:[%s814 + $0x340] sm:$0xff]
        %v3398 = vld [vmem:[%s814 + $0x348] sm:$0xff]
        %v3399 = vld [vmem:[%s814 + $0x350] sm:$0xff]
        %v3400 = vld [vmem:[%s814 + $0x358] sm:$0xff]
        %v3401 = vld [vmem:[%s814 + $0x360] sm:$0xff]
        %v3402 = vld [vmem:[%s814 + $0x368] sm:$0xff]
        %v3403 = vld [vmem:[%s814 + $0x370] sm:$0xff]
        %v3404 = vld [vmem:[%s814 + $0x378] sm:$0xff]
        %v3405 = vld [vmem:[%s814 + $0x380] sm:$0xff]
        %v3406 = vld [vmem:[%s814 + $0x388] sm:$0xff]
        %v3407 = vld [vmem:[%s814 + $0x390] sm:$0xff]
        %v3408 = vld [vmem:[%s814 + $0x398] sm:$0xff]
        %v3409 = vld [vmem:[%s814 + $0x3a0] sm:$0xff]
        %v3410 = vld [vmem:[%s814 + $0x3a8] sm:$0xff]
        %v3411 = vld [vmem:[%s814 + $0x3b0] sm:$0xff]
        %v3412 = vld [vmem:[%s814 + $0x3b8] sm:$0xff]
        %v3413 = vld [vmem:[%s814 + $0x3c0] sm:$0xff]
        %v3414 = vld [vmem:[%s814 + $0x3c8] sm:$0xff]
        %v3415 = vld [vmem:[%s814 + $0x3d0] sm:$0xff]
        %v3416 = vld [vmem:[%s814 + $0x3d8] sm:$0xff]
        %v3417 = vld [vmem:[%s814 + $0x3e0] sm:$0xff]
        %v3418 = vld [vmem:[%s814 + $0x3e8] sm:$0xff]
        %v3419 = vld [vmem:[%s814 + $0x3f0] sm:$0xff]
        %v3420 = vld [vmem:[%s814 + $0x3f8] sm:$0xff]
        %v3421 = vld [vmem:[%s814 + $0x400] sm:$0xff]
        %v3422 = vld [vmem:[%s814 + $0x408] sm:$0xff]
        %v3423 = vld [vmem:[%s814 + $0x410] sm:$0xff]
        %v3424 = vld [vmem:[%s814 + $0x418] sm:$0xff]
        %v3425 = vld [vmem:[%s814 + $0x420] sm:$0xff]
        %v3426 = vld [vmem:[%s814 + $0x428] sm:$0xff]
        %v3427 = vld [vmem:[%s814 + $0x430] sm:$0xff]
        %v3428 = vld [vmem:[%s814 + $0x438] sm:$0xff]
        %v3429 = vld [vmem:[%s814 + $0x440] sm:$0xff]
        %v3430 = vld [vmem:[%s814 + $0x448] sm:$0xff]
        %v3431 = vld [vmem:[%s814 + $0x450] sm:$0xff]
        %v3432 = vld [vmem:[%s814 + $0x458] sm:$0xff]
        %v3433 = vld [vmem:[%s814 + $0x460] sm:$0xff]
        %v3434 = vld [vmem:[%s814 + $0x468] sm:$0xff]
        %v3435 = vld [vmem:[%s814 + $0x470] sm:$0xff]
        %v3436 = vld [vmem:[%s814 + $0x478] sm:$0xff]
        %v3437 = vld [vmem:[%s814 + $0x480] sm:$0xff]
        %v3438 = vld [vmem:[%s814 + $0x488] sm:$0xff]
        %v3439 = vld [vmem:[%s814 + $0x490] sm:$0xff]
        %v3440 = vld [vmem:[%s814 + $0x498] sm:$0xff]
        %v3441 = vld [vmem:[%s814 + $0x4a0] sm:$0xff]
        %v3442 = vld [vmem:[%s814 + $0x4a8] sm:$0xff]
        %v3443 = vld [vmem:[%s814 + $0x4b0] sm:$0xff]
        %v3444 = vld [vmem:[%s814 + $0x4b8] sm:$0xff]
        %v3445 = vld [vmem:[%s814 + $0x4c0] sm:$0xff]
        %v3446 = vld [vmem:[%s814 + $0x4c8] sm:$0xff]
        %v3447 = vld [vmem:[%s814 + $0x4d0] sm:$0xff]
        %v3448 = vld [vmem:[%s814 + $0x4d8] sm:$0xff]
        %v3449 = vld [vmem:[%s814 + $0x4e0] sm:$0xff]
        %v3450 = vld [vmem:[%s814 + $0x4e8] sm:$0xff]
        %v3451 = vld [vmem:[%s814 + $0x4f0] sm:$0xff]
        %v3452 = vld [vmem:[%s814 + $0x4f8] sm:$0xff]
        %v3453 = vld [vmem:[%s814 + $0x500] sm:$0xff]
        %v3454 = vld [vmem:[%s814 + $0x508] sm:$0xff]
        %v3455 = vld [vmem:[%s814 + $0x510] sm:$0xff]
        %v3456 = vld [vmem:[%s814 + $0x518] sm:$0xff]
        %v3457 = vld [vmem:[%s814 + $0x520] sm:$0xff]
        %v3458 = vld [vmem:[%s814 + $0x528] sm:$0xff]
        %v3459 = vld [vmem:[%s814 + $0x530] sm:$0xff]
        %v3460 = vld [vmem:[%s814 + $0x538] sm:$0xff]
        %v3461 = vld [vmem:[%s814 + $0x540] sm:$0xff]
        %v3462 = vld [vmem:[%s814 + $0x548] sm:$0xff]
        %v3463 = vld [vmem:[%s814 + $0x550] sm:$0xff]
        %v3464 = vld [vmem:[%s814 + $0x558] sm:$0xff]
        %v3465 = vld [vmem:[%s814 + $0x560] sm:$0xff]
        %v3466 = vld [vmem:[%s814 + $0x568] sm:$0xff]
        %v3467 = vld [vmem:[%s814 + $0x570] sm:$0xff]
        %v3468 = vld [vmem:[%s814 + $0x578] sm:$0xff]
        %v3469 = vld [vmem:[%s814 + $0x580] sm:$0xff]
        %v3470 = vld [vmem:[%s814 + $0x588] sm:$0xff]
        %v3471 = vld [vmem:[%s814 + $0x590] sm:$0xff]
        %v3472 = vld [vmem:[%s814 + $0x598] sm:$0xff]
        %v3473 = vld [vmem:[%s814 + $0x5a0] sm:$0xff]
        %v3474 = vld [vmem:[%s814 + $0x5a8] sm:$0xff]
        %v3475 = vld [vmem:[%s814 + $0x5b0] sm:$0xff]
        %v3476 = vld [vmem:[%s814 + $0x5b8] sm:$0xff]
        %v3477 = vld [vmem:[%s814 + $0x5c0] sm:$0xff]
        %v3478 = vld [vmem:[%s814 + $0x5c8] sm:$0xff]
        %v3479 = vld [vmem:[%s814 + $0x5d0] sm:$0xff]
        %v3480 = vld [vmem:[%s814 + $0x5d8] sm:$0xff]
        %v3481 = vld [vmem:[%s814 + $0x5e0] sm:$0xff]
        %v3482 = vld [vmem:[%s814 + $0x5e8] sm:$0xff]
        %v3483 = vld [vmem:[%s814 + $0x5f0] sm:$0xff]
        %v3484 = vld [vmem:[%s814 + $0x5f8] sm:$0xff]
        %v3677 = vunpack.c.l.b16 %v3293
        %v3678 = vunpack.c.h.b16 %v3293
        %v3679 = vunpack.c.l.b16 %v3294
        %v3680 = vunpack.c.h.b16 %v3294
        %v3681 = vunpack.c.l.b16 %v3295
        %v3682 = vunpack.c.h.b16 %v3295
        %v3683 = vunpack.c.l.b16 %v3296
        %v3684 = vunpack.c.h.b16 %v3296
        %v3685 = vunpack.c.l.b16 %v3297
        %v3686 = vunpack.c.h.b16 %v3297
        %v3687 = vunpack.c.l.b16 %v3298
        %v3688 = vunpack.c.h.b16 %v3298
        %v3689 = vunpack.c.l.b16 %v3299
        %v3690 = vunpack.c.h.b16 %v3299
        %v3691 = vunpack.c.l.b16 %v3300
        %v3692 = vunpack.c.h.b16 %v3300
        %v3693 = vunpack.c.l.b16 %v3301
        %v3694 = vunpack.c.h.b16 %v3301
        %v3695 = vunpack.c.l.b16 %v3302
        %v3696 = vunpack.c.h.b16 %v3302
        %v3697 = vunpack.c.l.b16 %v3303
        %v3698 = vunpack.c.h.b16 %v3303
        %v3699 = vunpack.c.l.b16 %v3304
        %v3700 = vunpack.c.h.b16 %v3304
        %v3701 = vunpack.c.l.b16 %v3305
        %v3702 = vunpack.c.h.b16 %v3305
        %v3703 = vunpack.c.l.b16 %v3306
        %v3704 = vunpack.c.h.b16 %v3306
        %v3705 = vunpack.c.l.b16 %v3307
        %v3706 = vunpack.c.h.b16 %v3307
        %v3707 = vunpack.c.l.b16 %v3308
        %v3708 = vunpack.c.h.b16 %v3308
        %v3709 = vunpack.c.l.b16 %v3309
        %v3710 = vunpack.c.h.b16 %v3309
        %v3711 = vunpack.c.l.b16 %v3310
        %v3712 = vunpack.c.h.b16 %v3310
        %v3713 = vunpack.c.l.b16 %v3311
        %v3714 = vunpack.c.h.b16 %v3311
        %v3715 = vunpack.c.l.b16 %v3312
        %v3716 = vunpack.c.h.b16 %v3312
        %v3717 = vunpack.c.l.b16 %v3313
        %v3718 = vunpack.c.h.b16 %v3313
        %v3719 = vunpack.c.l.b16 %v3314
        %v3720 = vunpack.c.h.b16 %v3314
        %v3721 = vunpack.c.l.b16 %v3315
        %v3722 = vunpack.c.h.b16 %v3315
        %v3723 = vunpack.c.l.b16 %v3316
        %v3724 = vunpack.c.h.b16 %v3316
        %v3725 = vunpack.c.l.b16 %v3317
        %v3726 = vunpack.c.h.b16 %v3317
        %v3727 = vunpack.c.l.b16 %v3318
        %v3728 = vunpack.c.h.b16 %v3318
        %v3729 = vunpack.c.l.b16 %v3319
        %v3730 = vunpack.c.h.b16 %v3319
        %v3731 = vunpack.c.l.b16 %v3320
        %v3732 = vunpack.c.h.b16 %v3320
        %v3733 = vunpack.c.l.b16 %v3321
        %v3734 = vunpack.c.h.b16 %v3321
        %v3735 = vunpack.c.l.b16 %v3322
        %v3736 = vunpack.c.h.b16 %v3322
        %v3737 = vunpack.c.l.b16 %v3323
        %v3738 = vunpack.c.h.b16 %v3323
        %v3739 = vunpack.c.l.b16 %v3324
        %v3740 = vunpack.c.h.b16 %v3324
        %v3741 = vunpack.c.l.b16 %v3325
        %v3742 = vunpack.c.h.b16 %v3325
        %v3743 = vunpack.c.l.b16 %v3326
        %v3744 = vunpack.c.h.b16 %v3326
        %v3745 = vunpack.c.l.b16 %v3327
        %v3746 = vunpack.c.h.b16 %v3327
        %v3747 = vunpack.c.l.b16 %v3328
        %v3748 = vunpack.c.h.b16 %v3328
        %v3749 = vunpack.c.l.b16 %v3329
        %v3750 = vunpack.c.h.b16 %v3329
        %v3751 = vunpack.c.l.b16 %v3330
        %v3752 = vunpack.c.h.b16 %v3330
        %v3753 = vunpack.c.l.b16 %v3331
        %v3754 = vunpack.c.h.b16 %v3331
        %v3755 = vunpack.c.l.b16 %v3332
        %v3756 = vunpack.c.h.b16 %v3332
        %v3757 = vunpack.c.l.b16 %v3333
        %v3758 = vunpack.c.h.b16 %v3333
        %v3759 = vunpack.c.l.b16 %v3334
        %v3760 = vunpack.c.h.b16 %v3334
        %v3761 = vunpack.c.l.b16 %v3335
        %v3762 = vunpack.c.h.b16 %v3335
        %v3763 = vunpack.c.l.b16 %v3336
        %v3764 = vunpack.c.h.b16 %v3336
        %v3765 = vunpack.c.l.b16 %v3337
        %v3766 = vunpack.c.h.b16 %v3337
        %v3767 = vunpack.c.l.b16 %v3338
        %v3768 = vunpack.c.h.b16 %v3338
        %v3769 = vunpack.c.l.b16 %v3339
        %v3770 = vunpack.c.h.b16 %v3339
        %v3771 = vunpack.c.l.b16 %v3340
        %v3772 = vunpack.c.h.b16 %v3340
        %v3773 = vunpack.c.l.b16 %v3341
        %v3774 = vunpack.c.h.b16 %v3341
        %v3775 = vunpack.c.l.b16 %v3342
        %v3776 = vunpack.c.h.b16 %v3342
        %v3777 = vunpack.c.l.b16 %v3343
        %v3778 = vunpack.c.h.b16 %v3343
        %v3779 = vunpack.c.l.b16 %v3344
        %v3780 = vunpack.c.h.b16 %v3344
        %v3781 = vunpack.c.l.b16 %v3345
        %v3782 = vunpack.c.h.b16 %v3345
        %v3783 = vunpack.c.l.b16 %v3346
        %v3784 = vunpack.c.h.b16 %v3346
        %v3785 = vunpack.c.l.b16 %v3347
        %v3786 = vunpack.c.h.b16 %v3347
        %v3787 = vunpack.c.l.b16 %v3348
        %v3788 = vunpack.c.h.b16 %v3348
        %v3789 = vunpack.c.l.b16 %v3349
        %v3790 = vunpack.c.h.b16 %v3349
        %v3791 = vunpack.c.l.b16 %v3350
        %v3792 = vunpack.c.h.b16 %v3350
        %v3793 = vunpack.c.l.b16 %v3351
        %v3794 = vunpack.c.h.b16 %v3351
        %v3795 = vunpack.c.l.b16 %v3352
        %v3796 = vunpack.c.h.b16 %v3352
        %v3797 = vunpack.c.l.b16 %v3353
        %v3798 = vunpack.c.h.b16 %v3353
        %v3799 = vunpack.c.l.b16 %v3354
        %v3800 = vunpack.c.h.b16 %v3354
        %v3801 = vunpack.c.l.b16 %v3355
        %v3802 = vunpack.c.h.b16 %v3355
        %v3803 = vunpack.c.l.b16 %v3356
        %v3804 = vunpack.c.h.b16 %v3356
        %v3805 = vunpack.c.l.b16 %v3357
        %v3806 = vunpack.c.h.b16 %v3357
        %v3807 = vunpack.c.l.b16 %v3358
        %v3808 = vunpack.c.h.b16 %v3358
        %v3809 = vunpack.c.l.b16 %v3359
        %v3810 = vunpack.c.h.b16 %v3359
        %v3811 = vunpack.c.l.b16 %v3360
        %v3812 = vunpack.c.h.b16 %v3360
        %v3813 = vunpack.c.l.b16 %v3361
        %v3814 = vunpack.c.h.b16 %v3361
        %v3815 = vunpack.c.l.b16 %v3362
        %v3816 = vunpack.c.h.b16 %v3362
        %v3817 = vunpack.c.l.b16 %v3363
        %v3818 = vunpack.c.h.b16 %v3363
        %v3819 = vunpack.c.l.b16 %v3364
        %v3820 = vunpack.c.h.b16 %v3364
        %v3821 = vunpack.c.l.b16 %v3365
        %v3822 = vunpack.c.h.b16 %v3365
        %v3823 = vunpack.c.l.b16 %v3366
        %v3824 = vunpack.c.h.b16 %v3366
        %v3825 = vunpack.c.l.b16 %v3367
        %v3826 = vunpack.c.h.b16 %v3367
        %v3827 = vunpack.c.l.b16 %v3368
        %v3828 = vunpack.c.h.b16 %v3368
        %v3829 = vunpack.c.l.b16 %v3369
        %v3830 = vunpack.c.h.b16 %v3369
        %v3831 = vunpack.c.l.b16 %v3370
        %v3832 = vunpack.c.h.b16 %v3370
        %v3833 = vunpack.c.l.b16 %v3371
        %v3834 = vunpack.c.h.b16 %v3371
        %v3835 = vunpack.c.l.b16 %v3372
        %v3836 = vunpack.c.h.b16 %v3372
        %v3837 = vunpack.c.l.b16 %v3373
        %v3838 = vunpack.c.h.b16 %v3373
        %v3839 = vunpack.c.l.b16 %v3374
        %v3840 = vunpack.c.h.b16 %v3374
        %v3841 = vunpack.c.l.b16 %v3375
        %v3842 = vunpack.c.h.b16 %v3375
        %v3843 = vunpack.c.l.b16 %v3376
        %v3844 = vunpack.c.h.b16 %v3376
        %v3845 = vunpack.c.l.b16 %v3377
        %v3846 = vunpack.c.h.b16 %v3377
        %v3847 = vunpack.c.l.b16 %v3378
        %v3848 = vunpack.c.h.b16 %v3378
        %v3849 = vunpack.c.l.b16 %v3379
        %v3850 = vunpack.c.h.b16 %v3379
        %v3851 = vunpack.c.l.b16 %v3380
        %v3852 = vunpack.c.h.b16 %v3380
        %v3853 = vunpack.c.l.b16 %v3381
        %v3854 = vunpack.c.h.b16 %v3381
        %v3855 = vunpack.c.l.b16 %v3382
        %v3856 = vunpack.c.h.b16 %v3382
        %v3857 = vunpack.c.l.b16 %v3383
        %v3858 = vunpack.c.h.b16 %v3383
        %v3859 = vunpack.c.l.b16 %v3384
        %v3860 = vunpack.c.h.b16 %v3384
        %v3861 = vunpack.c.l.b16 %v3385
        %v3862 = vunpack.c.h.b16 %v3385
        %v3863 = vunpack.c.l.b16 %v3386
        %v3864 = vunpack.c.h.b16 %v3386
        %v3865 = vunpack.c.l.b16 %v3387
        %v3866 = vunpack.c.h.b16 %v3387
        %v3867 = vunpack.c.l.b16 %v3388
        %v3868 = vunpack.c.h.b16 %v3388
        %v3869 = vunpack.c.l.b16 %v3389
        %v3870 = vunpack.c.h.b16 %v3389
        %v3871 = vunpack.c.l.b16 %v3390
        %v3872 = vunpack.c.h.b16 %v3390
        %v3873 = vunpack.c.l.b16 %v3391
        %v3874 = vunpack.c.h.b16 %v3391
        %v3875 = vunpack.c.l.b16 %v3392
        %v3876 = vunpack.c.h.b16 %v3392
        %v3877 = vunpack.c.l.b16 %v3393
        %v3878 = vunpack.c.h.b16 %v3393
        %v3879 = vunpack.c.l.b16 %v3394
        %v3880 = vunpack.c.h.b16 %v3394
        %v3881 = vunpack.c.l.b16 %v3395
        %v3882 = vunpack.c.h.b16 %v3395
        %v3883 = vunpack.c.l.b16 %v3396
        %v3884 = vunpack.c.h.b16 %v3396
        %v3885 = vunpack.c.l.b16 %v3397
        %v3886 = vunpack.c.h.b16 %v3397
        %v3887 = vunpack.c.l.b16 %v3398
        %v3888 = vunpack.c.h.b16 %v3398
        %v3889 = vunpack.c.l.b16 %v3399
        %v3890 = vunpack.c.h.b16 %v3399
        %v3891 = vunpack.c.l.b16 %v3400
        %v3892 = vunpack.c.h.b16 %v3400
        %v3893 = vunpack.c.l.b16 %v3401
        %v3894 = vunpack.c.h.b16 %v3401
        %v3895 = vunpack.c.l.b16 %v3402
        %v3896 = vunpack.c.h.b16 %v3402
        %v3897 = vunpack.c.l.b16 %v3403
        %v3898 = vunpack.c.h.b16 %v3403
        %v3899 = vunpack.c.l.b16 %v3404
        %v3900 = vunpack.c.h.b16 %v3404
        %v3901 = vunpack.c.l.b16 %v3405
        %v3902 = vunpack.c.h.b16 %v3405
        %v3903 = vunpack.c.l.b16 %v3406
        %v3904 = vunpack.c.h.b16 %v3406
        %v3905 = vunpack.c.l.b16 %v3407
        %v3906 = vunpack.c.h.b16 %v3407
        %v3907 = vunpack.c.l.b16 %v3408
        %v3908 = vunpack.c.h.b16 %v3408
        %v3909 = vunpack.c.l.b16 %v3409
        %v3910 = vunpack.c.h.b16 %v3409
        %v3911 = vunpack.c.l.b16 %v3410
        %v3912 = vunpack.c.h.b16 %v3410
        %v3913 = vunpack.c.l.b16 %v3411
        %v3914 = vunpack.c.h.b16 %v3411
        %v3915 = vunpack.c.l.b16 %v3412
        %v3916 = vunpack.c.h.b16 %v3412
        %v3917 = vunpack.c.l.b16 %v3413
        %v3918 = vunpack.c.h.b16 %v3413
        %v3919 = vunpack.c.l.b16 %v3414
        %v3920 = vunpack.c.h.b16 %v3414
        %v3921 = vunpack.c.l.b16 %v3415
        %v3922 = vunpack.c.h.b16 %v3415
        %v3923 = vunpack.c.l.b16 %v3416
        %v3924 = vunpack.c.h.b16 %v3416
        %v3925 = vunpack.c.l.b16 %v3417
        %v3926 = vunpack.c.h.b16 %v3417
        %v3927 = vunpack.c.l.b16 %v3418
        %v3928 = vunpack.c.h.b16 %v3418
        %v3929 = vunpack.c.l.b16 %v3419
        %v3930 = vunpack.c.h.b16 %v3419
        %v3931 = vunpack.c.l.b16 %v3420
        %v3932 = vunpack.c.h.b16 %v3420
        %v3933 = vunpack.c.l.b16 %v3421
        %v3934 = vunpack.c.h.b16 %v3421
        %v3935 = vunpack.c.l.b16 %v3422
        %v3936 = vunpack.c.h.b16 %v3422
        %v3937 = vunpack.c.l.b16 %v3423
        %v3938 = vunpack.c.h.b16 %v3423
        %v3939 = vunpack.c.l.b16 %v3424
        %v3940 = vunpack.c.h.b16 %v3424
        %v3941 = vunpack.c.l.b16 %v3425
        %v3942 = vunpack.c.h.b16 %v3425
        %v3943 = vunpack.c.l.b16 %v3426
        %v3944 = vunpack.c.h.b16 %v3426
        %v3945 = vunpack.c.l.b16 %v3427
        %v3946 = vunpack.c.h.b16 %v3427
        %v3947 = vunpack.c.l.b16 %v3428
        %v3948 = vunpack.c.h.b16 %v3428
        %v3949 = vunpack.c.l.b16 %v3429
        %v3950 = vunpack.c.h.b16 %v3429
        %v3951 = vunpack.c.l.b16 %v3430
        %v3952 = vunpack.c.h.b16 %v3430
        %v3953 = vunpack.c.l.b16 %v3431
        %v3954 = vunpack.c.h.b16 %v3431
        %v3955 = vunpack.c.l.b16 %v3432
        %v3956 = vunpack.c.h.b16 %v3432
        %v3957 = vunpack.c.l.b16 %v3433
        %v3958 = vunpack.c.h.b16 %v3433
        %v3959 = vunpack.c.l.b16 %v3434
        %v3960 = vunpack.c.h.b16 %v3434
        %v3961 = vunpack.c.l.b16 %v3435
        %v3962 = vunpack.c.h.b16 %v3435
        %v3963 = vunpack.c.l.b16 %v3436
        %v3964 = vunpack.c.h.b16 %v3436
        %v3965 = vunpack.c.l.b16 %v3437
        %v3966 = vunpack.c.h.b16 %v3437
        %v3967 = vunpack.c.l.b16 %v3438
        %v3968 = vunpack.c.h.b16 %v3438
        %v3969 = vunpack.c.l.b16 %v3439
        %v3970 = vunpack.c.h.b16 %v3439
        %v3971 = vunpack.c.l.b16 %v3440
        %v3972 = vunpack.c.h.b16 %v3440
        %v3973 = vunpack.c.l.b16 %v3441
        %v3974 = vunpack.c.h.b16 %v3441
        %v3975 = vunpack.c.l.b16 %v3442
        %v3976 = vunpack.c.h.b16 %v3442
        %v3977 = vunpack.c.l.b16 %v3443
        %v3978 = vunpack.c.h.b16 %v3443
        %v3979 = vunpack.c.l.b16 %v3444
        %v3980 = vunpack.c.h.b16 %v3444
        %v3981 = vunpack.c.l.b16 %v3445
        %v3982 = vunpack.c.h.b16 %v3445
        %v3983 = vunpack.c.l.b16 %v3446
        %v3984 = vunpack.c.h.b16 %v3446
        %v3985 = vunpack.c.l.b16 %v3447
        %v3986 = vunpack.c.h.b16 %v3447
        %v3987 = vunpack.c.l.b16 %v3448
        %v3988 = vunpack.c.h.b16 %v3448
        %v3989 = vunpack.c.l.b16 %v3449
        %v3990 = vunpack.c.h.b16 %v3449
        %v3991 = vunpack.c.l.b16 %v3450
        %v3992 = vunpack.c.h.b16 %v3450
        %v3993 = vunpack.c.l.b16 %v3451
        %v3994 = vunpack.c.h.b16 %v3451
        %v3995 = vunpack.c.l.b16 %v3452
        %v3996 = vunpack.c.h.b16 %v3452
        %v3997 = vunpack.c.l.b16 %v3453
        %v3998 = vunpack.c.h.b16 %v3453
        %v3999 = vunpack.c.l.b16 %v3454
        %v4000 = vunpack.c.h.b16 %v3454
        %v4001 = vunpack.c.l.b16 %v3455
        %v4002 = vunpack.c.h.b16 %v3455
        %v4003 = vunpack.c.l.b16 %v3456
        %v4004 = vunpack.c.h.b16 %v3456
        %v4005 = vunpack.c.l.b16 %v3457
        %v4006 = vunpack.c.h.b16 %v3457
        %v4007 = vunpack.c.l.b16 %v3458
        %v4008 = vunpack.c.h.b16 %v3458
        %v4009 = vunpack.c.l.b16 %v3459
        %v4010 = vunpack.c.h.b16 %v3459
        %v4011 = vunpack.c.l.b16 %v3460
        %v4012 = vunpack.c.h.b16 %v3460
        %v4013 = vunpack.c.l.b16 %v3461
        %v4014 = vunpack.c.h.b16 %v3461
        %v4015 = vunpack.c.l.b16 %v3462
        %v4016 = vunpack.c.h.b16 %v3462
        %v4017 = vunpack.c.l.b16 %v3463
        %v4018 = vunpack.c.h.b16 %v3463
        %v4019 = vunpack.c.l.b16 %v3464
        %v4020 = vunpack.c.h.b16 %v3464
        %v4021 = vunpack.c.l.b16 %v3465
        %v4022 = vunpack.c.h.b16 %v3465
        %v4023 = vunpack.c.l.b16 %v3466
        %v4024 = vunpack.c.h.b16 %v3466
        %v4025 = vunpack.c.l.b16 %v3467
        %v4026 = vunpack.c.h.b16 %v3467
        %v4027 = vunpack.c.l.b16 %v3468
        %v4028 = vunpack.c.h.b16 %v3468
        %v4029 = vunpack.c.l.b16 %v3469
        %v4030 = vunpack.c.h.b16 %v3469
        %v4031 = vunpack.c.l.b16 %v3470
        %v4032 = vunpack.c.h.b16 %v3470
        %v4033 = vunpack.c.l.b16 %v3471
        %v4034 = vunpack.c.h.b16 %v3471
        %v4035 = vunpack.c.l.b16 %v3472
        %v4036 = vunpack.c.h.b16 %v3472
        %v4037 = vunpack.c.l.b16 %v3473
        %v4038 = vunpack.c.h.b16 %v3473
        %v4039 = vunpack.c.l.b16 %v3474
        %v4040 = vunpack.c.h.b16 %v3474
        %v4041 = vunpack.c.l.b16 %v3475
        %v4042 = vunpack.c.h.b16 %v3475
        %v4043 = vunpack.c.l.b16 %v3476
        %v4044 = vunpack.c.h.b16 %v3476
        %v4045 = vunpack.c.l.b16 %v3477
        %v4046 = vunpack.c.h.b16 %v3477
        %v4047 = vunpack.c.l.b16 %v3478
        %v4048 = vunpack.c.h.b16 %v3478
        %v4049 = vunpack.c.l.b16 %v3479
        %v4050 = vunpack.c.h.b16 %v3479
        %v4051 = vunpack.c.l.b16 %v3480
        %v4052 = vunpack.c.h.b16 %v3480
        %v4053 = vunpack.c.l.b16 %v3481
        %v4054 = vunpack.c.h.b16 %v3481
        %v4055 = vunpack.c.l.b16 %v3482
        %v4056 = vunpack.c.h.b16 %v3482
        %v4057 = vunpack.c.l.b16 %v3483
        %v4058 = vunpack.c.h.b16 %v3483
        %v4059 = vunpack.c.l.b16 %v3484
        %v4060 = vunpack.c.h.b16 %v3484
        %v4061 = vpack.c.b16 %v3689, %v3677
        %v4062 = vpack.c.b16 %v3690, %v3678
        %v4063 = vpack.c.b16 %v3691, %v3679
        %v4064 = vpack.c.b16 %v3692, %v3680
        %v4065 = vpack.c.b16 %v3693, %v3681
        %v4066 = vpack.c.b16 %v3694, %v3682
        %v4067 = vpack.c.b16 %v3695, %v3683
        %v4068 = vpack.c.b16 %v3696, %v3684
        %v4069 = vpack.c.b16 %v3697, %v3685
        %v4070 = vpack.c.b16 %v3698, %v3686
        %v4071 = vpack.c.b16 %v3699, %v3687
        %v4072 = vpack.c.b16 %v3700, %v3688
        %v4073 = vpack.c.b16 %v3713, %v3701
        %v4074 = vpack.c.b16 %v3714, %v3702
        %v4075 = vpack.c.b16 %v3715, %v3703
        %v4076 = vpack.c.b16 %v3716, %v3704
        %v4077 = vpack.c.b16 %v3717, %v3705
        %v4078 = vpack.c.b16 %v3718, %v3706
        %v4079 = vpack.c.b16 %v3719, %v3707
        %v4080 = vpack.c.b16 %v3720, %v3708
        %v4081 = vpack.c.b16 %v3721, %v3709
        %v4082 = vpack.c.b16 %v3722, %v3710
        %v4083 = vpack.c.b16 %v3723, %v3711
        %v4084 = vpack.c.b16 %v3724, %v3712
        %v4085 = vpack.c.b16 %v3737, %v3725
        %v4086 = vpack.c.b16 %v3738, %v3726
        %v4087 = vpack.c.b16 %v3739, %v3727
        %v4088 = vpack.c.b16 %v3740, %v3728
        %v4089 = vpack.c.b16 %v3741, %v3729
        %v4090 = vpack.c.b16 %v3742, %v3730
        %v4091 = vpack.c.b16 %v3743, %v3731
        %v4092 = vpack.c.b16 %v3744, %v3732
        %v4093 = vpack.c.b16 %v3745, %v3733
        %v4094 = vpack.c.b16 %v3746, %v3734
        %v4095 = vpack.c.b16 %v3747, %v3735
        %v4096 = vpack.c.b16 %v3748, %v3736
        %v4097 = vpack.c.b16 %v3761, %v3749
        %v4098 = vpack.c.b16 %v3762, %v3750
        %v4099 = vpack.c.b16 %v3763, %v3751
        %v4100 = vpack.c.b16 %v3764, %v3752
        %v4101 = vpack.c.b16 %v3765, %v3753
        %v4102 = vpack.c.b16 %v3766, %v3754
        %v4103 = vpack.c.b16 %v3767, %v3755
        %v4104 = vpack.c.b16 %v3768, %v3756
        %v4105 = vpack.c.b16 %v3769, %v3757
        %v4106 = vpack.c.b16 %v3770, %v3758
        %v4107 = vpack.c.b16 %v3771, %v3759
        %v4108 = vpack.c.b16 %v3772, %v3760
        %v4109 = vpack.c.b16 %v3785, %v3773
        %v4110 = vpack.c.b16 %v3786, %v3774
        %v4111 = vpack.c.b16 %v3787, %v3775
        %v4112 = vpack.c.b16 %v3788, %v3776
        %v4113 = vpack.c.b16 %v3789, %v3777
        %v4114 = vpack.c.b16 %v3790, %v3778
        %v4115 = vpack.c.b16 %v3791, %v3779
        %v4116 = vpack.c.b16 %v3792, %v3780
        %v4117 = vpack.c.b16 %v3793, %v3781
        %v4118 = vpack.c.b16 %v3794, %v3782
        %v4119 = vpack.c.b16 %v3795, %v3783
        %v4120 = vpack.c.b16 %v3796, %v3784
        %v4121 = vpack.c.b16 %v3809, %v3797
        %v4122 = vpack.c.b16 %v3810, %v3798
        %v4123 = vpack.c.b16 %v3811, %v3799
        %v4124 = vpack.c.b16 %v3812, %v3800
        %v4125 = vpack.c.b16 %v3813, %v3801
        %v4126 = vpack.c.b16 %v3814, %v3802
        %v4127 = vpack.c.b16 %v3815, %v3803
        %v4128 = vpack.c.b16 %v3816, %v3804
        %v4129 = vpack.c.b16 %v3817, %v3805
        %v4130 = vpack.c.b16 %v3818, %v3806
        %v4131 = vpack.c.b16 %v3819, %v3807
        %v4132 = vpack.c.b16 %v3820, %v3808
        %v4133 = vpack.c.b16 %v3833, %v3821
        %v4134 = vpack.c.b16 %v3834, %v3822
        %v4135 = vpack.c.b16 %v3835, %v3823
        %v4136 = vpack.c.b16 %v3836, %v3824
        %v4137 = vpack.c.b16 %v3837, %v3825
        %v4138 = vpack.c.b16 %v3838, %v3826
        %v4139 = vpack.c.b16 %v3839, %v3827
        %v4140 = vpack.c.b16 %v3840, %v3828
        %v4141 = vpack.c.b16 %v3841, %v3829
        %v4142 = vpack.c.b16 %v3842, %v3830
        %v4143 = vpack.c.b16 %v3843, %v3831
        %v4144 = vpack.c.b16 %v3844, %v3832
        %v4145 = vpack.c.b16 %v3857, %v3845
        %v4146 = vpack.c.b16 %v3858, %v3846
        %v4147 = vpack.c.b16 %v3859, %v3847
        %v4148 = vpack.c.b16 %v3860, %v3848
        %v4149 = vpack.c.b16 %v3861, %v3849
        %v4150 = vpack.c.b16 %v3862, %v3850
        %v4151 = vpack.c.b16 %v3863, %v3851
        %v4152 = vpack.c.b16 %v3864, %v3852
        %v4153 = vpack.c.b16 %v3865, %v3853
        %v4154 = vpack.c.b16 %v3866, %v3854
        %v4155 = vpack.c.b16 %v3867, %v3855
        %v4156 = vpack.c.b16 %v3868, %v3856
        %v4157 = vpack.c.b16 %v3881, %v3869
        %v4158 = vpack.c.b16 %v3882, %v3870
        %v4159 = vpack.c.b16 %v3883, %v3871
        %v4160 = vpack.c.b16 %v3884, %v3872
        %v4161 = vpack.c.b16 %v3885, %v3873
        %v4162 = vpack.c.b16 %v3886, %v3874
        %v4163 = vpack.c.b16 %v3887, %v3875
        %v4164 = vpack.c.b16 %v3888, %v3876
        %v4165 = vpack.c.b16 %v3889, %v3877
        %v4166 = vpack.c.b16 %v3890, %v3878
        %v4167 = vpack.c.b16 %v3891, %v3879
        %v4168 = vpack.c.b16 %v3892, %v3880
        %v4169 = vpack.c.b16 %v3905, %v3893
        %v4170 = vpack.c.b16 %v3906, %v3894
        %v4171 = vpack.c.b16 %v3907, %v3895
        %v4172 = vpack.c.b16 %v3908, %v3896
        %v4173 = vpack.c.b16 %v3909, %v3897
        %v4174 = vpack.c.b16 %v3910, %v3898
        %v4175 = vpack.c.b16 %v3911, %v3899
        %v4176 = vpack.c.b16 %v3912, %v3900
        %v4177 = vpack.c.b16 %v3913, %v3901
        %v4178 = vpack.c.b16 %v3914, %v3902
        %v4179 = vpack.c.b16 %v3915, %v3903
        %v4180 = vpack.c.b16 %v3916, %v3904
        %v4181 = vpack.c.b16 %v3929, %v3917
        %v4182 = vpack.c.b16 %v3930, %v3918
        %v4183 = vpack.c.b16 %v3931, %v3919
        %v4184 = vpack.c.b16 %v3932, %v3920
        %v4185 = vpack.c.b16 %v3933, %v3921
        %v4186 = vpack.c.b16 %v3934, %v3922
        %v4187 = vpack.c.b16 %v3935, %v3923
        %v4188 = vpack.c.b16 %v3936, %v3924
        %v4189 = vpack.c.b16 %v3937, %v3925
        %v4190 = vpack.c.b16 %v3938, %v3926
        %v4191 = vpack.c.b16 %v3939, %v3927
        %v4192 = vpack.c.b16 %v3940, %v3928
        %v4193 = vpack.c.b16 %v3953, %v3941
        %v4194 = vpack.c.b16 %v3954, %v3942
        %v4195 = vpack.c.b16 %v3955, %v3943
        %v4196 = vpack.c.b16 %v3956, %v3944
        %v4197 = vpack.c.b16 %v3957, %v3945
        %v4198 = vpack.c.b16 %v3958, %v3946
        %v4199 = vpack.c.b16 %v3959, %v3947
        %v4200 = vpack.c.b16 %v3960, %v3948
        %v4201 = vpack.c.b16 %v3961, %v3949
        %v4202 = vpack.c.b16 %v3962, %v3950
        %v4203 = vpack.c.b16 %v3963, %v3951
        %v4204 = vpack.c.b16 %v3964, %v3952
        %v4205 = vpack.c.b16 %v3977, %v3965
        %v4206 = vpack.c.b16 %v3978, %v3966
        %v4207 = vpack.c.b16 %v3979, %v3967
        %v4208 = vpack.c.b16 %v3980, %v3968
        %v4209 = vpack.c.b16 %v3981, %v3969
        %v4210 = vpack.c.b16 %v3982, %v3970
        %v4211 = vpack.c.b16 %v3983, %v3971
        %v4212 = vpack.c.b16 %v3984, %v3972
        %v4213 = vpack.c.b16 %v3985, %v3973
        %v4214 = vpack.c.b16 %v3986, %v3974
        %v4215 = vpack.c.b16 %v3987, %v3975
        %v4216 = vpack.c.b16 %v3988, %v3976
        %v4217 = vpack.c.b16 %v4001, %v3989
        %v4218 = vpack.c.b16 %v4002, %v3990
        %v4219 = vpack.c.b16 %v4003, %v3991
        %v4220 = vpack.c.b16 %v4004, %v3992
        %v4221 = vpack.c.b16 %v4005, %v3993
        %v4222 = vpack.c.b16 %v4006, %v3994
        %v4223 = vpack.c.b16 %v4007, %v3995
        %v4224 = vpack.c.b16 %v4008, %v3996
        %v4225 = vpack.c.b16 %v4009, %v3997
        %v4226 = vpack.c.b16 %v4010, %v3998
        %v4227 = vpack.c.b16 %v4011, %v3999
        %v4228 = vpack.c.b16 %v4012, %v4000
        %v4229 = vpack.c.b16 %v4025, %v4013
        %v4230 = vpack.c.b16 %v4026, %v4014
        %v4231 = vpack.c.b16 %v4027, %v4015
        %v4232 = vpack.c.b16 %v4028, %v4016
        %v4233 = vpack.c.b16 %v4029, %v4017
        %v4234 = vpack.c.b16 %v4030, %v4018
        %v4235 = vpack.c.b16 %v4031, %v4019
        %v4236 = vpack.c.b16 %v4032, %v4020
        %v4237 = vpack.c.b16 %v4033, %v4021
        %v4238 = vpack.c.b16 %v4034, %v4022
        %v4239 = vpack.c.b16 %v4035, %v4023
        %v4240 = vpack.c.b16 %v4036, %v4024
        %v4241 = vpack.c.b16 %v4049, %v4037
        %v4242 = vpack.c.b16 %v4050, %v4038
        %v4243 = vpack.c.b16 %v4051, %v4039
        %v4244 = vpack.c.b16 %v4052, %v4040
        %v4245 = vpack.c.b16 %v4053, %v4041
        %v4246 = vpack.c.b16 %v4054, %v4042
        %v4247 = vpack.c.b16 %v4055, %v4043
        %v4248 = vpack.c.b16 %v4056, %v4044
        %v4249 = vpack.c.b16 %v4057, %v4045
        %v4250 = vpack.c.b16 %v4058, %v4046
        %v4251 = vpack.c.b16 %v4059, %v4047
        %v4252 = vpack.c.b16 %v4060, %v4048
        %4445 = vmatprep.subr.bf16.mxu0 %v4062
        %4446 = vmatpush1.bf16.msra.mxu0 %v4061
        %4447 = vmatprep.subr.bf16.mxu0 %v4074
        %4448 = vmatpush1.bf16.msra.mxu0 %v4073
        %4449 = vmatprep.subr.bf16.mxu0 %v4086
        %4450 = vmatpush1.bf16.msra.mxu0 %v4085
        %4451 = vmatprep.subr.bf16.mxu0 %v4098
        %4452 = vmatpush1.bf16.msra.mxu0 %v4097
        %4453 = vmatprep.subr.bf16.mxu0 %v4110
        %4454 = vmatpush1.bf16.msra.mxu0 %v4109
        %4455 = vmatprep.subr.bf16.mxu0 %v4122
        %4456 = vmatpush1.bf16.msra.mxu0 %v4121
        %4457 = vmatprep.subr.bf16.mxu0 %v4134
        %4458 = vmatpush1.bf16.msra.mxu0 %v4133
        %4459 = vmatprep.subr.bf16.mxu0 %v4146
        %4460 = vmatpush1.bf16.msra.mxu0 %v4145
        %4461 = vmatprep.subr.bf16.mxu0 %v4158
        %4462 = vmatpush1.bf16.msra.mxu0 %v4157
        %4463 = vmatprep.subr.bf16.mxu0 %v4170
        %4464 = vmatpush1.bf16.msra.mxu0 %v4169
        %4465 = vmatprep.subr.bf16.mxu0 %v4182
        %4466 = vmatpush1.bf16.msra.mxu0 %v4181
        %4467 = vmatprep.subr.bf16.mxu0 %v4194
        %4468 = vmatpush1.bf16.msra.mxu0 %v4193
        %4469 = vmatprep.subr.bf16.mxu0 %v4206
        %4470 = vmatpush1.bf16.msra.mxu0 %v4205
        %4471 = vmatprep.subr.bf16.mxu0 %v4218
        %4472 = vmatpush1.bf16.msra.mxu0 %v4217
        %4473 = vmatprep.subr.bf16.mxu0 %v4230
        %4474 = vmatpush1.bf16.msra.mxu0 %v4229
        %4475 = vmatprep.subr.bf16.mxu0 %v4242
        %4476 = vmatpush1.bf16.msra.mxu0 %v4241
        %4477 = vmatprep.mubr.bf16.mxu0 %v3290
        %4478 = vmatmul.mubr.bf16.gmra.mrb[0].mxu0 %v3289
        %v4479 = vpop.f32.mrb[0].mxu0
        %v4480 = vadd.f32 0.0, %v4479
        %v4481 = vpop.f32.mrb[0].mxu0
        %v4482 = vadd.f32 0.0, %v4481
        %v4483 = vpop.f32.mrb[0].mxu0
        %v4484 = vadd.f32 0.0, %v4483
        %v4485 = vpop.f32.mrb[0].mxu0
        %v4486 = vadd.f32 0.0, %v4485
        %4487 = vmatprep.mubr.bf16.mxu0 %v3292
        %4488 = vmatmul.mubr.bf16.gmra.mrb[0].mxu0 %v3291
        %v4489 = vpop.f32.mrb[0].mxu0
        %v4490 = vadd.f32 0.0, %v4489
        %v4491 = vpop.f32.mrb[0].mxu0
        %v4492 = vadd.f32 0.0, %v4491
        %v4493 = vpop.f32.mrb[0].mxu0
        %v4494 = vadd.f32 0.0, %v4493
        %v4495 = vpop.f32.mrb[0].mxu0
        %v4496 = vadd.f32 0.0, %v4495
        %4497 = vdwg.mxu0
        %4498 = vmatprep.subr.bf16.mxu0 %v4064
        %4499 = vmatpush1.bf16.msra.mxu0 %v4063
        %4500 = vmatprep.subr.bf16.mxu0 %v4076
        %4501 = vmatpush1.bf16.msra.mxu0 %v4075
        %4502 = vmatprep.subr.bf16.mxu0 %v4088
        %4503 = vmatpush1.bf16.msra.mxu0 %v4087
        %4504 = vmatprep.subr.bf16.mxu0 %v4100
        %4505 = vmatpush1.bf16.msra.mxu0 %v4099
        %4506 = vmatprep.subr.bf16.mxu0 %v4112
        %4507 = vmatpush1.bf16.msra.mxu0 %v4111
        %4508 = vmatprep.subr.bf16.mxu0 %v4124
        %4509 = vmatpush1.bf16.msra.mxu0 %v4123
        %4510 = vmatprep.subr.bf16.mxu0 %v4136
        %4511 = vmatpush1.bf16.msra.mxu0 %v4135
        %4512 = vmatprep.subr.bf16.mxu0 %v4148
        %4513 = vmatpush1.bf16.msra.mxu0 %v4147
        %4514 = vmatprep.subr.bf16.mxu0 %v4160
        %4515 = vmatpush1.bf16.msra.mxu0 %v4159
        %4516 = vmatprep.subr.bf16.mxu0 %v4172
        %4517 = vmatpush1.bf16.msra.mxu0 %v4171
        %4518 = vmatprep.subr.bf16.mxu0 %v4184
        %4519 = vmatpush1.bf16.msra.mxu0 %v4183
        %4520 = vmatprep.subr.bf16.mxu0 %v4196
        %4521 = vmatpush1.bf16.msra.mxu0 %v4195
        %4522 = vmatprep.subr.bf16.mxu0 %v4208
        %4523 = vmatpush1.bf16.msra.mxu0 %v4207
        %4524 = vmatprep.subr.bf16.mxu0 %v4220
        %4525 = vmatpush1.bf16.msra.mxu0 %v4219
        %4526 = vmatprep.subr.bf16.mxu0 %v4232
        %4527 = vmatpush1.bf16.msra.mxu0 %v4231
        %4528 = vmatprep.subr.bf16.mxu0 %v4244
        %4529 = vmatpush1.bf16.msra.mxu0 %v4243
        %4530 = vmatprep.mubr.bf16.mxu0 %v3290
        %4531 = vmatmul.mubr.bf16.gmra.mrb[0].mxu0 %v3289
        %v4532 = vpop.f32.mrb[0].mxu0
        %v4533 = vadd.f32 0.0, %v4532
        %v4534 = vpop.f32.mrb[0].mxu0
        %v4535 = vadd.f32 0.0, %v4534
        %v4536 = vpop.f32.mrb[0].mxu0
        %v4537 = vadd.f32 0.0, %v4536
        %v4538 = vpop.f32.mrb[0].mxu0
        %v4539 = vadd.f32 0.0, %v4538
        %4540 = vmatprep.mubr.bf16.mxu0 %v3292
        %4541 = vmatmul.mubr.bf16.gmra.mrb[0].mxu0 %v3291
        %v4542 = vpop.f32.mrb[0].mxu0
        %v4543 = vadd.f32 0.0, %v4542
        %v4544 = vpop.f32.mrb[0].mxu0
        %v4545 = vadd.f32 0.0, %v4544
        %v4546 = vpop.f32.mrb[0].mxu0
        %v4547 = vadd.f32 0.0, %v4546
        %v4548 = vpop.f32.mrb[0].mxu0
        %v4549 = vadd.f32 0.0, %v4548
        %4550 = vdwg.mxu0
        %4551 = vmatprep.subr.bf16.mxu0 %v4066
        %4552 = vmatpush1.bf16.msra.mxu0 %v4065
        %4553 = vmatprep.subr.bf16.mxu0 %v4078
        %4554 = vmatpush1.bf16.msra.mxu0 %v4077
        %4555 = vmatprep.subr.bf16.mxu0 %v4090
        %4556 = vmatpush1.bf16.msra.mxu0 %v4089
        %4557 = vmatprep.subr.bf16.mxu0 %v4102
        %4558 = vmatpush1.bf16.msra.mxu0 %v4101
        %4559 = vmatprep.subr.bf16.mxu0 %v4114
        %4560 = vmatpush1.bf16.msra.mxu0 %v4113
        %4561 = vmatprep.subr.bf16.mxu0 %v4126
        %4562 = vmatpush1.bf16.msra.mxu0 %v4125
        %4563 = vmatprep.subr.bf16.mxu0 %v4138
        %4564 = vmatpush1.bf16.msra.mxu0 %v4137
        %4565 = vmatprep.subr.bf16.mxu0 %v4150
        %4566 = vmatpush1.bf16.msra.mxu0 %v4149
        %4567 = vmatprep.subr.bf16.mxu0 %v4162
        %4568 = vmatpush1.bf16.msra.mxu0 %v4161
        %4569 = vmatprep.subr.bf16.mxu0 %v4174
        %4570 = vmatpush1.bf16.msra.mxu0 %v4173
        %4571 = vmatprep.subr.bf16.mxu0 %v4186
        %4572 = vmatpush1.bf16.msra.mxu0 %v4185
        %4573 = vmatprep.subr.bf16.mxu0 %v4198
        %4574 = vmatpush1.bf16.msra.mxu0 %v4197
        %4575 = vmatprep.subr.bf16.mxu0 %v4210
        %4576 = vmatpush1.bf16.msra.mxu0 %v4209
        %4577 = vmatprep.subr.bf16.mxu0 %v4222
        %4578 = vmatpush1.bf16.msra.mxu0 %v4221
        %4579 = vmatprep.subr.bf16.mxu0 %v4234
        %4580 = vmatpush1.bf16.msra.mxu0 %v4233
        %4581 = vmatprep.subr.bf16.mxu0 %v4246
        %4582 = vmatpush1.bf16.msra.mxu0 %v4245
        %4583 = vmatprep.mubr.bf16.mxu0 %v3290
        %4584 = vmatmul.mubr.bf16.gmra.mrb[0].mxu0 %v3289
        %v4585 = vpop.f32.mrb[0].mxu0
        %v4586 = vadd.f32 0.0, %v4585
        %v4587 = vpop.f32.mrb[0].mxu0
        %v4588 = vadd.f32 0.0, %v4587
        %v4589 = vpop.f32.mrb[0].mxu0
        %v4590 = vadd.f32 0.0, %v4589
        %v4591 = vpop.f32.mrb[0].mxu0
        %v4592 = vadd.f32 0.0, %v4591
        %4593 = vmatprep.mubr.bf16.mxu0 %v3292
        %4594 = vmatmul.mubr.bf16.gmra.mrb[0].mxu0 %v3291
        %v4595 = vpop.f32.mrb[0].mxu0
        %v4596 = vadd.f32 0.0, %v4595
        %v4597 = vpop.f32.mrb[0].mxu0
        %v4598 = vadd.f32 0.0, %v4597
        %v4599 = vpop.f32.mrb[0].mxu0
        %v4600 = vadd.f32 0.0, %v4599
        %v4601 = vpop.f32.mrb[0].mxu0
        %v4602 = vadd.f32 0.0, %v4601
        %4603 = vdwg.mxu0
        %4604 = vmatprep.subr.bf16.mxu0 %v4068
        %4605 = vmatpush1.bf16.msra.mxu0 %v4067
        %4606 = vmatprep.subr.bf16.mxu0 %v4080
        %4607 = vmatpush1.bf16.msra.mxu0 %v4079
        %4608 = vmatprep.subr.bf16.mxu0 %v4092
        %4609 = vmatpush1.bf16.msra.mxu0 %v4091
        %4610 = vmatprep.subr.bf16.mxu0 %v4104
        %4611 = vmatpush1.bf16.msra.mxu0 %v4103
        %4612 = vmatprep.subr.bf16.mxu0 %v4116
        %4613 = vmatpush1.bf16.msra.mxu0 %v4115
        %4614 = vmatprep.subr.bf16.mxu0 %v4128
        %4615 = vmatpush1.bf16.msra.mxu0 %v4127
        %4616 = vmatprep.subr.bf16.mxu0 %v4140
        %4617 = vmatpush1.bf16.msra.mxu0 %v4139
        %4618 = vmatprep.subr.bf16.mxu0 %v4152
        %4619 = vmatpush1.bf16.msra.mxu0 %v4151
        %4620 = vmatprep.subr.bf16.mxu0 %v4164
        %4621 = vmatpush1.bf16.msra.mxu0 %v4163
        %4622 = vmatprep.subr.bf16.mxu0 %v4176
        %4623 = vmatpush1.bf16.msra.mxu0 %v4175
        %4624 = vmatprep.subr.bf16.mxu0 %v4188
        %4625 = vmatpush1.bf16.msra.mxu0 %v4187
        %4626 = vmatprep.subr.bf16.mxu0 %v4200
        %4627 = vmatpush1.bf16.msra.mxu0 %v4199
        %4628 = vmatprep.subr.bf16.mxu0 %v4212
        %4629 = vmatpush1.bf16.msra.mxu0 %v4211
        %4630 = vmatprep.subr.bf16.mxu0 %v4224
        %4631 = vmatpush1.bf16.msra.mxu0 %v4223
        %4632 = vmatprep.subr.bf16.mxu0 %v4236
        %4633 = vmatpush1.bf16.msra.mxu0 %v4235
        %4634 = vmatprep.subr.bf16.mxu0 %v4248
        %4635 = vmatpush1.bf16.msra.mxu0 %v4247
        %4636 = vmatprep.mubr.bf16.mxu0 %v3290
        %4637 = vmatmul.mubr.bf16.gmra.mrb[0].mxu0 %v3289
        %v4638 = vpop.f32.mrb[0].mxu0
        %v4639 = vadd.f32 0.0, %v4638
        %v4640 = vpop.f32.mrb[0].mxu0
        %v4641 = vadd.f32 0.0, %v4640
        %v4642 = vpop.f32.mrb[0].mxu0
        %v4643 = vadd.f32 0.0, %v4642
        %v4644 = vpop.f32.mrb[0].mxu0
        %v4645 = vadd.f32 0.0, %v4644
        %4646 = vmatprep.mubr.bf16.mxu0 %v3292
        %4647 = vmatmul.mubr.bf16.gmra.mrb[0].mxu0 %v3291
        %v4648 = vpop.f32.mrb[0].mxu0
        %v4649 = vadd.f32 0.0, %v4648
        %v4650 = vpop.f32.mrb[0].mxu0
        %v4651 = vadd.f32 0.0, %v4650
        %v4652 = vpop.f32.mrb[0].mxu0
        %v4653 = vadd.f32 0.0, %v4652
        %v4654 = vpop.f32.mrb[0].mxu0
        %v4655 = vadd.f32 0.0, %v4654
        %4656 = vdwg.mxu0
        %4657 = vmatprep.subr.bf16.mxu0 %v4070
        %4658 = vmatpush1.bf16.msra.mxu0 %v4069
        %4659 = vmatprep.subr.bf16.mxu0 %v4082
        %4660 = vmatpush1.bf16.msra.mxu0 %v4081
        %4661 = vmatprep.subr.bf16.mxu0 %v4094
        %4662 = vmatpush1.bf16.msra.mxu0 %v4093
        %4663 = vmatprep.subr.bf16.mxu0 %v4106
        %4664 = vmatpush1.bf16.msra.mxu0 %v4105
        %4665 = vmatprep.subr.bf16.mxu0 %v4118
        %4666 = vmatpush1.bf16.msra.mxu0 %v4117
        %4667 = vmatprep.subr.bf16.mxu0 %v4130
        %4668 = vmatpush1.bf16.msra.mxu0 %v4129
        %4669 = vmatprep.subr.bf16.mxu0 %v4142
        %4670 = vmatpush1.bf16.msra.mxu0 %v4141
        %4671 = vmatprep.subr.bf16.mxu0 %v4154
        %4672 = vmatpush1.bf16.msra.mxu0 %v4153
        %4673 = vmatprep.subr.bf16.mxu0 %v4166
        %4674 = vmatpush1.bf16.msra.mxu0 %v4165
        %4675 = vmatprep.subr.bf16.mxu0 %v4178
        %4676 = vmatpush1.bf16.msra.mxu0 %v4177
        %4677 = vmatprep.subr.bf16.mxu0 %v4190
        %4678 = vmatpush1.bf16.msra.mxu0 %v4189
        %4679 = vmatprep.subr.bf16.mxu0 %v4202
        %4680 = vmatpush1.bf16.msra.mxu0 %v4201
        %4681 = vmatprep.subr.bf16.mxu0 %v4214
        %4682 = vmatpush1.bf16.msra.mxu0 %v4213
        %4683 = vmatprep.subr.bf16.mxu0 %v4226
        %4684 = vmatpush1.bf16.msra.mxu0 %v4225
        %4685 = vmatprep.subr.bf16.mxu0 %v4238
        %4686 = vmatpush1.bf16.msra.mxu0 %v4237
        %4687 = vmatprep.subr.bf16.mxu0 %v4250
        %4688 = vmatpush1.bf16.msra.mxu0 %v4249
        %4689 = vmatprep.mubr.bf16.mxu0 %v3290
        %4690 = vmatmul.mubr.bf16.gmra.mrb[0].mxu0 %v3289
        %v4691 = vpop.f32.mrb[0].mxu0
        %v4692 = vadd.f32 0.0, %v4691
        %v4693 = vpop.f32.mrb[0].mxu0
        %v4694 = vadd.f32 0.0, %v4693
        %v4695 = vpop.f32.mrb[0].mxu0
        %v4696 = vadd.f32 0.0, %v4695
        %v4697 = vpop.f32.mrb[0].mxu0
        %v4698 = vadd.f32 0.0, %v4697
        %4699 = vmatprep.mubr.bf16.mxu0 %v3292
        %4700 = vmatmul.mubr.bf16.gmra.mrb[0].mxu0 %v3291
        %v4701 = vpop.f32.mrb[0].mxu0
        %v4702 = vadd.f32 0.0, %v4701
        %v4703 = vpop.f32.mrb[0].mxu0
        %v4704 = vadd.f32 0.0, %v4703
        %v4705 = vpop.f32.mrb[0].mxu0
        %v4706 = vadd.f32 0.0, %v4705
        %v4707 = vpop.f32.mrb[0].mxu0
        %v4708 = vadd.f32 0.0, %v4707
        %4709 = vdwg.mxu0
        %4710 = vmatprep.subr.bf16.mxu0 %v4072
        %4711 = vmatpush1.bf16.msra.mxu0 %v4071
        %4712 = vmatprep.subr.bf16.mxu0 %v4084
        %4713 = vmatpush1.bf16.msra.mxu0 %v4083
        %4714 = vmatprep.subr.bf16.mxu0 %v4096
        %4715 = vmatpush1.bf16.msra.mxu0 %v4095
        %4716 = vmatprep.subr.bf16.mxu0 %v4108
        %4717 = vmatpush1.bf16.msra.mxu0 %v4107
        %4718 = vmatprep.subr.bf16.mxu0 %v4120
        %4719 = vmatpush1.bf16.msra.mxu0 %v4119
        %4720 = vmatprep.subr.bf16.mxu0 %v4132
        %4721 = vmatpush1.bf16.msra.mxu0 %v4131
        %4722 = vmatprep.subr.bf16.mxu0 %v4144
        %4723 = vmatpush1.bf16.msra.mxu0 %v4143
        %4724 = vmatprep.subr.bf16.mxu0 %v4156
        %4725 = vmatpush1.bf16.msra.mxu0 %v4155
        %4726 = vmatprep.subr.bf16.mxu0 %v4168
        %4727 = vmatpush1.bf16.msra.mxu0 %v4167
        %4728 = vmatprep.subr.bf16.mxu0 %v4180
        %4729 = vmatpush1.bf16.msra.mxu0 %v4179
        %4730 = vmatprep.subr.bf16.mxu0 %v4192
        %4731 = vmatpush1.bf16.msra.mxu0 %v4191
        %4732 = vmatprep.subr.bf16.mxu0 %v4204
        %4733 = vmatpush1.bf16.msra.mxu0 %v4203
        %4734 = vmatprep.subr.bf16.mxu0 %v4216
        %4735 = vmatpush1.bf16.msra.mxu0 %v4215
        %4736 = vmatprep.subr.bf16.mxu0 %v4228
        %4737 = vmatpush1.bf16.msra.mxu0 %v4227
        %4738 = vmatprep.subr.bf16.mxu0 %v4240
        %4739 = vmatpush1.bf16.msra.mxu0 %v4239
        %4740 = vmatprep.subr.bf16.mxu0 %v4252
        %4741 = vmatpush1.bf16.msra.mxu0 %v4251
        %4742 = vmatprep.mubr.bf16.mxu0 %v3290
        %4743 = vmatmul.mubr.bf16.gmra.mrb[0].mxu0 %v3289
        %v4744 = vpop.f32.mrb[0].mxu0
        %v4745 = vadd.f32 0.0, %v4744
        %v4746 = vpop.f32.mrb[0].mxu0
        %v4747 = vadd.f32 0.0, %v4746
        %v4748 = vpop.f32.mrb[0].mxu0
        %v4749 = vadd.f32 0.0, %v4748
        %v4750 = vpop.f32.mrb[0].mxu0
        %v4751 = vadd.f32 0.0, %v4750
        %4752 = vmatprep.mubr.bf16.mxu0 %v3292
        %4753 = vmatmul.mubr.bf16.gmra.mrb[0].mxu0 %v3291
        %v4754 = vpop.f32.mrb[0].mxu0
        %v4755 = vadd.f32 0.0, %v4754
        %v4756 = vpop.f32.mrb[0].mxu0
        %v4757 = vadd.f32 0.0, %v4756
        %v4758 = vpop.f32.mrb[0].mxu0
        %v4759 = vadd.f32 0.0, %v4758
        %v4760 = vpop.f32.mrb[0].mxu0
        %v4761 = vadd.f32 0.0, %v4760
        %4762 = vdwg.mxu0
        %v4763 = vxor.u32 %v4480, 2147483648
        %v4764 = vxor.u32 %v4482, 2147483648
        %v4765 = vxor.u32 %v4533, 2147483648
        %v4766 = vxor.u32 %v4535, 2147483648
        %v4767 = vxor.u32 %v4586, 2147483648
        %v4768 = vxor.u32 %v4588, 2147483648
        %v4769 = vxor.u32 %v4484, 2147483648
        %v4770 = vxor.u32 %v4486, 2147483648
        %v4771 = vxor.u32 %v4537, 2147483648
        %v4772 = vxor.u32 %v4539, 2147483648
        %v4773 = vxor.u32 %v4590, 2147483648
        %v4774 = vxor.u32 %v4592, 2147483648
        %v4775 = vxor.u32 %v4490, 2147483648
        %v4776 = vxor.u32 %v4492, 2147483648
        %v4777 = vxor.u32 %v4543, 2147483648
        %v4778 = vxor.u32 %v4545, 2147483648
        %v4779 = vxor.u32 %v4596, 2147483648
        %v4780 = vxor.u32 %v4598, 2147483648
        %v4781 = vxor.u32 %v4494, 2147483648
        %v4782 = vxor.u32 %v4496, 2147483648
        %v4783 = vxor.u32 %v4547, 2147483648
        %v4784 = vxor.u32 %v4549, 2147483648
        %v4785 = vxor.u32 %v4600, 2147483648
        %v4786 = vxor.u32 %v4602, 2147483648
        %v4787 = vmul.f32 %v4763, 1.442695
        %v4788 = vpow.pop %v4787
        %v4789 = vmul.f32 %v4764, 1.442695
        %v4790 = vpow.pop %v4789
        %v4791 = vmul.f32 %v4765, 1.442695
        %v4792 = vpow.pop %v4791
        %v4793 = vmul.f32 %v4766, 1.442695
        %v4794 = vpow.pop %v4793
        %v4795 = vmul.f32 %v4767, 1.442695
        %v4796 = vpow.pop %v4795
        %v4797 = vmul.f32 %v4768, 1.442695
        %v4798 = vpow.pop %v4797
        %v4799 = vmul.f32 %v4769, 1.442695
        %v4800 = vpow.pop %v4799
        %v4801 = vmul.f32 %v4770, 1.442695
        %v4802 = vpow.pop %v4801
        %v4803 = vmul.f32 %v4771, 1.442695
        %v4804 = vpow.pop %v4803
        %v4805 = vmul.f32 %v4772, 1.442695
        %v4806 = vpow.pop %v4805
        %v4807 = vmul.f32 %v4773, 1.442695
        %v4808 = vpow.pop %v4807
        %v4809 = vmul.f32 %v4774, 1.442695
        %v4810 = vpow.pop %v4809
        %v4811 = vmul.f32 %v4775, 1.442695
        %v4812 = vpow.pop %v4811
        %v4813 = vmul.f32 %v4776, 1.442695
        %v4814 = vpow.pop %v4813
        %v4815 = vmul.f32 %v4777, 1.442695
        %v4816 = vpow.pop %v4815
        %v4817 = vmul.f32 %v4778, 1.442695
        %v4818 = vpow.pop %v4817
        %v4819 = vmul.f32 %v4779, 1.442695
        %v4820 = vpow.pop %v4819
        %v4821 = vmul.f32 %v4780, 1.442695
        %v4822 = vpow.pop %v4821
        %v4823 = vmul.f32 %v4781, 1.442695
        %v4824 = vpow.pop %v4823
        %v4825 = vmul.f32 %v4782, 1.442695
        %v4826 = vpow.pop %v4825
        %v4827 = vmul.f32 %v4783, 1.442695
        %v4828 = vpow.pop %v4827
        %v4829 = vmul.f32 %v4784, 1.442695
        %v4830 = vpow.pop %v4829
        %v4831 = vmul.f32 %v4785, 1.442695
        %v4832 = vpow.pop %v4831
        %v4833 = vmul.f32 %v4786, 1.442695
        %v4834 = vpow.pop %v4833
        %v4835 = vadd.f32 %v4788, 1.0
        %v4836 = vadd.f32 %v4790, 1.0
        %v4837 = vadd.f32 %v4792, 1.0
        %v4838 = vadd.f32 %v4794, 1.0
        %v4839 = vadd.f32 %v4796, 1.0
        %v4840 = vadd.f32 %v4798, 1.0
        %v4841 = vadd.f32 %v4800, 1.0
        %v4842 = vadd.f32 %v4802, 1.0
        %v4843 = vadd.f32 %v4804, 1.0
        %v4844 = vadd.f32 %v4806, 1.0
        %v4845 = vadd.f32 %v4808, 1.0
        %v4846 = vadd.f32 %v4810, 1.0
        %v4847 = vadd.f32 %v4812, 1.0
        %v4848 = vadd.f32 %v4814, 1.0
        %v4849 = vadd.f32 %v4816, 1.0
        %v4850 = vadd.f32 %v4818, 1.0
        %v4851 = vadd.f32 %v4820, 1.0
        %v4852 = vadd.f32 %v4822, 1.0
        %v4853 = vadd.f32 %v4824, 1.0
        %v4854 = vadd.f32 %v4826, 1.0
        %v4855 = vadd.f32 %v4828, 1.0
        %v4856 = vadd.f32 %v4830, 1.0
        %v4857 = vadd.f32 %v4832, 1.0
        %v4858 = vadd.f32 %v4834, 1.0
        %v4859 = vrcp.pop %v4835
        %v4860 = vmul.f32 1.0, %v4859
        %v4861 = vrcp.pop %v4836
        %v4862 = vmul.f32 1.0, %v4861
        %v4863 = vrcp.pop %v4837
        %v4864 = vmul.f32 1.0, %v4863
        %v4865 = vrcp.pop %v4838
        %v4866 = vmul.f32 1.0, %v4865
        %v4867 = vrcp.pop %v4839
        %v4868 = vmul.f32 1.0, %v4867
        %v4869 = vrcp.pop %v4840
        %v4870 = vmul.f32 1.0, %v4869
        %v4871 = vrcp.pop %v4841
        %v4872 = vmul.f32 1.0, %v4871
        %v4873 = vrcp.pop %v4842
        %v4874 = vmul.f32 1.0, %v4873
        %v4875 = vrcp.pop %v4843
        %v4876 = vmul.f32 1.0, %v4875
        %v4877 = vrcp.pop %v4844
        %v4878 = vmul.f32 1.0, %v4877
        %v4879 = vrcp.pop %v4845
        %v4880 = vmul.f32 1.0, %v4879
        %v4881 = vrcp.pop %v4846
        %v4882 = vmul.f32 1.0, %v4881
        %v4883 = vrcp.pop %v4847
        %v4884 = vmul.f32 1.0, %v4883
        %v4885 = vrcp.pop %v4848
        %v4886 = vmul.f32 1.0, %v4885
        %v4887 = vrcp.pop %v4849
        %v4888 = vmul.f32 1.0, %v4887
        %v4889 = vrcp.pop %v4850
        %v4890 = vmul.f32 1.0, %v4889
        %v4891 = vrcp.pop %v4851
        %v4892 = vmul.f32 1.0, %v4891
        %v4893 = vrcp.pop %v4852
        %v4894 = vmul.f32 1.0, %v4893
        %v4895 = vrcp.pop %v4853
        %v4896 = vmul.f32 1.0, %v4895
        %v4897 = vrcp.pop %v4854
        %v4898 = vmul.f32 1.0, %v4897
        %v4899 = vrcp.pop %v4855
        %v4900 = vmul.f32 1.0, %v4899
        %v4901 = vrcp.pop %v4856
        %v4902 = vmul.f32 1.0, %v4901
        %v4903 = vrcp.pop %v4857
        %v4904 = vmul.f32 1.0, %v4903
        %v4905 = vrcp.pop %v4858
        %v4906 = vmul.f32 1.0, %v4905
        %v4907 = vmul.f32 %v4480, %v4860
        %v4908 = vmul.f32 %v4482, %v4862
        %v4909 = vmul.f32 %v4533, %v4864
        %v4910 = vmul.f32 %v4535, %v4866
        %v4911 = vmul.f32 %v4586, %v4868
        %v4912 = vmul.f32 %v4588, %v4870
        %v4913 = vmul.f32 %v4484, %v4872
        %v4914 = vmul.f32 %v4486, %v4874
        %v4915 = vmul.f32 %v4537, %v4876
        %v4916 = vmul.f32 %v4539, %v4878
        %v4917 = vmul.f32 %v4590, %v4880
        %v4918 = vmul.f32 %v4592, %v4882
        %v4919 = vmul.f32 %v4490, %v4884
        %v4920 = vmul.f32 %v4492, %v4886
        %v4921 = vmul.f32 %v4543, %v4888
        %v4922 = vmul.f32 %v4545, %v4890
        %v4923 = vmul.f32 %v4596, %v4892
        %v4924 = vmul.f32 %v4598, %v4894
        %v4925 = vmul.f32 %v4494, %v4896
        %v4926 = vmul.f32 %v4496, %v4898
        %v4927 = vmul.f32 %v4547, %v4900
        %v4928 = vmul.f32 %v4549, %v4902
        %v4929 = vmul.f32 %v4600, %v4904
        %v4930 = vmul.f32 %v4602, %v4906
        %v4931 = vmul.f32 %v4907, %v4639
        %v4932 = vmul.f32 %v4908, %v4641
        %v4933 = vmul.f32 %v4909, %v4692
        %v4934 = vmul.f32 %v4910, %v4694
        %v4935 = vmul.f32 %v4911, %v4745
        %v4936 = vmul.f32 %v4912, %v4747
        %v4937 = vmul.f32 %v4913, %v4643
        %v4938 = vmul.f32 %v4914, %v4645
        %v4939 = vmul.f32 %v4915, %v4696
        %v4940 = vmul.f32 %v4916, %v4698
        %v4941 = vmul.f32 %v4917, %v4749
        %v4942 = vmul.f32 %v4918, %v4751
        %v4943 = vmul.f32 %v4919, %v4649
        %v4944 = vmul.f32 %v4920, %v4651
        %v4945 = vmul.f32 %v4921, %v4702
        %v4946 = vmul.f32 %v4922, %v4704
        %v4947 = vmul.f32 %v4923, %v4755
        %v4948 = vmul.f32 %v4924, %v4757
        %v4949 = vmul.f32 %v4925, %v4653
        %v4950 = vmul.f32 %v4926, %v4655
        %v4951 = vmul.f32 %v4927, %v4706
        %v4952 = vmul.f32 %v4928, %v4708
        %v4953 = vmul.f32 %v4929, %v4759
        %v4954 = vmul.f32 %v4930, %v4761
        %v4955 = vpack.c.bf16 %v4937, %v4931
        %v4956 = vpack.c.bf16 %v4938, %v4932
        %v4957 = vpack.c.bf16 %v4939, %v4933
        %v4958 = vpack.c.bf16 %v4940, %v4934
        %v4959 = vpack.c.bf16 %v4941, %v4935
        %v4960 = vpack.c.bf16 %v4942, %v4936
        %v4961 = vpack.c.bf16 %v4949, %v4943
        %v4962 = vpack.c.bf16 %v4950, %v4944
        %v4963 = vpack.c.bf16 %v4951, %v4945
        %v4964 = vpack.c.bf16 %v4952, %v4946
        %v4965 = vpack.c.bf16 %v4953, %v4947
        %v4966 = vpack.c.bf16 %v4954, %v4948
        %v4967 = vld [vmem:[%s823] sm:$0xff]
        %v4968 = vld [vmem:[%s823 + $0x8] sm:$0xff]
        %v4969 = vld [vmem:[%s823 + $0x10] sm:$0xff]
        %v4970 = vld [vmem:[%s823 + $0x18] sm:$0xff]
        %v4971 = vld [vmem:[%s823 + $0x20] sm:$0xff]
        %v4972 = vld [vmem:[%s823 + $0x28] sm:$0xff]
        %v4973 = vld [vmem:[%s823 + $0x30] sm:$0xff]
        %v4974 = vld [vmem:[%s823 + $0x38] sm:$0xff]
        %v4975 = vld [vmem:[%s823 + $0x40] sm:$0xff]
        %v4976 = vld [vmem:[%s823 + $0x48] sm:$0xff]
        %v4977 = vld [vmem:[%s823 + $0x50] sm:$0xff]
        %v4978 = vld [vmem:[%s823 + $0x58] sm:$0xff]
        %v4979 = vld [vmem:[%s823 + $0x60] sm:$0xff]
        %v4980 = vld [vmem:[%s823 + $0x68] sm:$0xff]
        %v4981 = vld [vmem:[%s823 + $0x70] sm:$0xff]
        %v4982 = vld [vmem:[%s823 + $0x78] sm:$0xff]
        %v4983 = vld [vmem:[%s823 + $0x80] sm:$0xff]
        %v4984 = vld [vmem:[%s823 + $0x88] sm:$0xff]
        %v4985 = vld [vmem:[%s823 + $0x90] sm:$0xff]
        %v4986 = vld [vmem:[%s823 + $0x98] sm:$0xff]
        %v4987 = vld [vmem:[%s823 + $0xa0] sm:$0xff]
        %v4988 = vld [vmem:[%s823 + $0xa8] sm:$0xff]
        %v4989 = vld [vmem:[%s823 + $0xb0] sm:$0xff]
        %v4990 = vld [vmem:[%s823 + $0xb8] sm:$0xff]
        %v4991 = vld [vmem:[%s823 + $0xc0] sm:$0xff]
        %v4992 = vld [vmem:[%s823 + $0xc8] sm:$0xff]
        %v4993 = vld [vmem:[%s823 + $0xd0] sm:$0xff]
        %v4994 = vld [vmem:[%s823 + $0xd8] sm:$0xff]
        %v4995 = vld [vmem:[%s823 + $0xe0] sm:$0xff]
        %v4996 = vld [vmem:[%s823 + $0xe8] sm:$0xff]
        %v4997 = vld [vmem:[%s823 + $0xf0] sm:$0xff]
        %v4998 = vld [vmem:[%s823 + $0xf8] sm:$0xff]
        %v4999 = vld [vmem:[%s823 + $0x100] sm:$0xff]
        %v5000 = vld [vmem:[%s823 + $0x108] sm:$0xff]
        %v5001 = vld [vmem:[%s823 + $0x110] sm:$0xff]
        %v5002 = vld [vmem:[%s823 + $0x118] sm:$0xff]
        %v5003 = vld [vmem:[%s823 + $0x120] sm:$0xff]
        %v5004 = vld [vmem:[%s823 + $0x128] sm:$0xff]
        %v5005 = vld [vmem:[%s823 + $0x130] sm:$0xff]
        %v5006 = vld [vmem:[%s823 + $0x138] sm:$0xff]
        %v5007 = vld [vmem:[%s823 + $0x140] sm:$0xff]
        %v5008 = vld [vmem:[%s823 + $0x148] sm:$0xff]
        %v5009 = vld [vmem:[%s823 + $0x150] sm:$0xff]
        %v5010 = vld [vmem:[%s823 + $0x158] sm:$0xff]
        %v5011 = vld [vmem:[%s823 + $0x160] sm:$0xff]
        %v5012 = vld [vmem:[%s823 + $0x168] sm:$0xff]
        %v5013 = vld [vmem:[%s823 + $0x170] sm:$0xff]
        %v5014 = vld [vmem:[%s823 + $0x178] sm:$0xff]
        %v5015 = vld [vmem:[%s823 + $0x180] sm:$0xff]
        %v5016 = vld [vmem:[%s823 + $0x188] sm:$0xff]
        %v5017 = vld [vmem:[%s823 + $0x190] sm:$0xff]
        %v5018 = vld [vmem:[%s823 + $0x198] sm:$0xff]
        %v5019 = vld [vmem:[%s823 + $0x1a0] sm:$0xff]
        %v5020 = vld [vmem:[%s823 + $0x1a8] sm:$0xff]
        %v5021 = vld [vmem:[%s823 + $0x1b0] sm:$0xff]
        %v5022 = vld [vmem:[%s823 + $0x1b8] sm:$0xff]
        %v5023 = vld [vmem:[%s823 + $0x1c0] sm:$0xff]
        %v5024 = vld [vmem:[%s823 + $0x1c8] sm:$0xff]
        %v5025 = vld [vmem:[%s823 + $0x1d0] sm:$0xff]
        %v5026 = vld [vmem:[%s823 + $0x1d8] sm:$0xff]
        %v5027 = vld [vmem:[%s823 + $0x1e0] sm:$0xff]
        %v5028 = vld [vmem:[%s823 + $0x1e8] sm:$0xff]
        %v5029 = vld [vmem:[%s823 + $0x1f0] sm:$0xff]
        %v5030 = vld [vmem:[%s823 + $0x1f8] sm:$0xff]
        %v5031 = vld [vmem:[%s823 + $0x200] sm:$0xff]
        %v5032 = vld [vmem:[%s823 + $0x208] sm:$0xff]
        %v5033 = vld [vmem:[%s823 + $0x210] sm:$0xff]
        %v5034 = vld [vmem:[%s823 + $0x218] sm:$0xff]
        %v5035 = vld [vmem:[%s823 + $0x220] sm:$0xff]
        %v5036 = vld [vmem:[%s823 + $0x228] sm:$0xff]
        %v5037 = vld [vmem:[%s823 + $0x230] sm:$0xff]
        %v5038 = vld [vmem:[%s823 + $0x238] sm:$0xff]
        %v5039 = vld [vmem:[%s823 + $0x240] sm:$0xff]
        %v5040 = vld [vmem:[%s823 + $0x248] sm:$0xff]
        %v5041 = vld [vmem:[%s823 + $0x250] sm:$0xff]
        %v5042 = vld [vmem:[%s823 + $0x258] sm:$0xff]
        %v5043 = vld [vmem:[%s823 + $0x260] sm:$0xff]
        %v5044 = vld [vmem:[%s823 + $0x268] sm:$0xff]
        %v5045 = vld [vmem:[%s823 + $0x270] sm:$0xff]
        %v5046 = vld [vmem:[%s823 + $0x278] sm:$0xff]
        %v5047 = vld [vmem:[%s823 + $0x280] sm:$0xff]
        %v5048 = vld [vmem:[%s823 + $0x288] sm:$0xff]
        %v5049 = vld [vmem:[%s823 + $0x290] sm:$0xff]
        %v5050 = vld [vmem:[%s823 + $0x298] sm:$0xff]
        %v5051 = vld [vmem:[%s823 + $0x2a0] sm:$0xff]
        %v5052 = vld [vmem:[%s823 + $0x2a8] sm:$0xff]
        %v5053 = vld [vmem:[%s823 + $0x2b0] sm:$0xff]
        %v5054 = vld [vmem:[%s823 + $0x2b8] sm:$0xff]
        %v5055 = vld [vmem:[%s823 + $0x2c0] sm:$0xff]
        %v5056 = vld [vmem:[%s823 + $0x2c8] sm:$0xff]
        %v5057 = vld [vmem:[%s823 + $0x2d0] sm:$0xff]
        %v5058 = vld [vmem:[%s823 + $0x2d8] sm:$0xff]
        %v5059 = vld [vmem:[%s823 + $0x2e0] sm:$0xff]
        %v5060 = vld [vmem:[%s823 + $0x2e8] sm:$0xff]
        %v5061 = vld [vmem:[%s823 + $0x2f0] sm:$0xff]
        %v5062 = vld [vmem:[%s823 + $0x2f8] sm:$0xff]
        %v5159 = vunpack.c.l.b16 %v4967
        %v5160 = vunpack.c.h.b16 %v4967
        %v5161 = vunpack.c.l.b16 %v4968
        %v5162 = vunpack.c.h.b16 %v4968
        %v5163 = vunpack.c.l.b16 %v4969
        %v5164 = vunpack.c.h.b16 %v4969
        %v5165 = vunpack.c.l.b16 %v4970
        %v5166 = vunpack.c.h.b16 %v4970
        %v5167 = vunpack.c.l.b16 %v4971
        %v5168 = vunpack.c.h.b16 %v4971
        %v5169 = vunpack.c.l.b16 %v4972
        %v5170 = vunpack.c.h.b16 %v4972
        %v5171 = vunpack.c.l.b16 %v4973
        %v5172 = vunpack.c.h.b16 %v4973
        %v5173 = vunpack.c.l.b16 %v4974
        %v5174 = vunpack.c.h.b16 %v4974
        %v5175 = vunpack.c.l.b16 %v4975
        %v5176 = vunpack.c.h.b16 %v4975
        %v5177 = vunpack.c.l.b16 %v4976
        %v5178 = vunpack.c.h.b16 %v4976
        %v5179 = vunpack.c.l.b16 %v4977
        %v5180 = vunpack.c.h.b16 %v4977
        %v5181 = vunpack.c.l.b16 %v4978
        %v5182 = vunpack.c.h.b16 %v4978
        %v5183 = vunpack.c.l.b16 %v4979
        %v5184 = vunpack.c.h.b16 %v4979
        %v5185 = vunpack.c.l.b16 %v4980
        %v5186 = vunpack.c.h.b16 %v4980
        %v5187 = vunpack.c.l.b16 %v4981
        %v5188 = vunpack.c.h.b16 %v4981
        %v5189 = vunpack.c.l.b16 %v4982
        %v5190 = vunpack.c.h.b16 %v4982
        %v5191 = vunpack.c.l.b16 %v4983
        %v5192 = vunpack.c.h.b16 %v4983
        %v5193 = vunpack.c.l.b16 %v4984
        %v5194 = vunpack.c.h.b16 %v4984
        %v5195 = vunpack.c.l.b16 %v4985
        %v5196 = vunpack.c.h.b16 %v4985
        %v5197 = vunpack.c.l.b16 %v4986
        %v5198 = vunpack.c.h.b16 %v4986
        %v5199 = vunpack.c.l.b16 %v4987
        %v5200 = vunpack.c.h.b16 %v4987
        %v5201 = vunpack.c.l.b16 %v4988
        %v5202 = vunpack.c.h.b16 %v4988
        %v5203 = vunpack.c.l.b16 %v4989
        %v5204 = vunpack.c.h.b16 %v4989
        %v5205 = vunpack.c.l.b16 %v4990
        %v5206 = vunpack.c.h.b16 %v4990
        %v5207 = vunpack.c.l.b16 %v4991
        %v5208 = vunpack.c.h.b16 %v4991
        %v5209 = vunpack.c.l.b16 %v4992
        %v5210 = vunpack.c.h.b16 %v4992
        %v5211 = vunpack.c.l.b16 %v4993
        %v5212 = vunpack.c.h.b16 %v4993
        %v5213 = vunpack.c.l.b16 %v4994
        %v5214 = vunpack.c.h.b16 %v4994
        %v5215 = vunpack.c.l.b16 %v4995
        %v5216 = vunpack.c.h.b16 %v4995
        %v5217 = vunpack.c.l.b16 %v4996
        %v5218 = vunpack.c.h.b16 %v4996
        %v5219 = vunpack.c.l.b16 %v4997
        %v5220 = vunpack.c.h.b16 %v4997
        %v5221 = vunpack.c.l.b16 %v4998
        %v5222 = vunpack.c.h.b16 %v4998
        %v5223 = vunpack.c.l.b16 %v4999
        %v5224 = vunpack.c.h.b16 %v4999
        %v5225 = vunpack.c.l.b16 %v5000
        %v5226 = vunpack.c.h.b16 %v5000
        %v5227 = vunpack.c.l.b16 %v5001
        %v5228 = vunpack.c.h.b16 %v5001
        %v5229 = vunpack.c.l.b16 %v5002
        %v5230 = vunpack.c.h.b16 %v5002
        %v5231 = vunpack.c.l.b16 %v5003
        %v5232 = vunpack.c.h.b16 %v5003
        %v5233 = vunpack.c.l.b16 %v5004
        %v5234 = vunpack.c.h.b16 %v5004
        %v5235 = vunpack.c.l.b16 %v5005
        %v5236 = vunpack.c.h.b16 %v5005
        %v5237 = vunpack.c.l.b16 %v5006
        %v5238 = vunpack.c.h.b16 %v5006
        %v5239 = vunpack.c.l.b16 %v5007
        %v5240 = vunpack.c.h.b16 %v5007
        %v5241 = vunpack.c.l.b16 %v5008
        %v5242 = vunpack.c.h.b16 %v5008
        %v5243 = vunpack.c.l.b16 %v5009
        %v5244 = vunpack.c.h.b16 %v5009
        %v5245 = vunpack.c.l.b16 %v5010
        %v5246 = vunpack.c.h.b16 %v5010
        %v5247 = vunpack.c.l.b16 %v5011
        %v5248 = vunpack.c.h.b16 %v5011
        %v5249 = vunpack.c.l.b16 %v5012
        %v5250 = vunpack.c.h.b16 %v5012
        %v5251 = vunpack.c.l.b16 %v5013
        %v5252 = vunpack.c.h.b16 %v5013
        %v5253 = vunpack.c.l.b16 %v5014
        %v5254 = vunpack.c.h.b16 %v5014
        %v5255 = vunpack.c.l.b16 %v5015
        %v5256 = vunpack.c.h.b16 %v5015
        %v5257 = vunpack.c.l.b16 %v5016
        %v5258 = vunpack.c.h.b16 %v5016
        %v5259 = vunpack.c.l.b16 %v5017
        %v5260 = vunpack.c.h.b16 %v5017
        %v5261 = vunpack.c.l.b16 %v5018
        %v5262 = vunpack.c.h.b16 %v5018
        %v5263 = vunpack.c.l.b16 %v5019
        %v5264 = vunpack.c.h.b16 %v5019
        %v5265 = vunpack.c.l.b16 %v5020
        %v5266 = vunpack.c.h.b16 %v5020
        %v5267 = vunpack.c.l.b16 %v5021
        %v5268 = vunpack.c.h.b16 %v5021
        %v5269 = vunpack.c.l.b16 %v5022
        %v5270 = vunpack.c.h.b16 %v5022
        %v5271 = vunpack.c.l.b16 %v5023
        %v5272 = vunpack.c.h.b16 %v5023
        %v5273 = vunpack.c.l.b16 %v5024
        %v5274 = vunpack.c.h.b16 %v5024
        %v5275 = vunpack.c.l.b16 %v5025
        %v5276 = vunpack.c.h.b16 %v5025
        %v5277 = vunpack.c.l.b16 %v5026
        %v5278 = vunpack.c.h.b16 %v5026
        %v5279 = vunpack.c.l.b16 %v5027
        %v5280 = vunpack.c.h.b16 %v5027
        %v5281 = vunpack.c.l.b16 %v5028
        %v5282 = vunpack.c.h.b16 %v5028
        %v5283 = vunpack.c.l.b16 %v5029
        %v5284 = vunpack.c.h.b16 %v5029
        %v5285 = vunpack.c.l.b16 %v5030
        %v5286 = vunpack.c.h.b16 %v5030
        %v5287 = vunpack.c.l.b16 %v5031
        %v5288 = vunpack.c.h.b16 %v5031
        %v5289 = vunpack.c.l.b16 %v5032
        %v5290 = vunpack.c.h.b16 %v5032
        %v5291 = vunpack.c.l.b16 %v5033
        %v5292 = vunpack.c.h.b16 %v5033
        %v5293 = vunpack.c.l.b16 %v5034
        %v5294 = vunpack.c.h.b16 %v5034
        %v5295 = vunpack.c.l.b16 %v5035
        %v5296 = vunpack.c.h.b16 %v5035
        %v5297 = vunpack.c.l.b16 %v5036
        %v5298 = vunpack.c.h.b16 %v5036
        %v5299 = vunpack.c.l.b16 %v5037
        %v5300 = vunpack.c.h.b16 %v5037
        %v5301 = vunpack.c.l.b16 %v5038
        %v5302 = vunpack.c.h.b16 %v5038
        %v5303 = vunpack.c.l.b16 %v5039
        %v5304 = vunpack.c.h.b16 %v5039
        %v5305 = vunpack.c.l.b16 %v5040
        %v5306 = vunpack.c.h.b16 %v5040
        %v5307 = vunpack.c.l.b16 %v5041
        %v5308 = vunpack.c.h.b16 %v5041
        %v5309 = vunpack.c.l.b16 %v5042
        %v5310 = vunpack.c.h.b16 %v5042
        %v5311 = vunpack.c.l.b16 %v5043
        %v5312 = vunpack.c.h.b16 %v5043
        %v5313 = vunpack.c.l.b16 %v5044
        %v5314 = vunpack.c.h.b16 %v5044
        %v5315 = vunpack.c.l.b16 %v5045
        %v5316 = vunpack.c.h.b16 %v5045
        %v5317 = vunpack.c.l.b16 %v5046
        %v5318 = vunpack.c.h.b16 %v5046
        %v5319 = vunpack.c.l.b16 %v5047
        %v5320 = vunpack.c.h.b16 %v5047
        %v5321 = vunpack.c.l.b16 %v5048
        %v5322 = vunpack.c.h.b16 %v5048
        %v5323 = vunpack.c.l.b16 %v5049
        %v5324 = vunpack.c.h.b16 %v5049
        %v5325 = vunpack.c.l.b16 %v5050
        %v5326 = vunpack.c.h.b16 %v5050
        %v5327 = vunpack.c.l.b16 %v5051
        %v5328 = vunpack.c.h.b16 %v5051
        %v5329 = vunpack.c.l.b16 %v5052
        %v5330 = vunpack.c.h.b16 %v5052
        %v5331 = vunpack.c.l.b16 %v5053
        %v5332 = vunpack.c.h.b16 %v5053
        %v5333 = vunpack.c.l.b16 %v5054
        %v5334 = vunpack.c.h.b16 %v5054
        %v5335 = vunpack.c.l.b16 %v5055
        %v5336 = vunpack.c.h.b16 %v5055
        %v5337 = vunpack.c.l.b16 %v5056
        %v5338 = vunpack.c.h.b16 %v5056
        %v5339 = vunpack.c.l.b16 %v5057
        %v5340 = vunpack.c.h.b16 %v5057
        %v5341 = vunpack.c.l.b16 %v5058
        %v5342 = vunpack.c.h.b16 %v5058
        %v5343 = vunpack.c.l.b16 %v5059
        %v5344 = vunpack.c.h.b16 %v5059
        %v5345 = vunpack.c.l.b16 %v5060
        %v5346 = vunpack.c.h.b16 %v5060
        %v5347 = vunpack.c.l.b16 %v5061
        %v5348 = vunpack.c.h.b16 %v5061
        %v5349 = vunpack.c.l.b16 %v5062
        %v5350 = vunpack.c.h.b16 %v5062
        %v5351 = vpack.c.b16 %v5161, %v5159
        %v5352 = vpack.c.b16 %v5162, %v5160
        %v5353 = vpack.c.b16 %v5165, %v5163
        %v5354 = vpack.c.b16 %v5166, %v5164
        %v5355 = vpack.c.b16 %v5169, %v5167
        %v5356 = vpack.c.b16 %v5170, %v5168
        %v5357 = vpack.c.b16 %v5173, %v5171
        %v5358 = vpack.c.b16 %v5174, %v5172
        %v5359 = vpack.c.b16 %v5177, %v5175
        %v5360 = vpack.c.b16 %v5178, %v5176
        %v5361 = vpack.c.b16 %v5181, %v5179
        %v5362 = vpack.c.b16 %v5182, %v5180
        %v5363 = vpack.c.b16 %v5185, %v5183
        %v5364 = vpack.c.b16 %v5186, %v5184
        %v5365 = vpack.c.b16 %v5189, %v5187
        %v5366 = vpack.c.b16 %v5190, %v5188
        %v5367 = vpack.c.b16 %v5193, %v5191
        %v5368 = vpack.c.b16 %v5194, %v5192
        %v5369 = vpack.c.b16 %v5197, %v5195
        %v5370 = vpack.c.b16 %v5198, %v5196
        %v5371 = vpack.c.b16 %v5201, %v5199
        %v5372 = vpack.c.b16 %v5202, %v5200
        %v5373 = vpack.c.b16 %v5205, %v5203
        %v5374 = vpack.c.b16 %v5206, %v5204
        %v5375 = vpack.c.b16 %v5209, %v5207
        %v5376 = vpack.c.b16 %v5210, %v5208
        %v5377 = vpack.c.b16 %v5213, %v5211
        %v5378 = vpack.c.b16 %v5214, %v5212
        %v5379 = vpack.c.b16 %v5217, %v5215
        %v5380 = vpack.c.b16 %v5218, %v5216
        %v5381 = vpack.c.b16 %v5221, %v5219
        %v5382 = vpack.c.b16 %v5222, %v5220
        %v5383 = vpack.c.b16 %v5225, %v5223
        %v5384 = vpack.c.b16 %v5226, %v5224
        %v5385 = vpack.c.b16 %v5229, %v5227
        %v5386 = vpack.c.b16 %v5230, %v5228
        %v5387 = vpack.c.b16 %v5233, %v5231
        %v5388 = vpack.c.b16 %v5234, %v5232
        %v5389 = vpack.c.b16 %v5237, %v5235
        %v5390 = vpack.c.b16 %v5238, %v5236
        %v5391 = vpack.c.b16 %v5241, %v5239
        %v5392 = vpack.c.b16 %v5242, %v5240
        %v5393 = vpack.c.b16 %v5245, %v5243
        %v5394 = vpack.c.b16 %v5246, %v5244
        %v5395 = vpack.c.b16 %v5249, %v5247
        %v5396 = vpack.c.b16 %v5250, %v5248
        %v5397 = vpack.c.b16 %v5253, %v5251
        %v5398 = vpack.c.b16 %v5254, %v5252
        %v5399 = vpack.c.b16 %v5257, %v5255
        %v5400 = vpack.c.b16 %v5258, %v5256
        %v5401 = vpack.c.b16 %v5261, %v5259
        %v5402 = vpack.c.b16 %v5262, %v5260
        %v5403 = vpack.c.b16 %v5265, %v5263
        %v5404 = vpack.c.b16 %v5266, %v5264
        %v5405 = vpack.c.b16 %v5269, %v5267
        %v5406 = vpack.c.b16 %v5270, %v5268
        %v5407 = vpack.c.b16 %v5273, %v5271
        %v5408 = vpack.c.b16 %v5274, %v5272
        %v5409 = vpack.c.b16 %v5277, %v5275
        %v5410 = vpack.c.b16 %v5278, %v5276
        %v5411 = vpack.c.b16 %v5281, %v5279
        %v5412 = vpack.c.b16 %v5282, %v5280
        %v5413 = vpack.c.b16 %v5285, %v5283
        %v5414 = vpack.c.b16 %v5286, %v5284
        %v5415 = vpack.c.b16 %v5289, %v5287
        %v5416 = vpack.c.b16 %v5290, %v5288
        %v5417 = vpack.c.b16 %v5293, %v5291
        %v5418 = vpack.c.b16 %v5294, %v5292
        %v5419 = vpack.c.b16 %v5297, %v5295
        %v5420 = vpack.c.b16 %v5298, %v5296
        %v5421 = vpack.c.b16 %v5301, %v5299
        %v5422 = vpack.c.b16 %v5302, %v5300
        %v5423 = vpack.c.b16 %v5305, %v5303
        %v5424 = vpack.c.b16 %v5306, %v5304
        %v5425 = vpack.c.b16 %v5309, %v5307
        %v5426 = vpack.c.b16 %v5310, %v5308
        %v5427 = vpack.c.b16 %v5313, %v5311
        %v5428 = vpack.c.b16 %v5314, %v5312
        %v5429 = vpack.c.b16 %v5317, %v5315
        %v5430 = vpack.c.b16 %v5318, %v5316
        %v5431 = vpack.c.b16 %v5321, %v5319
        %v5432 = vpack.c.b16 %v5322, %v5320
        %v5433 = vpack.c.b16 %v5325, %v5323
        %v5434 = vpack.c.b16 %v5326, %v5324
        %v5435 = vpack.c.b16 %v5329, %v5327
        %v5436 = vpack.c.b16 %v5330, %v5328
        %v5437 = vpack.c.b16 %v5333, %v5331
        %v5438 = vpack.c.b16 %v5334, %v5332
        %v5439 = vpack.c.b16 %v5337, %v5335
        %v5440 = vpack.c.b16 %v5338, %v5336
        %v5441 = vpack.c.b16 %v5341, %v5339
        %v5442 = vpack.c.b16 %v5342, %v5340
        %v5443 = vpack.c.b16 %v5345, %v5343
        %v5444 = vpack.c.b16 %v5346, %v5344
        %v5445 = vpack.c.b16 %v5349, %v5347
        %v5446 = vpack.c.b16 %v5350, %v5348
        %5543 = vmatprep.subr.bf16.mxu0 %v5352
        %5544 = vmatpush1.bf16.msra.mxu0 %v5351
        %5545 = vmatprep.subr.bf16.mxu0 %v5354
        %5546 = vmatpush1.bf16.msra.mxu0 %v5353
        %5547 = vmatprep.subr.bf16.mxu0 %v5356
        %5548 = vmatpush1.bf16.msra.mxu0 %v5355
        %5549 = vmatprep.subr.bf16.mxu0 %v5358
        %5550 = vmatpush1.bf16.msra.mxu0 %v5357
        %5551 = vmatprep.subr.bf16.mxu0 %v5360
        %5552 = vmatpush1.bf16.msra.mxu0 %v5359
        %5553 = vmatprep.subr.bf16.mxu0 %v5362
        %5554 = vmatpush1.bf16.msra.mxu0 %v5361
        %5555 = vmatprep.subr.bf16.mxu0 %v5364
        %5556 = vmatpush1.bf16.msra.mxu0 %v5363
        %5557 = vmatprep.subr.bf16.mxu0 %v5366
        %5558 = vmatpush1.bf16.msra.mxu0 %v5365
        %5559 = vmatprep.subr.bf16.mxu0 %v5368
        %5560 = vmatpush1.bf16.msra.mxu0 %v5367
        %5561 = vmatprep.subr.bf16.mxu0 %v5370
        %5562 = vmatpush1.bf16.msra.mxu0 %v5369
        %5563 = vmatprep.subr.bf16.mxu0 %v5372
        %5564 = vmatpush1.bf16.msra.mxu0 %v5371
        %5565 = vmatprep.subr.bf16.mxu0 %v5374
        %5566 = vmatpush1.bf16.msra.mxu0 %v5373
        %5567 = vmatprep.subr.bf16.mxu0 %v5376
        %5568 = vmatpush1.bf16.msra.mxu0 %v5375
        %5569 = vmatprep.subr.bf16.mxu0 %v5378
        %5570 = vmatpush1.bf16.msra.mxu0 %v5377
        %5571 = vmatprep.subr.bf16.mxu0 %v5380
        %5572 = vmatpush1.bf16.msra.mxu0 %v5379
        %5573 = vmatprep.subr.bf16.mxu0 %v5382
        %5574 = vmatpush1.bf16.msra.mxu0 %v5381
        %5575 = vmatprep.mubr.bf16.mxu0 %v4956
        %5576 = vmatmul.mubr.bf16.gmra.mrb[0].mxu0 %v4955
        %v5577 = vpop.f32.mrb[0].mxu0
        %v5578 = vadd.f32 0.0, %v5577
        %v5579 = vpop.f32.mrb[0].mxu0
        %v5580 = vadd.f32 0.0, %v5579
        %v5581 = vpop.f32.mrb[0].mxu0
        %v5582 = vadd.f32 0.0, %v5581
        %v5583 = vpop.f32.mrb[0].mxu0
        %v5584 = vadd.f32 0.0, %v5583
        %5585 = vmatprep.mubr.bf16.mxu0 %v4962
        %5586 = vmatmul.mubr.bf16.gmra.mrb[0].mxu0 %v4961
        %v5587 = vpop.f32.mrb[0].mxu0
        %v5588 = vadd.f32 0.0, %v5587
        %v5589 = vpop.f32.mrb[0].mxu0
        %v5590 = vadd.f32 0.0, %v5589
        %v5591 = vpop.f32.mrb[0].mxu0
        %v5592 = vadd.f32 0.0, %v5591
        %v5593 = vpop.f32.mrb[0].mxu0
        %v5594 = vadd.f32 0.0, %v5593
        %5595 = vdwg.mxu0
        %5596 = vmatprep.subr.bf16.mxu0 %v5384
        %5597 = vmatpush1.bf16.msra.mxu0 %v5383
        %5598 = vmatprep.subr.bf16.mxu0 %v5386
        %5599 = vmatpush1.bf16.msra.mxu0 %v5385
        %5600 = vmatprep.subr.bf16.mxu0 %v5388
        %5601 = vmatpush1.bf16.msra.mxu0 %v5387
        %5602 = vmatprep.subr.bf16.mxu0 %v5390
        %5603 = vmatpush1.bf16.msra.mxu0 %v5389
        %5604 = vmatprep.subr.bf16.mxu0 %v5392
        %5605 = vmatpush1.bf16.msra.mxu0 %v5391
        %5606 = vmatprep.subr.bf16.mxu0 %v5394
        %5607 = vmatpush1.bf16.msra.mxu0 %v5393
        %5608 = vmatprep.subr.bf16.mxu0 %v5396
        %5609 = vmatpush1.bf16.msra.mxu0 %v5395
        %5610 = vmatprep.subr.bf16.mxu0 %v5398
        %5611 = vmatpush1.bf16.msra.mxu0 %v5397
        %5612 = vmatprep.subr.bf16.mxu0 %v5400
        %5613 = vmatpush1.bf16.msra.mxu0 %v5399
        %5614 = vmatprep.subr.bf16.mxu0 %v5402
        %5615 = vmatpush1.bf16.msra.mxu0 %v5401
        %5616 = vmatprep.subr.bf16.mxu0 %v5404
        %5617 = vmatpush1.bf16.msra.mxu0 %v5403
        %5618 = vmatprep.subr.bf16.mxu0 %v5406
        %5619 = vmatpush1.bf16.msra.mxu0 %v5405
        %5620 = vmatprep.subr.bf16.mxu0 %v5408
        %5621 = vmatpush1.bf16.msra.mxu0 %v5407
        %5622 = vmatprep.subr.bf16.mxu0 %v5410
        %5623 = vmatpush1.bf16.msra.mxu0 %v5409
        %5624 = vmatprep.subr.bf16.mxu0 %v5412
        %5625 = vmatpush1.bf16.msra.mxu0 %v5411
        %5626 = vmatprep.subr.bf16.mxu0 %v5414
        %5627 = vmatpush1.bf16.msra.mxu0 %v5413
        %5628 = vmatprep.mubr.bf16.mxu0 %v4958
        %5629 = vmatmul.mubr.bf16.gmra.mrb[0].mxu0 %v4957
        %v5630 = vpop.f32.mrb[0].mxu0
        %v5631 = vadd.f32 %v5578, %v5630
        %v5632 = vpop.f32.mrb[0].mxu0
        %v5633 = vadd.f32 %v5580, %v5632
        %v5634 = vpop.f32.mrb[0].mxu0
        %v5635 = vadd.f32 %v5582, %v5634
        %v5636 = vpop.f32.mrb[0].mxu0
        %v5637 = vadd.f32 %v5584, %v5636
        %5638 = vmatprep.mubr.bf16.mxu0 %v4964
        %5639 = vmatmul.mubr.bf16.gmra.mrb[0].mxu0 %v4963
        %v5640 = vpop.f32.mrb[0].mxu0
        %v5641 = vadd.f32 %v5588, %v5640
        %v5642 = vpop.f32.mrb[0].mxu0
        %v5643 = vadd.f32 %v5590, %v5642
        %v5644 = vpop.f32.mrb[0].mxu0
        %v5645 = vadd.f32 %v5592, %v5644
        %v5646 = vpop.f32.mrb[0].mxu0
        %v5647 = vadd.f32 %v5594, %v5646
        %5648 = vdwg.mxu0
        %5649 = vmatprep.subr.bf16.mxu0 %v5416
        %5650 = vmatpush1.bf16.msra.mxu0 %v5415
        %5651 = vmatprep.subr.bf16.mxu0 %v5418
        %5652 = vmatpush1.bf16.msra.mxu0 %v5417
        %5653 = vmatprep.subr.bf16.mxu0 %v5420
        %5654 = vmatpush1.bf16.msra.mxu0 %v5419
        %5655 = vmatprep.subr.bf16.mxu0 %v5422
        %5656 = vmatpush1.bf16.msra.mxu0 %v5421
        %5657 = vmatprep.subr.bf16.mxu0 %v5424
        %5658 = vmatpush1.bf16.msra.mxu0 %v5423
        %5659 = vmatprep.subr.bf16.mxu0 %v5426
        %5660 = vmatpush1.bf16.msra.mxu0 %v5425
        %5661 = vmatprep.subr.bf16.mxu0 %v5428
        %5662 = vmatpush1.bf16.msra.mxu0 %v5427
        %5663 = vmatprep.subr.bf16.mxu0 %v5430
        %5664 = vmatpush1.bf16.msra.mxu0 %v5429
        %5665 = vmatprep.subr.bf16.mxu0 %v5432
        %5666 = vmatpush1.bf16.msra.mxu0 %v5431
        %5667 = vmatprep.subr.bf16.mxu0 %v5434
        %5668 = vmatpush1.bf16.msra.mxu0 %v5433
        %5669 = vmatprep.subr.bf16.mxu0 %v5436
        %5670 = vmatpush1.bf16.msra.mxu0 %v5435
        %5671 = vmatprep.subr.bf16.mxu0 %v5438
        %5672 = vmatpush1.bf16.msra.mxu0 %v5437
        %5673 = vmatprep.subr.bf16.mxu0 %v5440
        %5674 = vmatpush1.bf16.msra.mxu0 %v5439
        %5675 = vmatprep.subr.bf16.mxu0 %v5442
        %5676 = vmatpush1.bf16.msra.mxu0 %v5441
        %5677 = vmatprep.subr.bf16.mxu0 %v5444
        %5678 = vmatpush1.bf16.msra.mxu0 %v5443
        %5679 = vmatprep.subr.bf16.mxu0 %v5446
        %5680 = vmatpush1.bf16.msra.mxu0 %v5445
        %5681 = vmatprep.mubr.bf16.mxu0 %v4960
        %5682 = vmatmul.mubr.bf16.gmra.mrb[0].mxu0 %v4959
        %v5683 = vpop.f32.mrb[0].mxu0
        %v5684 = vadd.f32 %v5631, %v5683
        %v5685 = vpop.f32.mrb[0].mxu0
        %v5686 = vadd.f32 %v5633, %v5685
        %v5687 = vpop.f32.mrb[0].mxu0
        %v5688 = vadd.f32 %v5635, %v5687
        %v5689 = vpop.f32.mrb[0].mxu0
        %v5690 = vadd.f32 %v5637, %v5689
        %5691 = vmatprep.mubr.bf16.mxu0 %v4966
        %5692 = vmatmul.mubr.bf16.gmra.mrb[0].mxu0 %v4965
        %v5693 = vpop.f32.mrb[0].mxu0
        %v5694 = vadd.f32 %v5641, %v5693
        %v5695 = vpop.f32.mrb[0].mxu0
        %v5696 = vadd.f32 %v5643, %v5695
        %v5697 = vpop.f32.mrb[0].mxu0
        %v5698 = vadd.f32 %v5645, %v5697
        %v5699 = vpop.f32.mrb[0].mxu0
        %v5700 = vadd.f32 %v5647, %v5699
        %5701 = vdwg.mxu0
        %v5702 = vadd.f32 %v3201, %v5684
        %v5703 = vadd.f32 %v3202, %v5686
        %v5704 = vadd.f32 %v3203, %v5688
        %v5705 = vadd.f32 %v3204, %v5690
        %v5706 = vadd.f32 %v3205, %v5694
        %v5707 = vadd.f32 %v3206, %v5696
        %v5708 = vadd.f32 %v3207, %v5698
        %v5709 = vadd.f32 %v3208, %v5700
        %5710 = vst [vmem:[#allocation2] sm:$0xff] %v5702
        %5711 = vst [vmem:[#allocation2 + $0x8] sm:$0xff] %v5703
        %5712 = vst [vmem:[#allocation2 + $0x10] sm:$0xff] %v5704
        %5713 = vst [vmem:[#allocation2 + $0x18] sm:$0xff] %v5705
        %5714 = vst [vmem:[#allocation2 + $0x20] sm:$0xff] %v5706
        %5715 = vst [vmem:[#allocation2 + $0x28] sm:$0xff] %v5707
        %5716 = vst [vmem:[#allocation2 + $0x30] sm:$0xff] %v5708
        %5717 = vst [vmem:[#allocation2 + $0x38] sm:$0xff] %v5709
        %p5718 = scmp.eq.s32.totalorder %s50, 1
        // Predicated region
        $region149: #{molformer_forward.1} parent=83 // pred_check
          %p5719 = pneg %p5718
        $region150: #{molformer_forward.1} parent=83 // pred_check_branch
          %5721 = sbr.rel (%p5719) target = $region152
        $region151: #{molformer_forward.1} parent=83 // pred_region
          %v5722 = vld [vmem:[#allocation17] sm:$0x3]
          %v5723 = vld [vmem:[#allocation18] sm:$0x3]
          %v5724 = vmul.f32 %v5702, %v5702
          %v5725 = vmul.f32 %v5703, %v5703
          %v5726 = vmul.f32 %v5704, %v5704
          %v5727 = vmul.f32 %v5705, %v5705
          %v5728 = vmul.f32 %v5706, %v5706
          %v5729 = vmul.f32 %v5707, %v5707
          %v5730 = vmul.f32 %v5708, %v5708
          %v5731 = vmul.f32 %v5709, %v5709
          %v5732 = vadd.f32 %v5724, %v5725
          %5733 = vadd.xlane.f32.xlu0 %v5732
          %v5734 = vpop.xlane.xlu0 %5733
          %v5735 = vadd.f32 %v5726, %v5727
          %5736 = vadd.xlane.f32.xlu0 %v5735
          %v5737 = vpop.xlane.xlu0 %5736
          %v5738 = vadd.f32 %v5728, %v5729
          %5739 = vadd.xlane.f32.xlu0 %v5738
          %v5740 = vpop.xlane.xlu0 %5739
          %v5741 = vadd.f32 %v5730, %v5731
          %5742 = vadd.xlane.f32.xlu0 %v5741
          %v5743 = vpop.xlane.xlu0 %5742
          %v5744 = vmul.f32 %v5734, %v985
          %v5745 = vmul.f32 %v5737, %v985
          %v5746 = vmul.f32 %v5740, %v985
          %v5747 = vmul.f32 %v5743, %v985
          %v5748 = vadd.f32 %v5744, 1e-06
          %v5749 = vadd.f32 %v5745, 1e-06
          %v5750 = vadd.f32 %v5746, 1e-06
          %v5751 = vadd.f32 %v5747, 1e-06
          %v5752 = vrsqrt.pop %v5748
          %v5753 = vrsqrt.pop %v5749
          %v5754 = vrsqrt.pop %v5750
          %v5755 = vrsqrt.pop %v5751
          %v5756 = vmul.f32 %v5702, %v5752
          %v5757 = vmul.f32 %v5703, %v5752
          %v5758 = vmul.f32 %v5704, %v5753
          %v5759 = vmul.f32 %v5705, %v5753
          %v5760 = vmul.f32 %v5706, %v5754
          %v5761 = vmul.f32 %v5707, %v5754
          %v5762 = vmul.f32 %v5708, %v5755
          %v5763 = vmul.f32 %v5709, %v5755
          %v5765 = vlaneseq
          %v5766 = vshrl.u32 %v5765, 7
          %v5767 = vsub.s32 0, %v5766
          %v5768 = vrot.slane %v5722, %v5767
          %v5769 = vlaneseq
          %v5770 = vshrl.u32 %v5769, 7
          %v5771 = vsub.s32 1, %v5770
          %v5772 = vrot.slane %v5722, %v5771
          %v5775 = vmul.f32 %v5756, %v5768
          %v5776 = vmul.f32 %v5757, %v5772
          %v5777 = vmul.f32 %v5758, %v5768
          %v5778 = vmul.f32 %v5759, %v5772
          %v5779 = vmul.f32 %v5760, %v5768
          %v5780 = vmul.f32 %v5761, %v5772
          %v5781 = vmul.f32 %v5762, %v5768
          %v5782 = vmul.f32 %v5763, %v5772
          %v5784 = vlaneseq
          %v5785 = vshrl.u32 %v5784, 7
          %v5786 = vsub.s32 0, %v5785
          %v5787 = vrot.slane %v5723, %v5786
          %v5788 = vlaneseq
          %v5789 = vshrl.u32 %v5788, 7
          %v5790 = vsub.s32 1, %v5789
          %v5791 = vrot.slane %v5723, %v5790
          %v5794 = vadd.f32 %v5775, %v5787
          %v5795 = vadd.f32 %v5776, %v5791
          %v5796 = vadd.f32 %v5777, %v5787
          %v5797 = vadd.f32 %v5778, %v5791
          %v5798 = vadd.f32 %v5779, %v5787
          %v5799 = vadd.f32 %v5780, %v5791
          %v5800 = vadd.f32 %v5781, %v5787
          %v5801 = vadd.f32 %v5782, %v5791
          %5802 = vst [vmem:[#allocation28] sm:$0xff] %v5794
          %5803 = vst [vmem:[#allocation28 + $0x8] sm:$0xff] %v5795
          %5804 = vst [vmem:[#allocation28 + $0x10] sm:$0xff] %v5796
          %5805 = vst [vmem:[#allocation28 + $0x18] sm:$0xff] %v5797
          %5806 = vst [vmem:[#allocation28 + $0x20] sm:$0xff] %v5798
          %5807 = vst [vmem:[#allocation28 + $0x28] sm:$0xff] %v5799
          %5808 = vst [vmem:[#allocation28 + $0x30] sm:$0xff] %v5800
          %5809 = vst [vmem:[#allocation28 + $0x38] sm:$0xff] %v5801
          %v5810 = vpack.c.bf16 %v5796, %v5794
          %v5811 = vpack.c.bf16 %v5797, %v5795
          %v5812 = vpack.c.bf16 %v5800, %v5798
          %v5813 = vpack.c.bf16 %v5801, %v5799
          %v5814 = vld [vmem:[#allocation20] sm:$0xf]
          %v5815 = vld [vmem:[#allocation20 + $0x4] sm:$0xf]
          %v5816 = vld [vmem:[#allocation20 + $0x8] sm:$0xf]
          %v5817 = vld [vmem:[#allocation20 + $0xc] sm:$0xf]
          %v5818 = vld [vmem:[#allocation20 + $0x10] sm:$0xf]
          %v5819 = vld [vmem:[#allocation20 + $0x14] sm:$0xf]
          %v5820 = vld [vmem:[#allocation20 + $0x18] sm:$0xf]
          %v5821 = vld [vmem:[#allocation20 + $0x1c] sm:$0xf]
          %v5822 = vld [vmem:[#allocation20 + $0x20] sm:$0xf]
          %v5823 = vld [vmem:[#allocation20 + $0x24] sm:$0xf]
          %v5824 = vld [vmem:[#allocation20 + $0x28] sm:$0xf]
          %v5825 = vld [vmem:[#allocation20 + $0x2c] sm:$0xf]
          %v5826 = vld [vmem:[#allocation20 + $0x30] sm:$0xf]
          %v5827 = vld [vmem:[#allocation20 + $0x34] sm:$0xf]
          %v5828 = vld [vmem:[#allocation20 + $0x38] sm:$0xf]
          %v5829 = vld [vmem:[#allocation20 + $0x3c] sm:$0xf]
          %v5830 = vld [vmem:[#allocation20 + $0x40] sm:$0xf]
          %v5831 = vld [vmem:[#allocation20 + $0x44] sm:$0xf]
          %v5832 = vld [vmem:[#allocation20 + $0x48] sm:$0xf]
          %v5833 = vld [vmem:[#allocation20 + $0x4c] sm:$0xf]
          %v5834 = vld [vmem:[#allocation20 + $0x50] sm:$0xf]
          %v5835 = vld [vmem:[#allocation20 + $0x54] sm:$0xf]
          %v5836 = vld [vmem:[#allocation20 + $0x58] sm:$0xf]
          %v5837 = vld [vmem:[#allocation20 + $0x5c] sm:$0xf]
          %v5838 = vld [vmem:[#allocation20 + $0x60] sm:$0xf]
          %v5839 = vld [vmem:[#allocation20 + $0x64] sm:$0xf]
          %v5840 = vld [vmem:[#allocation20 + $0x68] sm:$0xf]
          %v5841 = vld [vmem:[#allocation20 + $0x6c] sm:$0xf]
          %v5842 = vld [vmem:[#allocation20 + $0x70] sm:$0xf]
          %v5843 = vld [vmem:[#allocation20 + $0x74] sm:$0xf]
          %v5844 = vld [vmem:[#allocation20 + $0x78] sm:$0xf]
          %v5845 = vld [vmem:[#allocation20 + $0x7c] sm:$0xf]
          %v5878 = vunpack.c.l.b16 %v5814
          %v5879 = vunpack.c.l.b16 %v5815
          %v5880 = vunpack.c.l.b16 %v5816
          %v5881 = vunpack.c.l.b16 %v5817
          %v5882 = vunpack.c.l.b16 %v5818
          %v5883 = vunpack.c.l.b16 %v5819
          %v5884 = vunpack.c.l.b16 %v5820
          %v5885 = vunpack.c.l.b16 %v5821
          %v5886 = vunpack.c.l.b16 %v5822
          %v5887 = vunpack.c.l.b16 %v5823
          %v5888 = vunpack.c.l.b16 %v5824
          %v5889 = vunpack.c.l.b16 %v5825
          %v5890 = vunpack.c.l.b16 %v5826
          %v5891 = vunpack.c.l.b16 %v5827
          %v5892 = vunpack.c.l.b16 %v5828
          %v5893 = vunpack.c.l.b16 %v5829
          %v5894 = vunpack.c.l.b16 %v5830
          %v5895 = vunpack.c.l.b16 %v5831
          %v5896 = vunpack.c.l.b16 %v5832
          %v5897 = vunpack.c.l.b16 %v5833
          %v5898 = vunpack.c.l.b16 %v5834
          %v5899 = vunpack.c.l.b16 %v5835
          %v5900 = vunpack.c.l.b16 %v5836
          %v5901 = vunpack.c.l.b16 %v5837
          %v5902 = vunpack.c.l.b16 %v5838
          %v5903 = vunpack.c.l.b16 %v5839
          %v5904 = vunpack.c.l.b16 %v5840
          %v5905 = vunpack.c.l.b16 %v5841
          %v5906 = vunpack.c.l.b16 %v5842
          %v5907 = vunpack.c.l.b16 %v5843
          %v5908 = vunpack.c.l.b16 %v5844
          %v5909 = vunpack.c.l.b16 %v5845
          %v5910 = vpack.c.b16 %v5879, %v5878
          %v5911 = vpack.c.b16 %v5881, %v5880
          %v5912 = vpack.c.b16 %v5883, %v5882
          %v5913 = vpack.c.b16 %v5885, %v5884
          %v5914 = vpack.c.b16 %v5887, %v5886
          %v5915 = vpack.c.b16 %v5889, %v5888
          %v5916 = vpack.c.b16 %v5891, %v5890
          %v5917 = vpack.c.b16 %v5893, %v5892
          %v5918 = vpack.c.b16 %v5895, %v5894
          %v5919 = vpack.c.b16 %v5897, %v5896
          %v5920 = vpack.c.b16 %v5899, %v5898
          %v5921 = vpack.c.b16 %v5901, %v5900
          %v5922 = vpack.c.b16 %v5903, %v5902
          %v5923 = vpack.c.b16 %v5905, %v5904
          %v5924 = vpack.c.b16 %v5907, %v5906
          %v5925 = vpack.c.b16 %v5909, %v5908
          %5942 = vmatprep.subr.bf16.mxu0 0
          %5943 = vmatpush1.bf16.msra.mxu0 %v5910
          %5944 = vmatprep.subr.bf16.mxu0 0
          %5945 = vmatpush1.bf16.msra.mxu0 %v5911
          %5946 = vmatprep.subr.bf16.mxu0 0
          %5947 = vmatpush1.bf16.msra.mxu0 %v5912
          %5948 = vmatprep.subr.bf16.mxu0 0
          %5949 = vmatpush1.bf16.msra.mxu0 %v5913
          %5950 = vmatprep.subr.bf16.mxu0 0
          %5951 = vmatpush1.bf16.msra.mxu0 %v5914
          %5952 = vmatprep.subr.bf16.mxu0 0
          %5953 = vmatpush1.bf16.msra.mxu0 %v5915
          %5954 = vmatprep.subr.bf16.mxu0 0
          %5955 = vmatpush1.bf16.msra.mxu0 %v5916
          %5956 = vmatprep.subr.bf16.mxu0 0
          %5957 = vmatpush1.bf16.msra.mxu0 %v5917
          %5958 = vmatprep.subr.bf16.mxu0 0
          %5959 = vmatpush1.bf16.msra.mxu0 %v5918
          %5960 = vmatprep.subr.bf16.mxu0 0
          %5961 = vmatpush1.bf16.msra.mxu0 %v5919
          %5962 = vmatprep.subr.bf16.mxu0 0
          %5963 = vmatpush1.bf16.msra.mxu0 %v5920
          %5964 = vmatprep.subr.bf16.mxu0 0
          %5965 = vmatpush1.bf16.msra.mxu0 %v5921
          %5966 = vmatprep.subr.bf16.mxu0 0
          %5967 = vmatpush1.bf16.msra.mxu0 %v5922
          %5968 = vmatprep.subr.bf16.mxu0 0
          %5969 = vmatpush1.bf16.msra.mxu0 %v5923
          %5970 = vmatprep.subr.bf16.mxu0 0
          %5971 = vmatpush1.bf16.msra.mxu0 %v5924
          %5972 = vmatprep.subr.bf16.mxu0 0
          %5973 = vmatpush1.bf16.msra.mxu0 %v5925
          %5974 = vmatprep.mubr.bf16.mxu0 %v5811
          %5975 = vmatmul.mubr.bf16.gmra.mrb[0].mxu0 %v5810
          %v5976 = vpop.f32.mrb[0].mxu0
          %v5977 = vadd.f32 0.0, %v5976
          %v5978 = vpop.f32.mrb[0].mxu0
          %v5979 = vpop.f32.mrb[0].mxu0
          %v5980 = vadd.f32 0.0, %v5979
          %v5981 = vpop.f32.mrb[0].mxu0
          %5982 = vmatprep.mubr.bf16.mxu0 %v5813
          %5983 = vmatmul.mubr.bf16.gmra.mrb[0].mxu0 %v5812
          %v5984 = vpop.f32.mrb[0].mxu0
          %v5985 = vadd.f32 0.0, %v5984
          %v5986 = vpop.f32.mrb[0].mxu0
          %v5987 = vpop.f32.mrb[0].mxu0
          %v5988 = vadd.f32 0.0, %v5987
          %v5989 = vpop.f32.mrb[0].mxu0
          %5990 = vdwg.mxu0
          %5991 = vst [vmem:[#allocation27] sm:$0xff] %v5977
          %5992 = vst [vmem:[#allocation27 + $0x8] sm:$0xff] %v5980
          %5993 = vst [vmem:[#allocation27 + $0x10] sm:$0xff] %v5985
          %5994 = vst [vmem:[#allocation27 + $0x18] sm:$0xff] %v5988
          %v5995 = vadd.f32 %v5794, %v5796
          %v5996 = vrot.slane %v5995, 4
          %v5997 = vadd.f32 %v5995, %v5996
          %v5998 = vrot.slane %v5997, 2
          %v5999 = vadd.f32 %v5997, %v5998
          %v6000 = vrot.slane %v5999, 1
          %v6001 = vadd.f32 %v5999, %v6000
          %v6002 = vadd.f32 %v5795, %v5797
          %v6003 = vrot.slane %v6002, 4
          %v6004 = vadd.f32 %v6002, %v6003
          %v6005 = vrot.slane %v6004, 2
          %v6006 = vadd.f32 %v6004, %v6005
          %v6007 = vrot.slane %v6006, 1
          %v6008 = vadd.f32 %v6006, %v6007
          %v6009 = vadd.f32 %v5798, %v5800
          %v6010 = vrot.slane %v6009, 4
          %v6011 = vadd.f32 %v6009, %v6010
          %v6012 = vrot.slane %v6011, 2
          %v6013 = vadd.f32 %v6011, %v6012
          %v6014 = vrot.slane %v6013, 1
          %v6015 = vadd.f32 %v6013, %v6014
          %v6016 = vadd.f32 %v5799, %v5801
          %v6017 = vrot.slane %v6016, 4
          %v6018 = vadd.f32 %v6016, %v6017
          %v6019 = vrot.slane %v6018, 2
          %v6020 = vadd.f32 %v6018, %v6019
          %v6021 = vrot.slane %v6020, 1
          %v6022 = vadd.f32 %v6020, %v6021
          %v6023 = vrcp.pop 16.0
          %v6024 = vmul.f32 %v6001, %v6023
          %v6025 = vmul.f32 %v6008, %v6023
          %v6026 = vmul.f32 %v6015, %v6023
          %v6027 = vmul.f32 %v6022, %v6023
          %v6028 = vpack.c.bf16 %v6024, %v6024
          %v6029 = vpack.c.bf16 %v6025, %v6025
          %v6030 = vpack.c.bf16 %v6026, %v6026
          %v6031 = vpack.c.bf16 %v6027, %v6027
          %v6032 = vld [vmem:[#allocation21] sm:$0xff]
          %v6033 = vld [vmem:[#allocation21 + $0x8] sm:$0xf]
          %v6034 = vld [vmem:[#allocation21 + $0xc] sm:$0xff]
          %v6035 = vld [vmem:[#allocation21 + $0x14] sm:$0xf]
          %v6036 = vld [vmem:[#allocation21 + $0x18] sm:$0xff]
          %v6037 = vld [vmem:[#allocation21 + $0x20] sm:$0xf]
          %v6038 = vld [vmem:[#allocation21 + $0x24] sm:$0xff]
          %v6039 = vld [vmem:[#allocation21 + $0x2c] sm:$0xf]
          %v6040 = vld [vmem:[#allocation21 + $0x30] sm:$0xff]
          %v6041 = vld [vmem:[#allocation21 + $0x38] sm:$0xf]
          %v6042 = vld [vmem:[#allocation21 + $0x3c] sm:$0xff]
          %v6043 = vld [vmem:[#allocation21 + $0x44] sm:$0xf]
          %v6044 = vld [vmem:[#allocation21 + $0x48] sm:$0xff]
          %v6045 = vld [vmem:[#allocation21 + $0x50] sm:$0xf]
          %v6046 = vld [vmem:[#allocation21 + $0x54] sm:$0xff]
          %v6047 = vld [vmem:[#allocation21 + $0x5c] sm:$0xf]
          %v6048 = vld [vmem:[#allocation21 + $0x60] sm:$0xff]
          %v6049 = vld [vmem:[#allocation21 + $0x68] sm:$0xf]
          %v6050 = vld [vmem:[#allocation21 + $0x6c] sm:$0xff]
          %v6051 = vld [vmem:[#allocation21 + $0x74] sm:$0xf]
          %v6052 = vld [vmem:[#allocation21 + $0x78] sm:$0xff]
          %v6053 = vld [vmem:[#allocation21 + $0x80] sm:$0xf]
          %v6054 = vld [vmem:[#allocation21 + $0x84] sm:$0xff]
          %v6055 = vld [vmem:[#allocation21 + $0x8c] sm:$0xf]
          %v6056 = vld [vmem:[#allocation21 + $0x90] sm:$0xff]
          %v6057 = vld [vmem:[#allocation21 + $0x98] sm:$0xf]
          %v6058 = vld [vmem:[#allocation21 + $0x9c] sm:$0xff]
          %v6059 = vld [vmem:[#allocation21 + $0xa4] sm:$0xf]
          %v6060 = vld [vmem:[#allocation21 + $0xa8] sm:$0xff]
          %v6061 = vld [vmem:[#allocation21 + $0xb0] sm:$0xf]
          %v6062 = vld [vmem:[#allocation21 + $0xb4] sm:$0xff]
          %v6063 = vld [vmem:[#allocation21 + $0xbc] sm:$0xf]
          %v6064 = vld [vmem:[#allocation21 + $0xc0] sm:$0xff]
          %v6065 = vld [vmem:[#allocation21 + $0xc8] sm:$0xf]
          %v6066 = vld [vmem:[#allocation21 + $0xcc] sm:$0xff]
          %v6067 = vld [vmem:[#allocation21 + $0xd4] sm:$0xf]
          %v6068 = vld [vmem:[#allocation21 + $0xd8] sm:$0xff]
          %v6069 = vld [vmem:[#allocation21 + $0xe0] sm:$0xf]
          %v6070 = vld [vmem:[#allocation21 + $0xe4] sm:$0xff]
          %v6071 = vld [vmem:[#allocation21 + $0xec] sm:$0xf]
          %v6072 = vld [vmem:[#allocation21 + $0xf0] sm:$0xff]
          %v6073 = vld [vmem:[#allocation21 + $0xf8] sm:$0xf]
          %v6074 = vld [vmem:[#allocation21 + $0xfc] sm:$0xff]
          %v6075 = vld [vmem:[#allocation21 + $0x104] sm:$0xf]
          %v6076 = vld [vmem:[#allocation21 + $0x108] sm:$0xff]
          %v6077 = vld [vmem:[#allocation21 + $0x110] sm:$0xf]
          %v6078 = vld [vmem:[#allocation21 + $0x114] sm:$0xff]
          %v6079 = vld [vmem:[#allocation21 + $0x11c] sm:$0xf]
          %v6080 = vld [vmem:[#allocation21 + $0x120] sm:$0xff]
          %v6081 = vld [vmem:[#allocation21 + $0x128] sm:$0xf]
          %v6082 = vld [vmem:[#allocation21 + $0x12c] sm:$0xff]
          %v6083 = vld [vmem:[#allocation21 + $0x134] sm:$0xf]
          %v6084 = vld [vmem:[#allocation21 + $0x138] sm:$0xff]
          %v6085 = vld [vmem:[#allocation21 + $0x140] sm:$0xf]
          %v6086 = vld [vmem:[#allocation21 + $0x144] sm:$0xff]
          %v6087 = vld [vmem:[#allocation21 + $0x14c] sm:$0xf]
          %v6088 = vld [vmem:[#allocation21 + $0x150] sm:$0xff]
          %v6089 = vld [vmem:[#allocation21 + $0x158] sm:$0xf]
          %v6090 = vld [vmem:[#allocation21 + $0x15c] sm:$0xff]
          %v6091 = vld [vmem:[#allocation21 + $0x164] sm:$0xf]
          %v6092 = vld [vmem:[#allocation21 + $0x168] sm:$0xff]
          %v6093 = vld [vmem:[#allocation21 + $0x170] sm:$0xf]
          %v6094 = vld [vmem:[#allocation21 + $0x174] sm:$0xff]
          %v6095 = vld [vmem:[#allocation21 + $0x17c] sm:$0xf]
          %v6096 = vld [vmem:[#allocation23] sm:$0x7]
          %v6098 = vlaneseq
          %v6099 = vshrl.u32 %v6098, 7
          %v6100 = vsub.s32 0, %v6099
          %v6101 = vrot.slane %v6096, %v6100
          %v6102 = vlaneseq
          %v6103 = vshrl.u32 %v6102, 7
          %v6104 = vsub.s32 1, %v6103
          %v6105 = vrot.slane %v6096, %v6104
          %v6106 = vlaneseq
          %v6107 = vshrl.u32 %v6106, 7
          %v6108 = vsub.s32 2, %v6107
          %v6109 = vrot.slane %v6096, %v6108
          %v6117 = vunpack.c.l.b16 %v6028
          %v6118 = vunpack.c.l.b16 %v6029
          %v6119 = vunpack.c.l.b16 %v6030
          %v6120 = vunpack.c.l.b16 %v6031
          %vm6121 = vcmask 1041409
          %v6122 = vsel %vm6121, %v6119, %v6117
          %v6123 = vsel %vm6121, %v6120, %v6118
          %v6124 = vpack.c.b16 %v6122, %v6122
          %v6125 = vpack.c.b16 %v6123, %v6123
          %v6192 = vunpack.c.l.b16 %v6032
          %v6193 = vunpack.c.h.b16 %v6032
          %v6194 = vunpack.c.l.b16 %v6033
          %v6195 = vunpack.c.l.b16 %v6034
          %v6196 = vunpack.c.h.b16 %v6034
          %v6197 = vunpack.c.l.b16 %v6035
          %v6198 = vunpack.c.l.b16 %v6036
          %v6199 = vunpack.c.h.b16 %v6036
          %v6200 = vunpack.c.l.b16 %v6037
          %v6201 = vunpack.c.l.b16 %v6038
          %v6202 = vunpack.c.h.b16 %v6038
          %v6203 = vunpack.c.l.b16 %v6039
          %v6204 = vunpack.c.l.b16 %v6040
          %v6205 = vunpack.c.h.b16 %v6040
          %v6206 = vunpack.c.l.b16 %v6041
          %v6207 = vunpack.c.l.b16 %v6042
          %v6208 = vunpack.c.h.b16 %v6042
          %v6209 = vunpack.c.l.b16 %v6043
          %v6210 = vunpack.c.l.b16 %v6044
          %v6211 = vunpack.c.h.b16 %v6044
          %v6212 = vunpack.c.l.b16 %v6045
          %v6213 = vunpack.c.l.b16 %v6046
          %v6214 = vunpack.c.h.b16 %v6046
          %v6215 = vunpack.c.l.b16 %v6047
          %v6216 = vunpack.c.l.b16 %v6048
          %v6217 = vunpack.c.h.b16 %v6048
          %v6218 = vunpack.c.l.b16 %v6049
          %v6219 = vunpack.c.l.b16 %v6050
          %v6220 = vunpack.c.h.b16 %v6050
          %v6221 = vunpack.c.l.b16 %v6051
          %v6222 = vunpack.c.l.b16 %v6052
          %v6223 = vunpack.c.h.b16 %v6052
          %v6224 = vunpack.c.l.b16 %v6053
          %v6225 = vunpack.c.l.b16 %v6054
          %v6226 = vunpack.c.h.b16 %v6054
          %v6227 = vunpack.c.l.b16 %v6055
          %v6228 = vunpack.c.l.b16 %v6056
          %v6229 = vunpack.c.h.b16 %v6056
          %v6230 = vunpack.c.l.b16 %v6057
          %v6231 = vunpack.c.l.b16 %v6058
          %v6232 = vunpack.c.h.b16 %v6058
          %v6233 = vunpack.c.l.b16 %v6059
          %v6234 = vunpack.c.l.b16 %v6060
          %v6235 = vunpack.c.h.b16 %v6060
          %v6236 = vunpack.c.l.b16 %v6061
          %v6237 = vunpack.c.l.b16 %v6062
          %v6238 = vunpack.c.h.b16 %v6062
          %v6239 = vunpack.c.l.b16 %v6063
          %v6240 = vunpack.c.l.b16 %v6064
          %v6241 = vunpack.c.h.b16 %v6064
          %v6242 = vunpack.c.l.b16 %v6065
          %v6243 = vunpack.c.l.b16 %v6066
          %v6244 = vunpack.c.h.b16 %v6066
          %v6245 = vunpack.c.l.b16 %v6067
          %v6246 = vunpack.c.l.b16 %v6068
          %v6247 = vunpack.c.h.b16 %v6068
          %v6248 = vunpack.c.l.b16 %v6069
          %v6249 = vunpack.c.l.b16 %v6070
          %v6250 = vunpack.c.h.b16 %v6070
          %v6251 = vunpack.c.l.b16 %v6071
          %v6252 = vunpack.c.l.b16 %v6072
          %v6253 = vunpack.c.h.b16 %v6072
          %v6254 = vunpack.c.l.b16 %v6073
          %v6255 = vunpack.c.l.b16 %v6074
          %v6256 = vunpack.c.h.b16 %v6074
          %v6257 = vunpack.c.l.b16 %v6075
          %v6258 = vunpack.c.l.b16 %v6076
          %v6259 = vunpack.c.h.b16 %v6076
          %v6260 = vunpack.c.l.b16 %v6077
          %v6261 = vunpack.c.l.b16 %v6078
          %v6262 = vunpack.c.h.b16 %v6078
          %v6263 = vunpack.c.l.b16 %v6079
          %v6264 = vunpack.c.l.b16 %v6080
          %v6265 = vunpack.c.h.b16 %v6080
          %v6266 = vunpack.c.l.b16 %v6081
          %v6267 = vunpack.c.l.b16 %v6082
          %v6268 = vunpack.c.h.b16 %v6082
          %v6269 = vunpack.c.l.b16 %v6083
          %v6270 = vunpack.c.l.b16 %v6084
          %v6271 = vunpack.c.h.b16 %v6084
          %v6272 = vunpack.c.l.b16 %v6085
          %v6273 = vunpack.c.l.b16 %v6086
          %v6274 = vunpack.c.h.b16 %v6086
          %v6275 = vunpack.c.l.b16 %v6087
          %v6276 = vunpack.c.l.b16 %v6088
          %v6277 = vunpack.c.h.b16 %v6088
          %v6278 = vunpack.c.l.b16 %v6089
          %v6279 = vunpack.c.l.b16 %v6090
          %v6280 = vunpack.c.h.b16 %v6090
          %v6281 = vunpack.c.l.b16 %v6091
          %v6282 = vunpack.c.l.b16 %v6092
          %v6283 = vunpack.c.h.b16 %v6092
          %v6284 = vunpack.c.l.b16 %v6093
          %v6285 = vunpack.c.l.b16 %v6094
          %v6286 = vunpack.c.h.b16 %v6094
          %v6287 = vunpack.c.l.b16 %v6095
          %v6288 = vpack.c.b16 %v6195, %v6192
          %v6289 = vpack.c.b16 %v6196, %v6193
          %v6290 = vpack.c.b16 %v6197, %v6194
          %v6291 = vpack.c.b16 %v6201, %v6198
          %v6292 = vpack.c.b16 %v6202, %v6199
          %v6293 = vpack.c.b16 %v6203, %v6200
          %v6294 = vpack.c.b16 %v6207, %v6204
          %v6295 = vpack.c.b16 %v6208, %v6205
          %v6296 = vpack.c.b16 %v6209, %v6206
          %v6297 = vpack.c.b16 %v6213, %v6210
          %v6298 = vpack.c.b16 %v6214, %v6211
          %v6299 = vpack.c.b16 %v6215, %v6212
          %v6300 = vpack.c.b16 %v6219, %v6216
          %v6301 = vpack.c.b16 %v6220, %v6217
          %v6302 = vpack.c.b16 %v6221, %v6218
          %v6303 = vpack.c.b16 %v6225, %v6222
          %v6304 = vpack.c.b16 %v6226, %v6223
          %v6305 = vpack.c.b16 %v6227, %v6224
          %v6306 = vpack.c.b16 %v6231, %v6228
          %v6307 = vpack.c.b16 %v6232, %v6229
          %v6308 = vpack.c.b16 %v6233, %v6230
          %v6309 = vpack.c.b16 %v6237, %v6234
          %v6310 = vpack.c.b16 %v6238, %v6235
          %v6311 = vpack.c.b16 %v6239, %v6236
          %v6312 = vpack.c.b16 %v6243, %v6240
          %v6313 = vpack.c.b16 %v6244, %v6241
          %v6314 = vpack.c.b16 %v6245, %v6242
          %v6315 = vpack.c.b16 %v6249, %v6246
          %v6316 = vpack.c.b16 %v6250, %v6247
          %v6317 = vpack.c.b16 %v6251, %v6248
          %v6318 = vpack.c.b16 %v6255, %v6252
          %v6319 = vpack.c.b16 %v6256, %v6253
          %v6320 = vpack.c.b16 %v6257, %v6254
          %v6321 = vpack.c.b16 %v6261, %v6258
          %v6322 = vpack.c.b16 %v6262, %v6259
          %v6323 = vpack.c.b16 %v6263, %v6260
          %v6324 = vpack.c.b16 %v6267, %v6264
          %v6325 = vpack.c.b16 %v6268, %v6265
          %v6326 = vpack.c.b16 %v6269, %v6266
          %v6327 = vpack.c.b16 %v6273, %v6270
          %v6328 = vpack.c.b16 %v6274, %v6271
          %v6329 = vpack.c.b16 %v6275, %v6272
          %v6330 = vpack.c.b16 %v6279, %v6276
          %v6331 = vpack.c.b16 %v6280, %v6277
          %v6332 = vpack.c.b16 %v6281, %v6278
          %v6333 = vpack.c.b16 %v6285, %v6282
          %v6334 = vpack.c.b16 %v6286, %v6283
          %v6335 = vpack.c.b16 %v6287, %v6284
          %6384 = vmatprep.subr.bf16.mxu0 %v6289
          %6385 = vmatpush1.bf16.msra.mxu0 %v6288
          %6386 = vmatprep.subr.bf16.mxu0 %v6292
          %6387 = vmatpush1.bf16.msra.mxu0 %v6291
          %6388 = vmatprep.subr.bf16.mxu0 %v6295
          %6389 = vmatpush1.bf16.msra.mxu0 %v6294
          %6390 = vmatprep.subr.bf16.mxu0 %v6298
          %6391 = vmatpush1.bf16.msra.mxu0 %v6297
          %6392 = vmatprep.subr.bf16.mxu0 %v6301
          %6393 = vmatpush1.bf16.msra.mxu0 %v6300
          %6394 = vmatprep.subr.bf16.mxu0 %v6304
          %6395 = vmatpush1.bf16.msra.mxu0 %v6303
          %6396 = vmatprep.subr.bf16.mxu0 %v6307
          %6397 = vmatpush1.bf16.msra.mxu0 %v6306
          %6398 = vmatprep.subr.bf16.mxu0 %v6310
          %6399 = vmatpush1.bf16.msra.mxu0 %v6309
          %6400 = vmatprep.subr.bf16.mxu0 %v6313
          %6401 = vmatpush1.bf16.msra.mxu0 %v6312
          %6402 = vmatprep.subr.bf16.mxu0 %v6316
          %6403 = vmatpush1.bf16.msra.mxu0 %v6315
          %6404 = vmatprep.subr.bf16.mxu0 %v6319
          %6405 = vmatpush1.bf16.msra.mxu0 %v6318
          %6406 = vmatprep.subr.bf16.mxu0 %v6322
          %6407 = vmatpush1.bf16.msra.mxu0 %v6321
          %6408 = vmatprep.subr.bf16.mxu0 %v6325
          %6409 = vmatpush1.bf16.msra.mxu0 %v6324
          %6410 = vmatprep.subr.bf16.mxu0 %v6328
          %6411 = vmatpush1.bf16.msra.mxu0 %v6327
          %6412 = vmatprep.subr.bf16.mxu0 %v6331
          %6413 = vmatpush1.bf16.msra.mxu0 %v6330
          %6414 = vmatprep.subr.bf16.mxu0 %v6334
          %6415 = vmatpush1.bf16.msra.mxu0 %v6333
          %6416 = vmatprep.mubr.bf16.mxu0 %v6125
          %6417 = vmatmul.mubr.bf16.gmra.mrb[0].mxu0 %v6124
          %v6418 = vpop.f32.mrb[0].mxu0
          %v6419 = vadd.f32 %v6101, %v6418
          %v6420 = vpop.f32.mrb[0].mxu0
          %v6421 = vadd.f32 %v6105, %v6420
          %v6422 = vpop.f32.mrb[0].mxu0
          %v6423 = vpop.f32.mrb[0].mxu0
          %6424 = vdwg.mxu0
          %6425 = vmatprep.subr.bf16.mxu0 0
          %6426 = vmatpush1.bf16.msra.mxu0 %v6290
          %6427 = vmatprep.subr.bf16.mxu0 0
          %6428 = vmatpush1.bf16.msra.mxu0 %v6293
          %6429 = vmatprep.subr.bf16.mxu0 0
          %6430 = vmatpush1.bf16.msra.mxu0 %v6296
          %6431 = vmatprep.subr.bf16.mxu0 0
          %6432 = vmatpush1.bf16.msra.mxu0 %v6299
          %6433 = vmatprep.subr.bf16.mxu0 0
          %6434 = vmatpush1.bf16.msra.mxu0 %v6302
          %6435 = vmatprep.subr.bf16.mxu0 0
          %6436 = vmatpush1.bf16.msra.mxu0 %v6305
          %6437 = vmatprep.subr.bf16.mxu0 0
          %6438 = vmatpush1.bf16.msra.mxu0 %v6308
          %6439 = vmatprep.subr.bf16.mxu0 0
          %6440 = vmatpush1.bf16.msra.mxu0 %v6311
          %6441 = vmatprep.subr.bf16.mxu0 0
          %6442 = vmatpush1.bf16.msra.mxu0 %v6314
          %6443 = vmatprep.subr.bf16.mxu0 0
          %6444 = vmatpush1.bf16.msra.mxu0 %v6317
          %6445 = vmatprep.subr.bf16.mxu0 0
          %6446 = vmatpush1.bf16.msra.mxu0 %v6320
          %6447 = vmatprep.subr.bf16.mxu0 0
          %6448 = vmatpush1.bf16.msra.mxu0 %v6323
          %6449 = vmatprep.subr.bf16.mxu0 0
          %6450 = vmatpush1.bf16.msra.mxu0 %v6326
          %6451 = vmatprep.subr.bf16.mxu0 0
          %6452 = vmatpush1.bf16.msra.mxu0 %v6329
          %6453 = vmatprep.subr.bf16.mxu0 0
          %6454 = vmatpush1.bf16.msra.mxu0 %v6332
          %6455 = vmatprep.subr.bf16.mxu0 0
          %6456 = vmatpush1.bf16.msra.mxu0 %v6335
          %6457 = vmatprep.mubr.bf16.mxu0 %v6125
          %6458 = vmatmul.mubr.bf16.gmra.mrb[0].mxu0 %v6124
          %v6459 = vpop.f32.mrb[0].mxu0
          %v6460 = vadd.f32 %v6109, %v6459
          %v6461 = vpop.f32.mrb[0].mxu0
          %v6462 = vpop.f32.mrb[0].mxu0
          %v6463 = vpop.f32.mrb[0].mxu0
          %6464 = vdwg.mxu0
          %v6465 = vmax.f32 %v6419, 0.0
          %v6466 = vmax.f32 %v6421, 0.0
          %v6467 = vmax.f32 %v6460, 0.0
          %v6468 = vpack.c.bf16 %v6465, %v6465
          %v6469 = vpack.c.bf16 %v6466, %v6466
          %v6470 = vpack.c.bf16 %v6467, %v6467
          %v6471 = vld [vmem:[#allocation24] sm:$0xf]
          %v6472 = vld [vmem:[#allocation24 + $0x4] sm:$0xf]
          %v6473 = vld [vmem:[#allocation24 + $0x8] sm:$0xf]
          %v6474 = vld [vmem:[#allocation24 + $0xc] sm:$0xf]
          %v6475 = vld [vmem:[#allocation24 + $0x10] sm:$0xf]
          %v6476 = vld [vmem:[#allocation24 + $0x14] sm:$0xf]
          %v6477 = vld [vmem:[#allocation24 + $0x18] sm:$0xf]
          %v6478 = vld [vmem:[#allocation24 + $0x1c] sm:$0xf]
          %v6479 = vld [vmem:[#allocation24 + $0x20] sm:$0xf]
          %v6480 = vld [vmem:[#allocation24 + $0x24] sm:$0xf]
          %v6481 = vld [vmem:[#allocation24 + $0x28] sm:$0xf]
          %v6482 = vld [vmem:[#allocation24 + $0x2c] sm:$0xf]
          %v6483 = vld [vmem:[#allocation24 + $0x30] sm:$0xf]
          %v6484 = vld [vmem:[#allocation24 + $0x34] sm:$0xf]
          %v6485 = vld [vmem:[#allocation24 + $0x38] sm:$0xf]
          %v6486 = vld [vmem:[#allocation24 + $0x3c] sm:$0xf]
          %v6487 = vld [vmem:[#allocation24 + $0x40] sm:$0xf]
          %v6488 = vld [vmem:[#allocation24 + $0x44] sm:$0xf]
          %v6489 = vld [vmem:[#allocation24 + $0x48] sm:$0xf]
          %v6490 = vld [vmem:[#allocation24 + $0x4c] sm:$0xf]
          %v6491 = vld [vmem:[#allocation24 + $0x50] sm:$0xf]
          %v6492 = vld [vmem:[#allocation24 + $0x54] sm:$0xf]
          %v6493 = vld [vmem:[#allocation24 + $0x58] sm:$0xf]
          %v6494 = vld [vmem:[#allocation24 + $0x5c] sm:$0xf]
          %v6495 = vld [vmem:[#allocation24 + $0x60] sm:$0xf]
          %v6496 = vld [vmem:[#allocation24 + $0x64] sm:$0xf]
          %v6497 = vld [vmem:[#allocation24 + $0x68] sm:$0xf]
          %v6498 = vld [vmem:[#allocation24 + $0x6c] sm:$0xf]
          %v6499 = vld [vmem:[#allocation24 + $0x70] sm:$0xf]
          %v6500 = vld [vmem:[#allocation24 + $0x74] sm:$0xf]
          %v6501 = vld [vmem:[#allocation24 + $0x78] sm:$0xf]
          %v6502 = vld [vmem:[#allocation24 + $0x7c] sm:$0xf]
          %v6503 = vld [vmem:[#allocation24 + $0x80] sm:$0xf]
          %v6504 = vld [vmem:[#allocation24 + $0x84] sm:$0xf]
          %v6505 = vld [vmem:[#allocation24 + $0x88] sm:$0xf]
          %v6506 = vld [vmem:[#allocation24 + $0x8c] sm:$0xf]
          %v6507 = vld [vmem:[#allocation24 + $0x90] sm:$0xf]
          %v6508 = vld [vmem:[#allocation24 + $0x94] sm:$0xf]
          %v6509 = vld [vmem:[#allocation24 + $0x98] sm:$0xf]
          %v6510 = vld [vmem:[#allocation24 + $0x9c] sm:$0xf]
          %v6511 = vld [vmem:[#allocation24 + $0xa0] sm:$0xf]
          %v6512 = vld [vmem:[#allocation24 + $0xa4] sm:$0xf]
          %v6513 = vld [vmem:[#allocation24 + $0xa8] sm:$0xf]
          %v6514 = vld [vmem:[#allocation24 + $0xac] sm:$0xf]
          %v6515 = vld [vmem:[#allocation24 + $0xb0] sm:$0xf]
          %v6516 = vld [vmem:[#allocation24 + $0xb4] sm:$0xf]
          %v6517 = vld [vmem:[#allocation24 + $0xb8] sm:$0xf]
          %v6518 = vld [vmem:[#allocation24 + $0xbc] sm:$0xf]
          %v6519 = vld [vmem:[#allocation26] sm:$0x1]
          %v6521 = vlaneseq
          %v6522 = vshrl.u32 %v6521, 7
          %v6523 = vsub.s32 0, %v6522
          %v6524 = vrot.slane %v6519, %v6523
          %v6574 = vunpack.c.l.b16 %v6471
          %v6575 = vunpack.c.l.b16 %v6472
          %v6576 = vunpack.c.l.b16 %v6473
          %v6577 = vunpack.c.l.b16 %v6474
          %v6578 = vunpack.c.l.b16 %v6475
          %v6579 = vunpack.c.l.b16 %v6476
          %v6580 = vunpack.c.l.b16 %v6477
          %v6581 = vunpack.c.l.b16 %v6478
          %v6582 = vunpack.c.l.b16 %v6479
          %v6583 = vunpack.c.l.b16 %v6480
          %v6584 = vunpack.c.l.b16 %v6481
          %v6585 = vunpack.c.l.b16 %v6482
          %v6586 = vunpack.c.l.b16 %v6483
          %v6587 = vunpack.c.l.b16 %v6484
          %v6588 = vunpack.c.l.b16 %v6485
          %v6589 = vunpack.c.l.b16 %v6486
          %v6590 = vunpack.c.l.b16 %v6487
          %v6591 = vunpack.c.l.b16 %v6488
          %v6592 = vunpack.c.l.b16 %v6489
          %v6593 = vunpack.c.l.b16 %v6490
          %v6594 = vunpack.c.l.b16 %v6491
          %v6595 = vunpack.c.l.b16 %v6492
          %v6596 = vunpack.c.l.b16 %v6493
          %v6597 = vunpack.c.l.b16 %v6494
          %v6598 = vunpack.c.l.b16 %v6495
          %v6599 = vunpack.c.l.b16 %v6496
          %v6600 = vunpack.c.l.b16 %v6497
          %v6601 = vunpack.c.l.b16 %v6498
          %v6602 = vunpack.c.l.b16 %v6499
          %v6603 = vunpack.c.l.b16 %v6500
          %v6604 = vunpack.c.l.b16 %v6501
          %v6605 = vunpack.c.l.b16 %v6502
          %v6606 = vunpack.c.l.b16 %v6503
          %v6607 = vunpack.c.l.b16 %v6504
          %v6608 = vunpack.c.l.b16 %v6505
          %v6609 = vunpack.c.l.b16 %v6506
          %v6610 = vunpack.c.l.b16 %v6507
          %v6611 = vunpack.c.l.b16 %v6508
          %v6612 = vunpack.c.l.b16 %v6509
          %v6613 = vunpack.c.l.b16 %v6510
          %v6614 = vunpack.c.l.b16 %v6511
          %v6615 = vunpack.c.l.b16 %v6512
          %v6616 = vunpack.c.l.b16 %v6513
          %v6617 = vunpack.c.l.b16 %v6514
          %v6618 = vunpack.c.l.b16 %v6515
          %v6619 = vunpack.c.l.b16 %v6516
          %v6620 = vunpack.c.l.b16 %v6517
          %v6621 = vunpack.c.l.b16 %v6518
          %v6622 = vpack.c.b16 %v6575, %v6574
          %v6623 = vpack.c.b16 %v6577, %v6576
          %v6624 = vpack.c.b16 %v6579, %v6578
          %v6625 = vpack.c.b16 %v6581, %v6580
          %v6626 = vpack.c.b16 %v6583, %v6582
          %v6627 = vpack.c.b16 %v6585, %v6584
          %v6628 = vpack.c.b16 %v6587, %v6586
          %v6629 = vpack.c.b16 %v6589, %v6588
          %v6630 = vpack.c.b16 %v6591, %v6590
          %v6631 = vpack.c.b16 %v6593, %v6592
          %v6632 = vpack.c.b16 %v6595, %v6594
          %v6633 = vpack.c.b16 %v6597, %v6596
          %v6634 = vpack.c.b16 %v6599, %v6598
          %v6635 = vpack.c.b16 %v6601, %v6600
          %v6636 = vpack.c.b16 %v6603, %v6602
          %v6637 = vpack.c.b16 %v6605, %v6604
          %v6638 = vpack.c.b16 %v6607, %v6606
          %v6639 = vpack.c.b16 %v6609, %v6608
          %v6640 = vpack.c.b16 %v6611, %v6610
          %v6641 = vpack.c.b16 %v6613, %v6612
          %v6642 = vpack.c.b16 %v6615, %v6614
          %v6643 = vpack.c.b16 %v6617, %v6616
          %v6644 = vpack.c.b16 %v6619, %v6618
          %v6645 = vpack.c.b16 %v6621, %v6620
          %6670 = vmatprep.subr.bf16.mxu0 0
          %6671 = vmatpush1.bf16.msra.mxu0 %v6622
          %6672 = vmatprep.subr.bf16.mxu0 0
          %6673 = vmatpush1.bf16.msra.mxu0 %v6623
          %6674 = vmatprep.subr.bf16.mxu0 0
          %6675 = vmatpush1.bf16.msra.mxu0 %v6624
          %6676 = vmatprep.subr.bf16.mxu0 0
          %6677 = vmatpush1.bf16.msra.mxu0 %v6625
          %6678 = vmatprep.subr.bf16.mxu0 0
          %6679 = vmatpush1.bf16.msra.mxu0 %v6626
          %6680 = vmatprep.subr.bf16.mxu0 0
          %6681 = vmatpush1.bf16.msra.mxu0 %v6627
          %6682 = vmatprep.subr.bf16.mxu0 0
          %6683 = vmatpush1.bf16.msra.mxu0 %v6628
          %6684 = vmatprep.subr.bf16.mxu0 0
          %6685 = vmatpush1.bf16.msra.mxu0 %v6629
          %6686 = vmatprep.subr.bf16.mxu0 0
          %6687 = vmatpush1.bf16.msra.mxu0 %v6630
          %6688 = vmatprep.subr.bf16.mxu0 0
          %6689 = vmatpush1.bf16.msra.mxu0 %v6631
          %6690 = vmatprep.subr.bf16.mxu0 0
          %6691 = vmatpush1.bf16.msra.mxu0 %v6632
          %6692 = vmatprep.subr.bf16.mxu0 0
          %6693 = vmatpush1.bf16.msra.mxu0 %v6633
          %6694 = vmatprep.subr.bf16.mxu0 0
          %6695 = vmatpush1.bf16.msra.mxu0 %v6634
          %6696 = vmatprep.subr.bf16.mxu0 0
          %6697 = vmatpush1.bf16.msra.mxu0 %v6635
          %6698 = vmatprep.subr.bf16.mxu0 0
          %6699 = vmatpush1.bf16.msra.mxu0 %v6636
          %6700 = vmatprep.subr.bf16.mxu0 0
          %6701 = vmatpush1.bf16.msra.mxu0 %v6637
          %6702 = vmatprep.mubr.bf16.mxu0 %v6469
          %6703 = vmatmul.mubr.bf16.gmra.mrb[0].mxu0 %v6468
          %v6704 = vpop.f32.mrb[0].mxu0
          %v6705 = vadd.f32 %v6524, %v6704
          %v6706 = vpop.f32.mrb[0].mxu0
          %v6707 = vpop.f32.mrb[0].mxu0
          %v6708 = vpop.f32.mrb[0].mxu0
          %6709 = vdwg.mxu0
          %6710 = vmatprep.subr.bf16.mxu0 0
          %6711 = vmatpush1.bf16.msra.mxu0 %v6638
          %6712 = vmatprep.subr.bf16.mxu0 0
          %6713 = vmatpush1.bf16.msra.mxu0 %v6639
          %6714 = vmatprep.subr.bf16.mxu0 0
          %6715 = vmatpush1.bf16.msra.mxu0 %v6640
          %6716 = vmatprep.subr.bf16.mxu0 0
          %6717 = vmatpush1.bf16.msra.mxu0 %v6641
          %6718 = vmatprep.subr.bf16.mxu0 0
          %6719 = vmatpush1.bf16.msra.mxu0 %v6642
          %6720 = vmatprep.subr.bf16.mxu0 0
          %6721 = vmatpush1.bf16.msra.mxu0 %v6643
          %6722 = vmatprep.subr.bf16.mxu0 0
          %6723 = vmatpush1.bf16.msra.mxu0 %v6644
          %6724 = vmatprep.subr.bf16.mxu0 0
          %6725 = vmatpush1.bf16.msra.mxu0 %v6645
          %6726 = vmatprep.subr.bf16.mxu0 0
          %6727 = vmatpush1.bf16.msra.mxu0 0
          %6728 = vmatprep.subr.bf16.mxu0 0
          %6729 = vmatpush1.bf16.msra.mxu0 0
          %6730 = vmatprep.subr.bf16.mxu0 0
          %6731 = vmatpush1.bf16.msra.mxu0 0
          %6732 = vmatprep.subr.bf16.mxu0 0
          %6733 = vmatpush1.bf16.msra.mxu0 0
          %6734 = vmatprep.subr.bf16.mxu0 0
          %6735 = vmatpush1.bf16.msra.mxu0 0
          %6736 = vmatprep.subr.bf16.mxu0 0
          %6737 = vmatpush1.bf16.msra.mxu0 0
          %6738 = vmatprep.subr.bf16.mxu0 0
          %6739 = vmatpush1.bf16.msra.mxu0 0
          %6740 = vmatprep.subr.bf16.mxu0 0
          %6741 = vmatpush1.bf16.msra.mxu0 0
          %6742 = vmatprep.mubr.bf16.mxu0 0
          %6743 = vmatmul.mubr.bf16.gmra.mrb[0].mxu0 %v6470
          %v6744 = vpop.f32.mrb[0].mxu0
          %v6745 = vadd.f32 %v6705, %v6744
          %v6746 = vpop.f32.mrb[0].mxu0
          %v6747 = vpop.f32.mrb[0].mxu0
          %v6748 = vpop.f32.mrb[0].mxu0
          %6749 = vdwg.mxu0
          %v6750 = vlaneseq
          %v6751 = vand.u32 %v6750, 127
          %vm6752 = vcmp.eq.s32.totalorder %v6751, 1
          %v6753 = vxor.u32 %v6745, 2147483648
          %v6754 = vmul.f32 %v6753, 1.442695
          %v6755 = vpow.pop %v6754
          %v6756 = vadd.f32 %v6755, 1.0
          %v6757 = vrcp.pop %v6756
          %v6758 = vmul.f32 1.0, %v6757
          %v6759 = vsel %vm6752, %v6758, %v6745
          %6760 = vst [vmem:[%s18] sm:$0x3] %v6759
        $region152: #{molformer_forward.1} parent=83 // pred_fallthru
          _
        // Predicated region
        $region153: #{molformer_forward.1} parent=83 // pred_check
          %p6761 = pneg %p439
        $region154: #{molformer_forward.1} parent=83 // pred_check_branch
          %6763 = sbr.rel (%p6761) target = $region156
        $region155: #{molformer_forward.1} parent=83 // pred_region
          %s6765 = ssub.s32 512, 512
          %6766 = vsyncadd [#allocation5], %s6765
          %s6767 = sshll.u32 [#allocation27], 4
          %s6768 = int_to_ptr.vmem [resolvable:$true] %s6767
          %6773 = dma.vmem_to_hbm [thread:$0]  %s6768, 512, %s16, [#allocation5], 128, 128, 8
        $region156: #{molformer_forward.1} parent=83 // pred_fallthru
          _
        // Predicated region
        $region157: #{molformer_forward.1} parent=83 // pred_check
          %p6774 = pneg %p460
        $region158: #{molformer_forward.1} parent=83 // pred_check_branch
          %6776 = sbr.rel (%p6774) target = $region160
        $region159: #{molformer_forward.1} parent=83 // pred_region
          %s6778 = ssub.s32 1024, 1024
          %6779 = vsyncadd [#allocation29], %s6778
          %s6780 = sshll.u32 [#allocation28], 4
          %s6781 = int_to_ptr.vmem [resolvable:$true] %s6780
          %6786 = dma.vmem_to_hbm [thread:$0]  %s6781, 1024, %s17, [#allocation29], 256, 256, 16
        $region160: #{molformer_forward.1} parent=83 // pred_fallthru
          _
        // Predicated region
        $region161: #{molformer_forward.1} parent=83 // pred_check
          %p6787 = pneg %p481
        $region162: #{molformer_forward.1} parent=83 // pred_check_branch
          %6789 = sbr.rel (%p6787) target = $region164
        $region163: #{molformer_forward.1} parent=83 // pred_region
          _
        $region164: #{molformer_forward.1} parent=83 // pred_fallthru
          _
        // Predicated region
        $region165: #{molformer_forward.1} parent=83 // pred_check
          %p6790 = pneg %p439
        $region166: #{molformer_forward.1} parent=83 // pred_check_branch
          %6792 = sbr.rel (%p6790) target = $region168
        $region167: #{molformer_forward.1} parent=83 // pred_region
          %6793 = dma.done [#allocation5], 512
        $region168: #{molformer_forward.1} parent=83 // pred_fallthru
          _
        // Predicated region
        $region169: #{molformer_forward.1} parent=83 // pred_check
          %p6794 = pneg %p460
        $region170: #{molformer_forward.1} parent=83 // pred_check_branch
          %6796 = sbr.rel (%p6794) target = $region172
        $region171: #{molformer_forward.1} parent=83 // pred_region
          %6797 = dma.done [#allocation29], 1024
        $region172: #{molformer_forward.1} parent=83 // pred_fallthru
          _
        // Predicated region
        $region173: #{molformer_forward.1} parent=83 // pred_check
          %p6798 = pneg %p481
        $region174: #{molformer_forward.1} parent=83 // pred_check_branch
          %6800 = sbr.rel (%p6798) target = $region176
        $region175: #{molformer_forward.1} parent=83 // pred_region
          _
        $region176: #{molformer_forward.1} parent=83 // pred_fallthru
          _
      $region84: #{molformer_forward.1} parent=5 // pred_fallthru
        _
      %p6801 = scmp.le.s32.totalorder 2, %s45
      // Predicated region
      $region177: #{molformer_forward.1} parent=5 // pred_check
        %p6802 = pneg %p6801
      $region178: #{molformer_forward.1} parent=5 // pred_check_branch
        %6804 = sbr.rel (%p6802) target = $region180
      $region179: #{molformer_forward.1} parent=5 // pred_region
        %s6805 = ssub.s32 %s45, 2
      $region180: #{molformer_forward.1} parent=5 // pred_fallthru
        _
    $region6: #{molformer_forward.1} parent=1 // loop_footer
      %s49 = sadd.s32 1, %s45
    $region7: #{molformer_forward.1} parent=1 // loop_footer_branch
      %44 = sbr.rel target = $region3
    $region8: #{molformer_forward.1} parent=1 // loop_exit
      _
    %6806 = vsyncpa [#allocation4], 1
    %s6807 = scalar_lea.sflag [#allocation4], 1
    %6808 = vsyncpa %s6807, 1
    %6809 = vsyncpa [#allocation7], 1
    %s6810 = scalar_lea.sflag [#allocation7], 1
    %6811 = vsyncpa %s6810, 1
    %6812 = vsyncpa [#allocation10], 1
    %s6813 = scalar_lea.sflag [#allocation10], 1
    %6814 = vsyncpa %s6813, 1
    %6815 = vsyncpa [#allocation13], 1
    %s6816 = scalar_lea.sflag [#allocation13], 1
    %6817 = vsyncpa %s6816, 1
    %6818 = vsyncpa [#allocation16], 1
    %s6819 = scalar_lea.sflag [#allocation16], 1
    %6820 = vsyncpa %s6819, 1
    %6821 = vsyncpa [#allocation19], 1
    %6822 = vsyncpa [#allocation22], 1
    %6823 = vsyncpa [#allocation25], 1
    %6824 = vsyncpa [#allocation5], 1
    %s6825 = scalar_lea.sflag [#allocation5], 1
    %6826 = vsyncpa %s6825, 1
    %6827 = vsyncpa [#allocation29], 1

</llo_original>
